<compile_context>
chip_gen: v6e
topology: v6e:2x2x1
jax: 0.10.0
libtpu: 0.0.40
codegen_flags: <defaults>
</compile_context>

<pallas_src>
import functools

import jax
import jax.numpy as jnp
import numpy as np
from jax import lax
from jax.experimental import pallas as pl
from jax.experimental.pallas import tpu as pltpu


def _round_up(x, m):
    return (x + m - 1) // m * m


# ----------------------------------------------------------------------------
# Fused per-image kernel: conv1+pool -> conv2+pool -> fc1 -> fc2, all in VMEM.
# ----------------------------------------------------------------------------
def _fused_cnn_kernel(p1_ref, w1_ref, b1_ref, w2_ref, b2_ref,
                      wf1_ref, bf1_ref, wf2_ref, bf2_ref,
                      o_ref, a1_ref, xf_ref, *,
                      WP1, HP2, WP2, KH, KW, C1, C2):
    f32 = jnp.float32
    bf16 = jnp.bfloat16

    # ---- conv1: one im2col matmul per 2x2 pool-window offset, pooled with a
    # ---- VPU max; bias + ReLU applied after the max (exact: bias uniform). --
    w1 = w1_ref[...]
    z = jnp.dot(p1_ref[0, 0], w1, preferred_element_type=f32)
    for q in range(1, 4):
        z = jnp.maximum(z, jnp.dot(p1_ref[0, q], w1, preferred_element_type=f32))
    a1 = jnp.maximum(z + b1_ref[...], 0.0)                 # (HP1*WP1, C1) f32
    a1_ref[...] = a1.astype(bf16)

    # ---- conv2 as 9 shift-matmuls (no im2col):
    # ----   z2[i*WP1 + j] += a1[(i+kh)*WP1 + (j+kw)] @ w2[kh*KW+kw]
    # ---- The row shift is a static slice of the flat a1 buffer.  Columns that
    # ---- wrap into the next image row appear only at j >= WO2, which the
    # ---- pool below never reads.  Accumulate in NG row-groups of GR rows so
    # ---- the f32 accumulators stay comfortably in vregs; offsets are the
    # ---- outer loop so each (64,128) weight block is read exactly once. ----
    NG = HP2 // 2                                          # 3 groups
    GR = 4 * WP1                                           # 60 conv2 rows/group
    b2 = b2_ref[...]
    accs = [None] * NG
    for kh in range(KH):
        for kw in range(KW):
            rhs = w2_ref[pl.ds((kh * KW + kw) * C1, C1), :]          # (C1, C2)
            for g in range(NG):
                lhs = a1_ref[pl.ds(g * GR + kh * WP1 + kw, GR), :]   # (GR, C1)
                d = jnp.dot(lhs, rhs, preferred_element_type=f32)
                accs[g] = d if accs[g] is None else accs[g] + d

    # ---- bias + ReLU + 2x2 max-pool (floor, matches MaxPool2d(2,2)) on the
    # ---- VPU, scattered directly into the flattened (h, w, c) vector. -------
    for g in range(NG):
        z2 = jnp.maximum(accs[g] + b2, 0.0)                # (GR, C2) f32
        for pr in range(2):                                # pooled rows in group
            pi = 2 * g + pr
            r0 = z2[(2 * pr) * WP1:(2 * pr) * WP1 + 2 * WP2, :]
            r1 = z2[(2 * pr + 1) * WP1:(2 * pr + 1) * WP1 + 2 * WP2, :]
            rm = jnp.maximum(r0, r1)                       # (2*WP2, C2)
            for pj in range(WP2):
                v = jnp.maximum(rm[2 * pj:2 * pj + 1, :], rm[2 * pj + 1:2 * pj + 2, :])
                xf_ref[:, pl.ds((pi * WP2 + pj) * C2, C2)] = v.astype(bf16)

    # ---- fc1 + ReLU + fc2 (output padded to 128 lanes -> lane-dense store) --
    h = jnp.dot(xf_ref[...], wf1_ref[...], preferred_element_type=f32) + bf1_ref[...]
    h = jnp.maximum(h, 0.0).astype(bf16)                   # (1, 128)
    o = jnp.dot(h, wf2_ref[...], preferred_element_type=f32) + bf2_ref[...]
    o_ref[0] = o


# ----------------------------------------------------------------------------
# Forward pass: plain-JAX glue (layout + im2col patches) around one pallas_call.
# ----------------------------------------------------------------------------
@jax.jit
def model_forward(x_nchw, params):
    x = jnp.transpose(x_nchw, (0, 2, 3, 1))                # NHWC
    N, H, W, Cin = x.shape
    KH = KW = 3
    C1, C2, DO = 64, 128, 128
    HO1, WO1 = H - KH + 1, W - KW + 1                      # conv1 output (30,30)
    HP1, WP1 = HO1 // 2, WO1 // 2                          # pooled      (15,15)
    HO2, WO2 = HP1 - KH + 1, WP1 - KW + 1                  # conv2 output (13,13)
    HP2, WP2 = HO2 // 2, WO2 // 2                          # pooled       (6, 6)

    # conv1 im2col patches grouped by pool-window offset:
    # p1[n, di*2+dj, pi*WP1+pj, (kh*KW+kw)*Cin+c] = x[n, 2pi+di+kh, 2pj+dj+kw, c]
    cols = [x[:, kh:kh + HO1, kw:kw + WO1, :] for kh in range(KH) for kw in range(KW)]
    p1 = jnp.concatenate(cols, axis=-1)                    # (N, HO1, WO1, 27)
    p1 = p1.reshape(N, HP1, 2, WP1, 2, KH * KW * Cin).transpose(0, 2, 4, 1, 3, 5)
    p1 = p1.reshape(N, 4, HP1 * WP1, KH * KW * Cin)
    k1p = _round_up(KH * KW * Cin, 8)
    p1 = jnp.pad(p1, ((0, 0), (0, 0), (0, 0), (0, k1p - KH * KW * Cin)))
    p1 = p1.astype(jnp.bfloat16)

    kernel = functools.partial(
        _fused_cnn_kernel, WP1=WP1, HP2=HP2, WP2=WP2,
        KH=KH, KW=KW, C1=C1, C2=C2)

    out = pl.pallas_call(
        kernel,
        out_shape=jax.ShapeDtypeStruct((N, 1, DO), jnp.float32),
        grid=(N,),
        in_specs=[
            pl.BlockSpec((1, 4, HP1 * WP1, k1p), lambda n: (n, 0, 0, 0)),
            pl.BlockSpec(params["w1"].shape, lambda n: (0, 0)),
            pl.BlockSpec(params["b1"].shape, lambda n: (0, 0)),
            pl.BlockSpec(params["w2"].shape, lambda n: (0, 0)),
            pl.BlockSpec(params["b2"].shape, lambda n: (0, 0)),
            pl.BlockSpec(params["wf1"].shape, lambda n: (0, 0)),
            pl.BlockSpec(params["bf1"].shape, lambda n: (0, 0)),
            pl.BlockSpec(params["wf2"].shape, lambda n: (0, 0)),
            pl.BlockSpec(params["bf2"].shape, lambda n: (0, 0)),
        ],
        out_specs=pl.BlockSpec((1, 1, DO), lambda n: (n, 0, 0)),
        scratch_shapes=[
            pltpu.VMEM((HP1 * WP1, C1), jnp.bfloat16),              # pooled conv1
            pltpu.VMEM((1, HP2 * WP2 * C2), jnp.bfloat16),          # flattened xf
        ],
        compiler_params=pltpu.CompilerParams(
            dimension_semantics=("parallel",)),
    )(p1, params["w1"], params["b1"], params["w2"], params["b2"],
      params["wf1"], params["bf1"], params["wf2"], params["bf2"])
    return out[:, 0, :10]


# ----------------------------------------------------------------------------
# Parameter prep: PyTorch-convention weights -> kernel layouts (bf16 matmuls).
# ----------------------------------------------------------------------------
def prepare_params(conv1_w, conv1_b, conv2_w, conv2_b, fc1_w, fc1_b, fc2_w, fc2_b):
    k1 = conv1_w.shape[1] * conv1_w.shape[2] * conv1_w.shape[3]       # 27
    w1 = jnp.transpose(conv1_w, (2, 3, 1, 0)).reshape(k1, 64)         # (kh,kw,c) x out
    w1 = jnp.pad(w1, ((0, _round_up(k1, 8) - k1), (0, 0))).astype(jnp.bfloat16)
    w2 = jnp.transpose(conv2_w, (2, 3, 1, 0)).reshape(9 * 64, 128).astype(jnp.bfloat16)
    # torch.flatten of NCHW orders features (c,h,w); kernel flattens (h,w,c):
    wf1 = jnp.transpose(fc1_w.reshape(128, 128, 6, 6), (2, 3, 1, 0))
    wf1 = wf1.reshape(4608, 128).astype(jnp.bfloat16)
    wf2 = jnp.pad(fc2_w.T, ((0, 0), (0, 118))).astype(jnp.bfloat16)   # (128,128)
    bf2 = jnp.pad(fc2_b, (0, 118))
    return dict(w1=w1, b1=conv1_b.reshape(1, 64).astype(jnp.float32),
                w2=w2, b2=conv2_b.reshape(1, 128).astype(jnp.float32),
                wf1=wf1, bf1=fc1_b.reshape(1, 128).astype(jnp.float32),
                wf2=wf2, bf2=bf2.reshape(1, 128).astype(jnp.float32))


# Pure-JAX f32 reference that mirrors the PyTorch module exactly (NCHW/OIHW).
def ref_forward(x_nchw, tp):
    def conv(x, w, b):
        y = lax.conv_general_dilated(x, w, (1, 1), "VALID",
                                     dimension_numbers=("NCHW", "OIHW", "NCHW"))
        return jnp.maximum(y + b.reshape(1, -1, 1, 1), 0.0)

    def pool(x):
        return lax.reduce_window(x, -jnp.inf, lax.max,
                                 (1, 1, 2, 2), (1, 1, 2, 2), "VALID")

    y = pool(conv(x_nchw, tp["conv1_w"], tp["conv1_b"]))
    y = pool(conv(y, tp["conv2_w"], tp["conv2_b"]))
    xf = y.reshape(y.shape[0], -1)
    h = jnp.maximum(xf @ tp["fc1_w"].T + tp["fc1_b"], 0.0)
    return h @ tp["fc2_w"].T + tp["fc2_b"]


if __name__ == "__main__":
    key = jax.random.PRNGKey(0)
    ks = jax.random.split(key, 9)

    # Deterministic parameters in PyTorch-convention shapes
    # (Conv2d: OIHW, Linear: (out_features, in_features)).
    torch_params = dict(
        conv1_w=jax.random.normal(ks[0], (64, 3, 3, 3), jnp.float32) * 0.10,
        conv1_b=jax.random.normal(ks[1], (64,), jnp.float32) * 0.10,
        conv2_w=jax.random.normal(ks[2], (128, 64, 3, 3), jnp.float32) * 0.05,
        conv2_b=jax.random.normal(ks[3], (128,), jnp.float32) * 0.05,
        fc1_w=jax.random.normal(ks[4], (128, 4608), jnp.float32) * 0.02,
        fc1_b=jax.random.normal(ks[5], (128,), jnp.float32) * 0.02,
        fc2_w=jax.random.normal(ks[6], (10, 128), jnp.float32) * 0.05,
        fc2_b=jax.random.normal(ks[7], (10,), jnp.float32) * 0.05,
    )
    params = prepare_params(**torch_params)

    # Input in the torch module's NCHW convention: (2, 3, 32, 32).
    x_nchw = jax.random.normal(ks[8], (2, 3, 32, 32), jnp.float32)

    out = jax.block_until_ready(model_forward(x_nchw, params))
    assert out.shape == (2, 10), out.shape

    ref = jax.block_until_ready(ref_forward(x_nchw, torch_params))
    # bf16 matmul inputs (f32 accumulation) -> loosened tolerance vs f32 ref.
    np.testing.assert_allclose(np.asarray(out), np.asarray(ref),
                               rtol=5e-2, atol=5e-2)

    print("KERNEL_OK")
</pallas_src>

<mosaic_0001>
module attributes {stable_mosaic.version = 11 : i64} {
  func.func @_fused_cnn_kernel(%arg0: i32, %arg1: memref<1x4x225x32xbf16, #tpu.memory_space<vmem>>, %arg2: memref<32x64xbf16, #tpu.memory_space<vmem>>, %arg3: memref<1x64xf32, #tpu.memory_space<vmem>>, %arg4: memref<576x128xbf16, #tpu.memory_space<vmem>>, %arg5: memref<1x128xf32, #tpu.memory_space<vmem>>, %arg6: memref<4608x128xbf16, #tpu.memory_space<vmem>>, %arg7: memref<1x128xf32, #tpu.memory_space<vmem>>, %arg8: memref<128x128xbf16, #tpu.memory_space<vmem>>, %arg9: memref<1x128xf32, #tpu.memory_space<vmem>>, %arg10: memref<1x1x128xf32, #tpu.memory_space<vmem>>, %arg11: memref<225x64xbf16, #tpu.memory_space<vmem>>, %arg12: memref<1x4608xbf16, #tpu.memory_space<vmem>>) attributes {dimension_semantics = [#tpu.dimension_semantics<parallel>], iteration_bounds = array<i64: 2>, scalar_prefetch = 0 : i64, scratch_operands = 2 : i64, tpu.core_type = #tpu.core_type<tc>, window_params = [{transform_indices = @transform_0, window_bounds = array<i64: 1, 4, 225, 32>}, {pipeline_mode = #tpu.pipeline_mode<synchronous>, transform_indices = @transform_1, window_bounds = array<i64: 32, 64>}, {pipeline_mode = #tpu.pipeline_mode<synchronous>, transform_indices = @transform_2, window_bounds = array<i64: 1, 64>}, {pipeline_mode = #tpu.pipeline_mode<synchronous>, transform_indices = @transform_3, window_bounds = array<i64: 576, 128>}, {pipeline_mode = #tpu.pipeline_mode<synchronous>, transform_indices = @transform_4, window_bounds = array<i64: 1, 128>}, {pipeline_mode = #tpu.pipeline_mode<synchronous>, transform_indices = @transform_5, window_bounds = array<i64: 4608, 128>}, {pipeline_mode = #tpu.pipeline_mode<synchronous>, transform_indices = @transform_6, window_bounds = array<i64: 1, 128>}, {pipeline_mode = #tpu.pipeline_mode<synchronous>, transform_indices = @transform_7, window_bounds = array<i64: 128, 128>}, {pipeline_mode = #tpu.pipeline_mode<synchronous>, transform_indices = @transform_8, window_bounds = array<i64: 1, 128>}, {transform_indices = @transform_9, window_bounds = array<i64: 1, 1, 128>}]} {
    %c0 = arith.constant 0 : index
    %c0_0 = arith.constant 0 : index
    %0 = vector.load %arg2[%c0, %c0_0] : memref<32x64xbf16, #tpu.memory_space<vmem>>, vector<32x64xbf16>
    %c0_1 = arith.constant 0 : index
    %c0_2 = arith.constant 0 : index
    %c0_3 = arith.constant 0 : index
    %c0_4 = arith.constant 0 : index
    %1 = vector.load %arg1[%c0_1, %c0_2, %c0_3, %c0_4] : memref<1x4x225x32xbf16, #tpu.memory_space<vmem>>, vector<1x1x225x32xbf16>
    %2 = vector.shape_cast %1 : vector<1x1x225x32xbf16> to vector<225x32xbf16>
    %cst = arith.constant dense<0.000000e+00> : vector<225x64xf32>
    %3 = tpu.matmul %2, %0, %cst {dimension_numbers = #tpu.dot_dimension_numbers<[1], [0], [0], [1], [0, 0, 1, 1], [], []>} : vector<225x32xbf16>, vector<32x64xbf16>, vector<225x64xf32> -> vector<225x64xf32>
    %c0_5 = arith.constant 0 : index
    %c1 = arith.constant 1 : index
    %c0_6 = arith.constant 0 : index
    %c0_7 = arith.constant 0 : index
    %4 = vector.load %arg1[%c0_5, %c1, %c0_6, %c0_7] : memref<1x4x225x32xbf16, #tpu.memory_space<vmem>>, vector<1x1x225x32xbf16>
    %5 = vector.shape_cast %4 : vector<1x1x225x32xbf16> to vector<225x32xbf16>
    %cst_8 = arith.constant dense<0.000000e+00> : vector<225x64xf32>
    %6 = tpu.matmul %5, %0, %cst_8 {dimension_numbers = #tpu.dot_dimension_numbers<[1], [0], [0], [1], [0, 0, 1, 1], [], []>} : vector<225x32xbf16>, vector<32x64xbf16>, vector<225x64xf32> -> vector<225x64xf32>
    %7 = arith.maximumf %3, %6 : vector<225x64xf32>
    %c0_9 = arith.constant 0 : index
    %c2 = arith.constant 2 : index
    %c0_10 = arith.constant 0 : index
    %c0_11 = arith.constant 0 : index
    %8 = vector.load %arg1[%c0_9, %c2, %c0_10, %c0_11] : memref<1x4x225x32xbf16, #tpu.memory_space<vmem>>, vector<1x1x225x32xbf16>
    %9 = vector.shape_cast %8 : vector<1x1x225x32xbf16> to vector<225x32xbf16>
    %cst_12 = arith.constant dense<0.000000e+00> : vector<225x64xf32>
    %10 = tpu.matmul %9, %0, %cst_12 {dimension_numbers = #tpu.dot_dimension_numbers<[1], [0], [0], [1], [0, 0, 1, 1], [], []>} : vector<225x32xbf16>, vector<32x64xbf16>, vector<225x64xf32> -> vector<225x64xf32>
    %11 = arith.maximumf %7, %10 : vector<225x64xf32>
    %c0_13 = arith.constant 0 : index
    %c3 = arith.constant 3 : index
    %c0_14 = arith.constant 0 : index
    %c0_15 = arith.constant 0 : index
    %12 = vector.load %arg1[%c0_13, %c3, %c0_14, %c0_15] : memref<1x4x225x32xbf16, #tpu.memory_space<vmem>>, vector<1x1x225x32xbf16>
    %13 = vector.shape_cast %12 : vector<1x1x225x32xbf16> to vector<225x32xbf16>
    %cst_16 = arith.constant dense<0.000000e+00> : vector<225x64xf32>
    %14 = tpu.matmul %13, %0, %cst_16 {dimension_numbers = #tpu.dot_dimension_numbers<[1], [0], [0], [1], [0, 0, 1, 1], [], []>} : vector<225x32xbf16>, vector<32x64xbf16>, vector<225x64xf32> -> vector<225x64xf32>
    %15 = arith.maximumf %11, %14 : vector<225x64xf32>
    %c0_17 = arith.constant 0 : index
    %c0_18 = arith.constant 0 : index
    %16 = vector.load %arg3[%c0_17, %c0_18] : memref<1x64xf32, #tpu.memory_space<vmem>>, vector<1x64xf32>
    %17 = vector.broadcast %16 : vector<1x64xf32> to vector<225x64xf32>
    %18 = arith.addf %15, %17 : vector<225x64xf32>
    %cst_19 = arith.constant 0.000000e+00 : f32
    %19 = vector.broadcast %cst_19 : f32 to vector<225x64xf32>
    %20 = arith.maximumf %18, %19 : vector<225x64xf32>
    %21 = arith.truncf %20 : vector<225x64xf32> to vector<225x64xbf16>
    %c0_20 = arith.constant 0 : index
    %c0_21 = arith.constant 0 : index
    %22 = vector.load %arg11[%c0_20, %c0_21] : memref<225x64xbf16, #tpu.memory_space<vmem>>, vector<225x64xbf16>
    tpu.vector_store %arg11[%c0_20, %c0_21], %21 {strides = array<i32>} : memref<225x64xbf16, #tpu.memory_space<vmem>>, vector<225x64xbf16>,
    %c0_22 = arith.constant 0 : index
    %c0_23 = arith.constant 0 : index
    %23 = vector.load %arg5[%c0_22, %c0_23] : memref<1x128xf32, #tpu.memory_space<vmem>>, vector<1x128xf32>
    %c0_24 = arith.constant 0 : index
    %c0_25 = arith.constant 0 : index
    %24 = vector.load %arg4[%c0_24, %c0_25] : memref<576x128xbf16, #tpu.memory_space<vmem>>, vector<64x128xbf16>
    %c0_26 = arith.constant 0 : index
    %c0_27 = arith.constant 0 : index
    %25 = vector.load %arg11[%c0_26, %c0_27] : memref<225x64xbf16, #tpu.memory_space<vmem>>, vector<60x64xbf16>
    %cst_28 = arith.constant dense<0.000000e+00> : vector<60x128xf32>
    %26 = tpu.matmul %25, %24, %cst_28 {dimension_numbers = #tpu.dot_dimension_numbers<[1], [0], [0], [1], [0, 0, 1, 1], [], []>} : vector<60x64xbf16>, vector<64x128xbf16>, vector<60x128xf32> -> vector<60x128xf32>
    %c60 = arith.constant 60 : index
    %c0_29 = arith.constant 0 : index
    %27 = vector.load %arg11[%c60, %c0_29] : memref<225x64xbf16, #tpu.memory_space<vmem>>, vector<60x64xbf16>
    %cst_30 = arith.constant dense<0.000000e+00> : vector<60x128xf32>
    %28 = tpu.matmul %27, %24, %cst_30 {dimension_numbers = #tpu.dot_dimension_numbers<[1], [0], [0], [1], [0, 0, 1, 1], [], []>} : vector<60x64xbf16>, vector<64x128xbf16>, vector<60x128xf32> -> vector<60x128xf32>
    %c120 = arith.constant 120 : index
    %c0_31 = arith.constant 0 : index
    %29 = vector.load %arg11[%c120, %c0_31] : memref<225x64xbf16, #tpu.memory_space<vmem>>, vector<60x64xbf16>
    %cst_32 = arith.constant dense<0.000000e+00> : vector<60x128xf32>
    %30 = tpu.matmul %29, %24, %cst_32 {dimension_numbers = #tpu.dot_dimension_numbers<[1], [0], [0], [1], [0, 0, 1, 1], [], []>} : vector<60x64xbf16>, vector<64x128xbf16>, vector<60x128xf32> -> vector<60x128xf32>
    %c64 = arith.constant 64 : index
    %c0_33 = arith.constant 0 : index
    %31 = vector.load %arg4[%c64, %c0_33] : memref<576x128xbf16, #tpu.memory_space<vmem>>, vector<64x128xbf16>
    %c1_34 = arith.constant 1 : index
    %c0_35 = arith.constant 0 : index
    %32 = vector.load %arg11[%c1_34, %c0_35] : memref<225x64xbf16, #tpu.memory_space<vmem>>, vector<60x64xbf16>
    %cst_36 = arith.constant dense<0.000000e+00> : vector<60x128xf32>
    %33 = tpu.matmul %32, %31, %cst_36 {dimension_numbers = #tpu.dot_dimension_numbers<[1], [0], [0], [1], [0, 0, 1, 1], [], []>} : vector<60x64xbf16>, vector<64x128xbf16>, vector<60x128xf32> -> vector<60x128xf32>
    %34 = arith.addf %26, %33 : vector<60x128xf32>
    %c61 = arith.constant 61 : index
    %c0_37 = arith.constant 0 : index
    %35 = vector.load %arg11[%c61, %c0_37] : memref<225x64xbf16, #tpu.memory_space<vmem>>, vector<60x64xbf16>
    %cst_38 = arith.constant dense<0.000000e+00> : vector<60x128xf32>
    %36 = tpu.matmul %35, %31, %cst_38 {dimension_numbers = #tpu.dot_dimension_numbers<[1], [0], [0], [1], [0, 0, 1, 1], [], []>} : vector<60x64xbf16>, vector<64x128xbf16>, vector<60x128xf32> -> vector<60x128xf32>
    %37 = arith.addf %28, %36 : vector<60x128xf32>
    %c121 = arith.constant 121 : index
    %c0_39 = arith.constant 0 : index
    %38 = vector.load %arg11[%c121, %c0_39] : memref<225x64xbf16, #tpu.memory_space<vmem>>, vector<60x64xbf16>
    %cst_40 = arith.constant dense<0.000000e+00> : vector<60x128xf32>
    %39 = tpu.matmul %38, %31, %cst_40 {dimension_numbers = #tpu.dot_dimension_numbers<[1], [0], [0], [1], [0, 0, 1, 1], [], []>} : vector<60x64xbf16>, vector<64x128xbf16>, vector<60x128xf32> -> vector<60x128xf32>
    %40 = arith.addf %30, %39 : vector<60x128xf32>
    %c128 = arith.constant 128 : index
    %c0_41 = arith.constant 0 : index
    %41 = vector.load %arg4[%c128, %c0_41] : memref<576x128xbf16, #tpu.memory_space<vmem>>, vector<64x128xbf16>
    %c2_42 = arith.constant 2 : index
    %c0_43 = arith.constant 0 : index
    %42 = vector.load %arg11[%c2_42, %c0_43] : memref<225x64xbf16, #tpu.memory_space<vmem>>, vector<60x64xbf16>
    %cst_44 = arith.constant dense<0.000000e+00> : vector<60x128xf32>
    %43 = tpu.matmul %42, %41, %cst_44 {dimension_numbers = #tpu.dot_dimension_numbers<[1], [0], [0], [1], [0, 0, 1, 1], [], []>} : vector<60x64xbf16>, vector<64x128xbf16>, vector<60x128xf32> -> vector<60x128xf32>
    %44 = arith.addf %34, %43 : vector<60x128xf32>
    %c62 = arith.constant 62 : index
    %c0_45 = arith.constant 0 : index
    %45 = vector.load %arg11[%c62, %c0_45] : memref<225x64xbf16, #tpu.memory_space<vmem>>, vector<60x64xbf16>
    %cst_46 = arith.constant dense<0.000000e+00> : vector<60x128xf32>
    %46 = tpu.matmul %45, %41, %cst_46 {dimension_numbers = #tpu.dot_dimension_numbers<[1], [0], [0], [1], [0, 0, 1, 1], [], []>} : vector<60x64xbf16>, vector<64x128xbf16>, vector<60x128xf32> -> vector<60x128xf32>
    %47 = arith.addf %37, %46 : vector<60x128xf32>
    %c122 = arith.constant 122 : index
    %c0_47 = arith.constant 0 : index
    %48 = vector.load %arg11[%c122, %c0_47] : memref<225x64xbf16, #tpu.memory_space<vmem>>, vector<60x64xbf16>
    %cst_48 = arith.constant dense<0.000000e+00> : vector<60x128xf32>
    %49 = tpu.matmul %48, %41, %cst_48 {dimension_numbers = #tpu.dot_dimension_numbers<[1], [0], [0], [1], [0, 0, 1, 1], [], []>} : vector<60x64xbf16>, vector<64x128xbf16>, vector<60x128xf32> -> vector<60x128xf32>
    %50 = arith.addf %40, %49 : vector<60x128xf32>
    %c192 = arith.constant 192 : index
    %c0_49 = arith.constant 0 : index
    %51 = vector.load %arg4[%c192, %c0_49] : memref<576x128xbf16, #tpu.memory_space<vmem>>, vector<64x128xbf16>
    %c15 = arith.constant 15 : index
    %c0_50 = arith.constant 0 : index
    %52 = vector.load %arg11[%c15, %c0_50] : memref<225x64xbf16, #tpu.memory_space<vmem>>, vector<60x64xbf16>
    %cst_51 = arith.constant dense<0.000000e+00> : vector<60x128xf32>
    %53 = tpu.matmul %52, %51, %cst_51 {dimension_numbers = #tpu.dot_dimension_numbers<[1], [0], [0], [1], [0, 0, 1, 1], [], []>} : vector<60x64xbf16>, vector<64x128xbf16>, vector<60x128xf32> -> vector<60x128xf32>
    %54 = arith.addf %44, %53 : vector<60x128xf32>
    %c75 = arith.constant 75 : index
    %c0_52 = arith.constant 0 : index
    %55 = vector.load %arg11[%c75, %c0_52] : memref<225x64xbf16, #tpu.memory_space<vmem>>, vector<60x64xbf16>
    %cst_53 = arith.constant dense<0.000000e+00> : vector<60x128xf32>
    %56 = tpu.matmul %55, %51, %cst_53 {dimension_numbers = #tpu.dot_dimension_numbers<[1], [0], [0], [1], [0, 0, 1, 1], [], []>} : vector<60x64xbf16>, vector<64x128xbf16>, vector<60x128xf32> -> vector<60x128xf32>
    %57 = arith.addf %47, %56 : vector<60x128xf32>
    %c135 = arith.constant 135 : index
    %c0_54 = arith.constant 0 : index
    %58 = vector.load %arg11[%c135, %c0_54] : memref<225x64xbf16, #tpu.memory_space<vmem>>, vector<60x64xbf16>
    %cst_55 = arith.constant dense<0.000000e+00> : vector<60x128xf32>
    %59 = tpu.matmul %58, %51, %cst_55 {dimension_numbers = #tpu.dot_dimension_numbers<[1], [0], [0], [1], [0, 0, 1, 1], [], []>} : vector<60x64xbf16>, vector<64x128xbf16>, vector<60x128xf32> -> vector<60x128xf32>
    %60 = arith.addf %50, %59 : vector<60x128xf32>
    %c256 = arith.constant 256 : index
    %c0_56 = arith.constant 0 : index
    %61 = vector.load %arg4[%c256, %c0_56] : memref<576x128xbf16, #tpu.memory_space<vmem>>, vector<64x128xbf16>
    %c16 = arith.constant 16 : index
    %c0_57 = arith.constant 0 : index
    %62 = vector.load %arg11[%c16, %c0_57] : memref<225x64xbf16, #tpu.memory_space<vmem>>, vector<60x64xbf16>
    %cst_58 = arith.constant dense<0.000000e+00> : vector<60x128xf32>
    %63 = tpu.matmul %62, %61, %cst_58 {dimension_numbers = #tpu.dot_dimension_numbers<[1], [0], [0], [1], [0, 0, 1, 1], [], []>} : vector<60x64xbf16>, vector<64x128xbf16>, vector<60x128xf32> -> vector<60x128xf32>
    %64 = arith.addf %54, %63 : vector<60x128xf32>
    %c76 = arith.constant 76 : index
    %c0_59 = arith.constant 0 : index
    %65 = vector.load %arg11[%c76, %c0_59] : memref<225x64xbf16, #tpu.memory_space<vmem>>, vector<60x64xbf16>
    %cst_60 = arith.constant dense<0.000000e+00> : vector<60x128xf32>
    %66 = tpu.matmul %65, %61, %cst_60 {dimension_numbers = #tpu.dot_dimension_numbers<[1], [0], [0], [1], [0, 0, 1, 1], [], []>} : vector<60x64xbf16>, vector<64x128xbf16>, vector<60x128xf32> -> vector<60x128xf32>
    %67 = arith.addf %57, %66 : vector<60x128xf32>
    %c136 = arith.constant 136 : index
    %c0_61 = arith.constant 0 : index
    %68 = vector.load %arg11[%c136, %c0_61] : memref<225x64xbf16, #tpu.memory_space<vmem>>, vector<60x64xbf16>
    %cst_62 = arith.constant dense<0.000000e+00> : vector<60x128xf32>
    %69 = tpu.matmul %68, %61, %cst_62 {dimension_numbers = #tpu.dot_dimension_numbers<[1], [0], [0], [1], [0, 0, 1, 1], [], []>} : vector<60x64xbf16>, vector<64x128xbf16>, vector<60x128xf32> -> vector<60x128xf32>
    %70 = arith.addf %60, %69 : vector<60x128xf32>
    %c320 = arith.constant 320 : index
    %c0_63 = arith.constant 0 : index
    %71 = vector.load %arg4[%c320, %c0_63] : memref<576x128xbf16, #tpu.memory_space<vmem>>, vector<64x128xbf16>
    %c17 = arith.constant 17 : index
    %c0_64 = arith.constant 0 : index
    %72 = vector.load %arg11[%c17, %c0_64] : memref<225x64xbf16, #tpu.memory_space<vmem>>, vector<60x64xbf16>
    %cst_65 = arith.constant dense<0.000000e+00> : vector<60x128xf32>
    %73 = tpu.matmul %72, %71, %cst_65 {dimension_numbers = #tpu.dot_dimension_numbers<[1], [0], [0], [1], [0, 0, 1, 1], [], []>} : vector<60x64xbf16>, vector<64x128xbf16>, vector<60x128xf32> -> vector<60x128xf32>
    %74 = arith.addf %64, %73 : vector<60x128xf32>
    %c77 = arith.constant 77 : index
    %c0_66 = arith.constant 0 : index
    %75 = vector.load %arg11[%c77, %c0_66] : memref<225x64xbf16, #tpu.memory_space<vmem>>, vector<60x64xbf16>
    %cst_67 = arith.constant dense<0.000000e+00> : vector<60x128xf32>
    %76 = tpu.matmul %75, %71, %cst_67 {dimension_numbers = #tpu.dot_dimension_numbers<[1], [0], [0], [1], [0, 0, 1, 1], [], []>} : vector<60x64xbf16>, vector<64x128xbf16>, vector<60x128xf32> -> vector<60x128xf32>
    %77 = arith.addf %67, %76 : vector<60x128xf32>
    %c137 = arith.constant 137 : index
    %c0_68 = arith.constant 0 : index
    %78 = vector.load %arg11[%c137, %c0_68] : memref<225x64xbf16, #tpu.memory_space<vmem>>, vector<60x64xbf16>
    %cst_69 = arith.constant dense<0.000000e+00> : vector<60x128xf32>
    %79 = tpu.matmul %78, %71, %cst_69 {dimension_numbers = #tpu.dot_dimension_numbers<[1], [0], [0], [1], [0, 0, 1, 1], [], []>} : vector<60x64xbf16>, vector<64x128xbf16>, vector<60x128xf32> -> vector<60x128xf32>
    %80 = arith.addf %70, %79 : vector<60x128xf32>
    %c384 = arith.constant 384 : index
    %c0_70 = arith.constant 0 : index
    %81 = vector.load %arg4[%c384, %c0_70] : memref<576x128xbf16, #tpu.memory_space<vmem>>, vector<64x128xbf16>
    %c30 = arith.constant 30 : index
    %c0_71 = arith.constant 0 : index
    %82 = vector.load %arg11[%c30, %c0_71] : memref<225x64xbf16, #tpu.memory_space<vmem>>, vector<60x64xbf16>
    %cst_72 = arith.constant dense<0.000000e+00> : vector<60x128xf32>
    %83 = tpu.matmul %82, %81, %cst_72 {dimension_numbers = #tpu.dot_dimension_numbers<[1], [0], [0], [1], [0, 0, 1, 1], [], []>} : vector<60x64xbf16>, vector<64x128xbf16>, vector<60x128xf32> -> vector<60x128xf32>
    %84 = arith.addf %74, %83 : vector<60x128xf32>
    %c90 = arith.constant 90 : index
    %c0_73 = arith.constant 0 : index
    %85 = vector.load %arg11[%c90, %c0_73] : memref<225x64xbf16, #tpu.memory_space<vmem>>, vector<60x64xbf16>
    %cst_74 = arith.constant dense<0.000000e+00> : vector<60x128xf32>
    %86 = tpu.matmul %85, %81, %cst_74 {dimension_numbers = #tpu.dot_dimension_numbers<[1], [0], [0], [1], [0, 0, 1, 1], [], []>} : vector<60x64xbf16>, vector<64x128xbf16>, vector<60x128xf32> -> vector<60x128xf32>
    %87 = arith.addf %77, %86 : vector<60x128xf32>
    %c150 = arith.constant 150 : index
    %c0_75 = arith.constant 0 : index
    %88 = vector.load %arg11[%c150, %c0_75] : memref<225x64xbf16, #tpu.memory_space<vmem>>, vector<60x64xbf16>
    %cst_76 = arith.constant dense<0.000000e+00> : vector<60x128xf32>
    %89 = tpu.matmul %88, %81, %cst_76 {dimension_numbers = #tpu.dot_dimension_numbers<[1], [0], [0], [1], [0, 0, 1, 1], [], []>} : vector<60x64xbf16>, vector<64x128xbf16>, vector<60x128xf32> -> vector<60x128xf32>
    %90 = arith.addf %80, %89 : vector<60x128xf32>
    %c448 = arith.constant 448 : index
    %c0_77 = arith.constant 0 : index
    %91 = vector.load %arg4[%c448, %c0_77] : memref<576x128xbf16, #tpu.memory_space<vmem>>, vector<64x128xbf16>
    %c31 = arith.constant 31 : index
    %c0_78 = arith.constant 0 : index
    %92 = vector.load %arg11[%c31, %c0_78] : memref<225x64xbf16, #tpu.memory_space<vmem>>, vector<60x64xbf16>
    %cst_79 = arith.constant dense<0.000000e+00> : vector<60x128xf32>
    %93 = tpu.matmul %92, %91, %cst_79 {dimension_numbers = #tpu.dot_dimension_numbers<[1], [0], [0], [1], [0, 0, 1, 1], [], []>} : vector<60x64xbf16>, vector<64x128xbf16>, vector<60x128xf32> -> vector<60x128xf32>
    %94 = arith.addf %84, %93 : vector<60x128xf32>
    %c91 = arith.constant 91 : index
    %c0_80 = arith.constant 0 : index
    %95 = vector.load %arg11[%c91, %c0_80] : memref<225x64xbf16, #tpu.memory_space<vmem>>, vector<60x64xbf16>
    %cst_81 = arith.constant dense<0.000000e+00> : vector<60x128xf32>
    %96 = tpu.matmul %95, %91, %cst_81 {dimension_numbers = #tpu.dot_dimension_numbers<[1], [0], [0], [1], [0, 0, 1, 1], [], []>} : vector<60x64xbf16>, vector<64x128xbf16>, vector<60x128xf32> -> vector<60x128xf32>
    %97 = arith.addf %87, %96 : vector<60x128xf32>
    %c151 = arith.constant 151 : index
    %c0_82 = arith.constant 0 : index
    %98 = vector.load %arg11[%c151, %c0_82] : memref<225x64xbf16, #tpu.memory_space<vmem>>, vector<60x64xbf16>
    %cst_83 = arith.constant dense<0.000000e+00> : vector<60x128xf32>
    %99 = tpu.matmul %98, %91, %cst_83 {dimension_numbers = #tpu.dot_dimension_numbers<[1], [0], [0], [1], [0, 0, 1, 1], [], []>} : vector<60x64xbf16>, vector<64x128xbf16>, vector<60x128xf32> -> vector<60x128xf32>
    %100 = arith.addf %90, %99 : vector<60x128xf32>
    %c512 = arith.constant 512 : index
    %c0_84 = arith.constant 0 : index
    %101 = vector.load %arg4[%c512, %c0_84] : memref<576x128xbf16, #tpu.memory_space<vmem>>, vector<64x128xbf16>
    %c32 = arith.constant 32 : index
    %c0_85 = arith.constant 0 : index
    %102 = vector.load %arg11[%c32, %c0_85] : memref<225x64xbf16, #tpu.memory_space<vmem>>, vector<60x64xbf16>
    %cst_86 = arith.constant dense<0.000000e+00> : vector<60x128xf32>
    %103 = tpu.matmul %102, %101, %cst_86 {dimension_numbers = #tpu.dot_dimension_numbers<[1], [0], [0], [1], [0, 0, 1, 1], [], []>} : vector<60x64xbf16>, vector<64x128xbf16>, vector<60x128xf32> -> vector<60x128xf32>
    %104 = arith.addf %94, %103 : vector<60x128xf32>
    %c92 = arith.constant 92 : index
    %c0_87 = arith.constant 0 : index
    %105 = vector.load %arg11[%c92, %c0_87] : memref<225x64xbf16, #tpu.memory_space<vmem>>, vector<60x64xbf16>
    %cst_88 = arith.constant dense<0.000000e+00> : vector<60x128xf32>
    %106 = tpu.matmul %105, %101, %cst_88 {dimension_numbers = #tpu.dot_dimension_numbers<[1], [0], [0], [1], [0, 0, 1, 1], [], []>} : vector<60x64xbf16>, vector<64x128xbf16>, vector<60x128xf32> -> vector<60x128xf32>
    %107 = arith.addf %97, %106 : vector<60x128xf32>
    %c152 = arith.constant 152 : index
    %c0_89 = arith.constant 0 : index
    %108 = vector.load %arg11[%c152, %c0_89] : memref<225x64xbf16, #tpu.memory_space<vmem>>, vector<60x64xbf16>
    %cst_90 = arith.constant dense<0.000000e+00> : vector<60x128xf32>
    %109 = tpu.matmul %108, %101, %cst_90 {dimension_numbers = #tpu.dot_dimension_numbers<[1], [0], [0], [1], [0, 0, 1, 1], [], []>} : vector<60x64xbf16>, vector<64x128xbf16>, vector<60x128xf32> -> vector<60x128xf32>
    %110 = arith.addf %100, %109 : vector<60x128xf32>
    %111 = vector.broadcast %23 : vector<1x128xf32> to vector<60x128xf32>
    %112 = arith.addf %104, %111 : vector<60x128xf32>
    %cst_91 = arith.constant 0.000000e+00 : f32
    %113 = vector.broadcast %cst_91 : f32 to vector<60x128xf32>
    %114 = arith.maximumf %112, %113 : vector<60x128xf32>
    %115 = vector.extract_strided_slice %114 {offsets = [0, 0], sizes = [12, 128], strides = [1, 1]} : vector<60x128xf32> to vector<12x128xf32>
    %116 = vector.extract_strided_slice %114 {offsets = [15, 0], sizes = [12, 128], strides = [1, 1]} : vector<60x128xf32> to vector<12x128xf32>
    %117 = arith.maximumf %115, %116 : vector<12x128xf32>
    %118 = vector.extract_strided_slice %117 {offsets = [0, 0], sizes = [1, 128], strides = [1, 1]} : vector<12x128xf32> to vector<1x128xf32>
    %119 = vector.extract_strided_slice %117 {offsets = [1, 0], sizes = [1, 128], strides = [1, 1]} : vector<12x128xf32> to vector<1x128xf32>
    %120 = arith.maximumf %118, %119 : vector<1x128xf32>
    %121 = arith.truncf %120 : vector<1x128xf32> to vector<1x128xbf16>
    %c0_92 = arith.constant 0 : index
    %c0_93 = arith.constant 0 : index
    %122 = vector.load %arg12[%c0_92, %c0_93] : memref<1x4608xbf16, #tpu.memory_space<vmem>>, vector<1x128xbf16>
    tpu.vector_store %arg12[%c0_92, %c0_93], %121 {strides = array<i32>} : memref<1x4608xbf16, #tpu.memory_space<vmem>>, vector<1x128xbf16>,
    %123 = vector.extract_strided_slice %117 {offsets = [2, 0], sizes = [1, 128], strides = [1, 1]} : vector<12x128xf32> to vector<1x128xf32>
    %124 = vector.extract_strided_slice %117 {offsets = [3, 0], sizes = [1, 128], strides = [1, 1]} : vector<12x128xf32> to vector<1x128xf32>
    %125 = arith.maximumf %123, %124 : vector<1x128xf32>
    %126 = arith.truncf %125 : vector<1x128xf32> to vector<1x128xbf16>
    %c0_94 = arith.constant 0 : index
    %c128_95 = arith.constant 128 : index
    %127 = vector.load %arg12[%c0_94, %c128_95] : memref<1x4608xbf16, #tpu.memory_space<vmem>>, vector<1x128xbf16>
    tpu.vector_store %arg12[%c0_94, %c128_95], %126 {strides = array<i32>} : memref<1x4608xbf16, #tpu.memory_space<vmem>>, vector<1x128xbf16>,
    %128 = vector.extract_strided_slice %117 {offsets = [4, 0], sizes = [1, 128], strides = [1, 1]} : vector<12x128xf32> to vector<1x128xf32>
    %129 = vector.extract_strided_slice %117 {offsets = [5, 0], sizes = [1, 128], strides = [1, 1]} : vector<12x128xf32> to vector<1x128xf32>
    %130 = arith.maximumf %128, %129 : vector<1x128xf32>
    %131 = arith.truncf %130 : vector<1x128xf32> to vector<1x128xbf16>
    %c0_96 = arith.constant 0 : index
    %c256_97 = arith.constant 256 : index
    %132 = vector.load %arg12[%c0_96, %c256_97] : memref<1x4608xbf16, #tpu.memory_space<vmem>>, vector<1x128xbf16>
    tpu.vector_store %arg12[%c0_96, %c256_97], %131 {strides = array<i32>} : memref<1x4608xbf16, #tpu.memory_space<vmem>>, vector<1x128xbf16>,
    %133 = vector.extract_strided_slice %117 {offsets = [6, 0], sizes = [1, 128], strides = [1, 1]} : vector<12x128xf32> to vector<1x128xf32>
    %134 = vector.extract_strided_slice %117 {offsets = [7, 0], sizes = [1, 128], strides = [1, 1]} : vector<12x128xf32> to vector<1x128xf32>
    %135 = arith.maximumf %133, %134 : vector<1x128xf32>
    %136 = arith.truncf %135 : vector<1x128xf32> to vector<1x128xbf16>
    %c0_98 = arith.constant 0 : index
    %c384_99 = arith.constant 384 : index
    %137 = vector.load %arg12[%c0_98, %c384_99] : memref<1x4608xbf16, #tpu.memory_space<vmem>>, vector<1x128xbf16>
    tpu.vector_store %arg12[%c0_98, %c384_99], %136 {strides = array<i32>} : memref<1x4608xbf16, #tpu.memory_space<vmem>>, vector<1x128xbf16>,
    %138 = vector.extract_strided_slice %117 {offsets = [8, 0], sizes = [1, 128], strides = [1, 1]} : vector<12x128xf32> to vector<1x128xf32>
    %139 = vector.extract_strided_slice %117 {offsets = [9, 0], sizes = [1, 128], strides = [1, 1]} : vector<12x128xf32> to vector<1x128xf32>
    %140 = arith.maximumf %138, %139 : vector<1x128xf32>
    %141 = arith.truncf %140 : vector<1x128xf32> to vector<1x128xbf16>
    %c0_100 = arith.constant 0 : index
    %c512_101 = arith.constant 512 : index
    %142 = vector.load %arg12[%c0_100, %c512_101] : memref<1x4608xbf16, #tpu.memory_space<vmem>>, vector<1x128xbf16>
    tpu.vector_store %arg12[%c0_100, %c512_101], %141 {strides = array<i32>} : memref<1x4608xbf16, #tpu.memory_space<vmem>>, vector<1x128xbf16>,
    %143 = vector.extract_strided_slice %117 {offsets = [10, 0], sizes = [1, 128], strides = [1, 1]} : vector<12x128xf32> to vector<1x128xf32>
    %144 = vector.extract_strided_slice %117 {offsets = [11, 0], sizes = [1, 128], strides = [1, 1]} : vector<12x128xf32> to vector<1x128xf32>
    %145 = arith.maximumf %143, %144 : vector<1x128xf32>
    %146 = arith.truncf %145 : vector<1x128xf32> to vector<1x128xbf16>
    %c0_102 = arith.constant 0 : index
    %c640 = arith.constant 640 : index
    %147 = vector.load %arg12[%c0_102, %c640] : memref<1x4608xbf16, #tpu.memory_space<vmem>>, vector<1x128xbf16>
    tpu.vector_store %arg12[%c0_102, %c640], %146 {strides = array<i32>} : memref<1x4608xbf16, #tpu.memory_space<vmem>>, vector<1x128xbf16>,
    %148 = vector.extract_strided_slice %114 {offsets = [30, 0], sizes = [12, 128], strides = [1, 1]} : vector<60x128xf32> to vector<12x128xf32>
    %149 = vector.extract_strided_slice %114 {offsets = [45, 0], sizes = [12, 128], strides = [1, 1]} : vector<60x128xf32> to vector<12x128xf32>
    %150 = arith.maximumf %148, %149 : vector<12x128xf32>
    %151 = vector.extract_strided_slice %150 {offsets = [0, 0], sizes = [1, 128], strides = [1, 1]} : vector<12x128xf32> to vector<1x128xf32>
    %152 = vector.extract_strided_slice %150 {offsets = [1, 0], sizes = [1, 128], strides = [1, 1]} : vector<12x128xf32> to vector<1x128xf32>
    %153 = arith.maximumf %151, %152 : vector<1x128xf32>
    %154 = arith.truncf %153 : vector<1x128xf32> to vector<1x128xbf16>
    %c0_103 = arith.constant 0 : index
    %c768 = arith.constant 768 : index
    %155 = vector.load %arg12[%c0_103, %c768] : memref<1x4608xbf16, #tpu.memory_space<vmem>>, vector<1x128xbf16>
    tpu.vector_store %arg12[%c0_103, %c768], %154 {strides = array<i32>} : memref<1x4608xbf16, #tpu.memory_space<vmem>>, vector<1x128xbf16>,
    %156 = vector.extract_strided_slice %150 {offsets = [2, 0], sizes = [1, 128], strides = [1, 1]} : vector<12x128xf32> to vector<1x128xf32>
    %157 = vector.extract_strided_slice %150 {offsets = [3, 0], sizes = [1, 128], strides = [1, 1]} : vector<12x128xf32> to vector<1x128xf32>
    %158 = arith.maximumf %156, %157 : vector<1x128xf32>
    %159 = arith.truncf %158 : vector<1x128xf32> to vector<1x128xbf16>
    %c0_104 = arith.constant 0 : index
    %c896 = arith.constant 896 : index
    %160 = vector.load %arg12[%c0_104, %c896] : memref<1x4608xbf16, #tpu.memory_space<vmem>>, vector<1x128xbf16>
    tpu.vector_store %arg12[%c0_104, %c896], %159 {strides = array<i32>} : memref<1x4608xbf16, #tpu.memory_space<vmem>>, vector<1x128xbf16>,
    %161 = vector.extract_strided_slice %150 {offsets = [4, 0], sizes = [1, 128], strides = [1, 1]} : vector<12x128xf32> to vector<1x128xf32>
    %162 = vector.extract_strided_slice %150 {offsets = [5, 0], sizes = [1, 128], strides = [1, 1]} : vector<12x128xf32> to vector<1x128xf32>
    %163 = arith.maximumf %161, %162 : vector<1x128xf32>
    %164 = arith.truncf %163 : vector<1x128xf32> to vector<1x128xbf16>
    %c0_105 = arith.constant 0 : index
    %c1024 = arith.constant 1024 : index
    %165 = vector.load %arg12[%c0_105, %c1024] : memref<1x4608xbf16, #tpu.memory_space<vmem>>, vector<1x128xbf16>
    tpu.vector_store %arg12[%c0_105, %c1024], %164 {strides = array<i32>} : memref<1x4608xbf16, #tpu.memory_space<vmem>>, vector<1x128xbf16>,
    %166 = vector.extract_strided_slice %150 {offsets = [6, 0], sizes = [1, 128], strides = [1, 1]} : vector<12x128xf32> to vector<1x128xf32>
    %167 = vector.extract_strided_slice %150 {offsets = [7, 0], sizes = [1, 128], strides = [1, 1]} : vector<12x128xf32> to vector<1x128xf32>
    %168 = arith.maximumf %166, %167 : vector<1x128xf32>
    %169 = arith.truncf %168 : vector<1x128xf32> to vector<1x128xbf16>
    %c0_106 = arith.constant 0 : index
    %c1152 = arith.constant 1152 : index
    %170 = vector.load %arg12[%c0_106, %c1152] : memref<1x4608xbf16, #tpu.memory_space<vmem>>, vector<1x128xbf16>
    tpu.vector_store %arg12[%c0_106, %c1152], %169 {strides = array<i32>} : memref<1x4608xbf16, #tpu.memory_space<vmem>>, vector<1x128xbf16>,
    %171 = vector.extract_strided_slice %150 {offsets = [8, 0], sizes = [1, 128], strides = [1, 1]} : vector<12x128xf32> to vector<1x128xf32>
    %172 = vector.extract_strided_slice %150 {offsets = [9, 0], sizes = [1, 128], strides = [1, 1]} : vector<12x128xf32> to vector<1x128xf32>
    %173 = arith.maximumf %171, %172 : vector<1x128xf32>
    %174 = arith.truncf %173 : vector<1x128xf32> to vector<1x128xbf16>
    %c0_107 = arith.constant 0 : index
    %c1280 = arith.constant 1280 : index
    %175 = vector.load %arg12[%c0_107, %c1280] : memref<1x4608xbf16, #tpu.memory_space<vmem>>, vector<1x128xbf16>
    tpu.vector_store %arg12[%c0_107, %c1280], %174 {strides = array<i32>} : memref<1x4608xbf16, #tpu.memory_space<vmem>>, vector<1x128xbf16>,
    %176 = vector.extract_strided_slice %150 {offsets = [10, 0], sizes = [1, 128], strides = [1, 1]} : vector<12x128xf32> to vector<1x128xf32>
    %177 = vector.extract_strided_slice %150 {offsets = [11, 0], sizes = [1, 128], strides = [1, 1]} : vector<12x128xf32> to vector<1x128xf32>
    %178 = arith.maximumf %176, %177 : vector<1x128xf32>
    %179 = arith.truncf %178 : vector<1x128xf32> to vector<1x128xbf16>
    %c0_108 = arith.constant 0 : index
    %c1408 = arith.constant 1408 : index
    %180 = vector.load %arg12[%c0_108, %c1408] : memref<1x4608xbf16, #tpu.memory_space<vmem>>, vector<1x128xbf16>
    tpu.vector_store %arg12[%c0_108, %c1408], %179 {strides = array<i32>} : memref<1x4608xbf16, #tpu.memory_space<vmem>>, vector<1x128xbf16>,
    %181 = vector.broadcast %23 : vector<1x128xf32> to vector<60x128xf32>
    %182 = arith.addf %107, %181 : vector<60x128xf32>
    %cst_109 = arith.constant 0.000000e+00 : f32
    %183 = vector.broadcast %cst_109 : f32 to vector<60x128xf32>
    %184 = arith.maximumf %182, %183 : vector<60x128xf32>
    %185 = vector.extract_strided_slice %184 {offsets = [0, 0], sizes = [12, 128], strides = [1, 1]} : vector<60x128xf32> to vector<12x128xf32>
    %186 = vector.extract_strided_slice %184 {offsets = [15, 0], sizes = [12, 128], strides = [1, 1]} : vector<60x128xf32> to vector<12x128xf32>
    %187 = arith.maximumf %185, %186 : vector<12x128xf32>
    %188 = vector.extract_strided_slice %187 {offsets = [0, 0], sizes = [1, 128], strides = [1, 1]} : vector<12x128xf32> to vector<1x128xf32>
    %189 = vector.extract_strided_slice %187 {offsets = [1, 0], sizes = [1, 128], strides = [1, 1]} : vector<12x128xf32> to vector<1x128xf32>
    %190 = arith.maximumf %188, %189 : vector<1x128xf32>
    %191 = arith.truncf %190 : vector<1x128xf32> to vector<1x128xbf16>
    %c0_110 = arith.constant 0 : index
    %c1536 = arith.constant 1536 : index
    %192 = vector.load %arg12[%c0_110, %c1536] : memref<1x4608xbf16, #tpu.memory_space<vmem>>, vector<1x128xbf16>
    tpu.vector_store %arg12[%c0_110, %c1536], %191 {strides = array<i32>} : memref<1x4608xbf16, #tpu.memory_space<vmem>>, vector<1x128xbf16>,
    %193 = vector.extract_strided_slice %187 {offsets = [2, 0], sizes = [1, 128], strides = [1, 1]} : vector<12x128xf32> to vector<1x128xf32>
    %194 = vector.extract_strided_slice %187 {offsets = [3, 0], sizes = [1, 128], strides = [1, 1]} : vector<12x128xf32> to vector<1x128xf32>
    %195 = arith.maximumf %193, %194 : vector<1x128xf32>
    %196 = arith.truncf %195 : vector<1x128xf32> to vector<1x128xbf16>
    %c0_111 = arith.constant 0 : index
    %c1664 = arith.constant 1664 : index
    %197 = vector.load %arg12[%c0_111, %c1664] : memref<1x4608xbf16, #tpu.memory_space<vmem>>, vector<1x128xbf16>
    tpu.vector_store %arg12[%c0_111, %c1664], %196 {strides = array<i32>} : memref<1x4608xbf16, #tpu.memory_space<vmem>>, vector<1x128xbf16>,
    %198 = vector.extract_strided_slice %187 {offsets = [4, 0], sizes = [1, 128], strides = [1, 1]} : vector<12x128xf32> to vector<1x128xf32>
    %199 = vector.extract_strided_slice %187 {offsets = [5, 0], sizes = [1, 128], strides = [1, 1]} : vector<12x128xf32> to vector<1x128xf32>
    %200 = arith.maximumf %198, %199 : vector<1x128xf32>
    %201 = arith.truncf %200 : vector<1x128xf32> to vector<1x128xbf16>
    %c0_112 = arith.constant 0 : index
    %c1792 = arith.constant 1792 : index
    %202 = vector.load %arg12[%c0_112, %c1792] : memref<1x4608xbf16, #tpu.memory_space<vmem>>, vector<1x128xbf16>
    tpu.vector_store %arg12[%c0_112, %c1792], %201 {strides = array<i32>} : memref<1x4608xbf16, #tpu.memory_space<vmem>>, vector<1x128xbf16>,
    %203 = vector.extract_strided_slice %187 {offsets = [6, 0], sizes = [1, 128], strides = [1, 1]} : vector<12x128xf32> to vector<1x128xf32>
    %204 = vector.extract_strided_slice %187 {offsets = [7, 0], sizes = [1, 128], strides = [1, 1]} : vector<12x128xf32> to vector<1x128xf32>
    %205 = arith.maximumf %203, %204 : vector<1x128xf32>
    %206 = arith.truncf %205 : vector<1x128xf32> to vector<1x128xbf16>
    %c0_113 = arith.constant 0 : index
    %c1920 = arith.constant 1920 : index
    %207 = vector.load %arg12[%c0_113, %c1920] : memref<1x4608xbf16, #tpu.memory_space<vmem>>, vector<1x128xbf16>
    tpu.vector_store %arg12[%c0_113, %c1920], %206 {strides = array<i32>} : memref<1x4608xbf16, #tpu.memory_space<vmem>>, vector<1x128xbf16>,
    %208 = vector.extract_strided_slice %187 {offsets = [8, 0], sizes = [1, 128], strides = [1, 1]} : vector<12x128xf32> to vector<1x128xf32>
    %209 = vector.extract_strided_slice %187 {offsets = [9, 0], sizes = [1, 128], strides = [1, 1]} : vector<12x128xf32> to vector<1x128xf32>
    %210 = arith.maximumf %208, %209 : vector<1x128xf32>
    %211 = arith.truncf %210 : vector<1x128xf32> to vector<1x128xbf16>
    %c0_114 = arith.constant 0 : index
    %c2048 = arith.constant 2048 : index
    %212 = vector.load %arg12[%c0_114, %c2048] : memref<1x4608xbf16, #tpu.memory_space<vmem>>, vector<1x128xbf16>
    tpu.vector_store %arg12[%c0_114, %c2048], %211 {strides = array<i32>} : memref<1x4608xbf16, #tpu.memory_space<vmem>>, vector<1x128xbf16>,
    %213 = vector.extract_strided_slice %187 {offsets = [10, 0], sizes = [1, 128], strides = [1, 1]} : vector<12x128xf32> to vector<1x128xf32>
    %214 = vector.extract_strided_slice %187 {offsets = [11, 0], sizes = [1, 128], strides = [1, 1]} : vector<12x128xf32> to vector<1x128xf32>
    %215 = arith.maximumf %213, %214 : vector<1x128xf32>
    %216 = arith.truncf %215 : vector<1x128xf32> to vector<1x128xbf16>
    %c0_115 = arith.constant 0 : index
    %c2176 = arith.constant 2176 : index
    %217 = vector.load %arg12[%c0_115, %c2176] : memref<1x4608xbf16, #tpu.memory_space<vmem>>, vector<1x128xbf16>
    tpu.vector_store %arg12[%c0_115, %c2176], %216 {strides = array<i32>} : memref<1x4608xbf16, #tpu.memory_space<vmem>>, vector<1x128xbf16>,
    %218 = vector.extract_strided_slice %184 {offsets = [30, 0], sizes = [12, 128], strides = [1, 1]} : vector<60x128xf32> to vector<12x128xf32>
    %219 = vector.extract_strided_slice %184 {offsets = [45, 0], sizes = [12, 128], strides = [1, 1]} : vector<60x128xf32> to vector<12x128xf32>
    %220 = arith.maximumf %218, %219 : vector<12x128xf32>
    %221 = vector.extract_strided_slice %220 {offsets = [0, 0], sizes = [1, 128], strides = [1, 1]} : vector<12x128xf32> to vector<1x128xf32>
    %222 = vector.extract_strided_slice %220 {offsets = [1, 0], sizes = [1, 128], strides = [1, 1]} : vector<12x128xf32> to vector<1x128xf32>
    %223 = arith.maximumf %221, %222 : vector<1x128xf32>
    %224 = arith.truncf %223 : vector<1x128xf32> to vector<1x128xbf16>
    %c0_116 = arith.constant 0 : index
    %c2304 = arith.constant 2304 : index
    %225 = vector.load %arg12[%c0_116, %c2304] : memref<1x4608xbf16, #tpu.memory_space<vmem>>, vector<1x128xbf16>
    tpu.vector_store %arg12[%c0_116, %c2304], %224 {strides = array<i32>} : memref<1x4608xbf16, #tpu.memory_space<vmem>>, vector<1x128xbf16>,
    %226 = vector.extract_strided_slice %220 {offsets = [2, 0], sizes = [1, 128], strides = [1, 1]} : vector<12x128xf32> to vector<1x128xf32>
    %227 = vector.extract_strided_slice %220 {offsets = [3, 0], sizes = [1, 128], strides = [1, 1]} : vector<12x128xf32> to vector<1x128xf32>
    %228 = arith.maximumf %226, %227 : vector<1x128xf32>
    %229 = arith.truncf %228 : vector<1x128xf32> to vector<1x128xbf16>
    %c0_117 = arith.constant 0 : index
    %c2432 = arith.constant 2432 : index
    %230 = vector.load %arg12[%c0_117, %c2432] : memref<1x4608xbf16, #tpu.memory_space<vmem>>, vector<1x128xbf16>
    tpu.vector_store %arg12[%c0_117, %c2432], %229 {strides = array<i32>} : memref<1x4608xbf16, #tpu.memory_space<vmem>>, vector<1x128xbf16>,
    %231 = vector.extract_strided_slice %220 {offsets = [4, 0], sizes = [1, 128], strides = [1, 1]} : vector<12x128xf32> to vector<1x128xf32>
    %232 = vector.extract_strided_slice %220 {offsets = [5, 0], sizes = [1, 128], strides = [1, 1]} : vector<12x128xf32> to vector<1x128xf32>
    %233 = arith.maximumf %231, %232 : vector<1x128xf32>
    %234 = arith.truncf %233 : vector<1x128xf32> to vector<1x128xbf16>
    %c0_118 = arith.constant 0 : index
    %c2560 = arith.constant 2560 : index
    %235 = vector.load %arg12[%c0_118, %c2560] : memref<1x4608xbf16, #tpu.memory_space<vmem>>, vector<1x128xbf16>
    tpu.vector_store %arg12[%c0_118, %c2560], %234 {strides = array<i32>} : memref<1x4608xbf16, #tpu.memory_space<vmem>>, vector<1x128xbf16>,
    %236 = vector.extract_strided_slice %220 {offsets = [6, 0], sizes = [1, 128], strides = [1, 1]} : vector<12x128xf32> to vector<1x128xf32>
    %237 = vector.extract_strided_slice %220 {offsets = [7, 0], sizes = [1, 128], strides = [1, 1]} : vector<12x128xf32> to vector<1x128xf32>
    %238 = arith.maximumf %236, %237 : vector<1x128xf32>
    %239 = arith.truncf %238 : vector<1x128xf32> to vector<1x128xbf16>
    %c0_119 = arith.constant 0 : index
    %c2688 = arith.constant 2688 : index
    %240 = vector.load %arg12[%c0_119, %c2688] : memref<1x4608xbf16, #tpu.memory_space<vmem>>, vector<1x128xbf16>
    tpu.vector_store %arg12[%c0_119, %c2688], %239 {strides = array<i32>} : memref<1x4608xbf16, #tpu.memory_space<vmem>>, vector<1x128xbf16>,
    %241 = vector.extract_strided_slice %220 {offsets = [8, 0], sizes = [1, 128], strides = [1, 1]} : vector<12x128xf32> to vector<1x128xf32>
    %242 = vector.extract_strided_slice %220 {offsets = [9, 0], sizes = [1, 128], strides = [1, 1]} : vector<12x128xf32> to vector<1x128xf32>
    %243 = arith.maximumf %241, %242 : vector<1x128xf32>
    %244 = arith.truncf %243 : vector<1x128xf32> to vector<1x128xbf16>
    %c0_120 = arith.constant 0 : index
    %c2816 = arith.constant 2816 : index
    %245 = vector.load %arg12[%c0_120, %c2816] : memref<1x4608xbf16, #tpu.memory_space<vmem>>, vector<1x128xbf16>
    tpu.vector_store %arg12[%c0_120, %c2816], %244 {strides = array<i32>} : memref<1x4608xbf16, #tpu.memory_space<vmem>>, vector<1x128xbf16>,
    %246 = vector.extract_strided_slice %220 {offsets = [10, 0], sizes = [1, 128], strides = [1, 1]} : vector<12x128xf32> to vector<1x128xf32>
    %247 = vector.extract_strided_slice %220 {offsets = [11, 0], sizes = [1, 128], strides = [1, 1]} : vector<12x128xf32> to vector<1x128xf32>
    %248 = arith.maximumf %246, %247 : vector<1x128xf32>
    %249 = arith.truncf %248 : vector<1x128xf32> to vector<1x128xbf16>
    %c0_121 = arith.constant 0 : index
    %c2944 = arith.constant 2944 : index
    %250 = vector.load %arg12[%c0_121, %c2944] : memref<1x4608xbf16, #tpu.memory_space<vmem>>, vector<1x128xbf16>
    tpu.vector_store %arg12[%c0_121, %c2944], %249 {strides = array<i32>} : memref<1x4608xbf16, #tpu.memory_space<vmem>>, vector<1x128xbf16>,
    %251 = vector.broadcast %23 : vector<1x128xf32> to vector<60x128xf32>
    %252 = arith.addf %110, %251 : vector<60x128xf32>
    %cst_122 = arith.constant 0.000000e+00 : f32
    %253 = vector.broadcast %cst_122 : f32 to vector<60x128xf32>
    %254 = arith.maximumf %252, %253 : vector<60x128xf32>
    %255 = vector.extract_strided_slice %254 {offsets = [0, 0], sizes = [12, 128], strides = [1, 1]} : vector<60x128xf32> to vector<12x128xf32>
    %256 = vector.extract_strided_slice %254 {offsets = [15, 0], sizes = [12, 128], strides = [1, 1]} : vector<60x128xf32> to vector<12x128xf32>
    %257 = arith.maximumf %255, %256 : vector<12x128xf32>
    %258 = vector.extract_strided_slice %257 {offsets = [0, 0], sizes = [1, 128], strides = [1, 1]} : vector<12x128xf32> to vector<1x128xf32>
    %259 = vector.extract_strided_slice %257 {offsets = [1, 0], sizes = [1, 128], strides = [1, 1]} : vector<12x128xf32> to vector<1x128xf32>
    %260 = arith.maximumf %258, %259 : vector<1x128xf32>
    %261 = arith.truncf %260 : vector<1x128xf32> to vector<1x128xbf16>
    %c0_123 = arith.constant 0 : index
    %c3072 = arith.constant 3072 : index
    %262 = vector.load %arg12[%c0_123, %c3072] : memref<1x4608xbf16, #tpu.memory_space<vmem>>, vector<1x128xbf16>
    tpu.vector_store %arg12[%c0_123, %c3072], %261 {strides = array<i32>} : memref<1x4608xbf16, #tpu.memory_space<vmem>>, vector<1x128xbf16>,
    %263 = vector.extract_strided_slice %257 {offsets = [2, 0], sizes = [1, 128], strides = [1, 1]} : vector<12x128xf32> to vector<1x128xf32>
    %264 = vector.extract_strided_slice %257 {offsets = [3, 0], sizes = [1, 128], strides = [1, 1]} : vector<12x128xf32> to vector<1x128xf32>
    %265 = arith.maximumf %263, %264 : vector<1x128xf32>
    %266 = arith.truncf %265 : vector<1x128xf32> to vector<1x128xbf16>
    %c0_124 = arith.constant 0 : index
    %c3200 = arith.constant 3200 : index
    %267 = vector.load %arg12[%c0_124, %c3200] : memref<1x4608xbf16, #tpu.memory_space<vmem>>, vector<1x128xbf16>
    tpu.vector_store %arg12[%c0_124, %c3200], %266 {strides = array<i32>} : memref<1x4608xbf16, #tpu.memory_space<vmem>>, vector<1x128xbf16>,
    %268 = vector.extract_strided_slice %257 {offsets = [4, 0], sizes = [1, 128], strides = [1, 1]} : vector<12x128xf32> to vector<1x128xf32>
    %269 = vector.extract_strided_slice %257 {offsets = [5, 0], sizes = [1, 128], strides = [1, 1]} : vector<12x128xf32> to vector<1x128xf32>
    %270 = arith.maximumf %268, %269 : vector<1x128xf32>
    %271 = arith.truncf %270 : vector<1x128xf32> to vector<1x128xbf16>
    %c0_125 = arith.constant 0 : index
    %c3328 = arith.constant 3328 : index
    %272 = vector.load %arg12[%c0_125, %c3328] : memref<1x4608xbf16, #tpu.memory_space<vmem>>, vector<1x128xbf16>
    tpu.vector_store %arg12[%c0_125, %c3328], %271 {strides = array<i32>} : memref<1x4608xbf16, #tpu.memory_space<vmem>>, vector<1x128xbf16>,
    %273 = vector.extract_strided_slice %257 {offsets = [6, 0], sizes = [1, 128], strides = [1, 1]} : vector<12x128xf32> to vector<1x128xf32>
    %274 = vector.extract_strided_slice %257 {offsets = [7, 0], sizes = [1, 128], strides = [1, 1]} : vector<12x128xf32> to vector<1x128xf32>
    %275 = arith.maximumf %273, %274 : vector<1x128xf32>
    %276 = arith.truncf %275 : vector<1x128xf32> to vector<1x128xbf16>
    %c0_126 = arith.constant 0 : index
    %c3456 = arith.constant 3456 : index
    %277 = vector.load %arg12[%c0_126, %c3456] : memref<1x4608xbf16, #tpu.memory_space<vmem>>, vector<1x128xbf16>
    tpu.vector_store %arg12[%c0_126, %c3456], %276 {strides = array<i32>} : memref<1x4608xbf16, #tpu.memory_space<vmem>>, vector<1x128xbf16>,
    %278 = vector.extract_strided_slice %257 {offsets = [8, 0], sizes = [1, 128], strides = [1, 1]} : vector<12x128xf32> to vector<1x128xf32>
    %279 = vector.extract_strided_slice %257 {offsets = [9, 0], sizes = [1, 128], strides = [1, 1]} : vector<12x128xf32> to vector<1x128xf32>
    %280 = arith.maximumf %278, %279 : vector<1x128xf32>
    %281 = arith.truncf %280 : vector<1x128xf32> to vector<1x128xbf16>
    %c0_127 = arith.constant 0 : index
    %c3584 = arith.constant 3584 : index
    %282 = vector.load %arg12[%c0_127, %c3584] : memref<1x4608xbf16, #tpu.memory_space<vmem>>, vector<1x128xbf16>
    tpu.vector_store %arg12[%c0_127, %c3584], %281 {strides = array<i32>} : memref<1x4608xbf16, #tpu.memory_space<vmem>>, vector<1x128xbf16>,
    %283 = vector.extract_strided_slice %257 {offsets = [10, 0], sizes = [1, 128], strides = [1, 1]} : vector<12x128xf32> to vector<1x128xf32>
    %284 = vector.extract_strided_slice %257 {offsets = [11, 0], sizes = [1, 128], strides = [1, 1]} : vector<12x128xf32> to vector<1x128xf32>
    %285 = arith.maximumf %283, %284 : vector<1x128xf32>
    %286 = arith.truncf %285 : vector<1x128xf32> to vector<1x128xbf16>
    %c0_128 = arith.constant 0 : index
    %c3712 = arith.constant 3712 : index
    %287 = vector.load %arg12[%c0_128, %c3712] : memref<1x4608xbf16, #tpu.memory_space<vmem>>, vector<1x128xbf16>
    tpu.vector_store %arg12[%c0_128, %c3712], %286 {strides = array<i32>} : memref<1x4608xbf16, #tpu.memory_space<vmem>>, vector<1x128xbf16>,
    %288 = vector.extract_strided_slice %254 {offsets = [30, 0], sizes = [12, 128], strides = [1, 1]} : vector<60x128xf32> to vector<12x128xf32>
    %289 = vector.extract_strided_slice %254 {offsets = [45, 0], sizes = [12, 128], strides = [1, 1]} : vector<60x128xf32> to vector<12x128xf32>
    %290 = arith.maximumf %288, %289 : vector<12x128xf32>
    %291 = vector.extract_strided_slice %290 {offsets = [0, 0], sizes = [1, 128], strides = [1, 1]} : vector<12x128xf32> to vector<1x128xf32>
    %292 = vector.extract_strided_slice %290 {offsets = [1, 0], sizes = [1, 128], strides = [1, 1]} : vector<12x128xf32> to vector<1x128xf32>
    %293 = arith.maximumf %291, %292 : vector<1x128xf32>
    %294 = arith.truncf %293 : vector<1x128xf32> to vector<1x128xbf16>
    %c0_129 = arith.constant 0 : index
    %c3840 = arith.constant 3840 : index
    %295 = vector.load %arg12[%c0_129, %c3840] : memref<1x4608xbf16, #tpu.memory_space<vmem>>, vector<1x128xbf16>
    tpu.vector_store %arg12[%c0_129, %c3840], %294 {strides = array<i32>} : memref<1x4608xbf16, #tpu.memory_space<vmem>>, vector<1x128xbf16>,
    %296 = vector.extract_strided_slice %290 {offsets = [2, 0], sizes = [1, 128], strides = [1, 1]} : vector<12x128xf32> to vector<1x128xf32>
    %297 = vector.extract_strided_slice %290 {offsets = [3, 0], sizes = [1, 128], strides = [1, 1]} : vector<12x128xf32> to vector<1x128xf32>
    %298 = arith.maximumf %296, %297 : vector<1x128xf32>
    %299 = arith.truncf %298 : vector<1x128xf32> to vector<1x128xbf16>
    %c0_130 = arith.constant 0 : index
    %c3968 = arith.constant 3968 : index
    %300 = vector.load %arg12[%c0_130, %c3968] : memref<1x4608xbf16, #tpu.memory_space<vmem>>, vector<1x128xbf16>
    tpu.vector_store %arg12[%c0_130, %c3968], %299 {strides = array<i32>} : memref<1x4608xbf16, #tpu.memory_space<vmem>>, vector<1x128xbf16>,
    %301 = vector.extract_strided_slice %290 {offsets = [4, 0], sizes = [1, 128], strides = [1, 1]} : vector<12x128xf32> to vector<1x128xf32>
    %302 = vector.extract_strided_slice %290 {offsets = [5, 0], sizes = [1, 128], strides = [1, 1]} : vector<12x128xf32> to vector<1x128xf32>
    %303 = arith.maximumf %301, %302 : vector<1x128xf32>
    %304 = arith.truncf %303 : vector<1x128xf32> to vector<1x128xbf16>
    %c0_131 = arith.constant 0 : index
    %c4096 = arith.constant 4096 : index
    %305 = vector.load %arg12[%c0_131, %c4096] : memref<1x4608xbf16, #tpu.memory_space<vmem>>, vector<1x128xbf16>
    tpu.vector_store %arg12[%c0_131, %c4096], %304 {strides = array<i32>} : memref<1x4608xbf16, #tpu.memory_space<vmem>>, vector<1x128xbf16>,
    %306 = vector.extract_strided_slice %290 {offsets = [6, 0], sizes = [1, 128], strides = [1, 1]} : vector<12x128xf32> to vector<1x128xf32>
    %307 = vector.extract_strided_slice %290 {offsets = [7, 0], sizes = [1, 128], strides = [1, 1]} : vector<12x128xf32> to vector<1x128xf32>
    %308 = arith.maximumf %306, %307 : vector<1x128xf32>
    %309 = arith.truncf %308 : vector<1x128xf32> to vector<1x128xbf16>
    %c0_132 = arith.constant 0 : index
    %c4224 = arith.constant 4224 : index
    %310 = vector.load %arg12[%c0_132, %c4224] : memref<1x4608xbf16, #tpu.memory_space<vmem>>, vector<1x128xbf16>
    tpu.vector_store %arg12[%c0_132, %c4224], %309 {strides = array<i32>} : memref<1x4608xbf16, #tpu.memory_space<vmem>>, vector<1x128xbf16>,
    %311 = vector.extract_strided_slice %290 {offsets = [8, 0], sizes = [1, 128], strides = [1, 1]} : vector<12x128xf32> to vector<1x128xf32>
    %312 = vector.extract_strided_slice %290 {offsets = [9, 0], sizes = [1, 128], strides = [1, 1]} : vector<12x128xf32> to vector<1x128xf32>
    %313 = arith.maximumf %311, %312 : vector<1x128xf32>
    %314 = arith.truncf %313 : vector<1x128xf32> to vector<1x128xbf16>
    %c0_133 = arith.constant 0 : index
    %c4352 = arith.constant 4352 : index
    %315 = vector.load %arg12[%c0_133, %c4352] : memref<1x4608xbf16, #tpu.memory_space<vmem>>, vector<1x128xbf16>
    tpu.vector_store %arg12[%c0_133, %c4352], %314 {strides = array<i32>} : memref<1x4608xbf16, #tpu.memory_space<vmem>>, vector<1x128xbf16>,
    %316 = vector.extract_strided_slice %290 {offsets = [10, 0], sizes = [1, 128], strides = [1, 1]} : vector<12x128xf32> to vector<1x128xf32>
    %317 = vector.extract_strided_slice %290 {offsets = [11, 0], sizes = [1, 128], strides = [1, 1]} : vector<12x128xf32> to vector<1x128xf32>
    %318 = arith.maximumf %316, %317 : vector<1x128xf32>
    %319 = arith.truncf %318 : vector<1x128xf32> to vector<1x128xbf16>
    %c0_134 = arith.constant 0 : index
    %c4480 = arith.constant 4480 : index
    %320 = vector.load %arg12[%c0_134, %c4480] : memref<1x4608xbf16, #tpu.memory_space<vmem>>, vector<1x128xbf16>
    tpu.vector_store %arg12[%c0_134, %c4480], %319 {strides = array<i32>} : memref<1x4608xbf16, #tpu.memory_space<vmem>>, vector<1x128xbf16>,
    %c0_135 = arith.constant 0 : index
    %c0_136 = arith.constant 0 : index
    %321 = vector.load %arg12[%c0_135, %c0_136] : memref<1x4608xbf16, #tpu.memory_space<vmem>>, vector<1x4608xbf16>
    %c0_137 = arith.constant 0 : index
    %c0_138 = arith.constant 0 : index
    %322 = vector.load %arg6[%c0_137, %c0_138] : memref<4608x128xbf16, #tpu.memory_space<vmem>>, vector<4608x128xbf16>
    %cst_139 = arith.constant dense<0.000000e+00> : vector<1x128xf32>
    %323 = tpu.matmul %321, %322, %cst_139 {dimension_numbers = #tpu.dot_dimension_numbers<[1], [0], [0], [1], [0, 0, 1, 1], [], []>} : vector<1x4608xbf16>, vector<4608x128xbf16>, vector<1x128xf32> -> vector<1x128xf32>
    %c0_140 = arith.constant 0 : index
    %c0_141 = arith.constant 0 : index
    %324 = vector.load %arg7[%c0_140, %c0_141] : memref<1x128xf32, #tpu.memory_space<vmem>>, vector<1x128xf32>
    %325 = arith.addf %323, %324 : vector<1x128xf32>
    %cst_142 = arith.constant 0.000000e+00 : f32
    %326 = vector.broadcast %cst_142 : f32 to vector<1x128xf32>
    %327 = arith.maximumf %325, %326 : vector<1x128xf32>
    %328 = arith.truncf %327 : vector<1x128xf32> to vector<1x128xbf16>
    %c0_143 = arith.constant 0 : index
    %c0_144 = arith.constant 0 : index
    %329 = vector.load %arg8[%c0_143, %c0_144] : memref<128x128xbf16, #tpu.memory_space<vmem>>, vector<128x128xbf16>
    %cst_145 = arith.constant dense<0.000000e+00> : vector<1x128xf32>
    %330 = tpu.matmul %328, %329, %cst_145 {dimension_numbers = #tpu.dot_dimension_numbers<[1], [0], [0], [1], [0, 0, 1, 1], [], []>} : vector<1x128xbf16>, vector<128x128xbf16>, vector<1x128xf32> -> vector<1x128xf32>
    %c0_146 = arith.constant 0 : index
    %c0_147 = arith.constant 0 : index
    %331 = vector.load %arg9[%c0_146, %c0_147] : memref<1x128xf32, #tpu.memory_space<vmem>>, vector<1x128xf32>
    %332 = arith.addf %330, %331 : vector<1x128xf32>
    %c0_148 = arith.constant 0 : index
    %c0_149 = arith.constant 0 : index
    %c0_150 = arith.constant 0 : index
    %333 = vector.load %arg10[%c0_148, %c0_149, %c0_150] : memref<1x1x128xf32, #tpu.memory_space<vmem>>, vector<1x1x128xf32>
    %334 = vector.shape_cast %333 : vector<1x1x128xf32> to vector<1x128xf32>
    %335 = vector.shape_cast %332 : vector<1x128xf32> to vector<1x1x128xf32>
    tpu.vector_store %arg10[%c0_148, %c0_149, %c0_150], %335 {strides = array<i32>} : memref<1x1x128xf32, #tpu.memory_space<vmem>>, vector<1x1x128xf32>,
    return
  }
  func.func @transform_0(%arg0: i32) -> (i32, i32, i32, i32) {
    %c0_i32 = arith.constant 0 : i32
    %c0_i32_0 = arith.constant 0 : i32
    %c0_i32_1 = arith.constant 0 : i32
    %c0_i32_2 = arith.constant 0 : i32
    return %arg0, %c0_i32, %c0_i32_0, %c0_i32_1 : i32, i32, i32, i32
  }
  func.func @transform_1(%arg0: i32) -> (i32, i32) {
    %c0_i32 = arith.constant 0 : i32
    %c0_i32_0 = arith.constant 0 : i32
    %c0_i32_1 = arith.constant 0 : i32
    return %c0_i32, %c0_i32_0 : i32, i32
  }
  func.func @transform_2(%arg0: i32) -> (i32, i32) {
    %c0_i32 = arith.constant 0 : i32
    %c0_i32_0 = arith.constant 0 : i32
    %c0_i32_1 = arith.constant 0 : i32
    return %c0_i32, %c0_i32_0 : i32, i32
  }
  func.func @transform_3(%arg0: i32) -> (i32, i32) {
    %c0_i32 = arith.constant 0 : i32
    %c0_i32_0 = arith.constant 0 : i32
    %c0_i32_1 = arith.constant 0 : i32
    return %c0_i32, %c0_i32_0 : i32, i32
  }
  func.func @transform_4(%arg0: i32) -> (i32, i32) {
    %c0_i32 = arith.constant 0 : i32
    %c0_i32_0 = arith.constant 0 : i32
    %c0_i32_1 = arith.constant 0 : i32
    return %c0_i32, %c0_i32_0 : i32, i32
  }
  func.func @transform_5(%arg0: i32) -> (i32, i32) {
    %c0_i32 = arith.constant 0 : i32
    %c0_i32_0 = arith.constant 0 : i32
    %c0_i32_1 = arith.constant 0 : i32
    return %c0_i32, %c0_i32_0 : i32, i32
  }
  func.func @transform_6(%arg0: i32) -> (i32, i32) {
    %c0_i32 = arith.constant 0 : i32
    %c0_i32_0 = arith.constant 0 : i32
    %c0_i32_1 = arith.constant 0 : i32
    return %c0_i32, %c0_i32_0 : i32, i32
  }
  func.func @transform_7(%arg0: i32) -> (i32, i32) {
    %c0_i32 = arith.constant 0 : i32
    %c0_i32_0 = arith.constant 0 : i32
    %c0_i32_1 = arith.constant 0 : i32
    return %c0_i32, %c0_i32_0 : i32, i32
  }
  func.func @transform_8(%arg0: i32) -> (i32, i32) {
    %c0_i32 = arith.constant 0 : i32
    %c0_i32_0 = arith.constant 0 : i32
    %c0_i32_1 = arith.constant 0 : i32
    return %c0_i32, %c0_i32_0 : i32, i32
  }
  func.func @transform_9(%arg0: i32) -> (i32, i32, i32) {
    %c0_i32 = arith.constant 0 : i32
    %c0_i32_0 = arith.constant 0 : i32
    %c0_i32_1 = arith.constant 0 : i32
    return %arg0, %c0_i32, %c0_i32_0 : i32, i32, i32
  }
}

</mosaic_0001>

<llo_original>
// kernel: model_forward.1
$region0: #{model_forward.1}
  #allocation0 [shape = 'u32[]', space=smem, size = 0x4, offset = 0x4, fixed_abs, tag = 'smem constant byte address 0x4 - core index']
  #allocation1 [shape = 'u32[144,128]{1,0:T(1,128)}', space=vmem, size = 0x12000, scoped, tag = 'internal scratch']
  #allocation2 [shape = 'bf16[225,64]{1,0:T(8,128)(2,1)}', space=vmem, size = 0xe800, scoped, tag = 'scratch operand']
  #allocation3 [shape = 'bf16[1,4608]{1,0:T(2,128)(2,1)}', space=vmem, size = 0x4800, scoped, tag = 'scratch operand']
  %s0 = inlined_call_operand.vmem [shape: bf16[2,4,225,32], index: 0, kind: input, shape index: {}]
  %s1 = inlined_call_operand.vmem [shape: bf16[32,64], index: 1, kind: input, shape index: {}]
  %s2 = inlined_call_operand.vmem [shape: f32[1,64], index: 2, kind: input, shape index: {}]
  %s3 = inlined_call_operand.vmem [shape: bf16[576,128], index: 3, kind: input, shape index: {}]
  %s4 = inlined_call_operand.vmem [shape: f32[1,128], index: 4, kind: input, shape index: {}]
  %s5 = inlined_call_operand.vmem [shape: bf16[4608,128], index: 5, kind: input, shape index: {}]
  %s6 = inlined_call_operand.vmem [shape: f32[1,128], index: 6, kind: input, shape index: {}]
  %s7 = inlined_call_operand.vmem [shape: bf16[128,128], index: 7, kind: input, shape index: {}]
  %s8 = inlined_call_operand.vmem [shape: f32[1,128], index: 8, kind: input, shape index: {}]
  %s9 = inlined_call_operand.hbm [shape: f32[2,1,128], index: 9, kind: output, shape index: {}]
  %s10 = sld [smem:[#allocation0]]
  $region69: #{model_forward.1} parent=0
    _
  %s12 = ssub.s32 1, %s10
  %s13 = scalar_select 0, %s12, %s10
  $region1: #{model_forward.1} parent=0
    #allocation4 [shape = 'u8[1024]{0}', space=vmem, size = 0x400, scoped, tag = 'output window, operand 0']
    #allocation5 [shape = 's32[2]{0}', space=sflag, size = 0x8, scoped, tag = 'scoped memory for model_forward.1']
    %14 = vsyncpa [#allocation5], 0
    %s15 = scalar_lea.sflag [#allocation5], 1
    %16 = vsyncpa %s15, 0
    loop: start=0, step=1, limit=4
    $region2: #{model_forward.1} parent=1 // loop_pre_header
      _
    $region3: #{model_forward.1} parent=1 // loop_header
      %s18 = sphi 0, %s22
      %p19 = scmp.ge.s32.totalorder %s18, 4
      %s28 = sphi 0, %s30
      %s31 = sphi 0, %s28
      %s32 = sphi 0, %s31
      %s48 = sphi 0, %s32
      %s52 = sphi 0, %s52
      %s54 = sphi 0, %s52
      %s55 = sphi 0, %s54
      %s69 = sphi 0, %s55
      %s73 = sphi 0, %s73
      %s75 = sphi 0, %s73
      %s76 = sphi 0, %s75
      %s90 = sphi 0, %s76
      %s94 = sphi 0, %s94
      %s96 = sphi 0, %s94
      %s97 = sphi 0, %s96
      %s111 = sphi 0, %s97
      %s115 = sphi 0, %s115
      %s117 = sphi 0, %s115
      %s118 = sphi 0, %s117
      %s132 = sphi 0, %s118
      %s136 = sphi 0, %s136
      %s138 = sphi 0, %s136
      %s139 = sphi 0, %s138
      %s153 = sphi 0, %s139
      %s157 = sphi 0, %s157
      %s159 = sphi 0, %s157
      %s160 = sphi 0, %s159
      %s174 = sphi 0, %s160
      %s178 = sphi 0, %s178
      %s180 = sphi 0, %s178
      %s181 = sphi 0, %s180
      %s195 = sphi 0, %s181
      %s199 = sphi 0, %s199
      %s201 = sphi 0, %s199
      %s202 = sphi 0, %s201
      %s216 = sphi 0, %s202
      %s222 = sphi 0, %s224
      %s225 = sphi 0, %s222
      %s226 = sphi 0, %s225
      %s242 = sphi 0, %s226
    $region4: #{model_forward.1} parent=1 // loop_header_branch
      %21 = sbr.rel (%p19) target = $region8
    $region5: #{model_forward.1} parent=1 // loop_body
      %s23 = ssub.s32 %s18, 1
      %s24 = ssub.s32 %s18, 2
      %s25 = sadd.s32 %s18, 1
      %s26 = ssub.s32 %s18, %s25
      %p27 = scmp.eq.s32.totalorder %s26, 0
      %s29 = sadd.s32 %s28, 1
      %s30 = scalar_select %p27, %s28, %s29
      %p33 = pneg %p27
      %p34 = scmp.eq.s32.totalorder %s18, 1
      %p35 = por %p33, %p34
      %p36 = scmp.ne.s32.totalorder %s28, %s31
      %p37 = scmp.eq.s32.totalorder %s18, 0
      %p38 = por %p36, %p37
      %p39 = scmp.ne.s32.totalorder %s28, %s31
      %p40 = scmp.eq.s32.totalorder %s23, 1
      %p41 = por %p39, %p40
      %p42 = scmp.ne.s32.totalorder %s31, %s32
      %p43 = scmp.eq.s32.totalorder %s23, 0
      %p44 = por %p42, %p43
      %p45 = scmp.ne.s32.totalorder %s31, %s32
      %p46 = scmp.eq.s32.totalorder %s24, 1
      %p47 = por %p45, %p46
      %p49 = scmp.ne.s32.totalorder %s32, %s48
      %p50 = scmp.eq.s32.totalorder %s24, 0
      %p51 = por %p49, %p50
      %s53 = sadd.s32 %s52, 1
      %p56 = scmp.eq.s32.totalorder %s18, 1
      %p57 = scmp.ne.s32.totalorder %s52, %s54
      %p58 = scmp.eq.s32.totalorder %s18, 0
      %p59 = por %p57, %p58
      %p60 = scmp.ne.s32.totalorder %s52, %s54
      %p61 = scmp.eq.s32.totalorder %s23, 1
      %p62 = por %p60, %p61
      %p63 = scmp.ne.s32.totalorder %s54, %s55
      %p64 = scmp.eq.s32.totalorder %s23, 0
      %p65 = por %p63, %p64
      %p66 = scmp.ne.s32.totalorder %s54, %s55
      %p67 = scmp.eq.s32.totalorder %s24, 1
      %p68 = por %p66, %p67
      %p70 = scmp.ne.s32.totalorder %s55, %s69
      %p71 = scmp.eq.s32.totalorder %s24, 0
      %p72 = por %p70, %p71
      %s74 = sadd.s32 %s73, 1
      %p77 = scmp.eq.s32.totalorder %s18, 1
      %p78 = scmp.ne.s32.totalorder %s73, %s75
      %p79 = scmp.eq.s32.totalorder %s18, 0
      %p80 = por %p78, %p79
      %p81 = scmp.ne.s32.totalorder %s73, %s75
      %p82 = scmp.eq.s32.totalorder %s23, 1
      %p83 = por %p81, %p82
      %p84 = scmp.ne.s32.totalorder %s75, %s76
      %p85 = scmp.eq.s32.totalorder %s23, 0
      %p86 = por %p84, %p85
      %p87 = scmp.ne.s32.totalorder %s75, %s76
      %p88 = scmp.eq.s32.totalorder %s24, 1
      %p89 = por %p87, %p88
      %p91 = scmp.ne.s32.totalorder %s76, %s90
      %p92 = scmp.eq.s32.totalorder %s24, 0
      %p93 = por %p91, %p92
      %s95 = sadd.s32 %s94, 1
      %p98 = scmp.eq.s32.totalorder %s18, 1
      %p99 = scmp.ne.s32.totalorder %s94, %s96
      %p100 = scmp.eq.s32.totalorder %s18, 0
      %p101 = por %p99, %p100
      %p102 = scmp.ne.s32.totalorder %s94, %s96
      %p103 = scmp.eq.s32.totalorder %s23, 1
      %p104 = por %p102, %p103
      %p105 = scmp.ne.s32.totalorder %s96, %s97
      %p106 = scmp.eq.s32.totalorder %s23, 0
      %p107 = por %p105, %p106
      %p108 = scmp.ne.s32.totalorder %s96, %s97
      %p109 = scmp.eq.s32.totalorder %s24, 1
      %p110 = por %p108, %p109
      %p112 = scmp.ne.s32.totalorder %s97, %s111
      %p113 = scmp.eq.s32.totalorder %s24, 0
      %p114 = por %p112, %p113
      %s116 = sadd.s32 %s115, 1
      %p119 = scmp.eq.s32.totalorder %s18, 1
      %p120 = scmp.ne.s32.totalorder %s115, %s117
      %p121 = scmp.eq.s32.totalorder %s18, 0
      %p122 = por %p120, %p121
      %p123 = scmp.ne.s32.totalorder %s115, %s117
      %p124 = scmp.eq.s32.totalorder %s23, 1
      %p125 = por %p123, %p124
      %p126 = scmp.ne.s32.totalorder %s117, %s118
      %p127 = scmp.eq.s32.totalorder %s23, 0
      %p128 = por %p126, %p127
      %p129 = scmp.ne.s32.totalorder %s117, %s118
      %p130 = scmp.eq.s32.totalorder %s24, 1
      %p131 = por %p129, %p130
      %p133 = scmp.ne.s32.totalorder %s118, %s132
      %p134 = scmp.eq.s32.totalorder %s24, 0
      %p135 = por %p133, %p134
      %s137 = sadd.s32 %s136, 1
      %p140 = scmp.eq.s32.totalorder %s18, 1
      %p141 = scmp.ne.s32.totalorder %s136, %s138
      %p142 = scmp.eq.s32.totalorder %s18, 0
      %p143 = por %p141, %p142
      %p144 = scmp.ne.s32.totalorder %s136, %s138
      %p145 = scmp.eq.s32.totalorder %s23, 1
      %p146 = por %p144, %p145
      %p147 = scmp.ne.s32.totalorder %s138, %s139
      %p148 = scmp.eq.s32.totalorder %s23, 0
      %p149 = por %p147, %p148
      %p150 = scmp.ne.s32.totalorder %s138, %s139
      %p151 = scmp.eq.s32.totalorder %s24, 1
      %p152 = por %p150, %p151
      %p154 = scmp.ne.s32.totalorder %s139, %s153
      %p155 = scmp.eq.s32.totalorder %s24, 0
      %p156 = por %p154, %p155
      %s158 = sadd.s32 %s157, 1
      %p161 = scmp.eq.s32.totalorder %s18, 1
      %p162 = scmp.ne.s32.totalorder %s157, %s159
      %p163 = scmp.eq.s32.totalorder %s18, 0
      %p164 = por %p162, %p163
      %p165 = scmp.ne.s32.totalorder %s157, %s159
      %p166 = scmp.eq.s32.totalorder %s23, 1
      %p167 = por %p165, %p166
      %p168 = scmp.ne.s32.totalorder %s159, %s160
      %p169 = scmp.eq.s32.totalorder %s23, 0
      %p170 = por %p168, %p169
      %p171 = scmp.ne.s32.totalorder %s159, %s160
      %p172 = scmp.eq.s32.totalorder %s24, 1
      %p173 = por %p171, %p172
      %p175 = scmp.ne.s32.totalorder %s160, %s174
      %p176 = scmp.eq.s32.totalorder %s24, 0
      %p177 = por %p175, %p176
      %s179 = sadd.s32 %s178, 1
      %p182 = scmp.eq.s32.totalorder %s18, 1
      %p183 = scmp.ne.s32.totalorder %s178, %s180
      %p184 = scmp.eq.s32.totalorder %s18, 0
      %p185 = por %p183, %p184
      %p186 = scmp.ne.s32.totalorder %s178, %s180
      %p187 = scmp.eq.s32.totalorder %s23, 1
      %p188 = por %p186, %p187
      %p189 = scmp.ne.s32.totalorder %s180, %s181
      %p190 = scmp.eq.s32.totalorder %s23, 0
      %p191 = por %p189, %p190
      %p192 = scmp.ne.s32.totalorder %s180, %s181
      %p193 = scmp.eq.s32.totalorder %s24, 1
      %p194 = por %p192, %p193
      %p196 = scmp.ne.s32.totalorder %s181, %s195
      %p197 = scmp.eq.s32.totalorder %s24, 0
      %p198 = por %p196, %p197
      %s200 = sadd.s32 %s199, 1
      %p203 = scmp.eq.s32.totalorder %s18, 1
      %p204 = scmp.ne.s32.totalorder %s199, %s201
      %p205 = scmp.eq.s32.totalorder %s18, 0
      %p206 = por %p204, %p205
      %p207 = scmp.ne.s32.totalorder %s199, %s201
      %p208 = scmp.eq.s32.totalorder %s23, 1
      %p209 = por %p207, %p208
      %p210 = scmp.ne.s32.totalorder %s201, %s202
      %p211 = scmp.eq.s32.totalorder %s23, 0
      %p212 = por %p210, %p211
      %p213 = scmp.ne.s32.totalorder %s201, %s202
      %p214 = scmp.eq.s32.totalorder %s24, 1
      %p215 = por %p213, %p214
      %p217 = scmp.ne.s32.totalorder %s202, %s216
      %p218 = scmp.eq.s32.totalorder %s24, 0
      %p219 = por %p217, %p218
      %s220 = ssub.s32 %s18, %s25
      %p221 = scmp.eq.s32.totalorder %s220, 0
      %s223 = sadd.s32 %s222, 1
      %s224 = scalar_select %p221, %s222, %s223
      %p227 = pneg %p221
      %p228 = scmp.eq.s32.totalorder %s18, 1
      %p229 = por %p227, %p228
      %p230 = scmp.ne.s32.totalorder %s222, %s225
      %p231 = scmp.eq.s32.totalorder %s18, 0
      %p232 = por %p230, %p231
      %p233 = scmp.ne.s32.totalorder %s222, %s225
      %p234 = scmp.eq.s32.totalorder %s23, 1
      %p235 = por %p233, %p234
      %p236 = scmp.ne.s32.totalorder %s225, %s226
      %p237 = scmp.eq.s32.totalorder %s23, 0
      %p238 = por %p236, %p237
      %p239 = scmp.ne.s32.totalorder %s225, %s226
      %p240 = scmp.eq.s32.totalorder %s24, 1
      %p241 = por %p239, %p240
      %p243 = scmp.ne.s32.totalorder %s226, %s242
      %p244 = scmp.eq.s32.totalorder %s24, 0
      %p245 = por %p243, %p244
      %p246 = scmp.le.s32.totalorder 1, %s18
      %p247 = scmp.lt.s32.totalorder %s18, 3
      %p248 = pnand %p246, %p247
      %p249 = pneg %p248
      // Predicated region
      $region9: #{model_forward.1} parent=5 // pred_check
        _
      $region10: #{model_forward.1} parent=5 // pred_check_branch
        %251 = sbr.rel (%p248) target = $region12
      $region11: #{model_forward.1} parent=5 // pred_region
        %s252 = ssub.s32 %s18, 1
        // Predicated region
        $region13: #{model_forward.1} parent=11 // pred_check
          %p253 = pneg %p65
        $region14: #{model_forward.1} parent=11 // pred_check_branch
          %255 = sbr.rel (%p253) target = $region16
        $region15: #{model_forward.1} parent=11 // pred_region
          _
        $region16: #{model_forward.1} parent=11 // pred_fallthru
          _
        // Predicated region
        $region17: #{model_forward.1} parent=11 // pred_check
          %p256 = pneg %p86
        $region18: #{model_forward.1} parent=11 // pred_check_branch
          %258 = sbr.rel (%p256) target = $region20
        $region19: #{model_forward.1} parent=11 // pred_region
          _
        $region20: #{model_forward.1} parent=11 // pred_fallthru
          _
        // Predicated region
        $region21: #{model_forward.1} parent=11 // pred_check
          %p259 = pneg %p107
        $region22: #{model_forward.1} parent=11 // pred_check_branch
          %261 = sbr.rel (%p259) target = $region24
        $region23: #{model_forward.1} parent=11 // pred_region
          _
        $region24: #{model_forward.1} parent=11 // pred_fallthru
          _
        // Predicated region
        $region25: #{model_forward.1} parent=11 // pred_check
          %p262 = pneg %p128
        $region26: #{model_forward.1} parent=11 // pred_check_branch
          %264 = sbr.rel (%p262) target = $region28
        $region27: #{model_forward.1} parent=11 // pred_region
          _
        $region28: #{model_forward.1} parent=11 // pred_fallthru
          _
        // Predicated region
        $region29: #{model_forward.1} parent=11 // pred_check
          %p265 = pneg %p149
        $region30: #{model_forward.1} parent=11 // pred_check_branch
          %267 = sbr.rel (%p265) target = $region32
        $region31: #{model_forward.1} parent=11 // pred_region
          _
        $region32: #{model_forward.1} parent=11 // pred_fallthru
          _
        // Predicated region
        $region33: #{model_forward.1} parent=11 // pred_check
          %p268 = pneg %p170
        $region34: #{model_forward.1} parent=11 // pred_check_branch
          %270 = sbr.rel (%p268) target = $region36
        $region35: #{model_forward.1} parent=11 // pred_region
          _
        $region36: #{model_forward.1} parent=11 // pred_fallthru
          _
        // Predicated region
        $region37: #{model_forward.1} parent=11 // pred_check
          %p271 = pneg %p191
        $region38: #{model_forward.1} parent=11 // pred_check_branch
          %273 = sbr.rel (%p271) target = $region40
        $region39: #{model_forward.1} parent=11 // pred_region
          _
        $region40: #{model_forward.1} parent=11 // pred_fallthru
          _
        // Predicated region
        $region41: #{model_forward.1} parent=11 // pred_check
          %p274 = pneg %p212
        $region42: #{model_forward.1} parent=11 // pred_check_branch
          %276 = sbr.rel (%p274) target = $region44
        $region43: #{model_forward.1} parent=11 // pred_region
          _
        $region44: #{model_forward.1} parent=11 // pred_fallthru
          _
      $region12: #{model_forward.1} parent=5 // pred_fallthru
        _
      %p277 = scmp.lt.s32.totalorder %s18, 2
      // Predicated region
      $region45: #{model_forward.1} parent=5 // pred_check
        %p278 = pneg %p277
      $region46: #{model_forward.1} parent=5 // pred_check_branch
        %280 = sbr.rel (%p278) target = $region48
      $region47: #{model_forward.1} parent=5 // pred_region
        // Predicated region
        $region49: #{model_forward.1} parent=47 // pred_check
          %p281 = pneg %p38
        $region50: #{model_forward.1} parent=47 // pred_check_branch
          %283 = sbr.rel (%p281) target = $region52
        $region51: #{model_forward.1} parent=47 // pred_region
          %p284 = scmp.lt.s32.totalorder %s18, 1
          %s285 = scalar_select %p284, %s18, 1
          %s286 = smul.addr %s285, 116
          %s287 = smul.addr %s286, 4
          %s288 = scalar_lea.vmem %s0, %s287
        $region52: #{model_forward.1} parent=47 // pred_fallthru
          _
      $region48: #{model_forward.1} parent=5 // pred_fallthru
        _
      %p289 = scmp.le.s32.totalorder 1, %s18
      %p290 = scmp.lt.s32.totalorder %s18, 3
      %p291 = pnand %p289, %p290
      %p292 = pneg %p291
      // Predicated region
      $region53: #{model_forward.1} parent=5 // pred_check
        _
      $region54: #{model_forward.1} parent=5 // pred_check_branch
        %294 = sbr.rel (%p291) target = $region56
      $region55: #{model_forward.1} parent=5 // pred_region
        %s295 = ssub.s32 %s18, 1
        %p296 = scmp.lt.s32.totalorder %s23, 1
        %s297 = scalar_select %p296, %s23, 1
        %s298 = smul.addr %s297, 116
        %s299 = smul.addr %s298, 4
        %s300 = scalar_lea.vmem %s0, %s299
        %p301 = pneg %p44
        %p302 = pneg %p41
        %p303 = pneg %p65
        %p304 = pneg %p62
        %p305 = pneg %p86
        %p306 = pneg %p83
        %p307 = pneg %p107
        %p308 = pneg %p104
        %p309 = pneg %p128
        %p310 = pneg %p125
        %p311 = pneg %p149
        %p312 = pneg %p146
        %p313 = pneg %p170
        %p314 = pneg %p167
        %p315 = pneg %p191
        %p316 = pneg %p188
        %p317 = pneg %p212
        %p318 = pneg %p209
        %p319 = pneg %p238
        %p320 = pneg %p235
        %s321 = sand.u32 %s225, 1
        %s322 = scalar_lea.sflag [#allocation5], %s321
        %s323 = sand.u32 %s225, 1
        %s324 = scalar_lea.vmem [#allocation4], %s323
        %p325 = scmp.lt.s32.totalorder %s23, 1
        %s326 = scalar_select %p325, %s23, 1
        %s327 = smul.addr %s326, 116
        %s328 = smul.addr %s327, 4
        %s329 = scalar_lea.vmem %s0, %s328
        %v331 = vld [vmem:[%s1] sm:$0xf]
        %v332 = vld [vmem:[%s1 + $0x4] sm:$0xf]
        %v333 = vld [vmem:[%s1 + $0x8] sm:$0xf]
        %v334 = vld [vmem:[%s1 + $0xc] sm:$0xf]
        %v335 = vld [vmem:[%s329] sm:$0xf]
        %v336 = vld [vmem:[%s329 + $0x4] sm:$0xf]
        %v337 = vld [vmem:[%s329 + $0x8] sm:$0xf]
        %v338 = vld [vmem:[%s329 + $0xc] sm:$0xf]
        %v339 = vld [vmem:[%s329 + $0x10] sm:$0xf]
        %v340 = vld [vmem:[%s329 + $0x14] sm:$0xf]
        %v341 = vld [vmem:[%s329 + $0x18] sm:$0xf]
        %v342 = vld [vmem:[%s329 + $0x1c] sm:$0xf]
        %v343 = vld [vmem:[%s329 + $0x20] sm:$0xf]
        %v344 = vld [vmem:[%s329 + $0x24] sm:$0xf]
        %v345 = vld [vmem:[%s329 + $0x28] sm:$0xf]
        %v346 = vld [vmem:[%s329 + $0x2c] sm:$0xf]
        %v347 = vld [vmem:[%s329 + $0x30] sm:$0xf]
        %v348 = vld [vmem:[%s329 + $0x34] sm:$0xf]
        %v349 = vld [vmem:[%s329 + $0x38] sm:$0xf]
        %v350 = vld [vmem:[%s329 + $0x3c] sm:$0xf]
        %v351 = vld [vmem:[%s329 + $0x40] sm:$0xf]
        %v352 = vld [vmem:[%s329 + $0x44] sm:$0xf]
        %v353 = vld [vmem:[%s329 + $0x48] sm:$0xf]
        %v354 = vld [vmem:[%s329 + $0x4c] sm:$0xf]
        %v355 = vld [vmem:[%s329 + $0x50] sm:$0xf]
        %v356 = vld [vmem:[%s329 + $0x54] sm:$0xf]
        %v357 = vld [vmem:[%s329 + $0x58] sm:$0xf]
        %v358 = vld [vmem:[%s329 + $0x5c] sm:$0xf]
        %v359 = vld [vmem:[%s329 + $0x60] sm:$0xf]
        %v360 = vld [vmem:[%s329 + $0x64] sm:$0xf]
        %v361 = vld [vmem:[%s329 + $0x68] sm:$0xf]
        %v362 = vld [vmem:[%s329 + $0x6c] sm:$0xf]
        %v363 = vld [vmem:[%s329 + $0x70] sm:$0x1]
        %v393 = vunpack.c.l.b16 %v335
        %v394 = vunpack.c.l.b16 %v336
        %v395 = vunpack.c.l.b16 %v337
        %v396 = vunpack.c.l.b16 %v338
        %v397 = vunpack.c.l.b16 %v339
        %v398 = vunpack.c.l.b16 %v340
        %v399 = vunpack.c.l.b16 %v341
        %v400 = vunpack.c.l.b16 %v342
        %v401 = vunpack.c.l.b16 %v343
        %v402 = vunpack.c.l.b16 %v344
        %v403 = vunpack.c.l.b16 %v345
        %v404 = vunpack.c.l.b16 %v346
        %v405 = vunpack.c.l.b16 %v347
        %v406 = vunpack.c.l.b16 %v348
        %v407 = vunpack.c.l.b16 %v349
        %v408 = vunpack.c.l.b16 %v350
        %v409 = vunpack.c.l.b16 %v351
        %v410 = vunpack.c.l.b16 %v352
        %v411 = vunpack.c.l.b16 %v353
        %v412 = vunpack.c.l.b16 %v354
        %v413 = vunpack.c.l.b16 %v355
        %v414 = vunpack.c.l.b16 %v356
        %v415 = vunpack.c.l.b16 %v357
        %v416 = vunpack.c.l.b16 %v358
        %v417 = vunpack.c.l.b16 %v359
        %v418 = vunpack.c.l.b16 %v360
        %v419 = vunpack.c.l.b16 %v361
        %v420 = vunpack.c.l.b16 %v362
        %v421 = vunpack.c.l.b16 %v363
        %v422 = vpack.c.b16 %v394, %v393
        %v423 = vpack.c.b16 %v396, %v395
        %v424 = vpack.c.b16 %v398, %v397
        %v425 = vpack.c.b16 %v400, %v399
        %v426 = vpack.c.b16 %v402, %v401
        %v427 = vpack.c.b16 %v404, %v403
        %v428 = vpack.c.b16 %v406, %v405
        %v429 = vpack.c.b16 %v408, %v407
        %v430 = vpack.c.b16 %v410, %v409
        %v431 = vpack.c.b16 %v412, %v411
        %v432 = vpack.c.b16 %v414, %v413
        %v433 = vpack.c.b16 %v416, %v415
        %v434 = vpack.c.b16 %v418, %v417
        %v435 = vpack.c.b16 %v420, %v419
        %v436 = vpack.c.b16 %v421, %v421
        %v441 = vunpack.c.l.b16 %v331
        %v442 = vunpack.c.l.b16 %v332
        %v443 = vunpack.c.l.b16 %v333
        %v444 = vunpack.c.l.b16 %v334
        %v445 = vpack.c.b16 %v442, %v441
        %v446 = vpack.c.b16 %v444, %v443
        %vm449 = vcmask 261120
        %v451 = vsel %vm449, %v422, 0
        %v454 = vsel %vm449, %v423, 0
        %v457 = vsel %vm449, %v424, 0
        %v460 = vsel %vm449, %v425, 0
        %v463 = vsel %vm449, %v426, 0
        %v466 = vsel %vm449, %v427, 0
        %v469 = vsel %vm449, %v428, 0
        %v472 = vsel %vm449, %v429, 0
        %v475 = vsel %vm449, %v430, 0
        %v478 = vsel %vm449, %v431, 0
        %v481 = vsel %vm449, %v432, 0
        %v484 = vsel %vm449, %v433, 0
        %v487 = vsel %vm449, %v434, 0
        %v490 = vsel %vm449, %v435, 0
        %v493 = vsel %vm449, %v436, 0
        %495 = vmatprep.subr.bf16.mxu0 0
        %496 = vmatpush1.bf16.msra.mxu0 0
        %497 = vmatprep.subr.bf16.mxu0 0
        %498 = vmatpush1.bf16.msra.mxu0 0
        %499 = vmatprep.subr.bf16.mxu0 0
        %500 = vmatpush1.bf16.msra.mxu0 0
        %501 = vmatprep.subr.bf16.mxu0 0
        %502 = vmatpush1.bf16.msra.mxu0 0
        %503 = vmatprep.subr.bf16.mxu0 0
        %504 = vmatpush1.bf16.msra.mxu0 0
        %505 = vmatprep.subr.bf16.mxu0 0
        %506 = vmatpush1.bf16.msra.mxu0 0
        %507 = vmatprep.subr.bf16.mxu0 0
        %508 = vmatpush1.bf16.msra.mxu0 %v446
        %509 = vmatprep.subr.bf16.mxu0 0
        %510 = vmatpush1.bf16.msra.mxu0 %v445
        %511 = vmatprep.subr.bf16.mxu0 0
        %512 = vmatpush2.bf16.msra.mxu0 0
        %513 = vmatprep.subr.bf16.mxu0 0
        %514 = vmatpush2.bf16.msra.mxu0 0
        %515 = vmatprep.subr.bf16.mxu0 0
        %516 = vmatpush2.bf16.msra.mxu0 0
        %517 = vmatprep.subr.bf16.mxu0 0
        %518 = vmatpush2.bf16.msra.mxu0 0
        %519 = vmatprep.subr.bf16.mxu0 0
        %520 = vmatpush2.bf16.msra.mxu0 0
        %521 = vmatprep.subr.bf16.mxu0 0
        %522 = vmatpush2.bf16.msra.mxu0 0
        %523 = vmatprep.subr.bf16.mxu0 0
        %524 = vmatpush2.bf16.msra.mxu0 0
        %525 = vmatprep.subr.bf16.mxu0 0
        %526 = vmatpush2.bf16.msra.mxu0 0
        %527 = vmatprep.mubr.bf16.mxu0 0
        %528 = vmatmul.mubr.bf16.gmra.mxu0 %v451
        %v529 = vpop.f32.mrf.mxu0
        %v530 = vadd.f32 0.0, %v529
        %v531 = vpop.f32.mrf.mxu0
        %v532 = vpop.f32.mrf.mxu0
        %v533 = vadd.f32 0.0, %v532
        %v534 = vpop.f32.mrf.mxu0
        %535 = vmatprep.mubr.bf16.mxu0 0
        %536 = vmatmul.mubr.bf16.gmra.mxu0 %v454
        %v537 = vpop.f32.mrf.mxu0
        %v538 = vadd.f32 0.0, %v537
        %v539 = vpop.f32.mrf.mxu0
        %v540 = vpop.f32.mrf.mxu0
        %v541 = vadd.f32 0.0, %v540
        %v542 = vpop.f32.mrf.mxu0
        %543 = vmatprep.mubr.bf16.mxu0 0
        %544 = vmatmul.mubr.bf16.gmra.mxu0 %v457
        %v545 = vpop.f32.mrf.mxu0
        %v546 = vadd.f32 0.0, %v545
        %v547 = vpop.f32.mrf.mxu0
        %v548 = vpop.f32.mrf.mxu0
        %v549 = vadd.f32 0.0, %v548
        %v550 = vpop.f32.mrf.mxu0
        %551 = vmatprep.mubr.bf16.mxu0 0
        %552 = vmatmul.mubr.bf16.gmra.mxu0 %v460
        %v553 = vpop.f32.mrf.mxu0
        %v554 = vadd.f32 0.0, %v553
        %v555 = vpop.f32.mrf.mxu0
        %v556 = vpop.f32.mrf.mxu0
        %v557 = vadd.f32 0.0, %v556
        %v558 = vpop.f32.mrf.mxu0
        %559 = vmatprep.mubr.bf16.mxu0 0
        %560 = vmatmul.mubr.bf16.gmra.mxu0 %v463
        %v561 = vpop.f32.mrf.mxu0
        %v562 = vadd.f32 0.0, %v561
        %v563 = vpop.f32.mrf.mxu0
        %v564 = vpop.f32.mrf.mxu0
        %v565 = vadd.f32 0.0, %v564
        %v566 = vpop.f32.mrf.mxu0
        %567 = vmatprep.mubr.bf16.mxu0 0
        %568 = vmatmul.mubr.bf16.gmra.mxu0 %v466
        %v569 = vpop.f32.mrf.mxu0
        %v570 = vadd.f32 0.0, %v569
        %v571 = vpop.f32.mrf.mxu0
        %v572 = vpop.f32.mrf.mxu0
        %v573 = vadd.f32 0.0, %v572
        %v574 = vpop.f32.mrf.mxu0
        %575 = vmatprep.mubr.bf16.mxu0 0
        %576 = vmatmul.mubr.bf16.gmra.mxu0 %v469
        %v577 = vpop.f32.mrf.mxu0
        %v578 = vadd.f32 0.0, %v577
        %v579 = vpop.f32.mrf.mxu0
        %v580 = vpop.f32.mrf.mxu0
        %v581 = vadd.f32 0.0, %v580
        %v582 = vpop.f32.mrf.mxu0
        %583 = vmatprep.mubr.bf16.mxu0 0
        %584 = vmatmul.mubr.bf16.gmra.mxu0 %v472
        %v585 = vpop.f32.mrf.mxu0
        %v586 = vadd.f32 0.0, %v585
        %v587 = vpop.f32.mrf.mxu0
        %v588 = vpop.f32.mrf.mxu0
        %v589 = vadd.f32 0.0, %v588
        %v590 = vpop.f32.mrf.mxu0
        %591 = vmatprep.mubr.bf16.mxu0 0
        %592 = vmatmul.mubr.bf16.gmra.mxu0 %v475
        %v593 = vpop.f32.mrf.mxu0
        %v594 = vadd.f32 0.0, %v593
        %v595 = vpop.f32.mrf.mxu0
        %v596 = vpop.f32.mrf.mxu0
        %v597 = vadd.f32 0.0, %v596
        %v598 = vpop.f32.mrf.mxu0
        %599 = vmatprep.mubr.bf16.mxu0 0
        %600 = vmatmul.mubr.bf16.gmra.mxu0 %v478
        %v601 = vpop.f32.mrf.mxu0
        %v602 = vadd.f32 0.0, %v601
        %v603 = vpop.f32.mrf.mxu0
        %v604 = vpop.f32.mrf.mxu0
        %v605 = vadd.f32 0.0, %v604
        %v606 = vpop.f32.mrf.mxu0
        %607 = vmatprep.mubr.bf16.mxu0 0
        %608 = vmatmul.mubr.bf16.gmra.mxu0 %v481
        %v609 = vpop.f32.mrf.mxu0
        %v610 = vadd.f32 0.0, %v609
        %v611 = vpop.f32.mrf.mxu0
        %v612 = vpop.f32.mrf.mxu0
        %v613 = vadd.f32 0.0, %v612
        %v614 = vpop.f32.mrf.mxu0
        %615 = vmatprep.mubr.bf16.mxu0 0
        %616 = vmatmul.mubr.bf16.gmra.mxu0 %v484
        %v617 = vpop.f32.mrf.mxu0
        %v618 = vadd.f32 0.0, %v617
        %v619 = vpop.f32.mrf.mxu0
        %v620 = vpop.f32.mrf.mxu0
        %v621 = vadd.f32 0.0, %v620
        %v622 = vpop.f32.mrf.mxu0
        %623 = vmatprep.mubr.bf16.mxu0 0
        %624 = vmatmul.mubr.bf16.gmra.mxu0 %v487
        %v625 = vpop.f32.mrf.mxu0
        %v626 = vadd.f32 0.0, %v625
        %v627 = vpop.f32.mrf.mxu0
        %v628 = vpop.f32.mrf.mxu0
        %v629 = vadd.f32 0.0, %v628
        %v630 = vpop.f32.mrf.mxu0
        %631 = vmatprep.mubr.bf16.mxu0 0
        %632 = vmatmul.mubr.bf16.gmra.mxu0 %v490
        %v633 = vpop.f32.mrf.mxu0
        %v634 = vadd.f32 0.0, %v633
        %v635 = vpop.f32.mrf.mxu0
        %v636 = vpop.f32.mrf.mxu0
        %v637 = vadd.f32 0.0, %v636
        %v638 = vpop.f32.mrf.mxu0
        %639 = vmatprep.mubr.bf16.mxu0 0
        %640 = vmatmul.mubr.bf16.gmra.mxu0 %v493
        %v641 = vpop.f32.mrf.mxu0
        %v642 = vadd.f32 0.0, %v641
        %v643 = vpop.f32.mrf.mxu0
        %v644 = vpop.f32.mrf.mxu0
        %v645 = vpop.f32.mrf.mxu0
        %646 = vdwg.mxu0
        %s647 = scalar_lea.vmem %s329, 116
        %v648 = vld [vmem:[%s647] sm:$0xf]
        %v649 = vld [vmem:[%s647 + $0x4] sm:$0xf]
        %v650 = vld [vmem:[%s647 + $0x8] sm:$0xf]
        %v651 = vld [vmem:[%s647 + $0xc] sm:$0xf]
        %v652 = vld [vmem:[%s647 + $0x10] sm:$0xf]
        %v653 = vld [vmem:[%s647 + $0x14] sm:$0xf]
        %v654 = vld [vmem:[%s647 + $0x18] sm:$0xf]
        %v655 = vld [vmem:[%s647 + $0x1c] sm:$0xf]
        %v656 = vld [vmem:[%s647 + $0x20] sm:$0xf]
        %v657 = vld [vmem:[%s647 + $0x24] sm:$0xf]
        %v658 = vld [vmem:[%s647 + $0x28] sm:$0xf]
        %v659 = vld [vmem:[%s647 + $0x2c] sm:$0xf]
        %v660 = vld [vmem:[%s647 + $0x30] sm:$0xf]
        %v661 = vld [vmem:[%s647 + $0x34] sm:$0xf]
        %v662 = vld [vmem:[%s647 + $0x38] sm:$0xf]
        %v663 = vld [vmem:[%s647 + $0x3c] sm:$0xf]
        %v664 = vld [vmem:[%s647 + $0x40] sm:$0xf]
        %v665 = vld [vmem:[%s647 + $0x44] sm:$0xf]
        %v666 = vld [vmem:[%s647 + $0x48] sm:$0xf]
        %v667 = vld [vmem:[%s647 + $0x4c] sm:$0xf]
        %v668 = vld [vmem:[%s647 + $0x50] sm:$0xf]
        %v669 = vld [vmem:[%s647 + $0x54] sm:$0xf]
        %v670 = vld [vmem:[%s647 + $0x58] sm:$0xf]
        %v671 = vld [vmem:[%s647 + $0x5c] sm:$0xf]
        %v672 = vld [vmem:[%s647 + $0x60] sm:$0xf]
        %v673 = vld [vmem:[%s647 + $0x64] sm:$0xf]
        %v674 = vld [vmem:[%s647 + $0x68] sm:$0xf]
        %v675 = vld [vmem:[%s647 + $0x6c] sm:$0xf]
        %v676 = vld [vmem:[%s647 + $0x70] sm:$0x1]
        %v706 = vunpack.c.l.b16 %v648
        %v707 = vunpack.c.l.b16 %v649
        %v708 = vunpack.c.l.b16 %v650
        %v709 = vunpack.c.l.b16 %v651
        %v710 = vunpack.c.l.b16 %v652
        %v711 = vunpack.c.l.b16 %v653
        %v712 = vunpack.c.l.b16 %v654
        %v713 = vunpack.c.l.b16 %v655
        %v714 = vunpack.c.l.b16 %v656
        %v715 = vunpack.c.l.b16 %v657
        %v716 = vunpack.c.l.b16 %v658
        %v717 = vunpack.c.l.b16 %v659
        %v718 = vunpack.c.l.b16 %v660
        %v719 = vunpack.c.l.b16 %v661
        %v720 = vunpack.c.l.b16 %v662
        %v721 = vunpack.c.l.b16 %v663
        %v722 = vunpack.c.l.b16 %v664
        %v723 = vunpack.c.l.b16 %v665
        %v724 = vunpack.c.l.b16 %v666
        %v725 = vunpack.c.l.b16 %v667
        %v726 = vunpack.c.l.b16 %v668
        %v727 = vunpack.c.l.b16 %v669
        %v728 = vunpack.c.l.b16 %v670
        %v729 = vunpack.c.l.b16 %v671
        %v730 = vunpack.c.l.b16 %v672
        %v731 = vunpack.c.l.b16 %v673
        %v732 = vunpack.c.l.b16 %v674
        %v733 = vunpack.c.l.b16 %v675
        %v734 = vunpack.c.l.b16 %v676
        %v735 = vpack.c.b16 %v707, %v706
        %v736 = vpack.c.b16 %v709, %v708
        %v737 = vpack.c.b16 %v711, %v710
        %v738 = vpack.c.b16 %v713, %v712
        %v739 = vpack.c.b16 %v715, %v714
        %v740 = vpack.c.b16 %v717, %v716
        %v741 = vpack.c.b16 %v719, %v718
        %v742 = vpack.c.b16 %v721, %v720
        %v743 = vpack.c.b16 %v723, %v722
        %v744 = vpack.c.b16 %v725, %v724
        %v745 = vpack.c.b16 %v727, %v726
        %v746 = vpack.c.b16 %v729, %v728
        %v747 = vpack.c.b16 %v731, %v730
        %v748 = vpack.c.b16 %v733, %v732
        %v749 = vpack.c.b16 %v734, %v734
        %v751 = vsel %vm449, %v735, 0
        %v754 = vsel %vm449, %v736, 0
        %v757 = vsel %vm449, %v737, 0
        %v760 = vsel %vm449, %v738, 0
        %v763 = vsel %vm449, %v739, 0
        %v766 = vsel %vm449, %v740, 0
        %v769 = vsel %vm449, %v741, 0
        %v772 = vsel %vm449, %v742, 0
        %v775 = vsel %vm449, %v743, 0
        %v778 = vsel %vm449, %v744, 0
        %v781 = vsel %vm449, %v745, 0
        %v784 = vsel %vm449, %v746, 0
        %v787 = vsel %vm449, %v747, 0
        %v790 = vsel %vm449, %v748, 0
        %v793 = vsel %vm449, %v749, 0
        %795 = vmatprep.subr.bf16.mxu0 0
        %796 = vmatpush1.bf16.msra.mxu0 0
        %797 = vmatprep.subr.bf16.mxu0 0
        %798 = vmatpush1.bf16.msra.mxu0 0
        %799 = vmatprep.subr.bf16.mxu0 0
        %800 = vmatpush1.bf16.msra.mxu0 0
        %801 = vmatprep.subr.bf16.mxu0 0
        %802 = vmatpush1.bf16.msra.mxu0 0
        %803 = vmatprep.subr.bf16.mxu0 0
        %804 = vmatpush1.bf16.msra.mxu0 0
        %805 = vmatprep.subr.bf16.mxu0 0
        %806 = vmatpush1.bf16.msra.mxu0 0
        %807 = vmatprep.subr.bf16.mxu0 0
        %808 = vmatpush1.bf16.msra.mxu0 %v446
        %809 = vmatprep.subr.bf16.mxu0 0
        %810 = vmatpush1.bf16.msra.mxu0 %v445
        %811 = vmatprep.subr.bf16.mxu0 0
        %812 = vmatpush2.bf16.msra.mxu0 0
        %813 = vmatprep.subr.bf16.mxu0 0
        %814 = vmatpush2.bf16.msra.mxu0 0
        %815 = vmatprep.subr.bf16.mxu0 0
        %816 = vmatpush2.bf16.msra.mxu0 0
        %817 = vmatprep.subr.bf16.mxu0 0
        %818 = vmatpush2.bf16.msra.mxu0 0
        %819 = vmatprep.subr.bf16.mxu0 0
        %820 = vmatpush2.bf16.msra.mxu0 0
        %821 = vmatprep.subr.bf16.mxu0 0
        %822 = vmatpush2.bf16.msra.mxu0 0
        %823 = vmatprep.subr.bf16.mxu0 0
        %824 = vmatpush2.bf16.msra.mxu0 0
        %825 = vmatprep.subr.bf16.mxu0 0
        %826 = vmatpush2.bf16.msra.mxu0 0
        %827 = vmatprep.mubr.bf16.mxu0 0
        %828 = vmatmul.mubr.bf16.gmra.mxu0 %v751
        %v829 = vpop.f32.mrf.mxu0
        %v830 = vadd.f32 0.0, %v829
        %v831 = vpop.f32.mrf.mxu0
        %v832 = vpop.f32.mrf.mxu0
        %v833 = vadd.f32 0.0, %v832
        %v834 = vpop.f32.mrf.mxu0
        %835 = vmatprep.mubr.bf16.mxu0 0
        %836 = vmatmul.mubr.bf16.gmra.mxu0 %v754
        %v837 = vpop.f32.mrf.mxu0
        %v838 = vadd.f32 0.0, %v837
        %v839 = vpop.f32.mrf.mxu0
        %v840 = vpop.f32.mrf.mxu0
        %v841 = vadd.f32 0.0, %v840
        %v842 = vpop.f32.mrf.mxu0
        %843 = vmatprep.mubr.bf16.mxu0 0
        %844 = vmatmul.mubr.bf16.gmra.mxu0 %v757
        %v845 = vpop.f32.mrf.mxu0
        %v846 = vadd.f32 0.0, %v845
        %v847 = vpop.f32.mrf.mxu0
        %v848 = vpop.f32.mrf.mxu0
        %v849 = vadd.f32 0.0, %v848
        %v850 = vpop.f32.mrf.mxu0
        %851 = vmatprep.mubr.bf16.mxu0 0
        %852 = vmatmul.mubr.bf16.gmra.mxu0 %v760
        %v853 = vpop.f32.mrf.mxu0
        %v854 = vadd.f32 0.0, %v853
        %v855 = vpop.f32.mrf.mxu0
        %v856 = vpop.f32.mrf.mxu0
        %v857 = vadd.f32 0.0, %v856
        %v858 = vpop.f32.mrf.mxu0
        %859 = vmatprep.mubr.bf16.mxu0 0
        %860 = vmatmul.mubr.bf16.gmra.mxu0 %v763
        %v861 = vpop.f32.mrf.mxu0
        %v862 = vadd.f32 0.0, %v861
        %v863 = vpop.f32.mrf.mxu0
        %v864 = vpop.f32.mrf.mxu0
        %v865 = vadd.f32 0.0, %v864
        %v866 = vpop.f32.mrf.mxu0
        %867 = vmatprep.mubr.bf16.mxu0 0
        %868 = vmatmul.mubr.bf16.gmra.mxu0 %v766
        %v869 = vpop.f32.mrf.mxu0
        %v870 = vadd.f32 0.0, %v869
        %v871 = vpop.f32.mrf.mxu0
        %v872 = vpop.f32.mrf.mxu0
        %v873 = vadd.f32 0.0, %v872
        %v874 = vpop.f32.mrf.mxu0
        %875 = vmatprep.mubr.bf16.mxu0 0
        %876 = vmatmul.mubr.bf16.gmra.mxu0 %v769
        %v877 = vpop.f32.mrf.mxu0
        %v878 = vadd.f32 0.0, %v877
        %v879 = vpop.f32.mrf.mxu0
        %v880 = vpop.f32.mrf.mxu0
        %v881 = vadd.f32 0.0, %v880
        %v882 = vpop.f32.mrf.mxu0
        %883 = vmatprep.mubr.bf16.mxu0 0
        %884 = vmatmul.mubr.bf16.gmra.mxu0 %v772
        %v885 = vpop.f32.mrf.mxu0
        %v886 = vadd.f32 0.0, %v885
        %v887 = vpop.f32.mrf.mxu0
        %v888 = vpop.f32.mrf.mxu0
        %v889 = vadd.f32 0.0, %v888
        %v890 = vpop.f32.mrf.mxu0
        %891 = vmatprep.mubr.bf16.mxu0 0
        %892 = vmatmul.mubr.bf16.gmra.mxu0 %v775
        %v893 = vpop.f32.mrf.mxu0
        %v894 = vadd.f32 0.0, %v893
        %v895 = vpop.f32.mrf.mxu0
        %v896 = vpop.f32.mrf.mxu0
        %v897 = vadd.f32 0.0, %v896
        %v898 = vpop.f32.mrf.mxu0
        %899 = vmatprep.mubr.bf16.mxu0 0
        %900 = vmatmul.mubr.bf16.gmra.mxu0 %v778
        %v901 = vpop.f32.mrf.mxu0
        %v902 = vadd.f32 0.0, %v901
        %v903 = vpop.f32.mrf.mxu0
        %v904 = vpop.f32.mrf.mxu0
        %v905 = vadd.f32 0.0, %v904
        %v906 = vpop.f32.mrf.mxu0
        %907 = vmatprep.mubr.bf16.mxu0 0
        %908 = vmatmul.mubr.bf16.gmra.mxu0 %v781
        %v909 = vpop.f32.mrf.mxu0
        %v910 = vadd.f32 0.0, %v909
        %v911 = vpop.f32.mrf.mxu0
        %v912 = vpop.f32.mrf.mxu0
        %v913 = vadd.f32 0.0, %v912
        %v914 = vpop.f32.mrf.mxu0
        %915 = vmatprep.mubr.bf16.mxu0 0
        %916 = vmatmul.mubr.bf16.gmra.mxu0 %v784
        %v917 = vpop.f32.mrf.mxu0
        %v918 = vadd.f32 0.0, %v917
        %v919 = vpop.f32.mrf.mxu0
        %v920 = vpop.f32.mrf.mxu0
        %v921 = vadd.f32 0.0, %v920
        %v922 = vpop.f32.mrf.mxu0
        %923 = vmatprep.mubr.bf16.mxu0 0
        %924 = vmatmul.mubr.bf16.gmra.mxu0 %v787
        %v925 = vpop.f32.mrf.mxu0
        %v926 = vadd.f32 0.0, %v925
        %v927 = vpop.f32.mrf.mxu0
        %v928 = vpop.f32.mrf.mxu0
        %v929 = vadd.f32 0.0, %v928
        %v930 = vpop.f32.mrf.mxu0
        %931 = vmatprep.mubr.bf16.mxu0 0
        %932 = vmatmul.mubr.bf16.gmra.mxu0 %v790
        %v933 = vpop.f32.mrf.mxu0
        %v934 = vadd.f32 0.0, %v933
        %v935 = vpop.f32.mrf.mxu0
        %v936 = vpop.f32.mrf.mxu0
        %v937 = vadd.f32 0.0, %v936
        %v938 = vpop.f32.mrf.mxu0
        %939 = vmatprep.mubr.bf16.mxu0 0
        %940 = vmatmul.mubr.bf16.gmra.mxu0 %v793
        %v941 = vpop.f32.mrf.mxu0
        %v942 = vadd.f32 0.0, %v941
        %v943 = vpop.f32.mrf.mxu0
        %v944 = vpop.f32.mrf.mxu0
        %v945 = vpop.f32.mrf.mxu0
        %946 = vdwg.mxu0
        %v947 = vmax.f32 %v530, %v830
        %v948 = vmax.f32 %v533, %v833
        %v949 = vmax.f32 %v538, %v838
        %v950 = vmax.f32 %v541, %v841
        %v951 = vmax.f32 %v546, %v846
        %v952 = vmax.f32 %v549, %v849
        %v953 = vmax.f32 %v554, %v854
        %v954 = vmax.f32 %v557, %v857
        %v955 = vmax.f32 %v562, %v862
        %v956 = vmax.f32 %v565, %v865
        %v957 = vmax.f32 %v570, %v870
        %v958 = vmax.f32 %v573, %v873
        %v959 = vmax.f32 %v578, %v878
        %v960 = vmax.f32 %v581, %v881
        %v961 = vmax.f32 %v586, %v886
        %v962 = vmax.f32 %v589, %v889
        %v963 = vmax.f32 %v594, %v894
        %v964 = vmax.f32 %v597, %v897
        %v965 = vmax.f32 %v602, %v902
        %v966 = vmax.f32 %v605, %v905
        %v967 = vmax.f32 %v610, %v910
        %v968 = vmax.f32 %v613, %v913
        %v969 = vmax.f32 %v618, %v918
        %v970 = vmax.f32 %v621, %v921
        %v971 = vmax.f32 %v626, %v926
        %v972 = vmax.f32 %v629, %v929
        %v973 = vmax.f32 %v634, %v934
        %v974 = vmax.f32 %v637, %v937
        %v975 = vmax.f32 %v642, %v942
        %s976 = scalar_lea.vmem %s329, 232
        %v977 = vld [vmem:[%s976] sm:$0xf]
        %v978 = vld [vmem:[%s976 + $0x4] sm:$0xf]
        %v979 = vld [vmem:[%s976 + $0x8] sm:$0xf]
        %v980 = vld [vmem:[%s976 + $0xc] sm:$0xf]
        %v981 = vld [vmem:[%s976 + $0x10] sm:$0xf]
        %v982 = vld [vmem:[%s976 + $0x14] sm:$0xf]
        %v983 = vld [vmem:[%s976 + $0x18] sm:$0xf]
        %v984 = vld [vmem:[%s976 + $0x1c] sm:$0xf]
        %v985 = vld [vmem:[%s976 + $0x20] sm:$0xf]
        %v986 = vld [vmem:[%s976 + $0x24] sm:$0xf]
        %v987 = vld [vmem:[%s976 + $0x28] sm:$0xf]
        %v988 = vld [vmem:[%s976 + $0x2c] sm:$0xf]
        %v989 = vld [vmem:[%s976 + $0x30] sm:$0xf]
        %v990 = vld [vmem:[%s976 + $0x34] sm:$0xf]
        %v991 = vld [vmem:[%s976 + $0x38] sm:$0xf]
        %v992 = vld [vmem:[%s976 + $0x3c] sm:$0xf]
        %v993 = vld [vmem:[%s976 + $0x40] sm:$0xf]
        %v994 = vld [vmem:[%s976 + $0x44] sm:$0xf]
        %v995 = vld [vmem:[%s976 + $0x48] sm:$0xf]
        %v996 = vld [vmem:[%s976 + $0x4c] sm:$0xf]
        %v997 = vld [vmem:[%s976 + $0x50] sm:$0xf]
        %v998 = vld [vmem:[%s976 + $0x54] sm:$0xf]
        %v999 = vld [vmem:[%s976 + $0x58] sm:$0xf]
        %v1000 = vld [vmem:[%s976 + $0x5c] sm:$0xf]
        %v1001 = vld [vmem:[%s976 + $0x60] sm:$0xf]
        %v1002 = vld [vmem:[%s976 + $0x64] sm:$0xf]
        %v1003 = vld [vmem:[%s976 + $0x68] sm:$0xf]
        %v1004 = vld [vmem:[%s976 + $0x6c] sm:$0xf]
        %v1005 = vld [vmem:[%s976 + $0x70] sm:$0x1]
        %v1035 = vunpack.c.l.b16 %v977
        %v1036 = vunpack.c.l.b16 %v978
        %v1037 = vunpack.c.l.b16 %v979
        %v1038 = vunpack.c.l.b16 %v980
        %v1039 = vunpack.c.l.b16 %v981
        %v1040 = vunpack.c.l.b16 %v982
        %v1041 = vunpack.c.l.b16 %v983
        %v1042 = vunpack.c.l.b16 %v984
        %v1043 = vunpack.c.l.b16 %v985
        %v1044 = vunpack.c.l.b16 %v986
        %v1045 = vunpack.c.l.b16 %v987
        %v1046 = vunpack.c.l.b16 %v988
        %v1047 = vunpack.c.l.b16 %v989
        %v1048 = vunpack.c.l.b16 %v990
        %v1049 = vunpack.c.l.b16 %v991
        %v1050 = vunpack.c.l.b16 %v992
        %v1051 = vunpack.c.l.b16 %v993
        %v1052 = vunpack.c.l.b16 %v994
        %v1053 = vunpack.c.l.b16 %v995
        %v1054 = vunpack.c.l.b16 %v996
        %v1055 = vunpack.c.l.b16 %v997
        %v1056 = vunpack.c.l.b16 %v998
        %v1057 = vunpack.c.l.b16 %v999
        %v1058 = vunpack.c.l.b16 %v1000
        %v1059 = vunpack.c.l.b16 %v1001
        %v1060 = vunpack.c.l.b16 %v1002
        %v1061 = vunpack.c.l.b16 %v1003
        %v1062 = vunpack.c.l.b16 %v1004
        %v1063 = vunpack.c.l.b16 %v1005
        %v1064 = vpack.c.b16 %v1036, %v1035
        %v1065 = vpack.c.b16 %v1038, %v1037
        %v1066 = vpack.c.b16 %v1040, %v1039
        %v1067 = vpack.c.b16 %v1042, %v1041
        %v1068 = vpack.c.b16 %v1044, %v1043
        %v1069 = vpack.c.b16 %v1046, %v1045
        %v1070 = vpack.c.b16 %v1048, %v1047
        %v1071 = vpack.c.b16 %v1050, %v1049
        %v1072 = vpack.c.b16 %v1052, %v1051
        %v1073 = vpack.c.b16 %v1054, %v1053
        %v1074 = vpack.c.b16 %v1056, %v1055
        %v1075 = vpack.c.b16 %v1058, %v1057
        %v1076 = vpack.c.b16 %v1060, %v1059
        %v1077 = vpack.c.b16 %v1062, %v1061
        %v1078 = vpack.c.b16 %v1063, %v1063
        %v1080 = vsel %vm449, %v1064, 0
        %v1083 = vsel %vm449, %v1065, 0
        %v1086 = vsel %vm449, %v1066, 0
        %v1089 = vsel %vm449, %v1067, 0
        %v1092 = vsel %vm449, %v1068, 0
        %v1095 = vsel %vm449, %v1069, 0
        %v1098 = vsel %vm449, %v1070, 0
        %v1101 = vsel %vm449, %v1071, 0
        %v1104 = vsel %vm449, %v1072, 0
        %v1107 = vsel %vm449, %v1073, 0
        %v1110 = vsel %vm449, %v1074, 0
        %v1113 = vsel %vm449, %v1075, 0
        %v1116 = vsel %vm449, %v1076, 0
        %v1119 = vsel %vm449, %v1077, 0
        %v1122 = vsel %vm449, %v1078, 0
        %1124 = vmatprep.subr.bf16.mxu0 0
        %1125 = vmatpush1.bf16.msra.mxu0 0
        %1126 = vmatprep.subr.bf16.mxu0 0
        %1127 = vmatpush1.bf16.msra.mxu0 0
        %1128 = vmatprep.subr.bf16.mxu0 0
        %1129 = vmatpush1.bf16.msra.mxu0 0
        %1130 = vmatprep.subr.bf16.mxu0 0
        %1131 = vmatpush1.bf16.msra.mxu0 0
        %1132 = vmatprep.subr.bf16.mxu0 0
        %1133 = vmatpush1.bf16.msra.mxu0 0
        %1134 = vmatprep.subr.bf16.mxu0 0
        %1135 = vmatpush1.bf16.msra.mxu0 0
        %1136 = vmatprep.subr.bf16.mxu0 0
        %1137 = vmatpush1.bf16.msra.mxu0 %v446
        %1138 = vmatprep.subr.bf16.mxu0 0
        %1139 = vmatpush1.bf16.msra.mxu0 %v445
        %1140 = vmatprep.subr.bf16.mxu0 0
        %1141 = vmatpush2.bf16.msra.mxu0 0
        %1142 = vmatprep.subr.bf16.mxu0 0
        %1143 = vmatpush2.bf16.msra.mxu0 0
        %1144 = vmatprep.subr.bf16.mxu0 0
        %1145 = vmatpush2.bf16.msra.mxu0 0
        %1146 = vmatprep.subr.bf16.mxu0 0
        %1147 = vmatpush2.bf16.msra.mxu0 0
        %1148 = vmatprep.subr.bf16.mxu0 0
        %1149 = vmatpush2.bf16.msra.mxu0 0
        %1150 = vmatprep.subr.bf16.mxu0 0
        %1151 = vmatpush2.bf16.msra.mxu0 0
        %1152 = vmatprep.subr.bf16.mxu0 0
        %1153 = vmatpush2.bf16.msra.mxu0 0
        %1154 = vmatprep.subr.bf16.mxu0 0
        %1155 = vmatpush2.bf16.msra.mxu0 0
        %1156 = vmatprep.mubr.bf16.mxu0 0
        %1157 = vmatmul.mubr.bf16.gmra.mxu0 %v1080
        %v1158 = vpop.f32.mrf.mxu0
        %v1159 = vadd.f32 0.0, %v1158
        %v1160 = vpop.f32.mrf.mxu0
        %v1161 = vpop.f32.mrf.mxu0
        %v1162 = vadd.f32 0.0, %v1161
        %v1163 = vpop.f32.mrf.mxu0
        %1164 = vmatprep.mubr.bf16.mxu0 0
        %1165 = vmatmul.mubr.bf16.gmra.mxu0 %v1083
        %v1166 = vpop.f32.mrf.mxu0
        %v1167 = vadd.f32 0.0, %v1166
        %v1168 = vpop.f32.mrf.mxu0
        %v1169 = vpop.f32.mrf.mxu0
        %v1170 = vadd.f32 0.0, %v1169
        %v1171 = vpop.f32.mrf.mxu0
        %1172 = vmatprep.mubr.bf16.mxu0 0
        %1173 = vmatmul.mubr.bf16.gmra.mxu0 %v1086
        %v1174 = vpop.f32.mrf.mxu0
        %v1175 = vadd.f32 0.0, %v1174
        %v1176 = vpop.f32.mrf.mxu0
        %v1177 = vpop.f32.mrf.mxu0
        %v1178 = vadd.f32 0.0, %v1177
        %v1179 = vpop.f32.mrf.mxu0
        %1180 = vmatprep.mubr.bf16.mxu0 0
        %1181 = vmatmul.mubr.bf16.gmra.mxu0 %v1089
        %v1182 = vpop.f32.mrf.mxu0
        %v1183 = vadd.f32 0.0, %v1182
        %v1184 = vpop.f32.mrf.mxu0
        %v1185 = vpop.f32.mrf.mxu0
        %v1186 = vadd.f32 0.0, %v1185
        %v1187 = vpop.f32.mrf.mxu0
        %1188 = vmatprep.mubr.bf16.mxu0 0
        %1189 = vmatmul.mubr.bf16.gmra.mxu0 %v1092
        %v1190 = vpop.f32.mrf.mxu0
        %v1191 = vadd.f32 0.0, %v1190
        %v1192 = vpop.f32.mrf.mxu0
        %v1193 = vpop.f32.mrf.mxu0
        %v1194 = vadd.f32 0.0, %v1193
        %v1195 = vpop.f32.mrf.mxu0
        %1196 = vmatprep.mubr.bf16.mxu0 0
        %1197 = vmatmul.mubr.bf16.gmra.mxu0 %v1095
        %v1198 = vpop.f32.mrf.mxu0
        %v1199 = vadd.f32 0.0, %v1198
        %v1200 = vpop.f32.mrf.mxu0
        %v1201 = vpop.f32.mrf.mxu0
        %v1202 = vadd.f32 0.0, %v1201
        %v1203 = vpop.f32.mrf.mxu0
        %1204 = vmatprep.mubr.bf16.mxu0 0
        %1205 = vmatmul.mubr.bf16.gmra.mxu0 %v1098
        %v1206 = vpop.f32.mrf.mxu0
        %v1207 = vadd.f32 0.0, %v1206
        %v1208 = vpop.f32.mrf.mxu0
        %v1209 = vpop.f32.mrf.mxu0
        %v1210 = vadd.f32 0.0, %v1209
        %v1211 = vpop.f32.mrf.mxu0
        %1212 = vmatprep.mubr.bf16.mxu0 0
        %1213 = vmatmul.mubr.bf16.gmra.mxu0 %v1101
        %v1214 = vpop.f32.mrf.mxu0
        %v1215 = vadd.f32 0.0, %v1214
        %v1216 = vpop.f32.mrf.mxu0
        %v1217 = vpop.f32.mrf.mxu0
        %v1218 = vadd.f32 0.0, %v1217
        %v1219 = vpop.f32.mrf.mxu0
        %1220 = vmatprep.mubr.bf16.mxu0 0
        %1221 = vmatmul.mubr.bf16.gmra.mxu0 %v1104
        %v1222 = vpop.f32.mrf.mxu0
        %v1223 = vadd.f32 0.0, %v1222
        %v1224 = vpop.f32.mrf.mxu0
        %v1225 = vpop.f32.mrf.mxu0
        %v1226 = vadd.f32 0.0, %v1225
        %v1227 = vpop.f32.mrf.mxu0
        %1228 = vmatprep.mubr.bf16.mxu0 0
        %1229 = vmatmul.mubr.bf16.gmra.mxu0 %v1107
        %v1230 = vpop.f32.mrf.mxu0
        %v1231 = vadd.f32 0.0, %v1230
        %v1232 = vpop.f32.mrf.mxu0
        %v1233 = vpop.f32.mrf.mxu0
        %v1234 = vadd.f32 0.0, %v1233
        %v1235 = vpop.f32.mrf.mxu0
        %1236 = vmatprep.mubr.bf16.mxu0 0
        %1237 = vmatmul.mubr.bf16.gmra.mxu0 %v1110
        %v1238 = vpop.f32.mrf.mxu0
        %v1239 = vadd.f32 0.0, %v1238
        %v1240 = vpop.f32.mrf.mxu0
        %v1241 = vpop.f32.mrf.mxu0
        %v1242 = vadd.f32 0.0, %v1241
        %v1243 = vpop.f32.mrf.mxu0
        %1244 = vmatprep.mubr.bf16.mxu0 0
        %1245 = vmatmul.mubr.bf16.gmra.mxu0 %v1113
        %v1246 = vpop.f32.mrf.mxu0
        %v1247 = vadd.f32 0.0, %v1246
        %v1248 = vpop.f32.mrf.mxu0
        %v1249 = vpop.f32.mrf.mxu0
        %v1250 = vadd.f32 0.0, %v1249
        %v1251 = vpop.f32.mrf.mxu0
        %1252 = vmatprep.mubr.bf16.mxu0 0
        %1253 = vmatmul.mubr.bf16.gmra.mxu0 %v1116
        %v1254 = vpop.f32.mrf.mxu0
        %v1255 = vadd.f32 0.0, %v1254
        %v1256 = vpop.f32.mrf.mxu0
        %v1257 = vpop.f32.mrf.mxu0
        %v1258 = vadd.f32 0.0, %v1257
        %v1259 = vpop.f32.mrf.mxu0
        %1260 = vmatprep.mubr.bf16.mxu0 0
        %1261 = vmatmul.mubr.bf16.gmra.mxu0 %v1119
        %v1262 = vpop.f32.mrf.mxu0
        %v1263 = vadd.f32 0.0, %v1262
        %v1264 = vpop.f32.mrf.mxu0
        %v1265 = vpop.f32.mrf.mxu0
        %v1266 = vadd.f32 0.0, %v1265
        %v1267 = vpop.f32.mrf.mxu0
        %1268 = vmatprep.mubr.bf16.mxu0 0
        %1269 = vmatmul.mubr.bf16.gmra.mxu0 %v1122
        %v1270 = vpop.f32.mrf.mxu0
        %v1271 = vadd.f32 0.0, %v1270
        %v1272 = vpop.f32.mrf.mxu0
        %v1273 = vpop.f32.mrf.mxu0
        %v1274 = vpop.f32.mrf.mxu0
        %1275 = vdwg.mxu0
        %v1276 = vmax.f32 %v947, %v1159
        %v1277 = vmax.f32 %v948, %v1162
        %v1278 = vmax.f32 %v949, %v1167
        %v1279 = vmax.f32 %v950, %v1170
        %v1280 = vmax.f32 %v951, %v1175
        %v1281 = vmax.f32 %v952, %v1178
        %v1282 = vmax.f32 %v953, %v1183
        %v1283 = vmax.f32 %v954, %v1186
        %v1284 = vmax.f32 %v955, %v1191
        %v1285 = vmax.f32 %v956, %v1194
        %v1286 = vmax.f32 %v957, %v1199
        %v1287 = vmax.f32 %v958, %v1202
        %v1288 = vmax.f32 %v959, %v1207
        %v1289 = vmax.f32 %v960, %v1210
        %v1290 = vmax.f32 %v961, %v1215
        %v1291 = vmax.f32 %v962, %v1218
        %v1292 = vmax.f32 %v963, %v1223
        %v1293 = vmax.f32 %v964, %v1226
        %v1294 = vmax.f32 %v965, %v1231
        %v1295 = vmax.f32 %v966, %v1234
        %v1296 = vmax.f32 %v967, %v1239
        %v1297 = vmax.f32 %v968, %v1242
        %v1298 = vmax.f32 %v969, %v1247
        %v1299 = vmax.f32 %v970, %v1250
        %v1300 = vmax.f32 %v971, %v1255
        %v1301 = vmax.f32 %v972, %v1258
        %v1302 = vmax.f32 %v973, %v1263
        %v1303 = vmax.f32 %v974, %v1266
        %v1304 = vmax.f32 %v975, %v1271
        %s1305 = scalar_lea.vmem %s329, 348
        %v1306 = vld [vmem:[%s1305] sm:$0xf]
        %v1307 = vld [vmem:[%s1305 + $0x4] sm:$0xf]
        %v1308 = vld [vmem:[%s1305 + $0x8] sm:$0xf]
        %v1309 = vld [vmem:[%s1305 + $0xc] sm:$0xf]
        %v1310 = vld [vmem:[%s1305 + $0x10] sm:$0xf]
        %v1311 = vld [vmem:[%s1305 + $0x14] sm:$0xf]
        %v1312 = vld [vmem:[%s1305 + $0x18] sm:$0xf]
        %v1313 = vld [vmem:[%s1305 + $0x1c] sm:$0xf]
        %v1314 = vld [vmem:[%s1305 + $0x20] sm:$0xf]
        %v1315 = vld [vmem:[%s1305 + $0x24] sm:$0xf]
        %v1316 = vld [vmem:[%s1305 + $0x28] sm:$0xf]
        %v1317 = vld [vmem:[%s1305 + $0x2c] sm:$0xf]
        %v1318 = vld [vmem:[%s1305 + $0x30] sm:$0xf]
        %v1319 = vld [vmem:[%s1305 + $0x34] sm:$0xf]
        %v1320 = vld [vmem:[%s1305 + $0x38] sm:$0xf]
        %v1321 = vld [vmem:[%s1305 + $0x3c] sm:$0xf]
        %v1322 = vld [vmem:[%s1305 + $0x40] sm:$0xf]
        %v1323 = vld [vmem:[%s1305 + $0x44] sm:$0xf]
        %v1324 = vld [vmem:[%s1305 + $0x48] sm:$0xf]
        %v1325 = vld [vmem:[%s1305 + $0x4c] sm:$0xf]
        %v1326 = vld [vmem:[%s1305 + $0x50] sm:$0xf]
        %v1327 = vld [vmem:[%s1305 + $0x54] sm:$0xf]
        %v1328 = vld [vmem:[%s1305 + $0x58] sm:$0xf]
        %v1329 = vld [vmem:[%s1305 + $0x5c] sm:$0xf]
        %v1330 = vld [vmem:[%s1305 + $0x60] sm:$0xf]
        %v1331 = vld [vmem:[%s1305 + $0x64] sm:$0xf]
        %v1332 = vld [vmem:[%s1305 + $0x68] sm:$0xf]
        %v1333 = vld [vmem:[%s1305 + $0x6c] sm:$0xf]
        %v1334 = vld [vmem:[%s1305 + $0x70] sm:$0x1]
        %v1364 = vunpack.c.l.b16 %v1306
        %v1365 = vunpack.c.l.b16 %v1307
        %v1366 = vunpack.c.l.b16 %v1308
        %v1367 = vunpack.c.l.b16 %v1309
        %v1368 = vunpack.c.l.b16 %v1310
        %v1369 = vunpack.c.l.b16 %v1311
        %v1370 = vunpack.c.l.b16 %v1312
        %v1371 = vunpack.c.l.b16 %v1313
        %v1372 = vunpack.c.l.b16 %v1314
        %v1373 = vunpack.c.l.b16 %v1315
        %v1374 = vunpack.c.l.b16 %v1316
        %v1375 = vunpack.c.l.b16 %v1317
        %v1376 = vunpack.c.l.b16 %v1318
        %v1377 = vunpack.c.l.b16 %v1319
        %v1378 = vunpack.c.l.b16 %v1320
        %v1379 = vunpack.c.l.b16 %v1321
        %v1380 = vunpack.c.l.b16 %v1322
        %v1381 = vunpack.c.l.b16 %v1323
        %v1382 = vunpack.c.l.b16 %v1324
        %v1383 = vunpack.c.l.b16 %v1325
        %v1384 = vunpack.c.l.b16 %v1326
        %v1385 = vunpack.c.l.b16 %v1327
        %v1386 = vunpack.c.l.b16 %v1328
        %v1387 = vunpack.c.l.b16 %v1329
        %v1388 = vunpack.c.l.b16 %v1330
        %v1389 = vunpack.c.l.b16 %v1331
        %v1390 = vunpack.c.l.b16 %v1332
        %v1391 = vunpack.c.l.b16 %v1333
        %v1392 = vunpack.c.l.b16 %v1334
        %v1393 = vpack.c.b16 %v1365, %v1364
        %v1394 = vpack.c.b16 %v1367, %v1366
        %v1395 = vpack.c.b16 %v1369, %v1368
        %v1396 = vpack.c.b16 %v1371, %v1370
        %v1397 = vpack.c.b16 %v1373, %v1372
        %v1398 = vpack.c.b16 %v1375, %v1374
        %v1399 = vpack.c.b16 %v1377, %v1376
        %v1400 = vpack.c.b16 %v1379, %v1378
        %v1401 = vpack.c.b16 %v1381, %v1380
        %v1402 = vpack.c.b16 %v1383, %v1382
        %v1403 = vpack.c.b16 %v1385, %v1384
        %v1404 = vpack.c.b16 %v1387, %v1386
        %v1405 = vpack.c.b16 %v1389, %v1388
        %v1406 = vpack.c.b16 %v1391, %v1390
        %v1407 = vpack.c.b16 %v1392, %v1392
        %v1409 = vsel %vm449, %v1393, 0
        %v1412 = vsel %vm449, %v1394, 0
        %v1415 = vsel %vm449, %v1395, 0
        %v1418 = vsel %vm449, %v1396, 0
        %v1421 = vsel %vm449, %v1397, 0
        %v1424 = vsel %vm449, %v1398, 0
        %v1427 = vsel %vm449, %v1399, 0
        %v1430 = vsel %vm449, %v1400, 0
        %v1433 = vsel %vm449, %v1401, 0
        %v1436 = vsel %vm449, %v1402, 0
        %v1439 = vsel %vm449, %v1403, 0
        %v1442 = vsel %vm449, %v1404, 0
        %v1445 = vsel %vm449, %v1405, 0
        %v1448 = vsel %vm449, %v1406, 0
        %v1451 = vsel %vm449, %v1407, 0
        %1453 = vmatprep.subr.bf16.mxu0 0
        %1454 = vmatpush1.bf16.msra.mxu0 0
        %1455 = vmatprep.subr.bf16.mxu0 0
        %1456 = vmatpush1.bf16.msra.mxu0 0
        %1457 = vmatprep.subr.bf16.mxu0 0
        %1458 = vmatpush1.bf16.msra.mxu0 0
        %1459 = vmatprep.subr.bf16.mxu0 0
        %1460 = vmatpush1.bf16.msra.mxu0 0
        %1461 = vmatprep.subr.bf16.mxu0 0
        %1462 = vmatpush1.bf16.msra.mxu0 0
        %1463 = vmatprep.subr.bf16.mxu0 0
        %1464 = vmatpush1.bf16.msra.mxu0 0
        %1465 = vmatprep.subr.bf16.mxu0 0
        %1466 = vmatpush1.bf16.msra.mxu0 %v446
        %1467 = vmatprep.subr.bf16.mxu0 0
        %1468 = vmatpush1.bf16.msra.mxu0 %v445
        %1469 = vmatprep.subr.bf16.mxu0 0
        %1470 = vmatpush2.bf16.msra.mxu0 0
        %1471 = vmatprep.subr.bf16.mxu0 0
        %1472 = vmatpush2.bf16.msra.mxu0 0
        %1473 = vmatprep.subr.bf16.mxu0 0
        %1474 = vmatpush2.bf16.msra.mxu0 0
        %1475 = vmatprep.subr.bf16.mxu0 0
        %1476 = vmatpush2.bf16.msra.mxu0 0
        %1477 = vmatprep.subr.bf16.mxu0 0
        %1478 = vmatpush2.bf16.msra.mxu0 0
        %1479 = vmatprep.subr.bf16.mxu0 0
        %1480 = vmatpush2.bf16.msra.mxu0 0
        %1481 = vmatprep.subr.bf16.mxu0 0
        %1482 = vmatpush2.bf16.msra.mxu0 0
        %1483 = vmatprep.subr.bf16.mxu0 0
        %1484 = vmatpush2.bf16.msra.mxu0 0
        %1485 = vmatprep.mubr.bf16.mxu0 0
        %1486 = vmatmul.mubr.bf16.gmra.mxu0 %v1409
        %v1487 = vpop.f32.mrf.mxu0
        %v1488 = vadd.f32 0.0, %v1487
        %v1489 = vpop.f32.mrf.mxu0
        %v1490 = vpop.f32.mrf.mxu0
        %v1491 = vadd.f32 0.0, %v1490
        %v1492 = vpop.f32.mrf.mxu0
        %1493 = vmatprep.mubr.bf16.mxu0 0
        %1494 = vmatmul.mubr.bf16.gmra.mxu0 %v1412
        %v1495 = vpop.f32.mrf.mxu0
        %v1496 = vadd.f32 0.0, %v1495
        %v1497 = vpop.f32.mrf.mxu0
        %v1498 = vpop.f32.mrf.mxu0
        %v1499 = vadd.f32 0.0, %v1498
        %v1500 = vpop.f32.mrf.mxu0
        %1501 = vmatprep.mubr.bf16.mxu0 0
        %1502 = vmatmul.mubr.bf16.gmra.mxu0 %v1415
        %v1503 = vpop.f32.mrf.mxu0
        %v1504 = vadd.f32 0.0, %v1503
        %v1505 = vpop.f32.mrf.mxu0
        %v1506 = vpop.f32.mrf.mxu0
        %v1507 = vadd.f32 0.0, %v1506
        %v1508 = vpop.f32.mrf.mxu0
        %1509 = vmatprep.mubr.bf16.mxu0 0
        %1510 = vmatmul.mubr.bf16.gmra.mxu0 %v1418
        %v1511 = vpop.f32.mrf.mxu0
        %v1512 = vadd.f32 0.0, %v1511
        %v1513 = vpop.f32.mrf.mxu0
        %v1514 = vpop.f32.mrf.mxu0
        %v1515 = vadd.f32 0.0, %v1514
        %v1516 = vpop.f32.mrf.mxu0
        %1517 = vmatprep.mubr.bf16.mxu0 0
        %1518 = vmatmul.mubr.bf16.gmra.mxu0 %v1421
        %v1519 = vpop.f32.mrf.mxu0
        %v1520 = vadd.f32 0.0, %v1519
        %v1521 = vpop.f32.mrf.mxu0
        %v1522 = vpop.f32.mrf.mxu0
        %v1523 = vadd.f32 0.0, %v1522
        %v1524 = vpop.f32.mrf.mxu0
        %1525 = vmatprep.mubr.bf16.mxu0 0
        %1526 = vmatmul.mubr.bf16.gmra.mxu0 %v1424
        %v1527 = vpop.f32.mrf.mxu0
        %v1528 = vadd.f32 0.0, %v1527
        %v1529 = vpop.f32.mrf.mxu0
        %v1530 = vpop.f32.mrf.mxu0
        %v1531 = vadd.f32 0.0, %v1530
        %v1532 = vpop.f32.mrf.mxu0
        %1533 = vmatprep.mubr.bf16.mxu0 0
        %1534 = vmatmul.mubr.bf16.gmra.mxu0 %v1427
        %v1535 = vpop.f32.mrf.mxu0
        %v1536 = vadd.f32 0.0, %v1535
        %v1537 = vpop.f32.mrf.mxu0
        %v1538 = vpop.f32.mrf.mxu0
        %v1539 = vadd.f32 0.0, %v1538
        %v1540 = vpop.f32.mrf.mxu0
        %1541 = vmatprep.mubr.bf16.mxu0 0
        %1542 = vmatmul.mubr.bf16.gmra.mxu0 %v1430
        %v1543 = vpop.f32.mrf.mxu0
        %v1544 = vadd.f32 0.0, %v1543
        %v1545 = vpop.f32.mrf.mxu0
        %v1546 = vpop.f32.mrf.mxu0
        %v1547 = vadd.f32 0.0, %v1546
        %v1548 = vpop.f32.mrf.mxu0
        %1549 = vmatprep.mubr.bf16.mxu0 0
        %1550 = vmatmul.mubr.bf16.gmra.mxu0 %v1433
        %v1551 = vpop.f32.mrf.mxu0
        %v1552 = vadd.f32 0.0, %v1551
        %v1553 = vpop.f32.mrf.mxu0
        %v1554 = vpop.f32.mrf.mxu0
        %v1555 = vadd.f32 0.0, %v1554
        %v1556 = vpop.f32.mrf.mxu0
        %1557 = vmatprep.mubr.bf16.mxu0 0
        %1558 = vmatmul.mubr.bf16.gmra.mxu0 %v1436
        %v1559 = vpop.f32.mrf.mxu0
        %v1560 = vadd.f32 0.0, %v1559
        %v1561 = vpop.f32.mrf.mxu0
        %v1562 = vpop.f32.mrf.mxu0
        %v1563 = vadd.f32 0.0, %v1562
        %v1564 = vpop.f32.mrf.mxu0
        %1565 = vmatprep.mubr.bf16.mxu0 0
        %1566 = vmatmul.mubr.bf16.gmra.mxu0 %v1439
        %v1567 = vpop.f32.mrf.mxu0
        %v1568 = vadd.f32 0.0, %v1567
        %v1569 = vpop.f32.mrf.mxu0
        %v1570 = vpop.f32.mrf.mxu0
        %v1571 = vadd.f32 0.0, %v1570
        %v1572 = vpop.f32.mrf.mxu0
        %1573 = vmatprep.mubr.bf16.mxu0 0
        %1574 = vmatmul.mubr.bf16.gmra.mxu0 %v1442
        %v1575 = vpop.f32.mrf.mxu0
        %v1576 = vadd.f32 0.0, %v1575
        %v1577 = vpop.f32.mrf.mxu0
        %v1578 = vpop.f32.mrf.mxu0
        %v1579 = vadd.f32 0.0, %v1578
        %v1580 = vpop.f32.mrf.mxu0
        %1581 = vmatprep.mubr.bf16.mxu0 0
        %1582 = vmatmul.mubr.bf16.gmra.mxu0 %v1445
        %v1583 = vpop.f32.mrf.mxu0
        %v1584 = vadd.f32 0.0, %v1583
        %v1585 = vpop.f32.mrf.mxu0
        %v1586 = vpop.f32.mrf.mxu0
        %v1587 = vadd.f32 0.0, %v1586
        %v1588 = vpop.f32.mrf.mxu0
        %1589 = vmatprep.mubr.bf16.mxu0 0
        %1590 = vmatmul.mubr.bf16.gmra.mxu0 %v1448
        %v1591 = vpop.f32.mrf.mxu0
        %v1592 = vadd.f32 0.0, %v1591
        %v1593 = vpop.f32.mrf.mxu0
        %v1594 = vpop.f32.mrf.mxu0
        %v1595 = vadd.f32 0.0, %v1594
        %v1596 = vpop.f32.mrf.mxu0
        %1597 = vmatprep.mubr.bf16.mxu0 0
        %1598 = vmatmul.mubr.bf16.gmra.mxu0 %v1451
        %v1599 = vpop.f32.mrf.mxu0
        %v1600 = vadd.f32 0.0, %v1599
        %v1601 = vpop.f32.mrf.mxu0
        %v1602 = vpop.f32.mrf.mxu0
        %v1603 = vpop.f32.mrf.mxu0
        %1604 = vdwg.mxu0
        %v1605 = vmax.f32 %v1276, %v1488
        %v1606 = vmax.f32 %v1277, %v1491
        %v1607 = vmax.f32 %v1278, %v1496
        %v1608 = vmax.f32 %v1279, %v1499
        %v1609 = vmax.f32 %v1280, %v1504
        %v1610 = vmax.f32 %v1281, %v1507
        %v1611 = vmax.f32 %v1282, %v1512
        %v1612 = vmax.f32 %v1283, %v1515
        %v1613 = vmax.f32 %v1284, %v1520
        %v1614 = vmax.f32 %v1285, %v1523
        %v1615 = vmax.f32 %v1286, %v1528
        %v1616 = vmax.f32 %v1287, %v1531
        %v1617 = vmax.f32 %v1288, %v1536
        %v1618 = vmax.f32 %v1289, %v1539
        %v1619 = vmax.f32 %v1290, %v1544
        %v1620 = vmax.f32 %v1291, %v1547
        %v1621 = vmax.f32 %v1292, %v1552
        %v1622 = vmax.f32 %v1293, %v1555
        %v1623 = vmax.f32 %v1294, %v1560
        %v1624 = vmax.f32 %v1295, %v1563
        %v1625 = vmax.f32 %v1296, %v1568
        %v1626 = vmax.f32 %v1297, %v1571
        %v1627 = vmax.f32 %v1298, %v1576
        %v1628 = vmax.f32 %v1299, %v1579
        %v1629 = vmax.f32 %v1300, %v1584
        %v1630 = vmax.f32 %v1301, %v1587
        %v1631 = vmax.f32 %v1302, %v1592
        %v1632 = vmax.f32 %v1303, %v1595
        %v1633 = vmax.f32 %v1304, %v1600
        %v1634 = vld [vmem:[%s2] sm:$0x1]
        %v1636 = vlaneseq
        %v1637 = vshrl.u32 %v1636, 7
        %v1638 = vsub.s32 0, %v1637
        %v1639 = vrot.slane %v1634, %v1638
        %v1641 = vadd.f32 %v1605, %v1639
        %v1642 = vadd.f32 %v1606, %v1639
        %v1643 = vadd.f32 %v1607, %v1639
        %v1644 = vadd.f32 %v1608, %v1639
        %v1645 = vadd.f32 %v1609, %v1639
        %v1646 = vadd.f32 %v1610, %v1639
        %v1647 = vadd.f32 %v1611, %v1639
        %v1648 = vadd.f32 %v1612, %v1639
        %v1649 = vadd.f32 %v1613, %v1639
        %v1650 = vadd.f32 %v1614, %v1639
        %v1651 = vadd.f32 %v1615, %v1639
        %v1652 = vadd.f32 %v1616, %v1639
        %v1653 = vadd.f32 %v1617, %v1639
        %v1654 = vadd.f32 %v1618, %v1639
        %v1655 = vadd.f32 %v1619, %v1639
        %v1656 = vadd.f32 %v1620, %v1639
        %v1657 = vadd.f32 %v1621, %v1639
        %v1658 = vadd.f32 %v1622, %v1639
        %v1659 = vadd.f32 %v1623, %v1639
        %v1660 = vadd.f32 %v1624, %v1639
        %v1661 = vadd.f32 %v1625, %v1639
        %v1662 = vadd.f32 %v1626, %v1639
        %v1663 = vadd.f32 %v1627, %v1639
        %v1664 = vadd.f32 %v1628, %v1639
        %v1665 = vadd.f32 %v1629, %v1639
        %v1666 = vadd.f32 %v1630, %v1639
        %v1667 = vadd.f32 %v1631, %v1639
        %v1668 = vadd.f32 %v1632, %v1639
        %v1669 = vadd.f32 %v1633, %v1639
        %v1670 = vmax.f32 %v1641, 0.0
        %v1671 = vmax.f32 %v1642, 0.0
        %v1672 = vmax.f32 %v1643, 0.0
        %v1673 = vmax.f32 %v1644, 0.0
        %v1674 = vmax.f32 %v1645, 0.0
        %v1675 = vmax.f32 %v1646, 0.0
        %v1676 = vmax.f32 %v1647, 0.0
        %v1677 = vmax.f32 %v1648, 0.0
        %v1678 = vmax.f32 %v1649, 0.0
        %v1679 = vmax.f32 %v1650, 0.0
        %v1680 = vmax.f32 %v1651, 0.0
        %v1681 = vmax.f32 %v1652, 0.0
        %v1682 = vmax.f32 %v1653, 0.0
        %v1683 = vmax.f32 %v1654, 0.0
        %v1684 = vmax.f32 %v1655, 0.0
        %v1685 = vmax.f32 %v1656, 0.0
        %v1686 = vmax.f32 %v1657, 0.0
        %v1687 = vmax.f32 %v1658, 0.0
        %v1688 = vmax.f32 %v1659, 0.0
        %v1689 = vmax.f32 %v1660, 0.0
        %v1690 = vmax.f32 %v1661, 0.0
        %v1691 = vmax.f32 %v1662, 0.0
        %v1692 = vmax.f32 %v1663, 0.0
        %v1693 = vmax.f32 %v1664, 0.0
        %v1694 = vmax.f32 %v1665, 0.0
        %v1695 = vmax.f32 %v1666, 0.0
        %v1696 = vmax.f32 %v1667, 0.0
        %v1697 = vmax.f32 %v1668, 0.0
        %v1698 = vmax.f32 %v1669, 0.0
        %v1699 = vpack.c.bf16 %v1671, %v1670
        %v1700 = vpack.c.bf16 %v1673, %v1672
        %v1701 = vpack.c.bf16 %v1675, %v1674
        %v1702 = vpack.c.bf16 %v1677, %v1676
        %v1703 = vpack.c.bf16 %v1679, %v1678
        %v1704 = vpack.c.bf16 %v1681, %v1680
        %v1705 = vpack.c.bf16 %v1683, %v1682
        %v1706 = vpack.c.bf16 %v1685, %v1684
        %v1707 = vpack.c.bf16 %v1687, %v1686
        %v1708 = vpack.c.bf16 %v1689, %v1688
        %v1709 = vpack.c.bf16 %v1691, %v1690
        %v1710 = vpack.c.bf16 %v1693, %v1692
        %v1711 = vpack.c.bf16 %v1695, %v1694
        %v1712 = vpack.c.bf16 %v1697, %v1696
        %v1713 = vpack.c.bf16 %v1698, %v1698
        %v1729 = vunpack.c.l.b16 %v1699
        %v1730 = vunpack.c.h.b16 %v1699
        %v1731 = vunpack.c.l.b16 %v1700
        %v1732 = vunpack.c.h.b16 %v1700
        %v1733 = vunpack.c.l.b16 %v1701
        %v1734 = vunpack.c.h.b16 %v1701
        %v1735 = vunpack.c.l.b16 %v1702
        %v1736 = vunpack.c.h.b16 %v1702
        %v1737 = vunpack.c.l.b16 %v1703
        %v1738 = vunpack.c.h.b16 %v1703
        %v1739 = vunpack.c.l.b16 %v1704
        %v1740 = vunpack.c.h.b16 %v1704
        %v1741 = vunpack.c.l.b16 %v1705
        %v1742 = vunpack.c.h.b16 %v1705
        %v1743 = vunpack.c.l.b16 %v1706
        %v1744 = vunpack.c.h.b16 %v1706
        %v1745 = vunpack.c.l.b16 %v1707
        %v1746 = vunpack.c.h.b16 %v1707
        %v1747 = vunpack.c.l.b16 %v1708
        %v1748 = vunpack.c.h.b16 %v1708
        %v1749 = vunpack.c.l.b16 %v1709
        %v1750 = vunpack.c.h.b16 %v1709
        %v1751 = vunpack.c.l.b16 %v1710
        %v1752 = vunpack.c.h.b16 %v1710
        %v1753 = vunpack.c.l.b16 %v1711
        %v1754 = vunpack.c.h.b16 %v1711
        %v1755 = vunpack.c.l.b16 %v1712
        %v1756 = vunpack.c.h.b16 %v1712
        %v1757 = vunpack.c.l.b16 %v1713
        %v1758 = vpack.c.b16 %v1729, %v1729
        %v1759 = vpack.c.b16 %v1730, %v1730
        %v1760 = vpack.c.b16 %v1731, %v1731
        %v1761 = vpack.c.b16 %v1732, %v1732
        %v1762 = vpack.c.b16 %v1733, %v1733
        %v1763 = vpack.c.b16 %v1734, %v1734
        %v1764 = vpack.c.b16 %v1735, %v1735
        %v1765 = vpack.c.b16 %v1736, %v1736
        %v1766 = vpack.c.b16 %v1737, %v1737
        %v1767 = vpack.c.b16 %v1738, %v1738
        %v1768 = vpack.c.b16 %v1739, %v1739
        %v1769 = vpack.c.b16 %v1740, %v1740
        %v1770 = vpack.c.b16 %v1741, %v1741
        %v1771 = vpack.c.b16 %v1742, %v1742
        %v1772 = vpack.c.b16 %v1743, %v1743
        %v1773 = vpack.c.b16 %v1744, %v1744
        %v1774 = vpack.c.b16 %v1745, %v1745
        %v1775 = vpack.c.b16 %v1746, %v1746
        %v1776 = vpack.c.b16 %v1747, %v1747
        %v1777 = vpack.c.b16 %v1748, %v1748
        %v1778 = vpack.c.b16 %v1749, %v1749
        %v1779 = vpack.c.b16 %v1750, %v1750
        %v1780 = vpack.c.b16 %v1751, %v1751
        %v1781 = vpack.c.b16 %v1752, %v1752
        %v1782 = vpack.c.b16 %v1753, %v1753
        %v1783 = vpack.c.b16 %v1754, %v1754
        %v1784 = vpack.c.b16 %v1755, %v1755
        %v1785 = vpack.c.b16 %v1756, %v1756
        %v1786 = vpack.c.b16 %v1757, %v1757
        %vm1816 = vcmask 519168
        %1817 = vst.msk [vmem:[#allocation2] sm:$0xf] %vm1816, %v1758
        %1818 = vst.msk [vmem:[#allocation2 + $0x4] sm:$0xf] %vm1816, %v1759
        %1819 = vst.msk [vmem:[#allocation2 + $0x8] sm:$0xf] %vm1816, %v1760
        %1820 = vst.msk [vmem:[#allocation2 + $0xc] sm:$0xf] %vm1816, %v1761
        %1821 = vst.msk [vmem:[#allocation2 + $0x10] sm:$0xf] %vm1816, %v1762
        %1822 = vst.msk [vmem:[#allocation2 + $0x14] sm:$0xf] %vm1816, %v1763
        %1823 = vst.msk [vmem:[#allocation2 + $0x18] sm:$0xf] %vm1816, %v1764
        %1824 = vst.msk [vmem:[#allocation2 + $0x1c] sm:$0xf] %vm1816, %v1765
        %1825 = vst.msk [vmem:[#allocation2 + $0x20] sm:$0xf] %vm1816, %v1766
        %1826 = vst.msk [vmem:[#allocation2 + $0x24] sm:$0xf] %vm1816, %v1767
        %1827 = vst.msk [vmem:[#allocation2 + $0x28] sm:$0xf] %vm1816, %v1768
        %1828 = vst.msk [vmem:[#allocation2 + $0x2c] sm:$0xf] %vm1816, %v1769
        %1829 = vst.msk [vmem:[#allocation2 + $0x30] sm:$0xf] %vm1816, %v1770
        %1830 = vst.msk [vmem:[#allocation2 + $0x34] sm:$0xf] %vm1816, %v1771
        %1831 = vst.msk [vmem:[#allocation2 + $0x38] sm:$0xf] %vm1816, %v1772
        %1832 = vst.msk [vmem:[#allocation2 + $0x3c] sm:$0xf] %vm1816, %v1773
        %1833 = vst.msk [vmem:[#allocation2 + $0x40] sm:$0xf] %vm1816, %v1774
        %1834 = vst.msk [vmem:[#allocation2 + $0x44] sm:$0xf] %vm1816, %v1775
        %1835 = vst.msk [vmem:[#allocation2 + $0x48] sm:$0xf] %vm1816, %v1776
        %1836 = vst.msk [vmem:[#allocation2 + $0x4c] sm:$0xf] %vm1816, %v1777
        %1837 = vst.msk [vmem:[#allocation2 + $0x50] sm:$0xf] %vm1816, %v1778
        %1838 = vst.msk [vmem:[#allocation2 + $0x54] sm:$0xf] %vm1816, %v1779
        %1839 = vst.msk [vmem:[#allocation2 + $0x58] sm:$0xf] %vm1816, %v1780
        %1840 = vst.msk [vmem:[#allocation2 + $0x5c] sm:$0xf] %vm1816, %v1781
        %1841 = vst.msk [vmem:[#allocation2 + $0x60] sm:$0xf] %vm1816, %v1782
        %1842 = vst.msk [vmem:[#allocation2 + $0x64] sm:$0xf] %vm1816, %v1783
        %1843 = vst.msk [vmem:[#allocation2 + $0x68] sm:$0xf] %vm1816, %v1784
        %1844 = vst.msk [vmem:[#allocation2 + $0x6c] sm:$0xf] %vm1816, %v1785
        %vm1845 = vcmask 516096
        %vm1846 = vsmask.f32 256
        %vm1847 = vmand %vm1845, %vm1846
        %v1848 = vld [vmem:[#allocation2 + $0x70] sm:$0x1]
        %v1849 = vsel %vm1847, %v1786, %v1848
        %1850 = vst [vmem:[#allocation2 + $0x70] sm:$0x1] %v1849
        %v1851 = vld [vmem:[%s4] sm:$0x1]
        %v1852 = vld [vmem:[%s3] sm:$0xf]
        %v1853 = vld [vmem:[%s3 + $0x4] sm:$0xf]
        %v1854 = vld [vmem:[%s3 + $0x8] sm:$0xf]
        %v1855 = vld [vmem:[%s3 + $0xc] sm:$0xf]
        %v1856 = vld [vmem:[%s3 + $0x10] sm:$0xf]
        %v1857 = vld [vmem:[%s3 + $0x14] sm:$0xf]
        %v1858 = vld [vmem:[%s3 + $0x18] sm:$0xf]
        %v1859 = vld [vmem:[%s3 + $0x1c] sm:$0xf]
        %v1860 = vld [vmem:[#allocation2] sm:$0xf]
        %v1861 = vld [vmem:[#allocation2 + $0x4] sm:$0xf]
        %v1862 = vld [vmem:[#allocation2 + $0x8] sm:$0xf]
        %v1863 = vld [vmem:[#allocation2 + $0xc] sm:$0xf]
        %v1864 = vld [vmem:[#allocation2 + $0x10] sm:$0xf]
        %v1865 = vld [vmem:[#allocation2 + $0x14] sm:$0xf]
        %v1866 = vld [vmem:[#allocation2 + $0x18] sm:$0xf]
        %v1867 = vld [vmem:[#allocation2 + $0x1c] sm:$0x3]
        %v1868 = vld [vmem:[#allocation2 + $0x1c] sm:$0xc]
        %v1869 = vld [vmem:[#allocation2 + $0x20] sm:$0xf]
        %v1870 = vld [vmem:[#allocation2 + $0x24] sm:$0xf]
        %v1871 = vld [vmem:[#allocation2 + $0x28] sm:$0xf]
        %v1872 = vld [vmem:[#allocation2 + $0x2c] sm:$0xf]
        %v1873 = vld [vmem:[#allocation2 + $0x30] sm:$0xf]
        %v1874 = vld [vmem:[#allocation2 + $0x34] sm:$0xf]
        %v1875 = vld [vmem:[#allocation2 + $0x38] sm:$0xf]
        %v1876 = vld [vmem:[#allocation2 + $0x3c] sm:$0xf]
        %v1877 = vld [vmem:[#allocation2 + $0x40] sm:$0xf]
        %v1878 = vld [vmem:[#allocation2 + $0x44] sm:$0xf]
        %v1879 = vld [vmem:[#allocation2 + $0x48] sm:$0xf]
        %v1880 = vld [vmem:[#allocation2 + $0x4c] sm:$0xf]
        %v1881 = vld [vmem:[#allocation2 + $0x50] sm:$0xf]
        %v1882 = vld [vmem:[#allocation2 + $0x54] sm:$0xf]
        %v1883 = vld [vmem:[#allocation2 + $0x58] sm:$0x3]
        %v1884 = vld [vmem:[%s3 + $0x20] sm:$0xf]
        %v1885 = vld [vmem:[%s3 + $0x24] sm:$0xf]
        %v1886 = vld [vmem:[%s3 + $0x28] sm:$0xf]
        %v1887 = vld [vmem:[%s3 + $0x2c] sm:$0xf]
        %v1888 = vld [vmem:[%s3 + $0x30] sm:$0xf]
        %v1889 = vld [vmem:[%s3 + $0x34] sm:$0xf]
        %v1890 = vld [vmem:[%s3 + $0x38] sm:$0xf]
        %v1891 = vld [vmem:[%s3 + $0x3c] sm:$0xf]
        %v1892 = vld [vmem:[#allocation2 + $0x1c] sm:$0x7]
        %v1901 = vunpack.c.l.b16 %v1860
        %v1902 = vunpack.c.l.b16 %v1861
        %v1903 = vunpack.c.l.b16 %v1862
        %v1904 = vunpack.c.l.b16 %v1863
        %v1905 = vunpack.c.l.b16 %v1864
        %v1906 = vunpack.c.l.b16 %v1865
        %v1907 = vunpack.c.l.b16 %v1866
        %v1908 = vunpack.c.l.b16 %v1892
        %v1909 = vpack.c.b16 %v1902, %v1901
        %v1910 = vpack.c.b16 %v1904, %v1903
        %v1911 = vpack.c.b16 %v1906, %v1905
        %v1912 = vpack.c.b16 %v1908, %v1907
        %vm1913 = vsmask.f32 7424
        %v1915 = vshrl.u32 %v1909, 16
        %v1917 = vshll.u32 %v1909, 16
        %v1919 = vrot.slane %v1917, 1
        %v1920 = vor.u32 %v1915, %v1919
        %v1922 = vshll.u32 %v1910, 16
        %v1924 = vrot.slane %v1922, 1
        %v1925 = vsel %vm1913, %v1920, %v1924
        %v1926 = vshrl.u32 %v1910, 16
        %v1928 = vor.u32 %v1926, %v1924
        %v1930 = vshll.u32 %v1911, 16
        %v1932 = vrot.slane %v1930, 1
        %v1933 = vsel %vm1913, %v1928, %v1932
        %v1934 = vshrl.u32 %v1911, 16
        %v1936 = vor.u32 %v1934, %v1932
        %v1938 = vshll.u32 %v1912, 16
        %v1940 = vrot.slane %v1938, 1
        %v1941 = vsel %vm1913, %v1936, %v1940
        %v1942 = vshrl.u32 %v1912, 16
        %v1944 = vor.u32 %v1942, %v1940
        %v1953 = vunpack.c.l.b16 %v1884
        %v1954 = vunpack.c.l.b16 %v1885
        %v1955 = vunpack.c.l.b16 %v1886
        %v1956 = vunpack.c.l.b16 %v1887
        %v1957 = vunpack.c.l.b16 %v1888
        %v1958 = vunpack.c.l.b16 %v1889
        %v1959 = vunpack.c.l.b16 %v1890
        %v1960 = vunpack.c.l.b16 %v1891
        %v1961 = vpack.c.b16 %v1954, %v1953
        %v1962 = vpack.c.b16 %v1956, %v1955
        %v1963 = vpack.c.b16 %v1958, %v1957
        %v1964 = vpack.c.b16 %v1960, %v1959
        %vm1969 = vcmask 523264
        %v1971 = vsel %vm1969, %v1925, 0
        %v1974 = vsel %vm1969, %v1933, 0
        %v1977 = vsel %vm1969, %v1941, 0
        %v1980 = vsel %vm1969, %v1944, 0
        %1982 = vmatprep.subr.bf16.mxu0 0
        %1983 = vmatpush1.bf16.msra.mxu0 0
        %1984 = vmatprep.subr.bf16.mxu0 0
        %1985 = vmatpush1.bf16.msra.mxu0 0
        %1986 = vmatprep.subr.bf16.mxu0 0
        %1987 = vmatpush1.bf16.msra.mxu0 0
        %1988 = vmatprep.subr.bf16.mxu0 0
        %1989 = vmatpush1.bf16.msra.mxu0 0
        %1990 = vmatprep.subr.bf16.mxu0 0
        %1991 = vmatpush1.bf16.msra.mxu0 %v1964
        %1992 = vmatprep.subr.bf16.mxu0 0
        %1993 = vmatpush1.bf16.msra.mxu0 %v1963
        %1994 = vmatprep.subr.bf16.mxu0 0
        %1995 = vmatpush1.bf16.msra.mxu0 %v1962
        %1996 = vmatprep.subr.bf16.mxu0 0
        %1997 = vmatpush1.bf16.msra.mxu0 %v1961
        %1998 = vmatprep.subr.bf16.mxu0 0
        %1999 = vmatpush2.bf16.msra.mxu0 0
        %2000 = vmatprep.subr.bf16.mxu0 0
        %2001 = vmatpush2.bf16.msra.mxu0 0
        %2002 = vmatprep.subr.bf16.mxu0 0
        %2003 = vmatpush2.bf16.msra.mxu0 0
        %2004 = vmatprep.subr.bf16.mxu0 0
        %2005 = vmatpush2.bf16.msra.mxu0 0
        %2006 = vmatprep.subr.bf16.mxu0 0
        %2007 = vmatpush2.bf16.msra.mxu0 0
        %2008 = vmatprep.subr.bf16.mxu0 0
        %2009 = vmatpush2.bf16.msra.mxu0 0
        %2010 = vmatprep.subr.bf16.mxu0 0
        %2011 = vmatpush2.bf16.msra.mxu0 0
        %2012 = vmatprep.subr.bf16.mxu0 0
        %2013 = vmatpush2.bf16.msra.mxu0 0
        %2014 = vmatprep.mubr.bf16.mxu0 0
        %2015 = vmatmul.mubr.bf16.gmra.mxu0 %v1971
        %v2016 = vpop.f32.mrf.mxu0
        %v2017 = vadd.f32 0.0, %v2016
        %v2018 = vpop.f32.mrf.mxu0
        %v2019 = vpop.f32.mrf.mxu0
        %v2020 = vadd.f32 0.0, %v2019
        %v2021 = vpop.f32.mrf.mxu0
        %2022 = vmatprep.mubr.bf16.mxu0 0
        %2023 = vmatmul.mubr.bf16.gmra.mxu0 %v1974
        %v2024 = vpop.f32.mrf.mxu0
        %v2025 = vadd.f32 0.0, %v2024
        %v2026 = vpop.f32.mrf.mxu0
        %v2027 = vpop.f32.mrf.mxu0
        %v2028 = vadd.f32 0.0, %v2027
        %v2029 = vpop.f32.mrf.mxu0
        %2030 = vmatprep.mubr.bf16.mxu0 0
        %2031 = vmatmul.mubr.bf16.gmra.mxu0 %v1977
        %v2032 = vpop.f32.mrf.mxu0
        %v2033 = vadd.f32 0.0, %v2032
        %v2034 = vpop.f32.mrf.mxu0
        %v2035 = vpop.f32.mrf.mxu0
        %v2036 = vadd.f32 0.0, %v2035
        %v2037 = vpop.f32.mrf.mxu0
        %2038 = vmatprep.mubr.bf16.mxu0 0
        %2039 = vmatmul.mubr.bf16.gmra.mxu0 %v1980
        %v2040 = vpop.f32.mrf.mxu0
        %v2041 = vadd.f32 0.0, %v2040
        %v2042 = vpop.f32.mrf.mxu0
        %v2043 = vpop.f32.mrf.mxu0
        %v2044 = vadd.f32 0.0, %v2043
        %v2045 = vpop.f32.mrf.mxu0
        %2046 = vdwg.mxu0
        %v2048 = vunpack.c.l.b16 %v1867
        %v2049 = vpack.c.b16 %v2048, %v1907
        %v2058 = vunpack.c.l.b16 %v1852
        %v2059 = vunpack.c.l.b16 %v1853
        %v2060 = vunpack.c.l.b16 %v1854
        %v2061 = vunpack.c.l.b16 %v1855
        %v2062 = vunpack.c.l.b16 %v1856
        %v2063 = vunpack.c.l.b16 %v1857
        %v2064 = vunpack.c.l.b16 %v1858
        %v2065 = vunpack.c.l.b16 %v1859
        %v2066 = vpack.c.b16 %v2059, %v2058
        %v2067 = vpack.c.b16 %v2061, %v2060
        %v2068 = vpack.c.b16 %v2063, %v2062
        %v2069 = vpack.c.b16 %v2065, %v2064
        %v2074 = vsel %vm1969, %v1909, 0
        %v2076 = vsel %vm1969, %v1910, 0
        %v2078 = vsel %vm1969, %v1911, 0
        %v2081 = vsel %vm1969, %v2049, 0
        %2083 = vmatprep.subr.bf16.mxu0 0
        %2084 = vmatpush1.bf16.msra.mxu0 0
        %2085 = vmatprep.subr.bf16.mxu0 0
        %2086 = vmatpush1.bf16.msra.mxu0 0
        %2087 = vmatprep.subr.bf16.mxu0 0
        %2088 = vmatpush1.bf16.msra.mxu0 0
        %2089 = vmatprep.subr.bf16.mxu0 0
        %2090 = vmatpush1.bf16.msra.mxu0 0
        %2091 = vmatprep.subr.bf16.mxu0 0
        %2092 = vmatpush1.bf16.msra.mxu0 %v2069
        %2093 = vmatprep.subr.bf16.mxu0 0
        %2094 = vmatpush1.bf16.msra.mxu0 %v2068
        %2095 = vmatprep.subr.bf16.mxu0 0
        %2096 = vmatpush1.bf16.msra.mxu0 %v2067
        %2097 = vmatprep.subr.bf16.mxu0 0
        %2098 = vmatpush1.bf16.msra.mxu0 %v2066
        %2099 = vmatprep.subr.bf16.mxu0 0
        %2100 = vmatpush2.bf16.msra.mxu0 0
        %2101 = vmatprep.subr.bf16.mxu0 0
        %2102 = vmatpush2.bf16.msra.mxu0 0
        %2103 = vmatprep.subr.bf16.mxu0 0
        %2104 = vmatpush2.bf16.msra.mxu0 0
        %2105 = vmatprep.subr.bf16.mxu0 0
        %2106 = vmatpush2.bf16.msra.mxu0 0
        %2107 = vmatprep.subr.bf16.mxu0 0
        %2108 = vmatpush2.bf16.msra.mxu0 0
        %2109 = vmatprep.subr.bf16.mxu0 0
        %2110 = vmatpush2.bf16.msra.mxu0 0
        %2111 = vmatprep.subr.bf16.mxu0 0
        %2112 = vmatpush2.bf16.msra.mxu0 0
        %2113 = vmatprep.subr.bf16.mxu0 0
        %2114 = vmatpush2.bf16.msra.mxu0 0
        %2115 = vmatprep.mubr.bf16.mxu0 0
        %2116 = vmatmul.mubr.bf16.gmra.mxu0 %v2074
        %v2117 = vpop.f32.mrf.mxu0
        %v2118 = vadd.f32 %v2017, %v2117
        %v2119 = vpop.f32.mrf.mxu0
        %v2120 = vpop.f32.mrf.mxu0
        %v2121 = vadd.f32 %v2020, %v2120
        %v2122 = vpop.f32.mrf.mxu0
        %2123 = vmatprep.mubr.bf16.mxu0 0
        %2124 = vmatmul.mubr.bf16.gmra.mxu0 %v2076
        %v2125 = vpop.f32.mrf.mxu0
        %v2126 = vadd.f32 %v2025, %v2125
        %v2127 = vpop.f32.mrf.mxu0
        %v2128 = vpop.f32.mrf.mxu0
        %v2129 = vadd.f32 %v2028, %v2128
        %v2130 = vpop.f32.mrf.mxu0
        %2131 = vmatprep.mubr.bf16.mxu0 0
        %2132 = vmatmul.mubr.bf16.gmra.mxu0 %v2078
        %v2133 = vpop.f32.mrf.mxu0
        %v2134 = vadd.f32 %v2033, %v2133
        %v2135 = vpop.f32.mrf.mxu0
        %v2136 = vpop.f32.mrf.mxu0
        %v2137 = vadd.f32 %v2036, %v2136
        %v2138 = vpop.f32.mrf.mxu0
        %2139 = vmatprep.mubr.bf16.mxu0 0
        %2140 = vmatmul.mubr.bf16.gmra.mxu0 %v2081
        %v2141 = vpop.f32.mrf.mxu0
        %v2142 = vadd.f32 %v2041, %v2141
        %v2143 = vpop.f32.mrf.mxu0
        %v2144 = vpop.f32.mrf.mxu0
        %v2145 = vadd.f32 %v2044, %v2144
        %v2146 = vpop.f32.mrf.mxu0
        %2147 = vdwg.mxu0
        %v2148 = vld [vmem:[#allocation2 + $0x1c] sm:$0xc]
        %v2149 = vld [vmem:[#allocation2 + $0x20] sm:$0xf]
        %v2150 = vld [vmem:[#allocation2 + $0x24] sm:$0xf]
        %v2151 = vld [vmem:[#allocation2 + $0x28] sm:$0xf]
        %v2152 = vld [vmem:[#allocation2 + $0x2c] sm:$0xf]
        %v2153 = vld [vmem:[#allocation2 + $0x30] sm:$0xf]
        %v2154 = vld [vmem:[#allocation2 + $0x34] sm:$0xf]
        %v2155 = vld [vmem:[#allocation2 + $0x38] sm:$0xf]
        %v2156 = vld [vmem:[#allocation2 + $0x3c] sm:$0x1]
        %v2166 = vunpack.c.l.b16 %v2148
        %v2167 = vunpack.c.l.b16 %v2149
        %v2168 = vunpack.c.l.b16 %v2150
        %v2169 = vunpack.c.l.b16 %v2151
        %v2170 = vunpack.c.l.b16 %v2152
        %v2171 = vunpack.c.l.b16 %v2153
        %v2172 = vunpack.c.l.b16 %v2154
        %v2173 = vunpack.c.l.b16 %v2155
        %v2174 = vunpack.c.l.b16 %v2156
        %v2175 = vpack.c.b16 %v2167, %v2166
        %v2176 = vpack.c.b16 %v2169, %v2168
        %v2177 = vpack.c.b16 %v2171, %v2170
        %v2178 = vpack.c.b16 %v2173, %v2172
        %v2179 = vpack.c.b16 %v2174, %v2174
        %vm2180 = vsmask.f32 5376
        %v2182 = vshrl.u32 %v2175, 16
        %v2184 = vrot.slane %v2182, 2
        %v2185 = vshll.u32 %v2175, 16
        %v2187 = vrot.slane %v2185, 3
        %v2188 = vor.u32 %v2184, %v2187
        %v2190 = vshrl.u32 %v2176, 16
        %v2192 = vrot.slane %v2190, 2
        %v2193 = vshll.u32 %v2176, 16
        %v2195 = vrot.slane %v2193, 3
        %v2196 = vor.u32 %v2192, %v2195
        %v2197 = vsel %vm2180, %v2188, %v2196
        %v2199 = vshrl.u32 %v2177, 16
        %v2201 = vrot.slane %v2199, 2
        %v2202 = vshll.u32 %v2177, 16
        %v2204 = vrot.slane %v2202, 3
        %v2205 = vor.u32 %v2201, %v2204
        %v2206 = vsel %vm2180, %v2196, %v2205
        %v2208 = vshrl.u32 %v2178, 16
        %v2210 = vrot.slane %v2208, 2
        %v2211 = vshll.u32 %v2178, 16
        %v2213 = vrot.slane %v2211, 3
        %v2214 = vor.u32 %v2210, %v2213
        %v2215 = vsel %vm2180, %v2205, %v2214
        %v2217 = vshll.u32 %v2179, 16
        %v2219 = vrot.slane %v2217, 3
        %v2220 = vsel %vm2180, %v2214, %v2219
        %v2222 = vsel %vm1969, %v2197, 0
        %v2225 = vsel %vm1969, %v2206, 0
        %v2228 = vsel %vm1969, %v2215, 0
        %v2231 = vsel %vm1969, %v2220, 0
        %2233 = vmatprep.subr.bf16.mxu0 0
        %2234 = vmatpush1.bf16.msra.mxu0 0
        %2235 = vmatprep.subr.bf16.mxu0 0
        %2236 = vmatpush1.bf16.msra.mxu0 0
        %2237 = vmatprep.subr.bf16.mxu0 0
        %2238 = vmatpush1.bf16.msra.mxu0 0
        %2239 = vmatprep.subr.bf16.mxu0 0
        %2240 = vmatpush1.bf16.msra.mxu0 0
        %2241 = vmatprep.subr.bf16.mxu0 0
        %2242 = vmatpush1.bf16.msra.mxu0 %v1964
        %2243 = vmatprep.subr.bf16.mxu0 0
        %2244 = vmatpush1.bf16.msra.mxu0 %v1963
        %2245 = vmatprep.subr.bf16.mxu0 0
        %2246 = vmatpush1.bf16.msra.mxu0 %v1962
        %2247 = vmatprep.subr.bf16.mxu0 0
        %2248 = vmatpush1.bf16.msra.mxu0 %v1961
        %2249 = vmatprep.subr.bf16.mxu0 0
        %2250 = vmatpush2.bf16.msra.mxu0 0
        %2251 = vmatprep.subr.bf16.mxu0 0
        %2252 = vmatpush2.bf16.msra.mxu0 0
        %2253 = vmatprep.subr.bf16.mxu0 0
        %2254 = vmatpush2.bf16.msra.mxu0 0
        %2255 = vmatprep.subr.bf16.mxu0 0
        %2256 = vmatpush2.bf16.msra.mxu0 0
        %2257 = vmatprep.subr.bf16.mxu0 0
        %2258 = vmatpush2.bf16.msra.mxu0 0
        %2259 = vmatprep.subr.bf16.mxu0 0
        %2260 = vmatpush2.bf16.msra.mxu0 0
        %2261 = vmatprep.subr.bf16.mxu0 0
        %2262 = vmatpush2.bf16.msra.mxu0 0
        %2263 = vmatprep.subr.bf16.mxu0 0
        %2264 = vmatpush2.bf16.msra.mxu0 0
        %2265 = vmatprep.mubr.bf16.mxu0 0
        %2266 = vmatmul.mubr.bf16.gmra.mxu0 %v2222
        %v2267 = vpop.f32.mrf.mxu0
        %v2268 = vadd.f32 0.0, %v2267
        %v2269 = vpop.f32.mrf.mxu0
        %v2270 = vpop.f32.mrf.mxu0
        %v2271 = vadd.f32 0.0, %v2270
        %v2272 = vpop.f32.mrf.mxu0
        %2273 = vmatprep.mubr.bf16.mxu0 0
        %2274 = vmatmul.mubr.bf16.gmra.mxu0 %v2225
        %v2275 = vpop.f32.mrf.mxu0
        %v2276 = vadd.f32 0.0, %v2275
        %v2277 = vpop.f32.mrf.mxu0
        %v2278 = vpop.f32.mrf.mxu0
        %v2279 = vadd.f32 0.0, %v2278
        %v2280 = vpop.f32.mrf.mxu0
        %2281 = vmatprep.mubr.bf16.mxu0 0
        %2282 = vmatmul.mubr.bf16.gmra.mxu0 %v2228
        %v2283 = vpop.f32.mrf.mxu0
        %v2284 = vadd.f32 0.0, %v2283
        %v2285 = vpop.f32.mrf.mxu0
        %v2286 = vpop.f32.mrf.mxu0
        %v2287 = vadd.f32 0.0, %v2286
        %v2288 = vpop.f32.mrf.mxu0
        %2289 = vmatprep.mubr.bf16.mxu0 0
        %2290 = vmatmul.mubr.bf16.gmra.mxu0 %v2231
        %v2291 = vpop.f32.mrf.mxu0
        %v2292 = vadd.f32 0.0, %v2291
        %v2293 = vpop.f32.mrf.mxu0
        %v2294 = vpop.f32.mrf.mxu0
        %v2295 = vadd.f32 0.0, %v2294
        %v2296 = vpop.f32.mrf.mxu0
        %2297 = vdwg.mxu0
        %v2306 = vunpack.c.l.b16 %v1868
        %v2307 = vunpack.c.l.b16 %v1869
        %v2308 = vunpack.c.l.b16 %v1870
        %v2309 = vunpack.c.l.b16 %v1871
        %v2310 = vunpack.c.l.b16 %v1872
        %v2311 = vunpack.c.l.b16 %v1873
        %v2312 = vunpack.c.l.b16 %v1874
        %v2313 = vunpack.c.l.b16 %v1875
        %v2314 = vpack.c.b16 %v2307, %v2306
        %v2315 = vpack.c.b16 %v2309, %v2308
        %v2316 = vpack.c.b16 %v2311, %v2310
        %v2317 = vpack.c.b16 %v2313, %v2312
        %vm2318 = vcmask 1045504
        %v2319 = vrot.slane %v2314, 2
        %v2320 = vrot.slane %v2315, 2
        %v2321 = vsel %vm2318, %v2319, %v2320
        %v2322 = vrot.slane %v2316, 2
        %v2323 = vsel %vm2318, %v2320, %v2322
        %v2324 = vrot.slane %v2317, 2
        %v2325 = vsel %vm2318, %v2322, %v2324
        %v2327 = vsel %vm1969, %v2321, 0
        %v2330 = vsel %vm1969, %v2323, 0
        %v2333 = vsel %vm1969, %v2325, 0
        %v2336 = vsel %vm1969, %v2324, 0
        %2338 = vmatprep.subr.bf16.mxu0 0
        %2339 = vmatpush1.bf16.msra.mxu0 0
        %2340 = vmatprep.subr.bf16.mxu0 0
        %2341 = vmatpush1.bf16.msra.mxu0 0
        %2342 = vmatprep.subr.bf16.mxu0 0
        %2343 = vmatpush1.bf16.msra.mxu0 0
        %2344 = vmatprep.subr.bf16.mxu0 0
        %2345 = vmatpush1.bf16.msra.mxu0 0
        %2346 = vmatprep.subr.bf16.mxu0 0
        %2347 = vmatpush1.bf16.msra.mxu0 %v2069
        %2348 = vmatprep.subr.bf16.mxu0 0
        %2349 = vmatpush1.bf16.msra.mxu0 %v2068
        %2350 = vmatprep.subr.bf16.mxu0 0
        %2351 = vmatpush1.bf16.msra.mxu0 %v2067
        %2352 = vmatprep.subr.bf16.mxu0 0
        %2353 = vmatpush1.bf16.msra.mxu0 %v2066
        %2354 = vmatprep.subr.bf16.mxu0 0
        %2355 = vmatpush2.bf16.msra.mxu0 0
        %2356 = vmatprep.subr.bf16.mxu0 0
        %2357 = vmatpush2.bf16.msra.mxu0 0
        %2358 = vmatprep.subr.bf16.mxu0 0
        %2359 = vmatpush2.bf16.msra.mxu0 0
        %2360 = vmatprep.subr.bf16.mxu0 0
        %2361 = vmatpush2.bf16.msra.mxu0 0
        %2362 = vmatprep.subr.bf16.mxu0 0
        %2363 = vmatpush2.bf16.msra.mxu0 0
        %2364 = vmatprep.subr.bf16.mxu0 0
        %2365 = vmatpush2.bf16.msra.mxu0 0
        %2366 = vmatprep.subr.bf16.mxu0 0
        %2367 = vmatpush2.bf16.msra.mxu0 0
        %2368 = vmatprep.subr.bf16.mxu0 0
        %2369 = vmatpush2.bf16.msra.mxu0 0
        %2370 = vmatprep.mubr.bf16.mxu0 0
        %2371 = vmatmul.mubr.bf16.gmra.mxu0 %v2327
        %v2372 = vpop.f32.mrf.mxu0
        %v2373 = vadd.f32 %v2268, %v2372
        %v2374 = vpop.f32.mrf.mxu0
        %v2375 = vpop.f32.mrf.mxu0
        %v2376 = vadd.f32 %v2271, %v2375
        %v2377 = vpop.f32.mrf.mxu0
        %2378 = vmatprep.mubr.bf16.mxu0 0
        %2379 = vmatmul.mubr.bf16.gmra.mxu0 %v2330
        %v2380 = vpop.f32.mrf.mxu0
        %v2381 = vadd.f32 %v2276, %v2380
        %v2382 = vpop.f32.mrf.mxu0
        %v2383 = vpop.f32.mrf.mxu0
        %v2384 = vadd.f32 %v2279, %v2383
        %v2385 = vpop.f32.mrf.mxu0
        %2386 = vmatprep.mubr.bf16.mxu0 0
        %2387 = vmatmul.mubr.bf16.gmra.mxu0 %v2333
        %v2388 = vpop.f32.mrf.mxu0
        %v2389 = vadd.f32 %v2284, %v2388
        %v2390 = vpop.f32.mrf.mxu0
        %v2391 = vpop.f32.mrf.mxu0
        %v2392 = vadd.f32 %v2287, %v2391
        %v2393 = vpop.f32.mrf.mxu0
        %2394 = vmatprep.mubr.bf16.mxu0 0
        %2395 = vmatmul.mubr.bf16.gmra.mxu0 %v2336
        %v2396 = vpop.f32.mrf.mxu0
        %v2397 = vadd.f32 %v2292, %v2396
        %v2398 = vpop.f32.mrf.mxu0
        %v2399 = vpop.f32.mrf.mxu0
        %v2400 = vadd.f32 %v2295, %v2399
        %v2401 = vpop.f32.mrf.mxu0
        %2402 = vdwg.mxu0
        %v2403 = vld [vmem:[#allocation2 + $0x58] sm:$0x7]
        %v2412 = vunpack.c.l.b16 %v1876
        %v2413 = vunpack.c.l.b16 %v1877
        %v2414 = vunpack.c.l.b16 %v1878
        %v2415 = vunpack.c.l.b16 %v1879
        %v2416 = vunpack.c.l.b16 %v1880
        %v2417 = vunpack.c.l.b16 %v1881
        %v2418 = vunpack.c.l.b16 %v1882
        %v2419 = vunpack.c.l.b16 %v2403
        %v2420 = vpack.c.b16 %v2413, %v2412
        %v2421 = vpack.c.b16 %v2415, %v2414
        %v2422 = vpack.c.b16 %v2417, %v2416
        %v2423 = vpack.c.b16 %v2419, %v2418
        %v2425 = vshrl.u32 %v2420, 16
        %v2427 = vshll.u32 %v2420, 16
        %v2429 = vrot.slane %v2427, 1
        %v2430 = vor.u32 %v2425, %v2429
        %v2432 = vshll.u32 %v2421, 16
        %v2434 = vrot.slane %v2432, 1
        %v2435 = vsel %vm1913, %v2430, %v2434
        %v2436 = vshrl.u32 %v2421, 16
        %v2438 = vor.u32 %v2436, %v2434
        %v2440 = vshll.u32 %v2422, 16
        %v2442 = vrot.slane %v2440, 1
        %v2443 = vsel %vm1913, %v2438, %v2442
        %v2444 = vshrl.u32 %v2422, 16
        %v2446 = vor.u32 %v2444, %v2442
        %v2448 = vshll.u32 %v2423, 16
        %v2450 = vrot.slane %v2448, 1
        %v2451 = vsel %vm1913, %v2446, %v2450
        %v2452 = vshrl.u32 %v2423, 16
        %v2454 = vor.u32 %v2452, %v2450
        %v2456 = vsel %vm1969, %v2435, 0
        %v2459 = vsel %vm1969, %v2443, 0
        %v2462 = vsel %vm1969, %v2451, 0
        %v2465 = vsel %vm1969, %v2454, 0
        %2467 = vmatprep.subr.bf16.mxu0 0
        %2468 = vmatpush1.bf16.msra.mxu0 0
        %2469 = vmatprep.subr.bf16.mxu0 0
        %2470 = vmatpush1.bf16.msra.mxu0 0
        %2471 = vmatprep.subr.bf16.mxu0 0
        %2472 = vmatpush1.bf16.msra.mxu0 0
        %2473 = vmatprep.subr.bf16.mxu0 0
        %2474 = vmatpush1.bf16.msra.mxu0 0
        %2475 = vmatprep.subr.bf16.mxu0 0
        %2476 = vmatpush1.bf16.msra.mxu0 %v1964
        %2477 = vmatprep.subr.bf16.mxu0 0
        %2478 = vmatpush1.bf16.msra.mxu0 %v1963
        %2479 = vmatprep.subr.bf16.mxu0 0
        %2480 = vmatpush1.bf16.msra.mxu0 %v1962
        %2481 = vmatprep.subr.bf16.mxu0 0
        %2482 = vmatpush1.bf16.msra.mxu0 %v1961
        %2483 = vmatprep.subr.bf16.mxu0 0
        %2484 = vmatpush2.bf16.msra.mxu0 0
        %2485 = vmatprep.subr.bf16.mxu0 0
        %2486 = vmatpush2.bf16.msra.mxu0 0
        %2487 = vmatprep.subr.bf16.mxu0 0
        %2488 = vmatpush2.bf16.msra.mxu0 0
        %2489 = vmatprep.subr.bf16.mxu0 0
        %2490 = vmatpush2.bf16.msra.mxu0 0
        %2491 = vmatprep.subr.bf16.mxu0 0
        %2492 = vmatpush2.bf16.msra.mxu0 0
        %2493 = vmatprep.subr.bf16.mxu0 0
        %2494 = vmatpush2.bf16.msra.mxu0 0
        %2495 = vmatprep.subr.bf16.mxu0 0
        %2496 = vmatpush2.bf16.msra.mxu0 0
        %2497 = vmatprep.subr.bf16.mxu0 0
        %2498 = vmatpush2.bf16.msra.mxu0 0
        %2499 = vmatprep.mubr.bf16.mxu0 0
        %2500 = vmatmul.mubr.bf16.gmra.mxu0 %v2456
        %v2501 = vpop.f32.mrf.mxu0
        %v2502 = vadd.f32 0.0, %v2501
        %v2503 = vpop.f32.mrf.mxu0
        %v2504 = vpop.f32.mrf.mxu0
        %v2505 = vadd.f32 0.0, %v2504
        %v2506 = vpop.f32.mrf.mxu0
        %2507 = vmatprep.mubr.bf16.mxu0 0
        %2508 = vmatmul.mubr.bf16.gmra.mxu0 %v2459
        %v2509 = vpop.f32.mrf.mxu0
        %v2510 = vadd.f32 0.0, %v2509
        %v2511 = vpop.f32.mrf.mxu0
        %v2512 = vpop.f32.mrf.mxu0
        %v2513 = vadd.f32 0.0, %v2512
        %v2514 = vpop.f32.mrf.mxu0
        %2515 = vmatprep.mubr.bf16.mxu0 0
        %2516 = vmatmul.mubr.bf16.gmra.mxu0 %v2462
        %v2517 = vpop.f32.mrf.mxu0
        %v2518 = vadd.f32 0.0, %v2517
        %v2519 = vpop.f32.mrf.mxu0
        %v2520 = vpop.f32.mrf.mxu0
        %v2521 = vadd.f32 0.0, %v2520
        %v2522 = vpop.f32.mrf.mxu0
        %2523 = vmatprep.mubr.bf16.mxu0 0
        %2524 = vmatmul.mubr.bf16.gmra.mxu0 %v2465
        %v2525 = vpop.f32.mrf.mxu0
        %v2526 = vadd.f32 0.0, %v2525
        %v2527 = vpop.f32.mrf.mxu0
        %v2528 = vpop.f32.mrf.mxu0
        %v2529 = vadd.f32 0.0, %v2528
        %v2530 = vpop.f32.mrf.mxu0
        %2531 = vdwg.mxu0
        %v2533 = vunpack.c.l.b16 %v1883
        %v2534 = vpack.c.b16 %v2533, %v2418
        %v2535 = vsel %vm1969, %v2420, 0
        %v2537 = vsel %vm1969, %v2421, 0
        %v2539 = vsel %vm1969, %v2422, 0
        %v2542 = vsel %vm1969, %v2534, 0
        %2544 = vmatprep.subr.bf16.mxu0 0
        %2545 = vmatpush1.bf16.msra.mxu0 0
        %2546 = vmatprep.subr.bf16.mxu0 0
        %2547 = vmatpush1.bf16.msra.mxu0 0
        %2548 = vmatprep.subr.bf16.mxu0 0
        %2549 = vmatpush1.bf16.msra.mxu0 0
        %2550 = vmatprep.subr.bf16.mxu0 0
        %2551 = vmatpush1.bf16.msra.mxu0 0
        %2552 = vmatprep.subr.bf16.mxu0 0
        %2553 = vmatpush1.bf16.msra.mxu0 %v2069
        %2554 = vmatprep.subr.bf16.mxu0 0
        %2555 = vmatpush1.bf16.msra.mxu0 %v2068
        %2556 = vmatprep.subr.bf16.mxu0 0
        %2557 = vmatpush1.bf16.msra.mxu0 %v2067
        %2558 = vmatprep.subr.bf16.mxu0 0
        %2559 = vmatpush1.bf16.msra.mxu0 %v2066
        %2560 = vmatprep.subr.bf16.mxu0 0
        %2561 = vmatpush2.bf16.msra.mxu0 0
        %2562 = vmatprep.subr.bf16.mxu0 0
        %2563 = vmatpush2.bf16.msra.mxu0 0
        %2564 = vmatprep.subr.bf16.mxu0 0
        %2565 = vmatpush2.bf16.msra.mxu0 0
        %2566 = vmatprep.subr.bf16.mxu0 0
        %2567 = vmatpush2.bf16.msra.mxu0 0
        %2568 = vmatprep.subr.bf16.mxu0 0
        %2569 = vmatpush2.bf16.msra.mxu0 0
        %2570 = vmatprep.subr.bf16.mxu0 0
        %2571 = vmatpush2.bf16.msra.mxu0 0
        %2572 = vmatprep.subr.bf16.mxu0 0
        %2573 = vmatpush2.bf16.msra.mxu0 0
        %2574 = vmatprep.subr.bf16.mxu0 0
        %2575 = vmatpush2.bf16.msra.mxu0 0
        %2576 = vmatprep.mubr.bf16.mxu0 0
        %2577 = vmatmul.mubr.bf16.gmra.mxu0 %v2535
        %v2578 = vpop.f32.mrf.mxu0
        %v2579 = vadd.f32 %v2502, %v2578
        %v2580 = vpop.f32.mrf.mxu0
        %v2581 = vpop.f32.mrf.mxu0
        %v2582 = vadd.f32 %v2505, %v2581
        %v2583 = vpop.f32.mrf.mxu0
        %2584 = vmatprep.mubr.bf16.mxu0 0
        %2585 = vmatmul.mubr.bf16.gmra.mxu0 %v2537
        %v2586 = vpop.f32.mrf.mxu0
        %v2587 = vadd.f32 %v2510, %v2586
        %v2588 = vpop.f32.mrf.mxu0
        %v2589 = vpop.f32.mrf.mxu0
        %v2590 = vadd.f32 %v2513, %v2589
        %v2591 = vpop.f32.mrf.mxu0
        %2592 = vmatprep.mubr.bf16.mxu0 0
        %2593 = vmatmul.mubr.bf16.gmra.mxu0 %v2539
        %v2594 = vpop.f32.mrf.mxu0
        %v2595 = vadd.f32 %v2518, %v2594
        %v2596 = vpop.f32.mrf.mxu0
        %v2597 = vpop.f32.mrf.mxu0
        %v2598 = vadd.f32 %v2521, %v2597
        %v2599 = vpop.f32.mrf.mxu0
        %2600 = vmatprep.mubr.bf16.mxu0 0
        %2601 = vmatmul.mubr.bf16.gmra.mxu0 %v2542
        %v2602 = vpop.f32.mrf.mxu0
        %v2603 = vadd.f32 %v2526, %v2602
        %v2604 = vpop.f32.mrf.mxu0
        %v2605 = vpop.f32.mrf.mxu0
        %v2606 = vadd.f32 %v2529, %v2605
        %v2607 = vpop.f32.mrf.mxu0
        %2608 = vdwg.mxu0
        %v2609 = vld [vmem:[%s3 + $0x40] sm:$0xf]
        %v2610 = vld [vmem:[%s3 + $0x44] sm:$0xf]
        %v2611 = vld [vmem:[%s3 + $0x48] sm:$0xf]
        %v2612 = vld [vmem:[%s3 + $0x4c] sm:$0xf]
        %v2613 = vld [vmem:[%s3 + $0x50] sm:$0xf]
        %v2614 = vld [vmem:[%s3 + $0x54] sm:$0xf]
        %v2615 = vld [vmem:[%s3 + $0x58] sm:$0xf]
        %v2616 = vld [vmem:[%s3 + $0x5c] sm:$0xf]
        %v2617 = vld [vmem:[#allocation2] sm:$0xe]
        %v2619 = vunpack.c.l.b16 %v2617
        %v2620 = vpack.c.b16 %v1902, %v2619
        %vm2621 = vcmask 1046528
        %v2622 = vrot.slane %v2620, 1
        %v2623 = vrot.slane %v1910, 1
        %v2624 = vsel %vm2621, %v2622, %v2623
        %v2625 = vrot.slane %v1911, 1
        %v2626 = vsel %vm2621, %v2623, %v2625
        %v2627 = vrot.slane %v1912, 1
        %v2628 = vsel %vm2621, %v2625, %v2627
        %v2637 = vunpack.c.l.b16 %v2609
        %v2638 = vunpack.c.l.b16 %v2610
        %v2639 = vunpack.c.l.b16 %v2611
        %v2640 = vunpack.c.l.b16 %v2612
        %v2641 = vunpack.c.l.b16 %v2613
        %v2642 = vunpack.c.l.b16 %v2614
        %v2643 = vunpack.c.l.b16 %v2615
        %v2644 = vunpack.c.l.b16 %v2616
        %v2645 = vpack.c.b16 %v2638, %v2637
        %v2646 = vpack.c.b16 %v2640, %v2639
        %v2647 = vpack.c.b16 %v2642, %v2641
        %v2648 = vpack.c.b16 %v2644, %v2643
        %v2654 = vsel %vm1969, %v2624, 0
        %v2657 = vsel %vm1969, %v2626, 0
        %v2660 = vsel %vm1969, %v2628, 0
        %v2663 = vsel %vm1969, %v2627, 0
        %2665 = vmatprep.subr.bf16.mxu0 0
        %2666 = vmatpush1.bf16.msra.mxu0 0
        %2667 = vmatprep.subr.bf16.mxu0 0
        %2668 = vmatpush1.bf16.msra.mxu0 0
        %2669 = vmatprep.subr.bf16.mxu0 0
        %2670 = vmatpush1.bf16.msra.mxu0 0
        %2671 = vmatprep.subr.bf16.mxu0 0
        %2672 = vmatpush1.bf16.msra.mxu0 0
        %2673 = vmatprep.subr.bf16.mxu0 0
        %2674 = vmatpush1.bf16.msra.mxu0 %v2648
        %2675 = vmatprep.subr.bf16.mxu0 0
        %2676 = vmatpush1.bf16.msra.mxu0 %v2647
        %2677 = vmatprep.subr.bf16.mxu0 0
        %2678 = vmatpush1.bf16.msra.mxu0 %v2646
        %2679 = vmatprep.subr.bf16.mxu0 0
        %2680 = vmatpush1.bf16.msra.mxu0 %v2645
        %2681 = vmatprep.subr.bf16.mxu0 0
        %2682 = vmatpush2.bf16.msra.mxu0 0
        %2683 = vmatprep.subr.bf16.mxu0 0
        %2684 = vmatpush2.bf16.msra.mxu0 0
        %2685 = vmatprep.subr.bf16.mxu0 0
        %2686 = vmatpush2.bf16.msra.mxu0 0
        %2687 = vmatprep.subr.bf16.mxu0 0
        %2688 = vmatpush2.bf16.msra.mxu0 0
        %2689 = vmatprep.subr.bf16.mxu0 0
        %2690 = vmatpush2.bf16.msra.mxu0 0
        %2691 = vmatprep.subr.bf16.mxu0 0
        %2692 = vmatpush2.bf16.msra.mxu0 0
        %2693 = vmatprep.subr.bf16.mxu0 0
        %2694 = vmatpush2.bf16.msra.mxu0 0
        %2695 = vmatprep.subr.bf16.mxu0 0
        %2696 = vmatpush2.bf16.msra.mxu0 0
        %2697 = vmatprep.mubr.bf16.mxu0 0
        %2698 = vmatmul.mubr.bf16.gmra.mxu0 %v2654
        %v2699 = vpop.f32.mrf.mxu0
        %v2700 = vadd.f32 0.0, %v2699
        %v2701 = vpop.f32.mrf.mxu0
        %v2702 = vpop.f32.mrf.mxu0
        %v2703 = vadd.f32 0.0, %v2702
        %v2704 = vpop.f32.mrf.mxu0
        %2705 = vmatprep.mubr.bf16.mxu0 0
        %2706 = vmatmul.mubr.bf16.gmra.mxu0 %v2657
        %v2707 = vpop.f32.mrf.mxu0
        %v2708 = vadd.f32 0.0, %v2707
        %v2709 = vpop.f32.mrf.mxu0
        %v2710 = vpop.f32.mrf.mxu0
        %v2711 = vadd.f32 0.0, %v2710
        %v2712 = vpop.f32.mrf.mxu0
        %2713 = vmatprep.mubr.bf16.mxu0 0
        %2714 = vmatmul.mubr.bf16.gmra.mxu0 %v2660
        %v2715 = vpop.f32.mrf.mxu0
        %v2716 = vadd.f32 0.0, %v2715
        %v2717 = vpop.f32.mrf.mxu0
        %v2718 = vpop.f32.mrf.mxu0
        %v2719 = vadd.f32 0.0, %v2718
        %v2720 = vpop.f32.mrf.mxu0
        %2721 = vmatprep.mubr.bf16.mxu0 0
        %2722 = vmatmul.mubr.bf16.gmra.mxu0 %v2663
        %v2723 = vpop.f32.mrf.mxu0
        %v2724 = vadd.f32 0.0, %v2723
        %v2725 = vpop.f32.mrf.mxu0
        %v2726 = vpop.f32.mrf.mxu0
        %v2727 = vadd.f32 0.0, %v2726
        %v2728 = vpop.f32.mrf.mxu0
        %2729 = vdwg.mxu0
        %v2730 = vadd.f32 %v2118, %v2700
        %v2731 = vadd.f32 %v2121, %v2703
        %v2732 = vadd.f32 %v2126, %v2708
        %v2733 = vadd.f32 %v2129, %v2711
        %v2734 = vadd.f32 %v2134, %v2716
        %v2735 = vadd.f32 %v2137, %v2719
        %v2736 = vadd.f32 %v2142, %v2724
        %v2737 = vadd.f32 %v2145, %v2727
        %v2738 = vld [vmem:[#allocation2 + $0x1c] sm:$0x8]
        %v2740 = vunpack.c.l.b16 %v2738
        %v2741 = vpack.c.b16 %v2167, %v2740
        %vm2742 = vcmask 1044480
        %v2743 = vrot.slane %v2741, 3
        %v2744 = vrot.slane %v2176, 3
        %v2745 = vsel %vm2742, %v2743, %v2744
        %v2746 = vrot.slane %v2177, 3
        %v2747 = vsel %vm2742, %v2744, %v2746
        %v2748 = vrot.slane %v2178, 3
        %v2749 = vsel %vm2742, %v2746, %v2748
        %v2750 = vrot.slane %v2179, 3
        %v2751 = vsel %vm2742, %v2748, %v2750
        %v2753 = vsel %vm1969, %v2745, 0
        %v2756 = vsel %vm1969, %v2747, 0
        %v2759 = vsel %vm1969, %v2749, 0
        %v2762 = vsel %vm1969, %v2751, 0
        %2764 = vmatprep.subr.bf16.mxu0 0
        %2765 = vmatpush1.bf16.msra.mxu0 0
        %2766 = vmatprep.subr.bf16.mxu0 0
        %2767 = vmatpush1.bf16.msra.mxu0 0
        %2768 = vmatprep.subr.bf16.mxu0 0
        %2769 = vmatpush1.bf16.msra.mxu0 0
        %2770 = vmatprep.subr.bf16.mxu0 0
        %2771 = vmatpush1.bf16.msra.mxu0 0
        %2772 = vmatprep.subr.bf16.mxu0 0
        %2773 = vmatpush1.bf16.msra.mxu0 %v2648
        %2774 = vmatprep.subr.bf16.mxu0 0
        %2775 = vmatpush1.bf16.msra.mxu0 %v2647
        %2776 = vmatprep.subr.bf16.mxu0 0
        %2777 = vmatpush1.bf16.msra.mxu0 %v2646
        %2778 = vmatprep.subr.bf16.mxu0 0
        %2779 = vmatpush1.bf16.msra.mxu0 %v2645
        %2780 = vmatprep.subr.bf16.mxu0 0
        %2781 = vmatpush2.bf16.msra.mxu0 0
        %2782 = vmatprep.subr.bf16.mxu0 0
        %2783 = vmatpush2.bf16.msra.mxu0 0
        %2784 = vmatprep.subr.bf16.mxu0 0
        %2785 = vmatpush2.bf16.msra.mxu0 0
        %2786 = vmatprep.subr.bf16.mxu0 0
        %2787 = vmatpush2.bf16.msra.mxu0 0
        %2788 = vmatprep.subr.bf16.mxu0 0
        %2789 = vmatpush2.bf16.msra.mxu0 0
        %2790 = vmatprep.subr.bf16.mxu0 0
        %2791 = vmatpush2.bf16.msra.mxu0 0
        %2792 = vmatprep.subr.bf16.mxu0 0
        %2793 = vmatpush2.bf16.msra.mxu0 0
        %2794 = vmatprep.subr.bf16.mxu0 0
        %2795 = vmatpush2.bf16.msra.mxu0 0
        %2796 = vmatprep.mubr.bf16.mxu0 0
        %2797 = vmatmul.mubr.bf16.gmra.mxu0 %v2753
        %v2798 = vpop.f32.mrf.mxu0
        %v2799 = vadd.f32 0.0, %v2798
        %v2800 = vpop.f32.mrf.mxu0
        %v2801 = vpop.f32.mrf.mxu0
        %v2802 = vadd.f32 0.0, %v2801
        %v2803 = vpop.f32.mrf.mxu0
        %2804 = vmatprep.mubr.bf16.mxu0 0
        %2805 = vmatmul.mubr.bf16.gmra.mxu0 %v2756
        %v2806 = vpop.f32.mrf.mxu0
        %v2807 = vadd.f32 0.0, %v2806
        %v2808 = vpop.f32.mrf.mxu0
        %v2809 = vpop.f32.mrf.mxu0
        %v2810 = vadd.f32 0.0, %v2809
        %v2811 = vpop.f32.mrf.mxu0
        %2812 = vmatprep.mubr.bf16.mxu0 0
        %2813 = vmatmul.mubr.bf16.gmra.mxu0 %v2759
        %v2814 = vpop.f32.mrf.mxu0
        %v2815 = vadd.f32 0.0, %v2814
        %v2816 = vpop.f32.mrf.mxu0
        %v2817 = vpop.f32.mrf.mxu0
        %v2818 = vadd.f32 0.0, %v2817
        %v2819 = vpop.f32.mrf.mxu0
        %2820 = vmatprep.mubr.bf16.mxu0 0
        %2821 = vmatmul.mubr.bf16.gmra.mxu0 %v2762
        %v2822 = vpop.f32.mrf.mxu0
        %v2823 = vadd.f32 0.0, %v2822
        %v2824 = vpop.f32.mrf.mxu0
        %v2825 = vpop.f32.mrf.mxu0
        %v2826 = vadd.f32 0.0, %v2825
        %v2827 = vpop.f32.mrf.mxu0
        %2828 = vdwg.mxu0
        %v2829 = vadd.f32 %v2373, %v2799
        %v2830 = vadd.f32 %v2376, %v2802
        %v2831 = vadd.f32 %v2381, %v2807
        %v2832 = vadd.f32 %v2384, %v2810
        %v2833 = vadd.f32 %v2389, %v2815
        %v2834 = vadd.f32 %v2392, %v2818
        %v2835 = vadd.f32 %v2397, %v2823
        %v2836 = vadd.f32 %v2400, %v2826
        %v2837 = vld [vmem:[#allocation2 + $0x3c] sm:$0xe]
        %v2839 = vunpack.c.l.b16 %v2837
        %v2840 = vpack.c.b16 %v2413, %v2839
        %v2841 = vrot.slane %v2840, 1
        %v2842 = vrot.slane %v2421, 1
        %v2843 = vsel %vm2621, %v2841, %v2842
        %v2844 = vrot.slane %v2422, 1
        %v2845 = vsel %vm2621, %v2842, %v2844
        %v2846 = vrot.slane %v2423, 1
        %v2847 = vsel %vm2621, %v2844, %v2846
        %v2849 = vsel %vm1969, %v2843, 0
        %v2852 = vsel %vm1969, %v2845, 0
        %v2855 = vsel %vm1969, %v2847, 0
        %v2858 = vsel %vm1969, %v2846, 0
        %2860 = vmatprep.subr.bf16.mxu0 0
        %2861 = vmatpush1.bf16.msra.mxu0 0
        %2862 = vmatprep.subr.bf16.mxu0 0
        %2863 = vmatpush1.bf16.msra.mxu0 0
        %2864 = vmatprep.subr.bf16.mxu0 0
        %2865 = vmatpush1.bf16.msra.mxu0 0
        %2866 = vmatprep.subr.bf16.mxu0 0
        %2867 = vmatpush1.bf16.msra.mxu0 0
        %2868 = vmatprep.subr.bf16.mxu0 0
        %2869 = vmatpush1.bf16.msra.mxu0 %v2648
        %2870 = vmatprep.subr.bf16.mxu0 0
        %2871 = vmatpush1.bf16.msra.mxu0 %v2647
        %2872 = vmatprep.subr.bf16.mxu0 0
        %2873 = vmatpush1.bf16.msra.mxu0 %v2646
        %2874 = vmatprep.subr.bf16.mxu0 0
        %2875 = vmatpush1.bf16.msra.mxu0 %v2645
        %2876 = vmatprep.subr.bf16.mxu0 0
        %2877 = vmatpush2.bf16.msra.mxu0 0
        %2878 = vmatprep.subr.bf16.mxu0 0
        %2879 = vmatpush2.bf16.msra.mxu0 0
        %2880 = vmatprep.subr.bf16.mxu0 0
        %2881 = vmatpush2.bf16.msra.mxu0 0
        %2882 = vmatprep.subr.bf16.mxu0 0
        %2883 = vmatpush2.bf16.msra.mxu0 0
        %2884 = vmatprep.subr.bf16.mxu0 0
        %2885 = vmatpush2.bf16.msra.mxu0 0
        %2886 = vmatprep.subr.bf16.mxu0 0
        %2887 = vmatpush2.bf16.msra.mxu0 0
        %2888 = vmatprep.subr.bf16.mxu0 0
        %2889 = vmatpush2.bf16.msra.mxu0 0
        %2890 = vmatprep.subr.bf16.mxu0 0
        %2891 = vmatpush2.bf16.msra.mxu0 0
        %2892 = vmatprep.mubr.bf16.mxu0 0
        %2893 = vmatmul.mubr.bf16.gmra.mxu0 %v2849
        %v2894 = vpop.f32.mrf.mxu0
        %v2895 = vadd.f32 0.0, %v2894
        %v2896 = vpop.f32.mrf.mxu0
        %v2897 = vpop.f32.mrf.mxu0
        %v2898 = vadd.f32 0.0, %v2897
        %v2899 = vpop.f32.mrf.mxu0
        %2900 = vmatprep.mubr.bf16.mxu0 0
        %2901 = vmatmul.mubr.bf16.gmra.mxu0 %v2852
        %v2902 = vpop.f32.mrf.mxu0
        %v2903 = vadd.f32 0.0, %v2902
        %v2904 = vpop.f32.mrf.mxu0
        %v2905 = vpop.f32.mrf.mxu0
        %v2906 = vadd.f32 0.0, %v2905
        %v2907 = vpop.f32.mrf.mxu0
        %2908 = vmatprep.mubr.bf16.mxu0 0
        %2909 = vmatmul.mubr.bf16.gmra.mxu0 %v2855
        %v2910 = vpop.f32.mrf.mxu0
        %v2911 = vadd.f32 0.0, %v2910
        %v2912 = vpop.f32.mrf.mxu0
        %v2913 = vpop.f32.mrf.mxu0
        %v2914 = vadd.f32 0.0, %v2913
        %v2915 = vpop.f32.mrf.mxu0
        %2916 = vmatprep.mubr.bf16.mxu0 0
        %2917 = vmatmul.mubr.bf16.gmra.mxu0 %v2858
        %v2918 = vpop.f32.mrf.mxu0
        %v2919 = vadd.f32 0.0, %v2918
        %v2920 = vpop.f32.mrf.mxu0
        %v2921 = vpop.f32.mrf.mxu0
        %v2922 = vadd.f32 0.0, %v2921
        %v2923 = vpop.f32.mrf.mxu0
        %2924 = vdwg.mxu0
        %v2925 = vadd.f32 %v2579, %v2895
        %v2926 = vadd.f32 %v2582, %v2898
        %v2927 = vadd.f32 %v2587, %v2903
        %v2928 = vadd.f32 %v2590, %v2906
        %v2929 = vadd.f32 %v2595, %v2911
        %v2930 = vadd.f32 %v2598, %v2914
        %v2931 = vadd.f32 %v2603, %v2919
        %v2932 = vadd.f32 %v2606, %v2922
        %v2933 = vld [vmem:[%s3 + $0x60] sm:$0xf]
        %v2934 = vld [vmem:[%s3 + $0x64] sm:$0xf]
        %v2935 = vld [vmem:[%s3 + $0x68] sm:$0xf]
        %v2936 = vld [vmem:[%s3 + $0x6c] sm:$0xf]
        %v2937 = vld [vmem:[%s3 + $0x70] sm:$0xf]
        %v2938 = vld [vmem:[%s3 + $0x74] sm:$0xf]
        %v2939 = vld [vmem:[%s3 + $0x78] sm:$0xf]
        %v2940 = vld [vmem:[%s3 + $0x7c] sm:$0xf]
        %v2941 = vld [vmem:[#allocation2 + $0x4] sm:$0x8]
        %v2942 = vld [vmem:[#allocation2 + $0x8] sm:$0xf]
        %v2943 = vld [vmem:[#allocation2 + $0xc] sm:$0xf]
        %v2944 = vld [vmem:[#allocation2 + $0x10] sm:$0xf]
        %v2945 = vld [vmem:[#allocation2 + $0x14] sm:$0xf]
        %v2946 = vld [vmem:[#allocation2 + $0x18] sm:$0xf]
        %v2947 = vld [vmem:[#allocation2 + $0x1c] sm:$0xf]
        %v2948 = vld [vmem:[#allocation2 + $0x20] sm:$0xf]
        %v2949 = vld [vmem:[#allocation2 + $0x24] sm:$0x3]
        %v2959 = vunpack.c.l.b16 %v2941
        %v2960 = vunpack.c.l.b16 %v2942
        %v2961 = vunpack.c.l.b16 %v2943
        %v2962 = vunpack.c.l.b16 %v2944
        %v2963 = vunpack.c.l.b16 %v2945
        %v2964 = vunpack.c.l.b16 %v2946
        %v2965 = vunpack.c.l.b16 %v2947
        %v2966 = vunpack.c.l.b16 %v2948
        %v2967 = vunpack.c.l.b16 %v2949
        %v2968 = vpack.c.b16 %v2960, %v2959
        %v2969 = vpack.c.b16 %v2962, %v2961
        %v2970 = vpack.c.b16 %v2964, %v2963
        %v2971 = vpack.c.b16 %v2966, %v2965
        %v2972 = vpack.c.b16 %v2967, %v2967
        %vm2973 = vsmask.f32 4352
        %v2975 = vshrl.u32 %v2968, 16
        %v2977 = vrot.slane %v2975, 3
        %v2978 = vshll.u32 %v2968, 16
        %v2980 = vrot.slane %v2978, 4
        %v2981 = vor.u32 %v2977, %v2980
        %v2983 = vshrl.u32 %v2969, 16
        %v2985 = vrot.slane %v2983, 3
        %v2986 = vshll.u32 %v2969, 16
        %v2988 = vrot.slane %v2986, 4
        %v2989 = vor.u32 %v2985, %v2988
        %v2990 = vsel %vm2973, %v2981, %v2989
        %v2992 = vshrl.u32 %v2970, 16
        %v2994 = vrot.slane %v2992, 3
        %v2995 = vshll.u32 %v2970, 16
        %v2997 = vrot.slane %v2995, 4
        %v2998 = vor.u32 %v2994, %v2997
        %v2999 = vsel %vm2973, %v2989, %v2998
        %v3001 = vshrl.u32 %v2971, 16
        %v3003 = vrot.slane %v3001, 3
        %v3004 = vshll.u32 %v2971, 16
        %v3006 = vrot.slane %v3004, 4
        %v3007 = vor.u32 %v3003, %v3006
        %v3008 = vsel %vm2973, %v2998, %v3007
        %v3010 = vshrl.u32 %v2972, 16
        %v3012 = vrot.slane %v3010, 3
        %v3013 = vshll.u32 %v2972, 16
        %v3015 = vrot.slane %v3013, 4
        %v3016 = vor.u32 %v3012, %v3015
        %v3017 = vsel %vm2973, %v3007, %v3016
        %v3026 = vunpack.c.l.b16 %v2933
        %v3027 = vunpack.c.l.b16 %v2934
        %v3028 = vunpack.c.l.b16 %v2935
        %v3029 = vunpack.c.l.b16 %v2936
        %v3030 = vunpack.c.l.b16 %v2937
        %v3031 = vunpack.c.l.b16 %v2938
        %v3032 = vunpack.c.l.b16 %v2939
        %v3033 = vunpack.c.l.b16 %v2940
        %v3034 = vpack.c.b16 %v3027, %v3026
        %v3035 = vpack.c.b16 %v3029, %v3028
        %v3036 = vpack.c.b16 %v3031, %v3030
        %v3037 = vpack.c.b16 %v3033, %v3032
        %v3043 = vsel %vm1969, %v2990, 0
        %v3046 = vsel %vm1969, %v2999, 0
        %v3049 = vsel %vm1969, %v3008, 0
        %v3052 = vsel %vm1969, %v3017, 0
        %3054 = vmatprep.subr.bf16.mxu0 0
        %3055 = vmatpush1.bf16.msra.mxu0 0
        %3056 = vmatprep.subr.bf16.mxu0 0
        %3057 = vmatpush1.bf16.msra.mxu0 0
        %3058 = vmatprep.subr.bf16.mxu0 0
        %3059 = vmatpush1.bf16.msra.mxu0 0
        %3060 = vmatprep.subr.bf16.mxu0 0
        %3061 = vmatpush1.bf16.msra.mxu0 0
        %3062 = vmatprep.subr.bf16.mxu0 0
        %3063 = vmatpush1.bf16.msra.mxu0 %v3037
        %3064 = vmatprep.subr.bf16.mxu0 0
        %3065 = vmatpush1.bf16.msra.mxu0 %v3036
        %3066 = vmatprep.subr.bf16.mxu0 0
        %3067 = vmatpush1.bf16.msra.mxu0 %v3035
        %3068 = vmatprep.subr.bf16.mxu0 0
        %3069 = vmatpush1.bf16.msra.mxu0 %v3034
        %3070 = vmatprep.subr.bf16.mxu0 0
        %3071 = vmatpush2.bf16.msra.mxu0 0
        %3072 = vmatprep.subr.bf16.mxu0 0
        %3073 = vmatpush2.bf16.msra.mxu0 0
        %3074 = vmatprep.subr.bf16.mxu0 0
        %3075 = vmatpush2.bf16.msra.mxu0 0
        %3076 = vmatprep.subr.bf16.mxu0 0
        %3077 = vmatpush2.bf16.msra.mxu0 0
        %3078 = vmatprep.subr.bf16.mxu0 0
        %3079 = vmatpush2.bf16.msra.mxu0 0
        %3080 = vmatprep.subr.bf16.mxu0 0
        %3081 = vmatpush2.bf16.msra.mxu0 0
        %3082 = vmatprep.subr.bf16.mxu0 0
        %3083 = vmatpush2.bf16.msra.mxu0 0
        %3084 = vmatprep.subr.bf16.mxu0 0
        %3085 = vmatpush2.bf16.msra.mxu0 0
        %3086 = vmatprep.mubr.bf16.mxu0 0
        %3087 = vmatmul.mubr.bf16.gmra.mxu0 %v3043
        %v3088 = vpop.f32.mrf.mxu0
        %v3089 = vadd.f32 0.0, %v3088
        %v3090 = vpop.f32.mrf.mxu0
        %v3091 = vpop.f32.mrf.mxu0
        %v3092 = vadd.f32 0.0, %v3091
        %v3093 = vpop.f32.mrf.mxu0
        %3094 = vmatprep.mubr.bf16.mxu0 0
        %3095 = vmatmul.mubr.bf16.gmra.mxu0 %v3046
        %v3096 = vpop.f32.mrf.mxu0
        %v3097 = vadd.f32 0.0, %v3096
        %v3098 = vpop.f32.mrf.mxu0
        %v3099 = vpop.f32.mrf.mxu0
        %v3100 = vadd.f32 0.0, %v3099
        %v3101 = vpop.f32.mrf.mxu0
        %3102 = vmatprep.mubr.bf16.mxu0 0
        %3103 = vmatmul.mubr.bf16.gmra.mxu0 %v3049
        %v3104 = vpop.f32.mrf.mxu0
        %v3105 = vadd.f32 0.0, %v3104
        %v3106 = vpop.f32.mrf.mxu0
        %v3107 = vpop.f32.mrf.mxu0
        %v3108 = vadd.f32 0.0, %v3107
        %v3109 = vpop.f32.mrf.mxu0
        %3110 = vmatprep.mubr.bf16.mxu0 0
        %3111 = vmatmul.mubr.bf16.gmra.mxu0 %v3052
        %v3112 = vpop.f32.mrf.mxu0
        %v3113 = vadd.f32 0.0, %v3112
        %v3114 = vpop.f32.mrf.mxu0
        %v3115 = vpop.f32.mrf.mxu0
        %v3116 = vadd.f32 0.0, %v3115
        %v3117 = vpop.f32.mrf.mxu0
        %3118 = vdwg.mxu0
        %v3119 = vadd.f32 %v2730, %v3089
        %v3120 = vadd.f32 %v2731, %v3092
        %v3121 = vadd.f32 %v2732, %v3097
        %v3122 = vadd.f32 %v2733, %v3100
        %v3123 = vadd.f32 %v2734, %v3105
        %v3124 = vadd.f32 %v2735, %v3108
        %v3125 = vadd.f32 %v2736, %v3113
        %v3126 = vadd.f32 %v2737, %v3116
        %v3127 = vld [vmem:[#allocation2 + $0x24] sm:$0xe]
        %v3128 = vld [vmem:[#allocation2 + $0x28] sm:$0xf]
        %v3129 = vld [vmem:[#allocation2 + $0x2c] sm:$0xf]
        %v3130 = vld [vmem:[#allocation2 + $0x30] sm:$0xf]
        %v3131 = vld [vmem:[#allocation2 + $0x34] sm:$0xf]
        %v3132 = vld [vmem:[#allocation2 + $0x38] sm:$0xf]
        %v3133 = vld [vmem:[#allocation2 + $0x3c] sm:$0xf]
        %v3134 = vld [vmem:[#allocation2 + $0x40] sm:$0xf]
        %v3143 = vunpack.c.l.b16 %v3127
        %v3144 = vunpack.c.l.b16 %v3128
        %v3145 = vunpack.c.l.b16 %v3129
        %v3146 = vunpack.c.l.b16 %v3130
        %v3147 = vunpack.c.l.b16 %v3131
        %v3148 = vunpack.c.l.b16 %v3132
        %v3149 = vunpack.c.l.b16 %v3133
        %v3150 = vunpack.c.l.b16 %v3134
        %v3151 = vpack.c.b16 %v3144, %v3143
        %v3152 = vpack.c.b16 %v3146, %v3145
        %v3153 = vpack.c.b16 %v3148, %v3147
        %v3154 = vpack.c.b16 %v3150, %v3149
        %vm3155 = vsmask.f32 6400
        %v3157 = vshrl.u32 %v3151, 16
        %v3159 = vrot.slane %v3157, 1
        %v3160 = vshll.u32 %v3151, 16
        %v3162 = vrot.slane %v3160, 2
        %v3163 = vor.u32 %v3159, %v3162
        %v3165 = vshrl.u32 %v3152, 16
        %v3167 = vrot.slane %v3165, 1
        %v3168 = vshll.u32 %v3152, 16
        %v3170 = vrot.slane %v3168, 2
        %v3171 = vor.u32 %v3167, %v3170
        %v3172 = vsel %vm3155, %v3163, %v3171
        %v3174 = vshrl.u32 %v3153, 16
        %v3176 = vrot.slane %v3174, 1
        %v3177 = vshll.u32 %v3153, 16
        %v3179 = vrot.slane %v3177, 2
        %v3180 = vor.u32 %v3176, %v3179
        %v3181 = vsel %vm3155, %v3171, %v3180
        %v3183 = vshrl.u32 %v3154, 16
        %v3185 = vrot.slane %v3183, 1
        %v3186 = vshll.u32 %v3154, 16
        %v3188 = vrot.slane %v3186, 2
        %v3189 = vor.u32 %v3185, %v3188
        %v3190 = vsel %vm3155, %v3180, %v3189
        %v3192 = vsel %vm1969, %v3172, 0
        %v3195 = vsel %vm1969, %v3181, 0
        %v3198 = vsel %vm1969, %v3190, 0
        %v3201 = vsel %vm1969, %v3189, 0
        %3203 = vmatprep.subr.bf16.mxu0 0
        %3204 = vmatpush1.bf16.msra.mxu0 0
        %3205 = vmatprep.subr.bf16.mxu0 0
        %3206 = vmatpush1.bf16.msra.mxu0 0
        %3207 = vmatprep.subr.bf16.mxu0 0
        %3208 = vmatpush1.bf16.msra.mxu0 0
        %3209 = vmatprep.subr.bf16.mxu0 0
        %3210 = vmatpush1.bf16.msra.mxu0 0
        %3211 = vmatprep.subr.bf16.mxu0 0
        %3212 = vmatpush1.bf16.msra.mxu0 %v3037
        %3213 = vmatprep.subr.bf16.mxu0 0
        %3214 = vmatpush1.bf16.msra.mxu0 %v3036
        %3215 = vmatprep.subr.bf16.mxu0 0
        %3216 = vmatpush1.bf16.msra.mxu0 %v3035
        %3217 = vmatprep.subr.bf16.mxu0 0
        %3218 = vmatpush1.bf16.msra.mxu0 %v3034
        %3219 = vmatprep.subr.bf16.mxu0 0
        %3220 = vmatpush2.bf16.msra.mxu0 0
        %3221 = vmatprep.subr.bf16.mxu0 0
        %3222 = vmatpush2.bf16.msra.mxu0 0
        %3223 = vmatprep.subr.bf16.mxu0 0
        %3224 = vmatpush2.bf16.msra.mxu0 0
        %3225 = vmatprep.subr.bf16.mxu0 0
        %3226 = vmatpush2.bf16.msra.mxu0 0
        %3227 = vmatprep.subr.bf16.mxu0 0
        %3228 = vmatpush2.bf16.msra.mxu0 0
        %3229 = vmatprep.subr.bf16.mxu0 0
        %3230 = vmatpush2.bf16.msra.mxu0 0
        %3231 = vmatprep.subr.bf16.mxu0 0
        %3232 = vmatpush2.bf16.msra.mxu0 0
        %3233 = vmatprep.subr.bf16.mxu0 0
        %3234 = vmatpush2.bf16.msra.mxu0 0
        %3235 = vmatprep.mubr.bf16.mxu0 0
        %3236 = vmatmul.mubr.bf16.gmra.mxu0 %v3192
        %v3237 = vpop.f32.mrf.mxu0
        %v3238 = vadd.f32 0.0, %v3237
        %v3239 = vpop.f32.mrf.mxu0
        %v3240 = vpop.f32.mrf.mxu0
        %v3241 = vadd.f32 0.0, %v3240
        %v3242 = vpop.f32.mrf.mxu0
        %3243 = vmatprep.mubr.bf16.mxu0 0
        %3244 = vmatmul.mubr.bf16.gmra.mxu0 %v3195
        %v3245 = vpop.f32.mrf.mxu0
        %v3246 = vadd.f32 0.0, %v3245
        %v3247 = vpop.f32.mrf.mxu0
        %v3248 = vpop.f32.mrf.mxu0
        %v3249 = vadd.f32 0.0, %v3248
        %v3250 = vpop.f32.mrf.mxu0
        %3251 = vmatprep.mubr.bf16.mxu0 0
        %3252 = vmatmul.mubr.bf16.gmra.mxu0 %v3198
        %v3253 = vpop.f32.mrf.mxu0
        %v3254 = vadd.f32 0.0, %v3253
        %v3255 = vpop.f32.mrf.mxu0
        %v3256 = vpop.f32.mrf.mxu0
        %v3257 = vadd.f32 0.0, %v3256
        %v3258 = vpop.f32.mrf.mxu0
        %3259 = vmatprep.mubr.bf16.mxu0 0
        %3260 = vmatmul.mubr.bf16.gmra.mxu0 %v3201
        %v3261 = vpop.f32.mrf.mxu0
        %v3262 = vadd.f32 0.0, %v3261
        %v3263 = vpop.f32.mrf.mxu0
        %v3264 = vpop.f32.mrf.mxu0
        %v3265 = vadd.f32 0.0, %v3264
        %v3266 = vpop.f32.mrf.mxu0
        %3267 = vdwg.mxu0
        %v3268 = vadd.f32 %v2829, %v3238
        %v3269 = vadd.f32 %v2830, %v3241
        %v3270 = vadd.f32 %v2831, %v3246
        %v3271 = vadd.f32 %v2832, %v3249
        %v3272 = vadd.f32 %v2833, %v3254
        %v3273 = vadd.f32 %v2834, %v3257
        %v3274 = vadd.f32 %v2835, %v3262
        %v3275 = vadd.f32 %v2836, %v3265
        %v3276 = vld [vmem:[#allocation2 + $0x40] sm:$0x8]
        %v3277 = vld [vmem:[#allocation2 + $0x44] sm:$0xf]
        %v3278 = vld [vmem:[#allocation2 + $0x48] sm:$0xf]
        %v3279 = vld [vmem:[#allocation2 + $0x4c] sm:$0xf]
        %v3280 = vld [vmem:[#allocation2 + $0x50] sm:$0xf]
        %v3281 = vld [vmem:[#allocation2 + $0x54] sm:$0xf]
        %v3282 = vld [vmem:[#allocation2 + $0x58] sm:$0xf]
        %v3283 = vld [vmem:[#allocation2 + $0x5c] sm:$0xf]
        %v3284 = vld [vmem:[#allocation2 + $0x60] sm:$0x3]
        %v3294 = vunpack.c.l.b16 %v3276
        %v3295 = vunpack.c.l.b16 %v3277
        %v3296 = vunpack.c.l.b16 %v3278
        %v3297 = vunpack.c.l.b16 %v3279
        %v3298 = vunpack.c.l.b16 %v3280
        %v3299 = vunpack.c.l.b16 %v3281
        %v3300 = vunpack.c.l.b16 %v3282
        %v3301 = vunpack.c.l.b16 %v3283
        %v3302 = vunpack.c.l.b16 %v3284
        %v3303 = vpack.c.b16 %v3295, %v3294
        %v3304 = vpack.c.b16 %v3297, %v3296
        %v3305 = vpack.c.b16 %v3299, %v3298
        %v3306 = vpack.c.b16 %v3301, %v3300
        %v3307 = vpack.c.b16 %v3302, %v3302
        %v3309 = vshrl.u32 %v3303, 16
        %v3311 = vrot.slane %v3309, 3
        %v3312 = vshll.u32 %v3303, 16
        %v3314 = vrot.slane %v3312, 4
        %v3315 = vor.u32 %v3311, %v3314
        %v3317 = vshrl.u32 %v3304, 16
        %v3319 = vrot.slane %v3317, 3
        %v3320 = vshll.u32 %v3304, 16
        %v3322 = vrot.slane %v3320, 4
        %v3323 = vor.u32 %v3319, %v3322
        %v3324 = vsel %vm2973, %v3315, %v3323
        %v3326 = vshrl.u32 %v3305, 16
        %v3328 = vrot.slane %v3326, 3
        %v3329 = vshll.u32 %v3305, 16
        %v3331 = vrot.slane %v3329, 4
        %v3332 = vor.u32 %v3328, %v3331
        %v3333 = vsel %vm2973, %v3323, %v3332
        %v3335 = vshrl.u32 %v3306, 16
        %v3337 = vrot.slane %v3335, 3
        %v3338 = vshll.u32 %v3306, 16
        %v3340 = vrot.slane %v3338, 4
        %v3341 = vor.u32 %v3337, %v3340
        %v3342 = vsel %vm2973, %v3332, %v3341
        %v3344 = vshrl.u32 %v3307, 16
        %v3346 = vrot.slane %v3344, 3
        %v3347 = vshll.u32 %v3307, 16
        %v3349 = vrot.slane %v3347, 4
        %v3350 = vor.u32 %v3346, %v3349
        %v3351 = vsel %vm2973, %v3341, %v3350
        %v3353 = vsel %vm1969, %v3324, 0
        %v3356 = vsel %vm1969, %v3333, 0
        %v3359 = vsel %vm1969, %v3342, 0
        %v3362 = vsel %vm1969, %v3351, 0
        %3364 = vmatprep.subr.bf16.mxu0 0
        %3365 = vmatpush1.bf16.msra.mxu0 0
        %3366 = vmatprep.subr.bf16.mxu0 0
        %3367 = vmatpush1.bf16.msra.mxu0 0
        %3368 = vmatprep.subr.bf16.mxu0 0
        %3369 = vmatpush1.bf16.msra.mxu0 0
        %3370 = vmatprep.subr.bf16.mxu0 0
        %3371 = vmatpush1.bf16.msra.mxu0 0
        %3372 = vmatprep.subr.bf16.mxu0 0
        %3373 = vmatpush1.bf16.msra.mxu0 %v3037
        %3374 = vmatprep.subr.bf16.mxu0 0
        %3375 = vmatpush1.bf16.msra.mxu0 %v3036
        %3376 = vmatprep.subr.bf16.mxu0 0
        %3377 = vmatpush1.bf16.msra.mxu0 %v3035
        %3378 = vmatprep.subr.bf16.mxu0 0
        %3379 = vmatpush1.bf16.msra.mxu0 %v3034
        %3380 = vmatprep.subr.bf16.mxu0 0
        %3381 = vmatpush2.bf16.msra.mxu0 0
        %3382 = vmatprep.subr.bf16.mxu0 0
        %3383 = vmatpush2.bf16.msra.mxu0 0
        %3384 = vmatprep.subr.bf16.mxu0 0
        %3385 = vmatpush2.bf16.msra.mxu0 0
        %3386 = vmatprep.subr.bf16.mxu0 0
        %3387 = vmatpush2.bf16.msra.mxu0 0
        %3388 = vmatprep.subr.bf16.mxu0 0
        %3389 = vmatpush2.bf16.msra.mxu0 0
        %3390 = vmatprep.subr.bf16.mxu0 0
        %3391 = vmatpush2.bf16.msra.mxu0 0
        %3392 = vmatprep.subr.bf16.mxu0 0
        %3393 = vmatpush2.bf16.msra.mxu0 0
        %3394 = vmatprep.subr.bf16.mxu0 0
        %3395 = vmatpush2.bf16.msra.mxu0 0
        %3396 = vmatprep.mubr.bf16.mxu0 0
        %3397 = vmatmul.mubr.bf16.gmra.mxu0 %v3353
        %v3398 = vpop.f32.mrf.mxu0
        %v3399 = vadd.f32 0.0, %v3398
        %v3400 = vpop.f32.mrf.mxu0
        %v3401 = vpop.f32.mrf.mxu0
        %v3402 = vadd.f32 0.0, %v3401
        %v3403 = vpop.f32.mrf.mxu0
        %3404 = vmatprep.mubr.bf16.mxu0 0
        %3405 = vmatmul.mubr.bf16.gmra.mxu0 %v3356
        %v3406 = vpop.f32.mrf.mxu0
        %v3407 = vadd.f32 0.0, %v3406
        %v3408 = vpop.f32.mrf.mxu0
        %v3409 = vpop.f32.mrf.mxu0
        %v3410 = vadd.f32 0.0, %v3409
        %v3411 = vpop.f32.mrf.mxu0
        %3412 = vmatprep.mubr.bf16.mxu0 0
        %3413 = vmatmul.mubr.bf16.gmra.mxu0 %v3359
        %v3414 = vpop.f32.mrf.mxu0
        %v3415 = vadd.f32 0.0, %v3414
        %v3416 = vpop.f32.mrf.mxu0
        %v3417 = vpop.f32.mrf.mxu0
        %v3418 = vadd.f32 0.0, %v3417
        %v3419 = vpop.f32.mrf.mxu0
        %3420 = vmatprep.mubr.bf16.mxu0 0
        %3421 = vmatmul.mubr.bf16.gmra.mxu0 %v3362
        %v3422 = vpop.f32.mrf.mxu0
        %v3423 = vadd.f32 0.0, %v3422
        %v3424 = vpop.f32.mrf.mxu0
        %v3425 = vpop.f32.mrf.mxu0
        %v3426 = vadd.f32 0.0, %v3425
        %v3427 = vpop.f32.mrf.mxu0
        %3428 = vdwg.mxu0
        %v3429 = vadd.f32 %v2925, %v3399
        %v3430 = vadd.f32 %v2926, %v3402
        %v3431 = vadd.f32 %v2927, %v3407
        %v3432 = vadd.f32 %v2928, %v3410
        %v3433 = vadd.f32 %v2929, %v3415
        %v3434 = vadd.f32 %v2930, %v3418
        %v3435 = vadd.f32 %v2931, %v3423
        %v3436 = vadd.f32 %v2932, %v3426
        %v3437 = vld [vmem:[%s3 + $0x80] sm:$0xf]
        %v3438 = vld [vmem:[%s3 + $0x84] sm:$0xf]
        %v3439 = vld [vmem:[%s3 + $0x88] sm:$0xf]
        %v3440 = vld [vmem:[%s3 + $0x8c] sm:$0xf]
        %v3441 = vld [vmem:[%s3 + $0x90] sm:$0xf]
        %v3442 = vld [vmem:[%s3 + $0x94] sm:$0xf]
        %v3443 = vld [vmem:[%s3 + $0x98] sm:$0xf]
        %v3444 = vld [vmem:[%s3 + $0x9c] sm:$0xf]
        %v3445 = vpack.c.b16 %v2961, %v2960
        %v3446 = vpack.c.b16 %v2963, %v2962
        %v3447 = vpack.c.b16 %v2965, %v2964
        %v3448 = vpack.c.b16 %v2967, %v2966
        %v3457 = vunpack.c.l.b16 %v3437
        %v3458 = vunpack.c.l.b16 %v3438
        %v3459 = vunpack.c.l.b16 %v3439
        %v3460 = vunpack.c.l.b16 %v3440
        %v3461 = vunpack.c.l.b16 %v3441
        %v3462 = vunpack.c.l.b16 %v3442
        %v3463 = vunpack.c.l.b16 %v3443
        %v3464 = vunpack.c.l.b16 %v3444
        %v3465 = vpack.c.b16 %v3458, %v3457
        %v3466 = vpack.c.b16 %v3460, %v3459
        %v3467 = vpack.c.b16 %v3462, %v3461
        %v3468 = vpack.c.b16 %v3464, %v3463
        %v3474 = vsel %vm1969, %v3445, 0
        %v3477 = vsel %vm1969, %v3446, 0
        %v3480 = vsel %vm1969, %v3447, 0
        %v3483 = vsel %vm1969, %v3448, 0
        %3485 = vmatprep.subr.bf16.mxu0 0
        %3486 = vmatpush1.bf16.msra.mxu0 0
        %3487 = vmatprep.subr.bf16.mxu0 0
        %3488 = vmatpush1.bf16.msra.mxu0 0
        %3489 = vmatprep.subr.bf16.mxu0 0
        %3490 = vmatpush1.bf16.msra.mxu0 0
        %3491 = vmatprep.subr.bf16.mxu0 0
        %3492 = vmatpush1.bf16.msra.mxu0 0
        %3493 = vmatprep.subr.bf16.mxu0 0
        %3494 = vmatpush1.bf16.msra.mxu0 %v3468
        %3495 = vmatprep.subr.bf16.mxu0 0
        %3496 = vmatpush1.bf16.msra.mxu0 %v3467
        %3497 = vmatprep.subr.bf16.mxu0 0
        %3498 = vmatpush1.bf16.msra.mxu0 %v3466
        %3499 = vmatprep.subr.bf16.mxu0 0
        %3500 = vmatpush1.bf16.msra.mxu0 %v3465
        %3501 = vmatprep.subr.bf16.mxu0 0
        %3502 = vmatpush2.bf16.msra.mxu0 0
        %3503 = vmatprep.subr.bf16.mxu0 0
        %3504 = vmatpush2.bf16.msra.mxu0 0
        %3505 = vmatprep.subr.bf16.mxu0 0
        %3506 = vmatpush2.bf16.msra.mxu0 0
        %3507 = vmatprep.subr.bf16.mxu0 0
        %3508 = vmatpush2.bf16.msra.mxu0 0
        %3509 = vmatprep.subr.bf16.mxu0 0
        %3510 = vmatpush2.bf16.msra.mxu0 0
        %3511 = vmatprep.subr.bf16.mxu0 0
        %3512 = vmatpush2.bf16.msra.mxu0 0
        %3513 = vmatprep.subr.bf16.mxu0 0
        %3514 = vmatpush2.bf16.msra.mxu0 0
        %3515 = vmatprep.subr.bf16.mxu0 0
        %3516 = vmatpush2.bf16.msra.mxu0 0
        %3517 = vmatprep.mubr.bf16.mxu0 0
        %3518 = vmatmul.mubr.bf16.gmra.mxu0 %v3474
        %v3519 = vpop.f32.mrf.mxu0
        %v3520 = vadd.f32 0.0, %v3519
        %v3521 = vpop.f32.mrf.mxu0
        %v3522 = vpop.f32.mrf.mxu0
        %v3523 = vadd.f32 0.0, %v3522
        %v3524 = vpop.f32.mrf.mxu0
        %3525 = vmatprep.mubr.bf16.mxu0 0
        %3526 = vmatmul.mubr.bf16.gmra.mxu0 %v3477
        %v3527 = vpop.f32.mrf.mxu0
        %v3528 = vadd.f32 0.0, %v3527
        %v3529 = vpop.f32.mrf.mxu0
        %v3530 = vpop.f32.mrf.mxu0
        %v3531 = vadd.f32 0.0, %v3530
        %v3532 = vpop.f32.mrf.mxu0
        %3533 = vmatprep.mubr.bf16.mxu0 0
        %3534 = vmatmul.mubr.bf16.gmra.mxu0 %v3480
        %v3535 = vpop.f32.mrf.mxu0
        %v3536 = vadd.f32 0.0, %v3535
        %v3537 = vpop.f32.mrf.mxu0
        %v3538 = vpop.f32.mrf.mxu0
        %v3539 = vadd.f32 0.0, %v3538
        %v3540 = vpop.f32.mrf.mxu0
        %3541 = vmatprep.mubr.bf16.mxu0 0
        %3542 = vmatmul.mubr.bf16.gmra.mxu0 %v3483
        %v3543 = vpop.f32.mrf.mxu0
        %v3544 = vadd.f32 0.0, %v3543
        %v3545 = vpop.f32.mrf.mxu0
        %v3546 = vpop.f32.mrf.mxu0
        %v3547 = vadd.f32 0.0, %v3546
        %v3548 = vpop.f32.mrf.mxu0
        %3549 = vdwg.mxu0
        %v3550 = vadd.f32 %v3119, %v3520
        %v3551 = vadd.f32 %v3120, %v3523
        %v3552 = vadd.f32 %v3121, %v3528
        %v3553 = vadd.f32 %v3122, %v3531
        %v3554 = vadd.f32 %v3123, %v3536
        %v3555 = vadd.f32 %v3124, %v3539
        %v3556 = vadd.f32 %v3125, %v3544
        %v3557 = vadd.f32 %v3126, %v3547
        %v3558 = vld [vmem:[#allocation2 + $0x24] sm:$0xc]
        %v3560 = vunpack.c.l.b16 %v3558
        %v3561 = vpack.c.b16 %v3144, %v3560
        %v3562 = vrot.slane %v3561, 2
        %v3563 = vrot.slane %v3152, 2
        %v3564 = vsel %vm2318, %v3562, %v3563
        %v3565 = vrot.slane %v3153, 2
        %v3566 = vsel %vm2318, %v3563, %v3565
        %v3567 = vrot.slane %v3154, 2
        %v3568 = vsel %vm2318, %v3565, %v3567
        %v3570 = vsel %vm1969, %v3564, 0
        %v3573 = vsel %vm1969, %v3566, 0
        %v3576 = vsel %vm1969, %v3568, 0
        %v3579 = vsel %vm1969, %v3567, 0
        %3581 = vmatprep.subr.bf16.mxu0 0
        %3582 = vmatpush1.bf16.msra.mxu0 0
        %3583 = vmatprep.subr.bf16.mxu0 0
        %3584 = vmatpush1.bf16.msra.mxu0 0
        %3585 = vmatprep.subr.bf16.mxu0 0
        %3586 = vmatpush1.bf16.msra.mxu0 0
        %3587 = vmatprep.subr.bf16.mxu0 0
        %3588 = vmatpush1.bf16.msra.mxu0 0
        %3589 = vmatprep.subr.bf16.mxu0 0
        %3590 = vmatpush1.bf16.msra.mxu0 %v3468
        %3591 = vmatprep.subr.bf16.mxu0 0
        %3592 = vmatpush1.bf16.msra.mxu0 %v3467
        %3593 = vmatprep.subr.bf16.mxu0 0
        %3594 = vmatpush1.bf16.msra.mxu0 %v3466
        %3595 = vmatprep.subr.bf16.mxu0 0
        %3596 = vmatpush1.bf16.msra.mxu0 %v3465
        %3597 = vmatprep.subr.bf16.mxu0 0
        %3598 = vmatpush2.bf16.msra.mxu0 0
        %3599 = vmatprep.subr.bf16.mxu0 0
        %3600 = vmatpush2.bf16.msra.mxu0 0
        %3601 = vmatprep.subr.bf16.mxu0 0
        %3602 = vmatpush2.bf16.msra.mxu0 0
        %3603 = vmatprep.subr.bf16.mxu0 0
        %3604 = vmatpush2.bf16.msra.mxu0 0
        %3605 = vmatprep.subr.bf16.mxu0 0
        %3606 = vmatpush2.bf16.msra.mxu0 0
        %3607 = vmatprep.subr.bf16.mxu0 0
        %3608 = vmatpush2.bf16.msra.mxu0 0
        %3609 = vmatprep.subr.bf16.mxu0 0
        %3610 = vmatpush2.bf16.msra.mxu0 0
        %3611 = vmatprep.subr.bf16.mxu0 0
        %3612 = vmatpush2.bf16.msra.mxu0 0
        %3613 = vmatprep.mubr.bf16.mxu0 0
        %3614 = vmatmul.mubr.bf16.gmra.mxu0 %v3570
        %v3615 = vpop.f32.mrf.mxu0
        %v3616 = vadd.f32 0.0, %v3615
        %v3617 = vpop.f32.mrf.mxu0
        %v3618 = vpop.f32.mrf.mxu0
        %v3619 = vadd.f32 0.0, %v3618
        %v3620 = vpop.f32.mrf.mxu0
        %3621 = vmatprep.mubr.bf16.mxu0 0
        %3622 = vmatmul.mubr.bf16.gmra.mxu0 %v3573
        %v3623 = vpop.f32.mrf.mxu0
        %v3624 = vadd.f32 0.0, %v3623
        %v3625 = vpop.f32.mrf.mxu0
        %v3626 = vpop.f32.mrf.mxu0
        %v3627 = vadd.f32 0.0, %v3626
        %v3628 = vpop.f32.mrf.mxu0
        %3629 = vmatprep.mubr.bf16.mxu0 0
        %3630 = vmatmul.mubr.bf16.gmra.mxu0 %v3576
        %v3631 = vpop.f32.mrf.mxu0
        %v3632 = vadd.f32 0.0, %v3631
        %v3633 = vpop.f32.mrf.mxu0
        %v3634 = vpop.f32.mrf.mxu0
        %v3635 = vadd.f32 0.0, %v3634
        %v3636 = vpop.f32.mrf.mxu0
        %3637 = vmatprep.mubr.bf16.mxu0 0
        %3638 = vmatmul.mubr.bf16.gmra.mxu0 %v3579
        %v3639 = vpop.f32.mrf.mxu0
        %v3640 = vadd.f32 0.0, %v3639
        %v3641 = vpop.f32.mrf.mxu0
        %v3642 = vpop.f32.mrf.mxu0
        %v3643 = vadd.f32 0.0, %v3642
        %v3644 = vpop.f32.mrf.mxu0
        %3645 = vdwg.mxu0
        %v3646 = vadd.f32 %v3268, %v3616
        %v3647 = vadd.f32 %v3269, %v3619
        %v3648 = vadd.f32 %v3270, %v3624
        %v3649 = vadd.f32 %v3271, %v3627
        %v3650 = vadd.f32 %v3272, %v3632
        %v3651 = vadd.f32 %v3273, %v3635
        %v3652 = vadd.f32 %v3274, %v3640
        %v3653 = vadd.f32 %v3275, %v3643
        %v3654 = vpack.c.b16 %v3296, %v3295
        %v3655 = vpack.c.b16 %v3298, %v3297
        %v3656 = vpack.c.b16 %v3300, %v3299
        %v3657 = vpack.c.b16 %v3302, %v3301
        %v3659 = vsel %vm1969, %v3654, 0
        %v3662 = vsel %vm1969, %v3655, 0
        %v3665 = vsel %vm1969, %v3656, 0
        %v3668 = vsel %vm1969, %v3657, 0
        %3670 = vmatprep.subr.bf16.mxu0 0
        %3671 = vmatpush1.bf16.msra.mxu0 0
        %3672 = vmatprep.subr.bf16.mxu0 0
        %3673 = vmatpush1.bf16.msra.mxu0 0
        %3674 = vmatprep.subr.bf16.mxu0 0
        %3675 = vmatpush1.bf16.msra.mxu0 0
        %3676 = vmatprep.subr.bf16.mxu0 0
        %3677 = vmatpush1.bf16.msra.mxu0 0
        %3678 = vmatprep.subr.bf16.mxu0 0
        %3679 = vmatpush1.bf16.msra.mxu0 %v3468
        %3680 = vmatprep.subr.bf16.mxu0 0
        %3681 = vmatpush1.bf16.msra.mxu0 %v3467
        %3682 = vmatprep.subr.bf16.mxu0 0
        %3683 = vmatpush1.bf16.msra.mxu0 %v3466
        %3684 = vmatprep.subr.bf16.mxu0 0
        %3685 = vmatpush1.bf16.msra.mxu0 %v3465
        %3686 = vmatprep.subr.bf16.mxu0 0
        %3687 = vmatpush2.bf16.msra.mxu0 0
        %3688 = vmatprep.subr.bf16.mxu0 0
        %3689 = vmatpush2.bf16.msra.mxu0 0
        %3690 = vmatprep.subr.bf16.mxu0 0
        %3691 = vmatpush2.bf16.msra.mxu0 0
        %3692 = vmatprep.subr.bf16.mxu0 0
        %3693 = vmatpush2.bf16.msra.mxu0 0
        %3694 = vmatprep.subr.bf16.mxu0 0
        %3695 = vmatpush2.bf16.msra.mxu0 0
        %3696 = vmatprep.subr.bf16.mxu0 0
        %3697 = vmatpush2.bf16.msra.mxu0 0
        %3698 = vmatprep.subr.bf16.mxu0 0
        %3699 = vmatpush2.bf16.msra.mxu0 0
        %3700 = vmatprep.subr.bf16.mxu0 0
        %3701 = vmatpush2.bf16.msra.mxu0 0
        %3702 = vmatprep.mubr.bf16.mxu0 0
        %3703 = vmatmul.mubr.bf16.gmra.mxu0 %v3659
        %v3704 = vpop.f32.mrf.mxu0
        %v3705 = vadd.f32 0.0, %v3704
        %v3706 = vpop.f32.mrf.mxu0
        %v3707 = vpop.f32.mrf.mxu0
        %v3708 = vadd.f32 0.0, %v3707
        %v3709 = vpop.f32.mrf.mxu0
        %3710 = vmatprep.mubr.bf16.mxu0 0
        %3711 = vmatmul.mubr.bf16.gmra.mxu0 %v3662
        %v3712 = vpop.f32.mrf.mxu0
        %v3713 = vadd.f32 0.0, %v3712
        %v3714 = vpop.f32.mrf.mxu0
        %v3715 = vpop.f32.mrf.mxu0
        %v3716 = vadd.f32 0.0, %v3715
        %v3717 = vpop.f32.mrf.mxu0
        %3718 = vmatprep.mubr.bf16.mxu0 0
        %3719 = vmatmul.mubr.bf16.gmra.mxu0 %v3665
        %v3720 = vpop.f32.mrf.mxu0
        %v3721 = vadd.f32 0.0, %v3720
        %v3722 = vpop.f32.mrf.mxu0
        %v3723 = vpop.f32.mrf.mxu0
        %v3724 = vadd.f32 0.0, %v3723
        %v3725 = vpop.f32.mrf.mxu0
        %3726 = vmatprep.mubr.bf16.mxu0 0
        %3727 = vmatmul.mubr.bf16.gmra.mxu0 %v3668
        %v3728 = vpop.f32.mrf.mxu0
        %v3729 = vadd.f32 0.0, %v3728
        %v3730 = vpop.f32.mrf.mxu0
        %v3731 = vpop.f32.mrf.mxu0
        %v3732 = vadd.f32 0.0, %v3731
        %v3733 = vpop.f32.mrf.mxu0
        %3734 = vdwg.mxu0
        %v3735 = vadd.f32 %v3429, %v3705
        %v3736 = vadd.f32 %v3430, %v3708
        %v3737 = vadd.f32 %v3431, %v3713
        %v3738 = vadd.f32 %v3432, %v3716
        %v3739 = vadd.f32 %v3433, %v3721
        %v3740 = vadd.f32 %v3434, %v3724
        %v3741 = vadd.f32 %v3435, %v3729
        %v3742 = vadd.f32 %v3436, %v3732
        %v3743 = vld [vmem:[%s3 + $0xa0] sm:$0xf]
        %v3744 = vld [vmem:[%s3 + $0xa4] sm:$0xf]
        %v3745 = vld [vmem:[%s3 + $0xa8] sm:$0xf]
        %v3746 = vld [vmem:[%s3 + $0xac] sm:$0xf]
        %v3747 = vld [vmem:[%s3 + $0xb0] sm:$0xf]
        %v3748 = vld [vmem:[%s3 + $0xb4] sm:$0xf]
        %v3749 = vld [vmem:[%s3 + $0xb8] sm:$0xf]
        %v3750 = vld [vmem:[%s3 + $0xbc] sm:$0xf]
        %v3751 = vld [vmem:[#allocation2 + $0x24] sm:$0x7]
        %v3753 = vunpack.c.l.b16 %v3751
        %v3754 = vpack.c.b16 %v3753, %v2966
        %v3755 = vshrl.u32 %v3445, 16
        %v3757 = vshll.u32 %v3445, 16
        %v3759 = vrot.slane %v3757, 1
        %v3760 = vor.u32 %v3755, %v3759
        %v3761 = vshll.u32 %v3446, 16
        %v3763 = vrot.slane %v3761, 1
        %v3764 = vsel %vm1913, %v3760, %v3763
        %v3765 = vshrl.u32 %v3446, 16
        %v3767 = vor.u32 %v3765, %v3763
        %v3768 = vshll.u32 %v3447, 16
        %v3770 = vrot.slane %v3768, 1
        %v3771 = vsel %vm1913, %v3767, %v3770
        %v3772 = vshrl.u32 %v3447, 16
        %v3774 = vor.u32 %v3772, %v3770
        %v3776 = vshll.u32 %v3754, 16
        %v3778 = vrot.slane %v3776, 1
        %v3779 = vsel %vm1913, %v3774, %v3778
        %v3780 = vshrl.u32 %v3754, 16
        %v3782 = vor.u32 %v3780, %v3778
        %v3791 = vunpack.c.l.b16 %v3743
        %v3792 = vunpack.c.l.b16 %v3744
        %v3793 = vunpack.c.l.b16 %v3745
        %v3794 = vunpack.c.l.b16 %v3746
        %v3795 = vunpack.c.l.b16 %v3747
        %v3796 = vunpack.c.l.b16 %v3748
        %v3797 = vunpack.c.l.b16 %v3749
        %v3798 = vunpack.c.l.b16 %v3750
        %v3799 = vpack.c.b16 %v3792, %v3791
        %v3800 = vpack.c.b16 %v3794, %v3793
        %v3801 = vpack.c.b16 %v3796, %v3795
        %v3802 = vpack.c.b16 %v3798, %v3797
        %v3808 = vsel %vm1969, %v3764, 0
        %v3811 = vsel %vm1969, %v3771, 0
        %v3814 = vsel %vm1969, %v3779, 0
        %v3817 = vsel %vm1969, %v3782, 0
        %3819 = vmatprep.subr.bf16.mxu0 0
        %3820 = vmatpush1.bf16.msra.mxu0 0
        %3821 = vmatprep.subr.bf16.mxu0 0
        %3822 = vmatpush1.bf16.msra.mxu0 0
        %3823 = vmatprep.subr.bf16.mxu0 0
        %3824 = vmatpush1.bf16.msra.mxu0 0
        %3825 = vmatprep.subr.bf16.mxu0 0
        %3826 = vmatpush1.bf16.msra.mxu0 0
        %3827 = vmatprep.subr.bf16.mxu0 0
        %3828 = vmatpush1.bf16.msra.mxu0 %v3802
        %3829 = vmatprep.subr.bf16.mxu0 0
        %3830 = vmatpush1.bf16.msra.mxu0 %v3801
        %3831 = vmatprep.subr.bf16.mxu0 0
        %3832 = vmatpush1.bf16.msra.mxu0 %v3800
        %3833 = vmatprep.subr.bf16.mxu0 0
        %3834 = vmatpush1.bf16.msra.mxu0 %v3799
        %3835 = vmatprep.subr.bf16.mxu0 0
        %3836 = vmatpush2.bf16.msra.mxu0 0
        %3837 = vmatprep.subr.bf16.mxu0 0
        %3838 = vmatpush2.bf16.msra.mxu0 0
        %3839 = vmatprep.subr.bf16.mxu0 0
        %3840 = vmatpush2.bf16.msra.mxu0 0
        %3841 = vmatprep.subr.bf16.mxu0 0
        %3842 = vmatpush2.bf16.msra.mxu0 0
        %3843 = vmatprep.subr.bf16.mxu0 0
        %3844 = vmatpush2.bf16.msra.mxu0 0
        %3845 = vmatprep.subr.bf16.mxu0 0
        %3846 = vmatpush2.bf16.msra.mxu0 0
        %3847 = vmatprep.subr.bf16.mxu0 0
        %3848 = vmatpush2.bf16.msra.mxu0 0
        %3849 = vmatprep.subr.bf16.mxu0 0
        %3850 = vmatpush2.bf16.msra.mxu0 0
        %3851 = vmatprep.mubr.bf16.mxu0 0
        %3852 = vmatmul.mubr.bf16.gmra.mxu0 %v3808
        %v3853 = vpop.f32.mrf.mxu0
        %v3854 = vadd.f32 0.0, %v3853
        %v3855 = vpop.f32.mrf.mxu0
        %v3856 = vpop.f32.mrf.mxu0
        %v3857 = vadd.f32 0.0, %v3856
        %v3858 = vpop.f32.mrf.mxu0
        %3859 = vmatprep.mubr.bf16.mxu0 0
        %3860 = vmatmul.mubr.bf16.gmra.mxu0 %v3811
        %v3861 = vpop.f32.mrf.mxu0
        %v3862 = vadd.f32 0.0, %v3861
        %v3863 = vpop.f32.mrf.mxu0
        %v3864 = vpop.f32.mrf.mxu0
        %v3865 = vadd.f32 0.0, %v3864
        %v3866 = vpop.f32.mrf.mxu0
        %3867 = vmatprep.mubr.bf16.mxu0 0
        %3868 = vmatmul.mubr.bf16.gmra.mxu0 %v3814
        %v3869 = vpop.f32.mrf.mxu0
        %v3870 = vadd.f32 0.0, %v3869
        %v3871 = vpop.f32.mrf.mxu0
        %v3872 = vpop.f32.mrf.mxu0
        %v3873 = vadd.f32 0.0, %v3872
        %v3874 = vpop.f32.mrf.mxu0
        %3875 = vmatprep.mubr.bf16.mxu0 0
        %3876 = vmatmul.mubr.bf16.gmra.mxu0 %v3817
        %v3877 = vpop.f32.mrf.mxu0
        %v3878 = vadd.f32 0.0, %v3877
        %v3879 = vpop.f32.mrf.mxu0
        %v3880 = vpop.f32.mrf.mxu0
        %v3881 = vadd.f32 0.0, %v3880
        %v3882 = vpop.f32.mrf.mxu0
        %3883 = vdwg.mxu0
        %v3884 = vadd.f32 %v3550, %v3854
        %v3885 = vadd.f32 %v3551, %v3857
        %v3886 = vadd.f32 %v3552, %v3862
        %v3887 = vadd.f32 %v3553, %v3865
        %v3888 = vadd.f32 %v3554, %v3870
        %v3889 = vadd.f32 %v3555, %v3873
        %v3890 = vadd.f32 %v3556, %v3878
        %v3891 = vadd.f32 %v3557, %v3881
        %v3892 = vld [vmem:[#allocation2 + $0x24] sm:$0xc]
        %v3893 = vld [vmem:[#allocation2 + $0x28] sm:$0xf]
        %v3894 = vld [vmem:[#allocation2 + $0x2c] sm:$0xf]
        %v3895 = vld [vmem:[#allocation2 + $0x30] sm:$0xf]
        %v3896 = vld [vmem:[#allocation2 + $0x34] sm:$0xf]
        %v3897 = vld [vmem:[#allocation2 + $0x38] sm:$0xf]
        %v3898 = vld [vmem:[#allocation2 + $0x3c] sm:$0xf]
        %v3899 = vld [vmem:[#allocation2 + $0x40] sm:$0xf]
        %v3900 = vld [vmem:[#allocation2 + $0x44] sm:$0x1]
        %v3910 = vunpack.c.l.b16 %v3892
        %v3911 = vunpack.c.l.b16 %v3893
        %v3912 = vunpack.c.l.b16 %v3894
        %v3913 = vunpack.c.l.b16 %v3895
        %v3914 = vunpack.c.l.b16 %v3896
        %v3915 = vunpack.c.l.b16 %v3897
        %v3916 = vunpack.c.l.b16 %v3898
        %v3917 = vunpack.c.l.b16 %v3899
        %v3918 = vunpack.c.l.b16 %v3900
        %v3919 = vpack.c.b16 %v3911, %v3910
        %v3920 = vpack.c.b16 %v3913, %v3912
        %v3921 = vpack.c.b16 %v3915, %v3914
        %v3922 = vpack.c.b16 %v3917, %v3916
        %v3923 = vpack.c.b16 %v3918, %v3918
        %v3925 = vshrl.u32 %v3919, 16
        %v3927 = vrot.slane %v3925, 2
        %v3928 = vshll.u32 %v3919, 16
        %v3930 = vrot.slane %v3928, 3
        %v3931 = vor.u32 %v3927, %v3930
        %v3933 = vshrl.u32 %v3920, 16
        %v3935 = vrot.slane %v3933, 2
        %v3936 = vshll.u32 %v3920, 16
        %v3938 = vrot.slane %v3936, 3
        %v3939 = vor.u32 %v3935, %v3938
        %v3940 = vsel %vm2180, %v3931, %v3939
        %v3942 = vshrl.u32 %v3921, 16
        %v3944 = vrot.slane %v3942, 2
        %v3945 = vshll.u32 %v3921, 16
        %v3947 = vrot.slane %v3945, 3
        %v3948 = vor.u32 %v3944, %v3947
        %v3949 = vsel %vm2180, %v3939, %v3948
        %v3951 = vshrl.u32 %v3922, 16
        %v3953 = vrot.slane %v3951, 2
        %v3954 = vshll.u32 %v3922, 16
        %v3956 = vrot.slane %v3954, 3
        %v3957 = vor.u32 %v3953, %v3956
        %v3958 = vsel %vm2180, %v3948, %v3957
        %v3960 = vshll.u32 %v3923, 16
        %v3962 = vrot.slane %v3960, 3
        %v3963 = vsel %vm2180, %v3957, %v3962
        %v3965 = vsel %vm1969, %v3940, 0
        %v3968 = vsel %vm1969, %v3949, 0
        %v3971 = vsel %vm1969, %v3958, 0
        %v3974 = vsel %vm1969, %v3963, 0
        %3976 = vmatprep.subr.bf16.mxu0 0
        %3977 = vmatpush1.bf16.msra.mxu0 0
        %3978 = vmatprep.subr.bf16.mxu0 0
        %3979 = vmatpush1.bf16.msra.mxu0 0
        %3980 = vmatprep.subr.bf16.mxu0 0
        %3981 = vmatpush1.bf16.msra.mxu0 0
        %3982 = vmatprep.subr.bf16.mxu0 0
        %3983 = vmatpush1.bf16.msra.mxu0 0
        %3984 = vmatprep.subr.bf16.mxu0 0
        %3985 = vmatpush1.bf16.msra.mxu0 %v3802
        %3986 = vmatprep.subr.bf16.mxu0 0
        %3987 = vmatpush1.bf16.msra.mxu0 %v3801
        %3988 = vmatprep.subr.bf16.mxu0 0
        %3989 = vmatpush1.bf16.msra.mxu0 %v3800
        %3990 = vmatprep.subr.bf16.mxu0 0
        %3991 = vmatpush1.bf16.msra.mxu0 %v3799
        %3992 = vmatprep.subr.bf16.mxu0 0
        %3993 = vmatpush2.bf16.msra.mxu0 0
        %3994 = vmatprep.subr.bf16.mxu0 0
        %3995 = vmatpush2.bf16.msra.mxu0 0
        %3996 = vmatprep.subr.bf16.mxu0 0
        %3997 = vmatpush2.bf16.msra.mxu0 0
        %3998 = vmatprep.subr.bf16.mxu0 0
        %3999 = vmatpush2.bf16.msra.mxu0 0
        %4000 = vmatprep.subr.bf16.mxu0 0
        %4001 = vmatpush2.bf16.msra.mxu0 0
        %4002 = vmatprep.subr.bf16.mxu0 0
        %4003 = vmatpush2.bf16.msra.mxu0 0
        %4004 = vmatprep.subr.bf16.mxu0 0
        %4005 = vmatpush2.bf16.msra.mxu0 0
        %4006 = vmatprep.subr.bf16.mxu0 0
        %4007 = vmatpush2.bf16.msra.mxu0 0
        %4008 = vmatprep.mubr.bf16.mxu0 0
        %4009 = vmatmul.mubr.bf16.gmra.mxu0 %v3965
        %v4010 = vpop.f32.mrf.mxu0
        %v4011 = vadd.f32 0.0, %v4010
        %v4012 = vpop.f32.mrf.mxu0
        %v4013 = vpop.f32.mrf.mxu0
        %v4014 = vadd.f32 0.0, %v4013
        %v4015 = vpop.f32.mrf.mxu0
        %4016 = vmatprep.mubr.bf16.mxu0 0
        %4017 = vmatmul.mubr.bf16.gmra.mxu0 %v3968
        %v4018 = vpop.f32.mrf.mxu0
        %v4019 = vadd.f32 0.0, %v4018
        %v4020 = vpop.f32.mrf.mxu0
        %v4021 = vpop.f32.mrf.mxu0
        %v4022 = vadd.f32 0.0, %v4021
        %v4023 = vpop.f32.mrf.mxu0
        %4024 = vmatprep.mubr.bf16.mxu0 0
        %4025 = vmatmul.mubr.bf16.gmra.mxu0 %v3971
        %v4026 = vpop.f32.mrf.mxu0
        %v4027 = vadd.f32 0.0, %v4026
        %v4028 = vpop.f32.mrf.mxu0
        %v4029 = vpop.f32.mrf.mxu0
        %v4030 = vadd.f32 0.0, %v4029
        %v4031 = vpop.f32.mrf.mxu0
        %4032 = vmatprep.mubr.bf16.mxu0 0
        %4033 = vmatmul.mubr.bf16.gmra.mxu0 %v3974
        %v4034 = vpop.f32.mrf.mxu0
        %v4035 = vadd.f32 0.0, %v4034
        %v4036 = vpop.f32.mrf.mxu0
        %v4037 = vpop.f32.mrf.mxu0
        %v4038 = vadd.f32 0.0, %v4037
        %v4039 = vpop.f32.mrf.mxu0
        %4040 = vdwg.mxu0
        %v4041 = vadd.f32 %v3646, %v4011
        %v4042 = vadd.f32 %v3647, %v4014
        %v4043 = vadd.f32 %v3648, %v4019
        %v4044 = vadd.f32 %v3649, %v4022
        %v4045 = vadd.f32 %v3650, %v4027
        %v4046 = vadd.f32 %v3651, %v4030
        %v4047 = vadd.f32 %v3652, %v4035
        %v4048 = vadd.f32 %v3653, %v4038
        %v4049 = vld [vmem:[#allocation2 + $0x60] sm:$0x7]
        %v4051 = vunpack.c.l.b16 %v4049
        %v4052 = vpack.c.b16 %v4051, %v3301
        %v4053 = vshrl.u32 %v3654, 16
        %v4055 = vshll.u32 %v3654, 16
        %v4057 = vrot.slane %v4055, 1
        %v4058 = vor.u32 %v4053, %v4057
        %v4059 = vshll.u32 %v3655, 16
        %v4061 = vrot.slane %v4059, 1
        %v4062 = vsel %vm1913, %v4058, %v4061
        %v4063 = vshrl.u32 %v3655, 16
        %v4065 = vor.u32 %v4063, %v4061
        %v4066 = vshll.u32 %v3656, 16
        %v4068 = vrot.slane %v4066, 1
        %v4069 = vsel %vm1913, %v4065, %v4068
        %v4070 = vshrl.u32 %v3656, 16
        %v4072 = vor.u32 %v4070, %v4068
        %v4074 = vshll.u32 %v4052, 16
        %v4076 = vrot.slane %v4074, 1
        %v4077 = vsel %vm1913, %v4072, %v4076
        %v4078 = vshrl.u32 %v4052, 16
        %v4080 = vor.u32 %v4078, %v4076
        %v4082 = vsel %vm1969, %v4062, 0
        %v4085 = vsel %vm1969, %v4069, 0
        %v4088 = vsel %vm1969, %v4077, 0
        %v4091 = vsel %vm1969, %v4080, 0
        %4093 = vmatprep.subr.bf16.mxu0 0
        %4094 = vmatpush1.bf16.msra.mxu0 0
        %4095 = vmatprep.subr.bf16.mxu0 0
        %4096 = vmatpush1.bf16.msra.mxu0 0
        %4097 = vmatprep.subr.bf16.mxu0 0
        %4098 = vmatpush1.bf16.msra.mxu0 0
        %4099 = vmatprep.subr.bf16.mxu0 0
        %4100 = vmatpush1.bf16.msra.mxu0 0
        %4101 = vmatprep.subr.bf16.mxu0 0
        %4102 = vmatpush1.bf16.msra.mxu0 %v3802
        %4103 = vmatprep.subr.bf16.mxu0 0
        %4104 = vmatpush1.bf16.msra.mxu0 %v3801
        %4105 = vmatprep.subr.bf16.mxu0 0
        %4106 = vmatpush1.bf16.msra.mxu0 %v3800
        %4107 = vmatprep.subr.bf16.mxu0 0
        %4108 = vmatpush1.bf16.msra.mxu0 %v3799
        %4109 = vmatprep.subr.bf16.mxu0 0
        %4110 = vmatpush2.bf16.msra.mxu0 0
        %4111 = vmatprep.subr.bf16.mxu0 0
        %4112 = vmatpush2.bf16.msra.mxu0 0
        %4113 = vmatprep.subr.bf16.mxu0 0
        %4114 = vmatpush2.bf16.msra.mxu0 0
        %4115 = vmatprep.subr.bf16.mxu0 0
        %4116 = vmatpush2.bf16.msra.mxu0 0
        %4117 = vmatprep.subr.bf16.mxu0 0
        %4118 = vmatpush2.bf16.msra.mxu0 0
        %4119 = vmatprep.subr.bf16.mxu0 0
        %4120 = vmatpush2.bf16.msra.mxu0 0
        %4121 = vmatprep.subr.bf16.mxu0 0
        %4122 = vmatpush2.bf16.msra.mxu0 0
        %4123 = vmatprep.subr.bf16.mxu0 0
        %4124 = vmatpush2.bf16.msra.mxu0 0
        %4125 = vmatprep.mubr.bf16.mxu0 0
        %4126 = vmatmul.mubr.bf16.gmra.mxu0 %v4082
        %v4127 = vpop.f32.mrf.mxu0
        %v4128 = vadd.f32 0.0, %v4127
        %v4129 = vpop.f32.mrf.mxu0
        %v4130 = vpop.f32.mrf.mxu0
        %v4131 = vadd.f32 0.0, %v4130
        %v4132 = vpop.f32.mrf.mxu0
        %4133 = vmatprep.mubr.bf16.mxu0 0
        %4134 = vmatmul.mubr.bf16.gmra.mxu0 %v4085
        %v4135 = vpop.f32.mrf.mxu0
        %v4136 = vadd.f32 0.0, %v4135
        %v4137 = vpop.f32.mrf.mxu0
        %v4138 = vpop.f32.mrf.mxu0
        %v4139 = vadd.f32 0.0, %v4138
        %v4140 = vpop.f32.mrf.mxu0
        %4141 = vmatprep.mubr.bf16.mxu0 0
        %4142 = vmatmul.mubr.bf16.gmra.mxu0 %v4088
        %v4143 = vpop.f32.mrf.mxu0
        %v4144 = vadd.f32 0.0, %v4143
        %v4145 = vpop.f32.mrf.mxu0
        %v4146 = vpop.f32.mrf.mxu0
        %v4147 = vadd.f32 0.0, %v4146
        %v4148 = vpop.f32.mrf.mxu0
        %4149 = vmatprep.mubr.bf16.mxu0 0
        %4150 = vmatmul.mubr.bf16.gmra.mxu0 %v4091
        %v4151 = vpop.f32.mrf.mxu0
        %v4152 = vadd.f32 0.0, %v4151
        %v4153 = vpop.f32.mrf.mxu0
        %v4154 = vpop.f32.mrf.mxu0
        %v4155 = vadd.f32 0.0, %v4154
        %v4156 = vpop.f32.mrf.mxu0
        %4157 = vdwg.mxu0
        %v4158 = vadd.f32 %v3735, %v4128
        %v4159 = vadd.f32 %v3736, %v4131
        %v4160 = vadd.f32 %v3737, %v4136
        %v4161 = vadd.f32 %v3738, %v4139
        %v4162 = vadd.f32 %v3739, %v4144
        %v4163 = vadd.f32 %v3740, %v4147
        %v4164 = vadd.f32 %v3741, %v4152
        %v4165 = vadd.f32 %v3742, %v4155
        %v4166 = vld [vmem:[%s3 + $0xc0] sm:$0xf]
        %v4167 = vld [vmem:[%s3 + $0xc4] sm:$0xf]
        %v4168 = vld [vmem:[%s3 + $0xc8] sm:$0xf]
        %v4169 = vld [vmem:[%s3 + $0xcc] sm:$0xf]
        %v4170 = vld [vmem:[%s3 + $0xd0] sm:$0xf]
        %v4171 = vld [vmem:[%s3 + $0xd4] sm:$0xf]
        %v4172 = vld [vmem:[%s3 + $0xd8] sm:$0xf]
        %v4173 = vld [vmem:[%s3 + $0xdc] sm:$0xf]
        %v4174 = vld [vmem:[#allocation2 + $0xc] sm:$0x8]
        %v4175 = vld [vmem:[#allocation2 + $0x10] sm:$0xf]
        %v4176 = vld [vmem:[#allocation2 + $0x14] sm:$0xf]
        %v4177 = vld [vmem:[#allocation2 + $0x18] sm:$0xf]
        %v4178 = vld [vmem:[#allocation2 + $0x1c] sm:$0xf]
        %v4179 = vld [vmem:[#allocation2 + $0x20] sm:$0xf]
        %v4180 = vld [vmem:[#allocation2 + $0x24] sm:$0xf]
        %v4181 = vld [vmem:[#allocation2 + $0x28] sm:$0xf]
        %v4182 = vld [vmem:[#allocation2 + $0x2c] sm:$0x1]
        %v4192 = vunpack.c.l.b16 %v4174
        %v4193 = vunpack.c.l.b16 %v4175
        %v4194 = vunpack.c.l.b16 %v4176
        %v4195 = vunpack.c.l.b16 %v4177
        %v4196 = vunpack.c.l.b16 %v4178
        %v4197 = vunpack.c.l.b16 %v4179
        %v4198 = vunpack.c.l.b16 %v4180
        %v4199 = vunpack.c.l.b16 %v4181
        %v4200 = vunpack.c.l.b16 %v4182
        %v4201 = vpack.c.b16 %v4193, %v4192
        %v4202 = vpack.c.b16 %v4195, %v4194
        %v4203 = vpack.c.b16 %v4197, %v4196
        %v4204 = vpack.c.b16 %v4199, %v4198
        %v4205 = vpack.c.b16 %v4200, %v4200
        %v4206 = vrot.slane %v4201, 3
        %v4207 = vrot.slane %v4202, 3
        %v4208 = vsel %vm2742, %v4206, %v4207
        %v4209 = vrot.slane %v4203, 3
        %v4210 = vsel %vm2742, %v4207, %v4209
        %v4211 = vrot.slane %v4204, 3
        %v4212 = vsel %vm2742, %v4209, %v4211
        %v4213 = vrot.slane %v4205, 3
        %v4214 = vsel %vm2742, %v4211, %v4213
        %v4223 = vunpack.c.l.b16 %v4166
        %v4224 = vunpack.c.l.b16 %v4167
        %v4225 = vunpack.c.l.b16 %v4168
        %v4226 = vunpack.c.l.b16 %v4169
        %v4227 = vunpack.c.l.b16 %v4170
        %v4228 = vunpack.c.l.b16 %v4171
        %v4229 = vunpack.c.l.b16 %v4172
        %v4230 = vunpack.c.l.b16 %v4173
        %v4231 = vpack.c.b16 %v4224, %v4223
        %v4232 = vpack.c.b16 %v4226, %v4225
        %v4233 = vpack.c.b16 %v4228, %v4227
        %v4234 = vpack.c.b16 %v4230, %v4229
        %v4240 = vsel %vm1969, %v4208, 0
        %v4243 = vsel %vm1969, %v4210, 0
        %v4246 = vsel %vm1969, %v4212, 0
        %v4249 = vsel %vm1969, %v4214, 0
        %4251 = vmatprep.subr.bf16.mxu0 0
        %4252 = vmatpush1.bf16.msra.mxu0 0
        %4253 = vmatprep.subr.bf16.mxu0 0
        %4254 = vmatpush1.bf16.msra.mxu0 0
        %4255 = vmatprep.subr.bf16.mxu0 0
        %4256 = vmatpush1.bf16.msra.mxu0 0
        %4257 = vmatprep.subr.bf16.mxu0 0
        %4258 = vmatpush1.bf16.msra.mxu0 0
        %4259 = vmatprep.subr.bf16.mxu0 0
        %4260 = vmatpush1.bf16.msra.mxu0 %v4234
        %4261 = vmatprep.subr.bf16.mxu0 0
        %4262 = vmatpush1.bf16.msra.mxu0 %v4233
        %4263 = vmatprep.subr.bf16.mxu0 0
        %4264 = vmatpush1.bf16.msra.mxu0 %v4232
        %4265 = vmatprep.subr.bf16.mxu0 0
        %4266 = vmatpush1.bf16.msra.mxu0 %v4231
        %4267 = vmatprep.subr.bf16.mxu0 0
        %4268 = vmatpush2.bf16.msra.mxu0 0
        %4269 = vmatprep.subr.bf16.mxu0 0
        %4270 = vmatpush2.bf16.msra.mxu0 0
        %4271 = vmatprep.subr.bf16.mxu0 0
        %4272 = vmatpush2.bf16.msra.mxu0 0
        %4273 = vmatprep.subr.bf16.mxu0 0
        %4274 = vmatpush2.bf16.msra.mxu0 0
        %4275 = vmatprep.subr.bf16.mxu0 0
        %4276 = vmatpush2.bf16.msra.mxu0 0
        %4277 = vmatprep.subr.bf16.mxu0 0
        %4278 = vmatpush2.bf16.msra.mxu0 0
        %4279 = vmatprep.subr.bf16.mxu0 0
        %4280 = vmatpush2.bf16.msra.mxu0 0
        %4281 = vmatprep.subr.bf16.mxu0 0
        %4282 = vmatpush2.bf16.msra.mxu0 0
        %4283 = vmatprep.mubr.bf16.mxu0 0
        %4284 = vmatmul.mubr.bf16.gmra.mxu0 %v4240
        %v4285 = vpop.f32.mrf.mxu0
        %v4286 = vadd.f32 0.0, %v4285
        %v4287 = vpop.f32.mrf.mxu0
        %v4288 = vpop.f32.mrf.mxu0
        %v4289 = vadd.f32 0.0, %v4288
        %v4290 = vpop.f32.mrf.mxu0
        %4291 = vmatprep.mubr.bf16.mxu0 0
        %4292 = vmatmul.mubr.bf16.gmra.mxu0 %v4243
        %v4293 = vpop.f32.mrf.mxu0
        %v4294 = vadd.f32 0.0, %v4293
        %v4295 = vpop.f32.mrf.mxu0
        %v4296 = vpop.f32.mrf.mxu0
        %v4297 = vadd.f32 0.0, %v4296
        %v4298 = vpop.f32.mrf.mxu0
        %4299 = vmatprep.mubr.bf16.mxu0 0
        %4300 = vmatmul.mubr.bf16.gmra.mxu0 %v4246
        %v4301 = vpop.f32.mrf.mxu0
        %v4302 = vadd.f32 0.0, %v4301
        %v4303 = vpop.f32.mrf.mxu0
        %v4304 = vpop.f32.mrf.mxu0
        %v4305 = vadd.f32 0.0, %v4304
        %v4306 = vpop.f32.mrf.mxu0
        %4307 = vmatprep.mubr.bf16.mxu0 0
        %4308 = vmatmul.mubr.bf16.gmra.mxu0 %v4249
        %v4309 = vpop.f32.mrf.mxu0
        %v4310 = vadd.f32 0.0, %v4309
        %v4311 = vpop.f32.mrf.mxu0
        %v4312 = vpop.f32.mrf.mxu0
        %v4313 = vadd.f32 0.0, %v4312
        %v4314 = vpop.f32.mrf.mxu0
        %4315 = vdwg.mxu0
        %v4316 = vadd.f32 %v3884, %v4286
        %v4317 = vadd.f32 %v3885, %v4289
        %v4318 = vadd.f32 %v3886, %v4294
        %v4319 = vadd.f32 %v3887, %v4297
        %v4320 = vadd.f32 %v3888, %v4302
        %v4321 = vadd.f32 %v3889, %v4305
        %v4322 = vadd.f32 %v3890, %v4310
        %v4323 = vadd.f32 %v3891, %v4313
        %v4324 = vld [vmem:[#allocation2 + $0x2c] sm:$0xe]
        %v4325 = vld [vmem:[#allocation2 + $0x30] sm:$0xf]
        %v4326 = vld [vmem:[#allocation2 + $0x34] sm:$0xf]
        %v4327 = vld [vmem:[#allocation2 + $0x38] sm:$0xf]
        %v4328 = vld [vmem:[#allocation2 + $0x3c] sm:$0xf]
        %v4329 = vld [vmem:[#allocation2 + $0x40] sm:$0xf]
        %v4330 = vld [vmem:[#allocation2 + $0x44] sm:$0xf]
        %v4331 = vld [vmem:[#allocation2 + $0x48] sm:$0x7]
        %v4340 = vunpack.c.l.b16 %v4324
        %v4341 = vunpack.c.l.b16 %v4325
        %v4342 = vunpack.c.l.b16 %v4326
        %v4343 = vunpack.c.l.b16 %v4327
        %v4344 = vunpack.c.l.b16 %v4328
        %v4345 = vunpack.c.l.b16 %v4329
        %v4346 = vunpack.c.l.b16 %v4330
        %v4347 = vunpack.c.l.b16 %v4331
        %v4348 = vpack.c.b16 %v4341, %v4340
        %v4349 = vpack.c.b16 %v4343, %v4342
        %v4350 = vpack.c.b16 %v4345, %v4344
        %v4351 = vpack.c.b16 %v4347, %v4346
        %v4352 = vrot.slane %v4348, 1
        %v4353 = vrot.slane %v4349, 1
        %v4354 = vsel %vm2621, %v4352, %v4353
        %v4355 = vrot.slane %v4350, 1
        %v4356 = vsel %vm2621, %v4353, %v4355
        %v4357 = vrot.slane %v4351, 1
        %v4358 = vsel %vm2621, %v4355, %v4357
        %v4360 = vsel %vm1969, %v4354, 0
        %v4363 = vsel %vm1969, %v4356, 0
        %v4366 = vsel %vm1969, %v4358, 0
        %v4369 = vsel %vm1969, %v4357, 0
        %4371 = vmatprep.subr.bf16.mxu0 0
        %4372 = vmatpush1.bf16.msra.mxu0 0
        %4373 = vmatprep.subr.bf16.mxu0 0
        %4374 = vmatpush1.bf16.msra.mxu0 0
        %4375 = vmatprep.subr.bf16.mxu0 0
        %4376 = vmatpush1.bf16.msra.mxu0 0
        %4377 = vmatprep.subr.bf16.mxu0 0
        %4378 = vmatpush1.bf16.msra.mxu0 0
        %4379 = vmatprep.subr.bf16.mxu0 0
        %4380 = vmatpush1.bf16.msra.mxu0 %v4234
        %4381 = vmatprep.subr.bf16.mxu0 0
        %4382 = vmatpush1.bf16.msra.mxu0 %v4233
        %4383 = vmatprep.subr.bf16.mxu0 0
        %4384 = vmatpush1.bf16.msra.mxu0 %v4232
        %4385 = vmatprep.subr.bf16.mxu0 0
        %4386 = vmatpush1.bf16.msra.mxu0 %v4231
        %4387 = vmatprep.subr.bf16.mxu0 0
        %4388 = vmatpush2.bf16.msra.mxu0 0
        %4389 = vmatprep.subr.bf16.mxu0 0
        %4390 = vmatpush2.bf16.msra.mxu0 0
        %4391 = vmatprep.subr.bf16.mxu0 0
        %4392 = vmatpush2.bf16.msra.mxu0 0
        %4393 = vmatprep.subr.bf16.mxu0 0
        %4394 = vmatpush2.bf16.msra.mxu0 0
        %4395 = vmatprep.subr.bf16.mxu0 0
        %4396 = vmatpush2.bf16.msra.mxu0 0
        %4397 = vmatprep.subr.bf16.mxu0 0
        %4398 = vmatpush2.bf16.msra.mxu0 0
        %4399 = vmatprep.subr.bf16.mxu0 0
        %4400 = vmatpush2.bf16.msra.mxu0 0
        %4401 = vmatprep.subr.bf16.mxu0 0
        %4402 = vmatpush2.bf16.msra.mxu0 0
        %4403 = vmatprep.mubr.bf16.mxu0 0
        %4404 = vmatmul.mubr.bf16.gmra.mxu0 %v4360
        %v4405 = vpop.f32.mrf.mxu0
        %v4406 = vadd.f32 0.0, %v4405
        %v4407 = vpop.f32.mrf.mxu0
        %v4408 = vpop.f32.mrf.mxu0
        %v4409 = vadd.f32 0.0, %v4408
        %v4410 = vpop.f32.mrf.mxu0
        %4411 = vmatprep.mubr.bf16.mxu0 0
        %4412 = vmatmul.mubr.bf16.gmra.mxu0 %v4363
        %v4413 = vpop.f32.mrf.mxu0
        %v4414 = vadd.f32 0.0, %v4413
        %v4415 = vpop.f32.mrf.mxu0
        %v4416 = vpop.f32.mrf.mxu0
        %v4417 = vadd.f32 0.0, %v4416
        %v4418 = vpop.f32.mrf.mxu0
        %4419 = vmatprep.mubr.bf16.mxu0 0
        %4420 = vmatmul.mubr.bf16.gmra.mxu0 %v4366
        %v4421 = vpop.f32.mrf.mxu0
        %v4422 = vadd.f32 0.0, %v4421
        %v4423 = vpop.f32.mrf.mxu0
        %v4424 = vpop.f32.mrf.mxu0
        %v4425 = vadd.f32 0.0, %v4424
        %v4426 = vpop.f32.mrf.mxu0
        %4427 = vmatprep.mubr.bf16.mxu0 0
        %4428 = vmatmul.mubr.bf16.gmra.mxu0 %v4369
        %v4429 = vpop.f32.mrf.mxu0
        %v4430 = vadd.f32 0.0, %v4429
        %v4431 = vpop.f32.mrf.mxu0
        %v4432 = vpop.f32.mrf.mxu0
        %v4433 = vadd.f32 0.0, %v4432
        %v4434 = vpop.f32.mrf.mxu0
        %4435 = vdwg.mxu0
        %v4436 = vadd.f32 %v4041, %v4406
        %v4437 = vadd.f32 %v4042, %v4409
        %v4438 = vadd.f32 %v4043, %v4414
        %v4439 = vadd.f32 %v4044, %v4417
        %v4440 = vadd.f32 %v4045, %v4422
        %v4441 = vadd.f32 %v4046, %v4425
        %v4442 = vadd.f32 %v4047, %v4430
        %v4443 = vadd.f32 %v4048, %v4433
        %v4444 = vld [vmem:[#allocation2 + $0x48] sm:$0x8]
        %v4445 = vld [vmem:[#allocation2 + $0x4c] sm:$0xf]
        %v4446 = vld [vmem:[#allocation2 + $0x50] sm:$0xf]
        %v4447 = vld [vmem:[#allocation2 + $0x54] sm:$0xf]
        %v4448 = vld [vmem:[#allocation2 + $0x58] sm:$0xf]
        %v4449 = vld [vmem:[#allocation2 + $0x5c] sm:$0xf]
        %v4450 = vld [vmem:[#allocation2 + $0x60] sm:$0xf]
        %v4451 = vld [vmem:[#allocation2 + $0x64] sm:$0xf]
        %v4452 = vld [vmem:[#allocation2 + $0x68] sm:$0x1]
        %v4462 = vunpack.c.l.b16 %v4444
        %v4463 = vunpack.c.l.b16 %v4445
        %v4464 = vunpack.c.l.b16 %v4446
        %v4465 = vunpack.c.l.b16 %v4447
        %v4466 = vunpack.c.l.b16 %v4448
        %v4467 = vunpack.c.l.b16 %v4449
        %v4468 = vunpack.c.l.b16 %v4450
        %v4469 = vunpack.c.l.b16 %v4451
        %v4470 = vunpack.c.l.b16 %v4452
        %v4471 = vpack.c.b16 %v4463, %v4462
        %v4472 = vpack.c.b16 %v4465, %v4464
        %v4473 = vpack.c.b16 %v4467, %v4466
        %v4474 = vpack.c.b16 %v4469, %v4468
        %v4475 = vpack.c.b16 %v4470, %v4470
        %v4476 = vrot.slane %v4471, 3
        %v4477 = vrot.slane %v4472, 3
        %v4478 = vsel %vm2742, %v4476, %v4477
        %v4479 = vrot.slane %v4473, 3
        %v4480 = vsel %vm2742, %v4477, %v4479
        %v4481 = vrot.slane %v4474, 3
        %v4482 = vsel %vm2742, %v4479, %v4481
        %v4483 = vrot.slane %v4475, 3
        %v4484 = vsel %vm2742, %v4481, %v4483
        %v4486 = vsel %vm1969, %v4478, 0
        %v4489 = vsel %vm1969, %v4480, 0
        %v4492 = vsel %vm1969, %v4482, 0
        %v4495 = vsel %vm1969, %v4484, 0
        %4497 = vmatprep.subr.bf16.mxu0 0
        %4498 = vmatpush1.bf16.msra.mxu0 0
        %4499 = vmatprep.subr.bf16.mxu0 0
        %4500 = vmatpush1.bf16.msra.mxu0 0
        %4501 = vmatprep.subr.bf16.mxu0 0
        %4502 = vmatpush1.bf16.msra.mxu0 0
        %4503 = vmatprep.subr.bf16.mxu0 0
        %4504 = vmatpush1.bf16.msra.mxu0 0
        %4505 = vmatprep.subr.bf16.mxu0 0
        %4506 = vmatpush1.bf16.msra.mxu0 %v4234
        %4507 = vmatprep.subr.bf16.mxu0 0
        %4508 = vmatpush1.bf16.msra.mxu0 %v4233
        %4509 = vmatprep.subr.bf16.mxu0 0
        %4510 = vmatpush1.bf16.msra.mxu0 %v4232
        %4511 = vmatprep.subr.bf16.mxu0 0
        %4512 = vmatpush1.bf16.msra.mxu0 %v4231
        %4513 = vmatprep.subr.bf16.mxu0 0
        %4514 = vmatpush2.bf16.msra.mxu0 0
        %4515 = vmatprep.subr.bf16.mxu0 0
        %4516 = vmatpush2.bf16.msra.mxu0 0
        %4517 = vmatprep.subr.bf16.mxu0 0
        %4518 = vmatpush2.bf16.msra.mxu0 0
        %4519 = vmatprep.subr.bf16.mxu0 0
        %4520 = vmatpush2.bf16.msra.mxu0 0
        %4521 = vmatprep.subr.bf16.mxu0 0
        %4522 = vmatpush2.bf16.msra.mxu0 0
        %4523 = vmatprep.subr.bf16.mxu0 0
        %4524 = vmatpush2.bf16.msra.mxu0 0
        %4525 = vmatprep.subr.bf16.mxu0 0
        %4526 = vmatpush2.bf16.msra.mxu0 0
        %4527 = vmatprep.subr.bf16.mxu0 0
        %4528 = vmatpush2.bf16.msra.mxu0 0
        %4529 = vmatprep.mubr.bf16.mxu0 0
        %4530 = vmatmul.mubr.bf16.gmra.mxu0 %v4486
        %v4531 = vpop.f32.mrf.mxu0
        %v4532 = vadd.f32 0.0, %v4531
        %v4533 = vpop.f32.mrf.mxu0
        %v4534 = vpop.f32.mrf.mxu0
        %v4535 = vadd.f32 0.0, %v4534
        %v4536 = vpop.f32.mrf.mxu0
        %4537 = vmatprep.mubr.bf16.mxu0 0
        %4538 = vmatmul.mubr.bf16.gmra.mxu0 %v4489
        %v4539 = vpop.f32.mrf.mxu0
        %v4540 = vadd.f32 0.0, %v4539
        %v4541 = vpop.f32.mrf.mxu0
        %v4542 = vpop.f32.mrf.mxu0
        %v4543 = vadd.f32 0.0, %v4542
        %v4544 = vpop.f32.mrf.mxu0
        %4545 = vmatprep.mubr.bf16.mxu0 0
        %4546 = vmatmul.mubr.bf16.gmra.mxu0 %v4492
        %v4547 = vpop.f32.mrf.mxu0
        %v4548 = vadd.f32 0.0, %v4547
        %v4549 = vpop.f32.mrf.mxu0
        %v4550 = vpop.f32.mrf.mxu0
        %v4551 = vadd.f32 0.0, %v4550
        %v4552 = vpop.f32.mrf.mxu0
        %4553 = vmatprep.mubr.bf16.mxu0 0
        %4554 = vmatmul.mubr.bf16.gmra.mxu0 %v4495
        %v4555 = vpop.f32.mrf.mxu0
        %v4556 = vadd.f32 0.0, %v4555
        %v4557 = vpop.f32.mrf.mxu0
        %v4558 = vpop.f32.mrf.mxu0
        %v4559 = vadd.f32 0.0, %v4558
        %v4560 = vpop.f32.mrf.mxu0
        %4561 = vdwg.mxu0
        %v4562 = vadd.f32 %v4158, %v4532
        %v4563 = vadd.f32 %v4159, %v4535
        %v4564 = vadd.f32 %v4160, %v4540
        %v4565 = vadd.f32 %v4161, %v4543
        %v4566 = vadd.f32 %v4162, %v4548
        %v4567 = vadd.f32 %v4163, %v4551
        %v4568 = vadd.f32 %v4164, %v4556
        %v4569 = vadd.f32 %v4165, %v4559
        %v4570 = vld [vmem:[%s3 + $0xe0] sm:$0xf]
        %v4571 = vld [vmem:[%s3 + $0xe4] sm:$0xf]
        %v4572 = vld [vmem:[%s3 + $0xe8] sm:$0xf]
        %v4573 = vld [vmem:[%s3 + $0xec] sm:$0xf]
        %v4574 = vld [vmem:[%s3 + $0xf0] sm:$0xf]
        %v4575 = vld [vmem:[%s3 + $0xf4] sm:$0xf]
        %v4576 = vld [vmem:[%s3 + $0xf8] sm:$0xf]
        %v4577 = vld [vmem:[%s3 + $0xfc] sm:$0xf]
        %v4578 = vld [vmem:[#allocation2 + $0x2c] sm:$0x3]
        %v4580 = vunpack.c.l.b16 %v4578
        %v4581 = vpack.c.b16 %v4580, %v4580
        %v4583 = vshrl.u32 %v4201, 16
        %v4585 = vrot.slane %v4583, 3
        %v4586 = vshll.u32 %v4201, 16
        %v4588 = vrot.slane %v4586, 4
        %v4589 = vor.u32 %v4585, %v4588
        %v4591 = vshrl.u32 %v4202, 16
        %v4593 = vrot.slane %v4591, 3
        %v4594 = vshll.u32 %v4202, 16
        %v4596 = vrot.slane %v4594, 4
        %v4597 = vor.u32 %v4593, %v4596
        %v4598 = vsel %vm2973, %v4589, %v4597
        %v4600 = vshrl.u32 %v4203, 16
        %v4602 = vrot.slane %v4600, 3
        %v4603 = vshll.u32 %v4203, 16
        %v4605 = vrot.slane %v4603, 4
        %v4606 = vor.u32 %v4602, %v4605
        %v4607 = vsel %vm2973, %v4597, %v4606
        %v4609 = vshrl.u32 %v4204, 16
        %v4611 = vrot.slane %v4609, 3
        %v4612 = vshll.u32 %v4204, 16
        %v4614 = vrot.slane %v4612, 4
        %v4615 = vor.u32 %v4611, %v4614
        %v4616 = vsel %vm2973, %v4606, %v4615
        %v4618 = vshrl.u32 %v4581, 16
        %v4620 = vrot.slane %v4618, 3
        %v4621 = vshll.u32 %v4581, 16
        %v4623 = vrot.slane %v4621, 4
        %v4624 = vor.u32 %v4620, %v4623
        %v4625 = vsel %vm2973, %v4615, %v4624
        %v4634 = vunpack.c.l.b16 %v4570
        %v4635 = vunpack.c.l.b16 %v4571
        %v4636 = vunpack.c.l.b16 %v4572
        %v4637 = vunpack.c.l.b16 %v4573
        %v4638 = vunpack.c.l.b16 %v4574
        %v4639 = vunpack.c.l.b16 %v4575
        %v4640 = vunpack.c.l.b16 %v4576
        %v4641 = vunpack.c.l.b16 %v4577
        %v4642 = vpack.c.b16 %v4635, %v4634
        %v4643 = vpack.c.b16 %v4637, %v4636
        %v4644 = vpack.c.b16 %v4639, %v4638
        %v4645 = vpack.c.b16 %v4641, %v4640
        %v4651 = vsel %vm1969, %v4598, 0
        %v4654 = vsel %vm1969, %v4607, 0
        %v4657 = vsel %vm1969, %v4616, 0
        %v4660 = vsel %vm1969, %v4625, 0
        %4662 = vmatprep.subr.bf16.mxu0 0
        %4663 = vmatpush1.bf16.msra.mxu0 0
        %4664 = vmatprep.subr.bf16.mxu0 0
        %4665 = vmatpush1.bf16.msra.mxu0 0
        %4666 = vmatprep.subr.bf16.mxu0 0
        %4667 = vmatpush1.bf16.msra.mxu0 0
        %4668 = vmatprep.subr.bf16.mxu0 0
        %4669 = vmatpush1.bf16.msra.mxu0 0
        %4670 = vmatprep.subr.bf16.mxu0 0
        %4671 = vmatpush1.bf16.msra.mxu0 %v4645
        %4672 = vmatprep.subr.bf16.mxu0 0
        %4673 = vmatpush1.bf16.msra.mxu0 %v4644
        %4674 = vmatprep.subr.bf16.mxu0 0
        %4675 = vmatpush1.bf16.msra.mxu0 %v4643
        %4676 = vmatprep.subr.bf16.mxu0 0
        %4677 = vmatpush1.bf16.msra.mxu0 %v4642
        %4678 = vmatprep.subr.bf16.mxu0 0
        %4679 = vmatpush2.bf16.msra.mxu0 0
        %4680 = vmatprep.subr.bf16.mxu0 0
        %4681 = vmatpush2.bf16.msra.mxu0 0
        %4682 = vmatprep.subr.bf16.mxu0 0
        %4683 = vmatpush2.bf16.msra.mxu0 0
        %4684 = vmatprep.subr.bf16.mxu0 0
        %4685 = vmatpush2.bf16.msra.mxu0 0
        %4686 = vmatprep.subr.bf16.mxu0 0
        %4687 = vmatpush2.bf16.msra.mxu0 0
        %4688 = vmatprep.subr.bf16.mxu0 0
        %4689 = vmatpush2.bf16.msra.mxu0 0
        %4690 = vmatprep.subr.bf16.mxu0 0
        %4691 = vmatpush2.bf16.msra.mxu0 0
        %4692 = vmatprep.subr.bf16.mxu0 0
        %4693 = vmatpush2.bf16.msra.mxu0 0
        %4694 = vmatprep.mubr.bf16.mxu0 0
        %4695 = vmatmul.mubr.bf16.gmra.mxu0 %v4651
        %v4696 = vpop.f32.mrf.mxu0
        %v4697 = vadd.f32 0.0, %v4696
        %v4698 = vpop.f32.mrf.mxu0
        %v4699 = vpop.f32.mrf.mxu0
        %v4700 = vadd.f32 0.0, %v4699
        %v4701 = vpop.f32.mrf.mxu0
        %4702 = vmatprep.mubr.bf16.mxu0 0
        %4703 = vmatmul.mubr.bf16.gmra.mxu0 %v4654
        %v4704 = vpop.f32.mrf.mxu0
        %v4705 = vadd.f32 0.0, %v4704
        %v4706 = vpop.f32.mrf.mxu0
        %v4707 = vpop.f32.mrf.mxu0
        %v4708 = vadd.f32 0.0, %v4707
        %v4709 = vpop.f32.mrf.mxu0
        %4710 = vmatprep.mubr.bf16.mxu0 0
        %4711 = vmatmul.mubr.bf16.gmra.mxu0 %v4657
        %v4712 = vpop.f32.mrf.mxu0
        %v4713 = vadd.f32 0.0, %v4712
        %v4714 = vpop.f32.mrf.mxu0
        %v4715 = vpop.f32.mrf.mxu0
        %v4716 = vadd.f32 0.0, %v4715
        %v4717 = vpop.f32.mrf.mxu0
        %4718 = vmatprep.mubr.bf16.mxu0 0
        %4719 = vmatmul.mubr.bf16.gmra.mxu0 %v4660
        %v4720 = vpop.f32.mrf.mxu0
        %v4721 = vadd.f32 0.0, %v4720
        %v4722 = vpop.f32.mrf.mxu0
        %v4723 = vpop.f32.mrf.mxu0
        %v4724 = vadd.f32 0.0, %v4723
        %v4725 = vpop.f32.mrf.mxu0
        %4726 = vdwg.mxu0
        %v4727 = vadd.f32 %v4316, %v4697
        %v4728 = vadd.f32 %v4317, %v4700
        %v4729 = vadd.f32 %v4318, %v4705
        %v4730 = vadd.f32 %v4319, %v4708
        %v4731 = vadd.f32 %v4320, %v4713
        %v4732 = vadd.f32 %v4321, %v4716
        %v4733 = vadd.f32 %v4322, %v4721
        %v4734 = vadd.f32 %v4323, %v4724
        %v4735 = vld [vmem:[#allocation2 + $0x48] sm:$0xf]
        %v4737 = vunpack.c.l.b16 %v4735
        %v4738 = vpack.c.b16 %v4737, %v4346
        %v4740 = vshrl.u32 %v4348, 16
        %v4742 = vrot.slane %v4740, 1
        %v4743 = vshll.u32 %v4348, 16
        %v4745 = vrot.slane %v4743, 2
        %v4746 = vor.u32 %v4742, %v4745
        %v4748 = vshrl.u32 %v4349, 16
        %v4750 = vrot.slane %v4748, 1
        %v4751 = vshll.u32 %v4349, 16
        %v4753 = vrot.slane %v4751, 2
        %v4754 = vor.u32 %v4750, %v4753
        %v4755 = vsel %vm3155, %v4746, %v4754
        %v4757 = vshrl.u32 %v4350, 16
        %v4759 = vrot.slane %v4757, 1
        %v4760 = vshll.u32 %v4350, 16
        %v4762 = vrot.slane %v4760, 2
        %v4763 = vor.u32 %v4759, %v4762
        %v4764 = vsel %vm3155, %v4754, %v4763
        %v4766 = vshrl.u32 %v4738, 16
        %v4768 = vrot.slane %v4766, 1
        %v4769 = vshll.u32 %v4738, 16
        %v4771 = vrot.slane %v4769, 2
        %v4772 = vor.u32 %v4768, %v4771
        %v4773 = vsel %vm3155, %v4763, %v4772
        %v4775 = vsel %vm1969, %v4755, 0
        %v4778 = vsel %vm1969, %v4764, 0
        %v4781 = vsel %vm1969, %v4773, 0
        %v4784 = vsel %vm1969, %v4772, 0
        %4786 = vmatprep.subr.bf16.mxu0 0
        %4787 = vmatpush1.bf16.msra.mxu0 0
        %4788 = vmatprep.subr.bf16.mxu0 0
        %4789 = vmatpush1.bf16.msra.mxu0 0
        %4790 = vmatprep.subr.bf16.mxu0 0
        %4791 = vmatpush1.bf16.msra.mxu0 0
        %4792 = vmatprep.subr.bf16.mxu0 0
        %4793 = vmatpush1.bf16.msra.mxu0 0
        %4794 = vmatprep.subr.bf16.mxu0 0
        %4795 = vmatpush1.bf16.msra.mxu0 %v4645
        %4796 = vmatprep.subr.bf16.mxu0 0
        %4797 = vmatpush1.bf16.msra.mxu0 %v4644
        %4798 = vmatprep.subr.bf16.mxu0 0
        %4799 = vmatpush1.bf16.msra.mxu0 %v4643
        %4800 = vmatprep.subr.bf16.mxu0 0
        %4801 = vmatpush1.bf16.msra.mxu0 %v4642
        %4802 = vmatprep.subr.bf16.mxu0 0
        %4803 = vmatpush2.bf16.msra.mxu0 0
        %4804 = vmatprep.subr.bf16.mxu0 0
        %4805 = vmatpush2.bf16.msra.mxu0 0
        %4806 = vmatprep.subr.bf16.mxu0 0
        %4807 = vmatpush2.bf16.msra.mxu0 0
        %4808 = vmatprep.subr.bf16.mxu0 0
        %4809 = vmatpush2.bf16.msra.mxu0 0
        %4810 = vmatprep.subr.bf16.mxu0 0
        %4811 = vmatpush2.bf16.msra.mxu0 0
        %4812 = vmatprep.subr.bf16.mxu0 0
        %4813 = vmatpush2.bf16.msra.mxu0 0
        %4814 = vmatprep.subr.bf16.mxu0 0
        %4815 = vmatpush2.bf16.msra.mxu0 0
        %4816 = vmatprep.subr.bf16.mxu0 0
        %4817 = vmatpush2.bf16.msra.mxu0 0
        %4818 = vmatprep.mubr.bf16.mxu0 0
        %4819 = vmatmul.mubr.bf16.gmra.mxu0 %v4775
        %v4820 = vpop.f32.mrf.mxu0
        %v4821 = vadd.f32 0.0, %v4820
        %v4822 = vpop.f32.mrf.mxu0
        %v4823 = vpop.f32.mrf.mxu0
        %v4824 = vadd.f32 0.0, %v4823
        %v4825 = vpop.f32.mrf.mxu0
        %4826 = vmatprep.mubr.bf16.mxu0 0
        %4827 = vmatmul.mubr.bf16.gmra.mxu0 %v4778
        %v4828 = vpop.f32.mrf.mxu0
        %v4829 = vadd.f32 0.0, %v4828
        %v4830 = vpop.f32.mrf.mxu0
        %v4831 = vpop.f32.mrf.mxu0
        %v4832 = vadd.f32 0.0, %v4831
        %v4833 = vpop.f32.mrf.mxu0
        %4834 = vmatprep.mubr.bf16.mxu0 0
        %4835 = vmatmul.mubr.bf16.gmra.mxu0 %v4781
        %v4836 = vpop.f32.mrf.mxu0
        %v4837 = vadd.f32 0.0, %v4836
        %v4838 = vpop.f32.mrf.mxu0
        %v4839 = vpop.f32.mrf.mxu0
        %v4840 = vadd.f32 0.0, %v4839
        %v4841 = vpop.f32.mrf.mxu0
        %4842 = vmatprep.mubr.bf16.mxu0 0
        %4843 = vmatmul.mubr.bf16.gmra.mxu0 %v4784
        %v4844 = vpop.f32.mrf.mxu0
        %v4845 = vadd.f32 0.0, %v4844
        %v4846 = vpop.f32.mrf.mxu0
        %v4847 = vpop.f32.mrf.mxu0
        %v4848 = vadd.f32 0.0, %v4847
        %v4849 = vpop.f32.mrf.mxu0
        %4850 = vdwg.mxu0
        %v4851 = vadd.f32 %v4436, %v4821
        %v4852 = vadd.f32 %v4437, %v4824
        %v4853 = vadd.f32 %v4438, %v4829
        %v4854 = vadd.f32 %v4439, %v4832
        %v4855 = vadd.f32 %v4440, %v4837
        %v4856 = vadd.f32 %v4441, %v4840
        %v4857 = vadd.f32 %v4442, %v4845
        %v4858 = vadd.f32 %v4443, %v4848
        %v4859 = vld [vmem:[#allocation2 + $0x68] sm:$0x3]
        %v4861 = vunpack.c.l.b16 %v4859
        %v4862 = vpack.c.b16 %v4861, %v4861
        %v4864 = vshrl.u32 %v4471, 16
        %v4866 = vrot.slane %v4864, 3
        %v4867 = vshll.u32 %v4471, 16
        %v4869 = vrot.slane %v4867, 4
        %v4870 = vor.u32 %v4866, %v4869
        %v4872 = vshrl.u32 %v4472, 16
        %v4874 = vrot.slane %v4872, 3
        %v4875 = vshll.u32 %v4472, 16
        %v4877 = vrot.slane %v4875, 4
        %v4878 = vor.u32 %v4874, %v4877
        %v4879 = vsel %vm2973, %v4870, %v4878
        %v4881 = vshrl.u32 %v4473, 16
        %v4883 = vrot.slane %v4881, 3
        %v4884 = vshll.u32 %v4473, 16
        %v4886 = vrot.slane %v4884, 4
        %v4887 = vor.u32 %v4883, %v4886
        %v4888 = vsel %vm2973, %v4878, %v4887
        %v4890 = vshrl.u32 %v4474, 16
        %v4892 = vrot.slane %v4890, 3
        %v4893 = vshll.u32 %v4474, 16
        %v4895 = vrot.slane %v4893, 4
        %v4896 = vor.u32 %v4892, %v4895
        %v4897 = vsel %vm2973, %v4887, %v4896
        %v4899 = vshrl.u32 %v4862, 16
        %v4901 = vrot.slane %v4899, 3
        %v4902 = vshll.u32 %v4862, 16
        %v4904 = vrot.slane %v4902, 4
        %v4905 = vor.u32 %v4901, %v4904
        %v4906 = vsel %vm2973, %v4896, %v4905
        %v4908 = vsel %vm1969, %v4879, 0
        %v4911 = vsel %vm1969, %v4888, 0
        %v4914 = vsel %vm1969, %v4897, 0
        %v4917 = vsel %vm1969, %v4906, 0
        %4919 = vmatprep.subr.bf16.mxu0 0
        %4920 = vmatpush1.bf16.msra.mxu0 0
        %4921 = vmatprep.subr.bf16.mxu0 0
        %4922 = vmatpush1.bf16.msra.mxu0 0
        %4923 = vmatprep.subr.bf16.mxu0 0
        %4924 = vmatpush1.bf16.msra.mxu0 0
        %4925 = vmatprep.subr.bf16.mxu0 0
        %4926 = vmatpush1.bf16.msra.mxu0 0
        %4927 = vmatprep.subr.bf16.mxu0 0
        %4928 = vmatpush1.bf16.msra.mxu0 %v4645
        %4929 = vmatprep.subr.bf16.mxu0 0
        %4930 = vmatpush1.bf16.msra.mxu0 %v4644
        %4931 = vmatprep.subr.bf16.mxu0 0
        %4932 = vmatpush1.bf16.msra.mxu0 %v4643
        %4933 = vmatprep.subr.bf16.mxu0 0
        %4934 = vmatpush1.bf16.msra.mxu0 %v4642
        %4935 = vmatprep.subr.bf16.mxu0 0
        %4936 = vmatpush2.bf16.msra.mxu0 0
        %4937 = vmatprep.subr.bf16.mxu0 0
        %4938 = vmatpush2.bf16.msra.mxu0 0
        %4939 = vmatprep.subr.bf16.mxu0 0
        %4940 = vmatpush2.bf16.msra.mxu0 0
        %4941 = vmatprep.subr.bf16.mxu0 0
        %4942 = vmatpush2.bf16.msra.mxu0 0
        %4943 = vmatprep.subr.bf16.mxu0 0
        %4944 = vmatpush2.bf16.msra.mxu0 0
        %4945 = vmatprep.subr.bf16.mxu0 0
        %4946 = vmatpush2.bf16.msra.mxu0 0
        %4947 = vmatprep.subr.bf16.mxu0 0
        %4948 = vmatpush2.bf16.msra.mxu0 0
        %4949 = vmatprep.subr.bf16.mxu0 0
        %4950 = vmatpush2.bf16.msra.mxu0 0
        %4951 = vmatprep.mubr.bf16.mxu0 0
        %4952 = vmatmul.mubr.bf16.gmra.mxu0 %v4908
        %v4953 = vpop.f32.mrf.mxu0
        %v4954 = vadd.f32 0.0, %v4953
        %v4955 = vpop.f32.mrf.mxu0
        %v4956 = vpop.f32.mrf.mxu0
        %v4957 = vadd.f32 0.0, %v4956
        %v4958 = vpop.f32.mrf.mxu0
        %4959 = vmatprep.mubr.bf16.mxu0 0
        %4960 = vmatmul.mubr.bf16.gmra.mxu0 %v4911
        %v4961 = vpop.f32.mrf.mxu0
        %v4962 = vadd.f32 0.0, %v4961
        %v4963 = vpop.f32.mrf.mxu0
        %v4964 = vpop.f32.mrf.mxu0
        %v4965 = vadd.f32 0.0, %v4964
        %v4966 = vpop.f32.mrf.mxu0
        %4967 = vmatprep.mubr.bf16.mxu0 0
        %4968 = vmatmul.mubr.bf16.gmra.mxu0 %v4914
        %v4969 = vpop.f32.mrf.mxu0
        %v4970 = vadd.f32 0.0, %v4969
        %v4971 = vpop.f32.mrf.mxu0
        %v4972 = vpop.f32.mrf.mxu0
        %v4973 = vadd.f32 0.0, %v4972
        %v4974 = vpop.f32.mrf.mxu0
        %4975 = vmatprep.mubr.bf16.mxu0 0
        %4976 = vmatmul.mubr.bf16.gmra.mxu0 %v4917
        %v4977 = vpop.f32.mrf.mxu0
        %v4978 = vadd.f32 0.0, %v4977
        %v4979 = vpop.f32.mrf.mxu0
        %v4980 = vpop.f32.mrf.mxu0
        %v4981 = vadd.f32 0.0, %v4980
        %v4982 = vpop.f32.mrf.mxu0
        %4983 = vdwg.mxu0
        %v4984 = vadd.f32 %v4562, %v4954
        %v4985 = vadd.f32 %v4563, %v4957
        %v4986 = vadd.f32 %v4564, %v4962
        %v4987 = vadd.f32 %v4565, %v4965
        %v4988 = vadd.f32 %v4566, %v4970
        %v4989 = vadd.f32 %v4567, %v4973
        %v4990 = vadd.f32 %v4568, %v4978
        %v4991 = vadd.f32 %v4569, %v4981
        %v4992 = vld [vmem:[%s3 + $0x100] sm:$0xf]
        %v4993 = vld [vmem:[%s3 + $0x104] sm:$0xf]
        %v4994 = vld [vmem:[%s3 + $0x108] sm:$0xf]
        %v4995 = vld [vmem:[%s3 + $0x10c] sm:$0xf]
        %v4996 = vld [vmem:[%s3 + $0x110] sm:$0xf]
        %v4997 = vld [vmem:[%s3 + $0x114] sm:$0xf]
        %v4998 = vld [vmem:[%s3 + $0x118] sm:$0xf]
        %v4999 = vld [vmem:[%s3 + $0x11c] sm:$0xf]
        %v5000 = vpack.c.b16 %v4194, %v4193
        %v5001 = vpack.c.b16 %v4196, %v4195
        %v5002 = vpack.c.b16 %v4198, %v4197
        %v5003 = vpack.c.b16 %v4580, %v4199
        %v5012 = vunpack.c.l.b16 %v4992
        %v5013 = vunpack.c.l.b16 %v4993
        %v5014 = vunpack.c.l.b16 %v4994
        %v5015 = vunpack.c.l.b16 %v4995
        %v5016 = vunpack.c.l.b16 %v4996
        %v5017 = vunpack.c.l.b16 %v4997
        %v5018 = vunpack.c.l.b16 %v4998
        %v5019 = vunpack.c.l.b16 %v4999
        %v5020 = vpack.c.b16 %v5013, %v5012
        %v5021 = vpack.c.b16 %v5015, %v5014
        %v5022 = vpack.c.b16 %v5017, %v5016
        %v5023 = vpack.c.b16 %v5019, %v5018
        %v5029 = vsel %vm1969, %v5000, 0
        %v5032 = vsel %vm1969, %v5001, 0
        %v5035 = vsel %vm1969, %v5002, 0
        %v5038 = vsel %vm1969, %v5003, 0
        %5040 = vmatprep.subr.bf16.mxu0 0
        %5041 = vmatpush1.bf16.msra.mxu0 0
        %5042 = vmatprep.subr.bf16.mxu0 0
        %5043 = vmatpush1.bf16.msra.mxu0 0
        %5044 = vmatprep.subr.bf16.mxu0 0
        %5045 = vmatpush1.bf16.msra.mxu0 0
        %5046 = vmatprep.subr.bf16.mxu0 0
        %5047 = vmatpush1.bf16.msra.mxu0 0
        %5048 = vmatprep.subr.bf16.mxu0 0
        %5049 = vmatpush1.bf16.msra.mxu0 %v5023
        %5050 = vmatprep.subr.bf16.mxu0 0
        %5051 = vmatpush1.bf16.msra.mxu0 %v5022
        %5052 = vmatprep.subr.bf16.mxu0 0
        %5053 = vmatpush1.bf16.msra.mxu0 %v5021
        %5054 = vmatprep.subr.bf16.mxu0 0
        %5055 = vmatpush1.bf16.msra.mxu0 %v5020
        %5056 = vmatprep.subr.bf16.mxu0 0
        %5057 = vmatpush2.bf16.msra.mxu0 0
        %5058 = vmatprep.subr.bf16.mxu0 0
        %5059 = vmatpush2.bf16.msra.mxu0 0
        %5060 = vmatprep.subr.bf16.mxu0 0
        %5061 = vmatpush2.bf16.msra.mxu0 0
        %5062 = vmatprep.subr.bf16.mxu0 0
        %5063 = vmatpush2.bf16.msra.mxu0 0
        %5064 = vmatprep.subr.bf16.mxu0 0
        %5065 = vmatpush2.bf16.msra.mxu0 0
        %5066 = vmatprep.subr.bf16.mxu0 0
        %5067 = vmatpush2.bf16.msra.mxu0 0
        %5068 = vmatprep.subr.bf16.mxu0 0
        %5069 = vmatpush2.bf16.msra.mxu0 0
        %5070 = vmatprep.subr.bf16.mxu0 0
        %5071 = vmatpush2.bf16.msra.mxu0 0
        %5072 = vmatprep.mubr.bf16.mxu0 0
        %5073 = vmatmul.mubr.bf16.gmra.mxu0 %v5029
        %v5074 = vpop.f32.mrf.mxu0
        %v5075 = vadd.f32 0.0, %v5074
        %v5076 = vpop.f32.mrf.mxu0
        %v5077 = vpop.f32.mrf.mxu0
        %v5078 = vadd.f32 0.0, %v5077
        %v5079 = vpop.f32.mrf.mxu0
        %5080 = vmatprep.mubr.bf16.mxu0 0
        %5081 = vmatmul.mubr.bf16.gmra.mxu0 %v5032
        %v5082 = vpop.f32.mrf.mxu0
        %v5083 = vadd.f32 0.0, %v5082
        %v5084 = vpop.f32.mrf.mxu0
        %v5085 = vpop.f32.mrf.mxu0
        %v5086 = vadd.f32 0.0, %v5085
        %v5087 = vpop.f32.mrf.mxu0
        %5088 = vmatprep.mubr.bf16.mxu0 0
        %5089 = vmatmul.mubr.bf16.gmra.mxu0 %v5035
        %v5090 = vpop.f32.mrf.mxu0
        %v5091 = vadd.f32 0.0, %v5090
        %v5092 = vpop.f32.mrf.mxu0
        %v5093 = vpop.f32.mrf.mxu0
        %v5094 = vadd.f32 0.0, %v5093
        %v5095 = vpop.f32.mrf.mxu0
        %5096 = vmatprep.mubr.bf16.mxu0 0
        %5097 = vmatmul.mubr.bf16.gmra.mxu0 %v5038
        %v5098 = vpop.f32.mrf.mxu0
        %v5099 = vadd.f32 0.0, %v5098
        %v5100 = vpop.f32.mrf.mxu0
        %v5101 = vpop.f32.mrf.mxu0
        %v5102 = vadd.f32 0.0, %v5101
        %v5103 = vpop.f32.mrf.mxu0
        %5104 = vdwg.mxu0
        %v5105 = vadd.f32 %v4727, %v5075
        %v5106 = vadd.f32 %v4728, %v5078
        %v5107 = vadd.f32 %v4729, %v5083
        %v5108 = vadd.f32 %v4730, %v5086
        %v5109 = vadd.f32 %v4731, %v5091
        %v5110 = vadd.f32 %v4732, %v5094
        %v5111 = vadd.f32 %v4733, %v5099
        %v5112 = vadd.f32 %v4734, %v5102
        %v5113 = vld [vmem:[#allocation2 + $0x2c] sm:$0xc]
        %v5115 = vunpack.c.l.b16 %v5113
        %v5116 = vpack.c.b16 %v4341, %v5115
        %v5117 = vrot.slane %v5116, 2
        %v5118 = vrot.slane %v4349, 2
        %v5119 = vsel %vm2318, %v5117, %v5118
        %v5120 = vrot.slane %v4350, 2
        %v5121 = vsel %vm2318, %v5118, %v5120
        %v5122 = vrot.slane %v4738, 2
        %v5123 = vsel %vm2318, %v5120, %v5122
        %v5125 = vsel %vm1969, %v5119, 0
        %v5128 = vsel %vm1969, %v5121, 0
        %v5131 = vsel %vm1969, %v5123, 0
        %v5134 = vsel %vm1969, %v5122, 0
        %5136 = vmatprep.subr.bf16.mxu0 0
        %5137 = vmatpush1.bf16.msra.mxu0 0
        %5138 = vmatprep.subr.bf16.mxu0 0
        %5139 = vmatpush1.bf16.msra.mxu0 0
        %5140 = vmatprep.subr.bf16.mxu0 0
        %5141 = vmatpush1.bf16.msra.mxu0 0
        %5142 = vmatprep.subr.bf16.mxu0 0
        %5143 = vmatpush1.bf16.msra.mxu0 0
        %5144 = vmatprep.subr.bf16.mxu0 0
        %5145 = vmatpush1.bf16.msra.mxu0 %v5023
        %5146 = vmatprep.subr.bf16.mxu0 0
        %5147 = vmatpush1.bf16.msra.mxu0 %v5022
        %5148 = vmatprep.subr.bf16.mxu0 0
        %5149 = vmatpush1.bf16.msra.mxu0 %v5021
        %5150 = vmatprep.subr.bf16.mxu0 0
        %5151 = vmatpush1.bf16.msra.mxu0 %v5020
        %5152 = vmatprep.subr.bf16.mxu0 0
        %5153 = vmatpush2.bf16.msra.mxu0 0
        %5154 = vmatprep.subr.bf16.mxu0 0
        %5155 = vmatpush2.bf16.msra.mxu0 0
        %5156 = vmatprep.subr.bf16.mxu0 0
        %5157 = vmatpush2.bf16.msra.mxu0 0
        %5158 = vmatprep.subr.bf16.mxu0 0
        %5159 = vmatpush2.bf16.msra.mxu0 0
        %5160 = vmatprep.subr.bf16.mxu0 0
        %5161 = vmatpush2.bf16.msra.mxu0 0
        %5162 = vmatprep.subr.bf16.mxu0 0
        %5163 = vmatpush2.bf16.msra.mxu0 0
        %5164 = vmatprep.subr.bf16.mxu0 0
        %5165 = vmatpush2.bf16.msra.mxu0 0
        %5166 = vmatprep.subr.bf16.mxu0 0
        %5167 = vmatpush2.bf16.msra.mxu0 0
        %5168 = vmatprep.mubr.bf16.mxu0 0
        %5169 = vmatmul.mubr.bf16.gmra.mxu0 %v5125
        %v5170 = vpop.f32.mrf.mxu0
        %v5171 = vadd.f32 0.0, %v5170
        %v5172 = vpop.f32.mrf.mxu0
        %v5173 = vpop.f32.mrf.mxu0
        %v5174 = vadd.f32 0.0, %v5173
        %v5175 = vpop.f32.mrf.mxu0
        %5176 = vmatprep.mubr.bf16.mxu0 0
        %5177 = vmatmul.mubr.bf16.gmra.mxu0 %v5128
        %v5178 = vpop.f32.mrf.mxu0
        %v5179 = vadd.f32 0.0, %v5178
        %v5180 = vpop.f32.mrf.mxu0
        %v5181 = vpop.f32.mrf.mxu0
        %v5182 = vadd.f32 0.0, %v5181
        %v5183 = vpop.f32.mrf.mxu0
        %5184 = vmatprep.mubr.bf16.mxu0 0
        %5185 = vmatmul.mubr.bf16.gmra.mxu0 %v5131
        %v5186 = vpop.f32.mrf.mxu0
        %v5187 = vadd.f32 0.0, %v5186
        %v5188 = vpop.f32.mrf.mxu0
        %v5189 = vpop.f32.mrf.mxu0
        %v5190 = vadd.f32 0.0, %v5189
        %v5191 = vpop.f32.mrf.mxu0
        %5192 = vmatprep.mubr.bf16.mxu0 0
        %5193 = vmatmul.mubr.bf16.gmra.mxu0 %v5134
        %v5194 = vpop.f32.mrf.mxu0
        %v5195 = vadd.f32 0.0, %v5194
        %v5196 = vpop.f32.mrf.mxu0
        %v5197 = vpop.f32.mrf.mxu0
        %v5198 = vadd.f32 0.0, %v5197
        %v5199 = vpop.f32.mrf.mxu0
        %5200 = vdwg.mxu0
        %v5201 = vadd.f32 %v4851, %v5171
        %v5202 = vadd.f32 %v4852, %v5174
        %v5203 = vadd.f32 %v4853, %v5179
        %v5204 = vadd.f32 %v4854, %v5182
        %v5205 = vadd.f32 %v4855, %v5187
        %v5206 = vadd.f32 %v4856, %v5190
        %v5207 = vadd.f32 %v4857, %v5195
        %v5208 = vadd.f32 %v4858, %v5198
        %v5209 = vpack.c.b16 %v4464, %v4463
        %v5210 = vpack.c.b16 %v4466, %v4465
        %v5211 = vpack.c.b16 %v4468, %v4467
        %v5212 = vpack.c.b16 %v4861, %v4469
        %v5214 = vsel %vm1969, %v5209, 0
        %v5217 = vsel %vm1969, %v5210, 0
        %v5220 = vsel %vm1969, %v5211, 0
        %v5223 = vsel %vm1969, %v5212, 0
        %5225 = vmatprep.subr.bf16.mxu0 0
        %5226 = vmatpush1.bf16.msra.mxu0 0
        %5227 = vmatprep.subr.bf16.mxu0 0
        %5228 = vmatpush1.bf16.msra.mxu0 0
        %5229 = vmatprep.subr.bf16.mxu0 0
        %5230 = vmatpush1.bf16.msra.mxu0 0
        %5231 = vmatprep.subr.bf16.mxu0 0
        %5232 = vmatpush1.bf16.msra.mxu0 0
        %5233 = vmatprep.subr.bf16.mxu0 0
        %5234 = vmatpush1.bf16.msra.mxu0 %v5023
        %5235 = vmatprep.subr.bf16.mxu0 0
        %5236 = vmatpush1.bf16.msra.mxu0 %v5022
        %5237 = vmatprep.subr.bf16.mxu0 0
        %5238 = vmatpush1.bf16.msra.mxu0 %v5021
        %5239 = vmatprep.subr.bf16.mxu0 0
        %5240 = vmatpush1.bf16.msra.mxu0 %v5020
        %5241 = vmatprep.subr.bf16.mxu0 0
        %5242 = vmatpush2.bf16.msra.mxu0 0
        %5243 = vmatprep.subr.bf16.mxu0 0
        %5244 = vmatpush2.bf16.msra.mxu0 0
        %5245 = vmatprep.subr.bf16.mxu0 0
        %5246 = vmatpush2.bf16.msra.mxu0 0
        %5247 = vmatprep.subr.bf16.mxu0 0
        %5248 = vmatpush2.bf16.msra.mxu0 0
        %5249 = vmatprep.subr.bf16.mxu0 0
        %5250 = vmatpush2.bf16.msra.mxu0 0
        %5251 = vmatprep.subr.bf16.mxu0 0
        %5252 = vmatpush2.bf16.msra.mxu0 0
        %5253 = vmatprep.subr.bf16.mxu0 0
        %5254 = vmatpush2.bf16.msra.mxu0 0
        %5255 = vmatprep.subr.bf16.mxu0 0
        %5256 = vmatpush2.bf16.msra.mxu0 0
        %5257 = vmatprep.mubr.bf16.mxu0 0
        %5258 = vmatmul.mubr.bf16.gmra.mxu0 %v5214
        %v5259 = vpop.f32.mrf.mxu0
        %v5260 = vadd.f32 0.0, %v5259
        %v5261 = vpop.f32.mrf.mxu0
        %v5262 = vpop.f32.mrf.mxu0
        %v5263 = vadd.f32 0.0, %v5262
        %v5264 = vpop.f32.mrf.mxu0
        %5265 = vmatprep.mubr.bf16.mxu0 0
        %5266 = vmatmul.mubr.bf16.gmra.mxu0 %v5217
        %v5267 = vpop.f32.mrf.mxu0
        %v5268 = vadd.f32 0.0, %v5267
        %v5269 = vpop.f32.mrf.mxu0
        %v5270 = vpop.f32.mrf.mxu0
        %v5271 = vadd.f32 0.0, %v5270
        %v5272 = vpop.f32.mrf.mxu0
        %5273 = vmatprep.mubr.bf16.mxu0 0
        %5274 = vmatmul.mubr.bf16.gmra.mxu0 %v5220
        %v5275 = vpop.f32.mrf.mxu0
        %v5276 = vadd.f32 0.0, %v5275
        %v5277 = vpop.f32.mrf.mxu0
        %v5278 = vpop.f32.mrf.mxu0
        %v5279 = vadd.f32 0.0, %v5278
        %v5280 = vpop.f32.mrf.mxu0
        %5281 = vmatprep.mubr.bf16.mxu0 0
        %5282 = vmatmul.mubr.bf16.gmra.mxu0 %v5223
        %v5283 = vpop.f32.mrf.mxu0
        %v5284 = vadd.f32 0.0, %v5283
        %v5285 = vpop.f32.mrf.mxu0
        %v5286 = vpop.f32.mrf.mxu0
        %v5287 = vadd.f32 0.0, %v5286
        %v5288 = vpop.f32.mrf.mxu0
        %5289 = vdwg.mxu0
        %v5290 = vadd.f32 %v4984, %v5260
        %v5291 = vadd.f32 %v4985, %v5263
        %v5292 = vadd.f32 %v4986, %v5268
        %v5293 = vadd.f32 %v4987, %v5271
        %v5294 = vadd.f32 %v4988, %v5276
        %v5295 = vadd.f32 %v4989, %v5279
        %v5296 = vadd.f32 %v4990, %v5284
        %v5297 = vadd.f32 %v4991, %v5287
        %v5299 = vlaneseq
        %v5300 = vshrl.u32 %v5299, 7
        %v5301 = vsub.s32 0, %v5300
        %v5302 = vrot.slane %v1851, %v5301
        %v5304 = vadd.f32 %v5105, %v5302
        %v5305 = vadd.f32 %v5106, %v5302
        %v5306 = vadd.f32 %v5107, %v5302
        %v5307 = vadd.f32 %v5108, %v5302
        %v5308 = vadd.f32 %v5109, %v5302
        %v5309 = vadd.f32 %v5110, %v5302
        %v5310 = vadd.f32 %v5111, %v5302
        %v5311 = vadd.f32 %v5112, %v5302
        %v5312 = vmax.f32 %v5304, 0.0
        %v5313 = vmax.f32 %v5305, 0.0
        %v5314 = vmax.f32 %v5306, 0.0
        %v5315 = vmax.f32 %v5307, 0.0
        %v5316 = vmax.f32 %v5308, 0.0
        %v5317 = vmax.f32 %v5309, 0.0
        %v5318 = vmax.f32 %v5310, 0.0
        %v5319 = vmax.f32 %v5311, 0.0
        %vm5323 = vcmask 1040384
        %v5324 = vrot.slane %v5313, 7
        %v5325 = vrot.slane %v5314, 7
        %v5326 = vsel %vm5323, %v5324, %v5325
        %v5327 = vrot.slane %v5315, 7
        %v5328 = vsel %vm5323, %v5325, %v5327
        %v5331 = vmax.f32 %v5312, %v5326
        %v5332 = vmax.f32 %v5313, %v5328
        %v5334 = vrot.slane %v5331, 1
        %v5336 = vmax.f32 %v5331, %v5334
        %v5337 = vpack.c.bf16 %v5336, %v5336
        %vm5338 = vcmask 1040384
        %vm5339 = vmand %vm5338, %vm1846
        %v5340 = vld [vmem:[#allocation3] sm:$0x1]
        %v5341 = vsel %vm5339, %v5337, %v5340
        %5342 = vst [vmem:[#allocation3] sm:$0x1] %v5341
        %v5345 = vunpack.c.l.s4 1966171168
        %v5346 = vunpack.c.0.s8 %v5345
        %v5347 = vlaneseq
        %v5348 = vshrl.u32 %v5347, 7
        %v5349 = vsub.s32 %v5346, %v5348
        %v5350 = vrot.slane %v5337, %v5349
        %v5351 = vcombine.high %v5350, %v5350
        %v5353 = vunpack.c.l.s4 1966171168
        %v5354 = vunpack.c.0.s8 %v5353
        %v5355 = vlaneseq
        %v5356 = vshrl.u32 %v5355, 7
        %v5357 = vsub.s32 %v5354, %v5356
        %v5358 = vrot.slane %v5350, %v5357
        %v5360 = vunpack.c.l.s4 1966171168
        %v5361 = vunpack.c.0.s8 %v5360
        %v5362 = vlaneseq
        %v5363 = vshrl.u32 %v5362, 7
        %v5364 = vsub.s32 %v5361, %v5363
        %v5365 = vrot.slane %v5351, %v5364
        %v5367 = vld [vmem:[#allocation3 + $0x1] sm:$0x1]
        %v5368 = vsel %vm5339, %v5365, %v5367
        %5369 = vst [vmem:[#allocation3 + $0x1] sm:$0x1] %v5368
        %v5370 = vcombine.high %v5358, %v5358
        %v5372 = vld [vmem:[#allocation3 + $0x2] sm:$0x1]
        %v5373 = vsel %vm5339, %v5370, %v5372
        %5374 = vst [vmem:[#allocation3 + $0x2] sm:$0x1] %v5373
        %v5375 = vcombine.high %v5365, %v5365
        %v5377 = vld [vmem:[#allocation3 + $0x3] sm:$0x1]
        %v5378 = vsel %vm5339, %v5375, %v5377
        %5379 = vst [vmem:[#allocation3 + $0x3] sm:$0x1] %v5378
        %v5381 = vrot.slane %v5332, 1
        %v5383 = vmax.f32 %v5332, %v5381
        %v5384 = vpack.c.bf16 %v5383, %v5383
        %v5385 = vld [vmem:[#allocation3 + $0x4] sm:$0x1]
        %v5386 = vsel %vm5339, %v5384, %v5385
        %5387 = vst [vmem:[#allocation3 + $0x4] sm:$0x1] %v5386
        %v5390 = vunpack.c.l.s4 1966171168
        %v5391 = vunpack.c.0.s8 %v5390
        %v5392 = vlaneseq
        %v5393 = vshrl.u32 %v5392, 7
        %v5394 = vsub.s32 %v5391, %v5393
        %v5395 = vrot.slane %v5384, %v5394
        %v5396 = vcombine.high %v5395, %v5395
        %v5398 = vunpack.c.l.s4 1966171168
        %v5399 = vunpack.c.0.s8 %v5398
        %v5400 = vlaneseq
        %v5401 = vshrl.u32 %v5400, 7
        %v5402 = vsub.s32 %v5399, %v5401
        %v5403 = vrot.slane %v5396, %v5402
        %v5405 = vld [vmem:[#allocation3 + $0x5] sm:$0x1]
        %v5406 = vsel %vm5339, %v5403, %v5405
        %5407 = vst [vmem:[#allocation3 + $0x5] sm:$0x1] %v5406
        %v5411 = vrot.slane %v5317, 7
        %v5412 = vrot.slane %v5318, 7
        %v5413 = vsel %vm5323, %v5411, %v5412
        %v5414 = vrot.slane %v5319, 7
        %v5415 = vsel %vm5323, %v5412, %v5414
        %v5419 = vmax.f32 %v5315, %v5411
        %v5420 = vmax.f32 %v5316, %v5413
        %v5421 = vmax.f32 %v5317, %v5415
        %v5423 = vrot.slane %v5419, 1
        %v5425 = vmax.f32 %v5419, %v5423
        %v5426 = vpack.c.bf16 %v5425, %v5425
        %v5429 = vunpack.c.l.s4 1966171168
        %v5430 = vunpack.c.0.s8 %v5429
        %v5431 = vlaneseq
        %v5432 = vshrl.u32 %v5431, 7
        %v5433 = vsub.s32 %v5430, %v5432
        %v5434 = vrot.slane %v5426, %v5433
        %v5435 = vcombine.high %v5434, %v5434
        %v5437 = vunpack.c.l.s4 1966171168
        %v5438 = vunpack.c.0.s8 %v5437
        %v5439 = vlaneseq
        %v5440 = vshrl.u32 %v5439, 7
        %v5441 = vsub.s32 %v5438, %v5440
        %v5442 = vrot.slane %v5435, %v5441
        %v5443 = vcombine.high %v5442, %v5442
        %v5445 = vld [vmem:[#allocation3 + $0x6] sm:$0x1]
        %v5446 = vsel %vm5339, %v5443, %v5445
        %5447 = vst [vmem:[#allocation3 + $0x6] sm:$0x1] %v5446
        %v5449 = vrot.slane %v5420, 1
        %v5451 = vmax.f32 %v5420, %v5449
        %v5452 = vpack.c.bf16 %v5451, %v5451
        %v5453 = vld [vmem:[#allocation3 + $0x7] sm:$0x1]
        %v5454 = vsel %vm5339, %v5452, %v5453
        %5455 = vst [vmem:[#allocation3 + $0x7] sm:$0x1] %v5454
        %v5458 = vunpack.c.l.s4 1966171168
        %v5459 = vunpack.c.0.s8 %v5458
        %v5460 = vlaneseq
        %v5461 = vshrl.u32 %v5460, 7
        %v5462 = vsub.s32 %v5459, %v5461
        %v5463 = vrot.slane %v5452, %v5462
        %v5464 = vcombine.high %v5463, %v5463
        %v5466 = vunpack.c.l.s4 1966171168
        %v5467 = vunpack.c.0.s8 %v5466
        %v5468 = vlaneseq
        %v5469 = vshrl.u32 %v5468, 7
        %v5470 = vsub.s32 %v5467, %v5469
        %v5471 = vrot.slane %v5463, %v5470
        %v5473 = vunpack.c.l.s4 1966171168
        %v5474 = vunpack.c.0.s8 %v5473
        %v5475 = vlaneseq
        %v5476 = vshrl.u32 %v5475, 7
        %v5477 = vsub.s32 %v5474, %v5476
        %v5478 = vrot.slane %v5464, %v5477
        %v5480 = vld [vmem:[#allocation3 + $0x8] sm:$0x1]
        %v5481 = vsel %vm5339, %v5478, %v5480
        %5482 = vst [vmem:[#allocation3 + $0x8] sm:$0x1] %v5481
        %v5483 = vcombine.high %v5471, %v5471
        %v5485 = vld [vmem:[#allocation3 + $0x9] sm:$0x1]
        %v5486 = vsel %vm5339, %v5483, %v5485
        %5487 = vst [vmem:[#allocation3 + $0x9] sm:$0x1] %v5486
        %v5488 = vcombine.high %v5478, %v5478
        %v5490 = vld [vmem:[#allocation3 + $0xa] sm:$0x1]
        %v5491 = vsel %vm5339, %v5488, %v5490
        %5492 = vst [vmem:[#allocation3 + $0xa] sm:$0x1] %v5491
        %v5494 = vrot.slane %v5421, 1
        %v5496 = vmax.f32 %v5421, %v5494
        %v5497 = vpack.c.bf16 %v5496, %v5496
        %v5498 = vld [vmem:[#allocation3 + $0xb] sm:$0x1]
        %v5499 = vsel %vm5339, %v5497, %v5498
        %5500 = vst [vmem:[#allocation3 + $0xb] sm:$0x1] %v5499
        %v5501 = vadd.f32 %v5201, %v5302
        %v5502 = vadd.f32 %v5202, %v5302
        %v5503 = vadd.f32 %v5203, %v5302
        %v5504 = vadd.f32 %v5204, %v5302
        %v5505 = vadd.f32 %v5205, %v5302
        %v5506 = vadd.f32 %v5206, %v5302
        %v5507 = vadd.f32 %v5207, %v5302
        %v5508 = vadd.f32 %v5208, %v5302
        %v5509 = vmax.f32 %v5501, 0.0
        %v5510 = vmax.f32 %v5502, 0.0
        %v5511 = vmax.f32 %v5503, 0.0
        %v5512 = vmax.f32 %v5504, 0.0
        %v5513 = vmax.f32 %v5505, 0.0
        %v5514 = vmax.f32 %v5506, 0.0
        %v5515 = vmax.f32 %v5507, 0.0
        %v5516 = vmax.f32 %v5508, 0.0
        %v5520 = vrot.slane %v5510, 7
        %v5521 = vrot.slane %v5511, 7
        %v5522 = vsel %vm5323, %v5520, %v5521
        %v5523 = vrot.slane %v5512, 7
        %v5524 = vsel %vm5323, %v5521, %v5523
        %v5527 = vmax.f32 %v5509, %v5522
        %v5528 = vmax.f32 %v5510, %v5524
        %v5530 = vrot.slane %v5527, 1
        %v5532 = vmax.f32 %v5527, %v5530
        %v5533 = vpack.c.bf16 %v5532, %v5532
        %v5534 = vld [vmem:[#allocation3 + $0xc] sm:$0x1]
        %v5535 = vsel %vm5339, %v5533, %v5534
        %5536 = vst [vmem:[#allocation3 + $0xc] sm:$0x1] %v5535
        %v5539 = vunpack.c.l.s4 1966171168
        %v5540 = vunpack.c.0.s8 %v5539
        %v5541 = vlaneseq
        %v5542 = vshrl.u32 %v5541, 7
        %v5543 = vsub.s32 %v5540, %v5542
        %v5544 = vrot.slane %v5533, %v5543
        %v5545 = vcombine.high %v5544, %v5544
        %v5547 = vunpack.c.l.s4 1966171168
        %v5548 = vunpack.c.0.s8 %v5547
        %v5549 = vlaneseq
        %v5550 = vshrl.u32 %v5549, 7
        %v5551 = vsub.s32 %v5548, %v5550
        %v5552 = vrot.slane %v5544, %v5551
        %v5554 = vunpack.c.l.s4 1966171168
        %v5555 = vunpack.c.0.s8 %v5554
        %v5556 = vlaneseq
        %v5557 = vshrl.u32 %v5556, 7
        %v5558 = vsub.s32 %v5555, %v5557
        %v5559 = vrot.slane %v5545, %v5558
        %v5561 = vld [vmem:[#allocation3 + $0xd] sm:$0x1]
        %v5562 = vsel %vm5339, %v5559, %v5561
        %5563 = vst [vmem:[#allocation3 + $0xd] sm:$0x1] %v5562
        %v5564 = vcombine.high %v5552, %v5552
        %v5566 = vld [vmem:[#allocation3 + $0xe] sm:$0x1]
        %v5567 = vsel %vm5339, %v5564, %v5566
        %5568 = vst [vmem:[#allocation3 + $0xe] sm:$0x1] %v5567
        %v5569 = vcombine.high %v5559, %v5559
        %v5571 = vld [vmem:[#allocation3 + $0xf] sm:$0x1]
        %v5572 = vsel %vm5339, %v5569, %v5571
        %5573 = vst [vmem:[#allocation3 + $0xf] sm:$0x1] %v5572
        %v5575 = vrot.slane %v5528, 1
        %v5577 = vmax.f32 %v5528, %v5575
        %v5578 = vpack.c.bf16 %v5577, %v5577
        %v5579 = vld [vmem:[#allocation3 + $0x10] sm:$0x1]
        %v5580 = vsel %vm5339, %v5578, %v5579
        %5581 = vst [vmem:[#allocation3 + $0x10] sm:$0x1] %v5580
        %v5584 = vunpack.c.l.s4 1966171168
        %v5585 = vunpack.c.0.s8 %v5584
        %v5586 = vlaneseq
        %v5587 = vshrl.u32 %v5586, 7
        %v5588 = vsub.s32 %v5585, %v5587
        %v5589 = vrot.slane %v5578, %v5588
        %v5590 = vcombine.high %v5589, %v5589
        %v5592 = vunpack.c.l.s4 1966171168
        %v5593 = vunpack.c.0.s8 %v5592
        %v5594 = vlaneseq
        %v5595 = vshrl.u32 %v5594, 7
        %v5596 = vsub.s32 %v5593, %v5595
        %v5597 = vrot.slane %v5590, %v5596
        %v5599 = vld [vmem:[#allocation3 + $0x11] sm:$0x1]
        %v5600 = vsel %vm5339, %v5597, %v5599
        %5601 = vst [vmem:[#allocation3 + $0x11] sm:$0x1] %v5600
        %v5605 = vrot.slane %v5514, 7
        %v5606 = vrot.slane %v5515, 7
        %v5607 = vsel %vm5323, %v5605, %v5606
        %v5608 = vrot.slane %v5516, 7
        %v5609 = vsel %vm5323, %v5606, %v5608
        %v5613 = vmax.f32 %v5512, %v5605
        %v5614 = vmax.f32 %v5513, %v5607
        %v5615 = vmax.f32 %v5514, %v5609
        %v5617 = vrot.slane %v5613, 1
        %v5619 = vmax.f32 %v5613, %v5617
        %v5620 = vpack.c.bf16 %v5619, %v5619
        %v5623 = vunpack.c.l.s4 1966171168
        %v5624 = vunpack.c.0.s8 %v5623
        %v5625 = vlaneseq
        %v5626 = vshrl.u32 %v5625, 7
        %v5627 = vsub.s32 %v5624, %v5626
        %v5628 = vrot.slane %v5620, %v5627
        %v5629 = vcombine.high %v5628, %v5628
        %v5631 = vunpack.c.l.s4 1966171168
        %v5632 = vunpack.c.0.s8 %v5631
        %v5633 = vlaneseq
        %v5634 = vshrl.u32 %v5633, 7
        %v5635 = vsub.s32 %v5632, %v5634
        %v5636 = vrot.slane %v5629, %v5635
        %v5637 = vcombine.high %v5636, %v5636
        %v5639 = vld [vmem:[#allocation3 + $0x12] sm:$0x1]
        %v5640 = vsel %vm5339, %v5637, %v5639
        %5641 = vst [vmem:[#allocation3 + $0x12] sm:$0x1] %v5640
        %v5643 = vrot.slane %v5614, 1
        %v5645 = vmax.f32 %v5614, %v5643
        %v5646 = vpack.c.bf16 %v5645, %v5645
        %v5647 = vld [vmem:[#allocation3 + $0x13] sm:$0x1]
        %v5648 = vsel %vm5339, %v5646, %v5647
        %5649 = vst [vmem:[#allocation3 + $0x13] sm:$0x1] %v5648
        %v5652 = vunpack.c.l.s4 1966171168
        %v5653 = vunpack.c.0.s8 %v5652
        %v5654 = vlaneseq
        %v5655 = vshrl.u32 %v5654, 7
        %v5656 = vsub.s32 %v5653, %v5655
        %v5657 = vrot.slane %v5646, %v5656
        %v5658 = vcombine.high %v5657, %v5657
        %v5660 = vunpack.c.l.s4 1966171168
        %v5661 = vunpack.c.0.s8 %v5660
        %v5662 = vlaneseq
        %v5663 = vshrl.u32 %v5662, 7
        %v5664 = vsub.s32 %v5661, %v5663
        %v5665 = vrot.slane %v5657, %v5664
        %v5667 = vunpack.c.l.s4 1966171168
        %v5668 = vunpack.c.0.s8 %v5667
        %v5669 = vlaneseq
        %v5670 = vshrl.u32 %v5669, 7
        %v5671 = vsub.s32 %v5668, %v5670
        %v5672 = vrot.slane %v5658, %v5671
        %v5674 = vld [vmem:[#allocation3 + $0x14] sm:$0x1]
        %v5675 = vsel %vm5339, %v5672, %v5674
        %5676 = vst [vmem:[#allocation3 + $0x14] sm:$0x1] %v5675
        %v5677 = vcombine.high %v5665, %v5665
        %v5679 = vld [vmem:[#allocation3 + $0x15] sm:$0x1]
        %v5680 = vsel %vm5339, %v5677, %v5679
        %5681 = vst [vmem:[#allocation3 + $0x15] sm:$0x1] %v5680
        %v5682 = vcombine.high %v5672, %v5672
        %v5684 = vld [vmem:[#allocation3 + $0x16] sm:$0x1]
        %v5685 = vsel %vm5339, %v5682, %v5684
        %5686 = vst [vmem:[#allocation3 + $0x16] sm:$0x1] %v5685
        %v5688 = vrot.slane %v5615, 1
        %v5690 = vmax.f32 %v5615, %v5688
        %v5691 = vpack.c.bf16 %v5690, %v5690
        %v5692 = vld [vmem:[#allocation3 + $0x17] sm:$0x1]
        %v5693 = vsel %vm5339, %v5691, %v5692
        %5694 = vst [vmem:[#allocation3 + $0x17] sm:$0x1] %v5693
        %v5695 = vadd.f32 %v5290, %v5302
        %v5696 = vadd.f32 %v5291, %v5302
        %v5697 = vadd.f32 %v5292, %v5302
        %v5698 = vadd.f32 %v5293, %v5302
        %v5699 = vadd.f32 %v5294, %v5302
        %v5700 = vadd.f32 %v5295, %v5302
        %v5701 = vadd.f32 %v5296, %v5302
        %v5702 = vadd.f32 %v5297, %v5302
        %v5703 = vmax.f32 %v5695, 0.0
        %v5704 = vmax.f32 %v5696, 0.0
        %v5705 = vmax.f32 %v5697, 0.0
        %v5706 = vmax.f32 %v5698, 0.0
        %v5707 = vmax.f32 %v5699, 0.0
        %v5708 = vmax.f32 %v5700, 0.0
        %v5709 = vmax.f32 %v5701, 0.0
        %v5710 = vmax.f32 %v5702, 0.0
        %v5714 = vrot.slane %v5704, 7
        %v5715 = vrot.slane %v5705, 7
        %v5716 = vsel %vm5323, %v5714, %v5715
        %v5717 = vrot.slane %v5706, 7
        %v5718 = vsel %vm5323, %v5715, %v5717
        %v5721 = vmax.f32 %v5703, %v5716
        %v5722 = vmax.f32 %v5704, %v5718
        %v5724 = vrot.slane %v5721, 1
        %v5726 = vmax.f32 %v5721, %v5724
        %v5727 = vpack.c.bf16 %v5726, %v5726
        %v5728 = vld [vmem:[#allocation3 + $0x18] sm:$0x1]
        %v5729 = vsel %vm5339, %v5727, %v5728
        %5730 = vst [vmem:[#allocation3 + $0x18] sm:$0x1] %v5729
        %v5733 = vunpack.c.l.s4 1966171168
        %v5734 = vunpack.c.0.s8 %v5733
        %v5735 = vlaneseq
        %v5736 = vshrl.u32 %v5735, 7
        %v5737 = vsub.s32 %v5734, %v5736
        %v5738 = vrot.slane %v5727, %v5737
        %v5739 = vcombine.high %v5738, %v5738
        %v5741 = vunpack.c.l.s4 1966171168
        %v5742 = vunpack.c.0.s8 %v5741
        %v5743 = vlaneseq
        %v5744 = vshrl.u32 %v5743, 7
        %v5745 = vsub.s32 %v5742, %v5744
        %v5746 = vrot.slane %v5738, %v5745
        %v5748 = vunpack.c.l.s4 1966171168
        %v5749 = vunpack.c.0.s8 %v5748
        %v5750 = vlaneseq
        %v5751 = vshrl.u32 %v5750, 7
        %v5752 = vsub.s32 %v5749, %v5751
        %v5753 = vrot.slane %v5739, %v5752
        %v5755 = vld [vmem:[#allocation3 + $0x19] sm:$0x1]
        %v5756 = vsel %vm5339, %v5753, %v5755
        %5757 = vst [vmem:[#allocation3 + $0x19] sm:$0x1] %v5756
        %v5758 = vcombine.high %v5746, %v5746
        %v5760 = vld [vmem:[#allocation3 + $0x1a] sm:$0x1]
        %v5761 = vsel %vm5339, %v5758, %v5760
        %5762 = vst [vmem:[#allocation3 + $0x1a] sm:$0x1] %v5761
        %v5763 = vcombine.high %v5753, %v5753
        %v5765 = vld [vmem:[#allocation3 + $0x1b] sm:$0x1]
        %v5766 = vsel %vm5339, %v5763, %v5765
        %5767 = vst [vmem:[#allocation3 + $0x1b] sm:$0x1] %v5766
        %v5769 = vrot.slane %v5722, 1
        %v5771 = vmax.f32 %v5722, %v5769
        %v5772 = vpack.c.bf16 %v5771, %v5771
        %v5773 = vld [vmem:[#allocation3 + $0x1c] sm:$0x1]
        %v5774 = vsel %vm5339, %v5772, %v5773
        %5775 = vst [vmem:[#allocation3 + $0x1c] sm:$0x1] %v5774
        %v5778 = vunpack.c.l.s4 1966171168
        %v5779 = vunpack.c.0.s8 %v5778
        %v5780 = vlaneseq
        %v5781 = vshrl.u32 %v5780, 7
        %v5782 = vsub.s32 %v5779, %v5781
        %v5783 = vrot.slane %v5772, %v5782
        %v5784 = vcombine.high %v5783, %v5783
        %v5786 = vunpack.c.l.s4 1966171168
        %v5787 = vunpack.c.0.s8 %v5786
        %v5788 = vlaneseq
        %v5789 = vshrl.u32 %v5788, 7
        %v5790 = vsub.s32 %v5787, %v5789
        %v5791 = vrot.slane %v5784, %v5790
        %v5793 = vld [vmem:[#allocation3 + $0x1d] sm:$0x1]
        %v5794 = vsel %vm5339, %v5791, %v5793
        %5795 = vst [vmem:[#allocation3 + $0x1d] sm:$0x1] %v5794
        %v5799 = vrot.slane %v5708, 7
        %v5800 = vrot.slane %v5709, 7
        %v5801 = vsel %vm5323, %v5799, %v5800
        %v5802 = vrot.slane %v5710, 7
        %v5803 = vsel %vm5323, %v5800, %v5802
        %v5807 = vmax.f32 %v5706, %v5799
        %v5808 = vmax.f32 %v5707, %v5801
        %v5809 = vmax.f32 %v5708, %v5803
        %v5811 = vrot.slane %v5807, 1
        %v5813 = vmax.f32 %v5807, %v5811
        %v5814 = vpack.c.bf16 %v5813, %v5813
        %v5817 = vunpack.c.l.s4 1966171168
        %v5818 = vunpack.c.0.s8 %v5817
        %v5819 = vlaneseq
        %v5820 = vshrl.u32 %v5819, 7
        %v5821 = vsub.s32 %v5818, %v5820
        %v5822 = vrot.slane %v5814, %v5821
        %v5823 = vcombine.high %v5822, %v5822
        %v5825 = vunpack.c.l.s4 1966171168
        %v5826 = vunpack.c.0.s8 %v5825
        %v5827 = vlaneseq
        %v5828 = vshrl.u32 %v5827, 7
        %v5829 = vsub.s32 %v5826, %v5828
        %v5830 = vrot.slane %v5823, %v5829
        %v5831 = vcombine.high %v5830, %v5830
        %v5833 = vld [vmem:[#allocation3 + $0x1e] sm:$0x1]
        %v5834 = vsel %vm5339, %v5831, %v5833
        %5835 = vst [vmem:[#allocation3 + $0x1e] sm:$0x1] %v5834
        %v5837 = vrot.slane %v5808, 1
        %v5839 = vmax.f32 %v5808, %v5837
        %v5840 = vpack.c.bf16 %v5839, %v5839
        %v5841 = vld [vmem:[#allocation3 + $0x1f] sm:$0x1]
        %v5842 = vsel %vm5339, %v5840, %v5841
        %5843 = vst [vmem:[#allocation3 + $0x1f] sm:$0x1] %v5842
        %v5846 = vunpack.c.l.s4 1966171168
        %v5847 = vunpack.c.0.s8 %v5846
        %v5848 = vlaneseq
        %v5849 = vshrl.u32 %v5848, 7
        %v5850 = vsub.s32 %v5847, %v5849
        %v5851 = vrot.slane %v5840, %v5850
        %v5852 = vcombine.high %v5851, %v5851
        %v5854 = vunpack.c.l.s4 1966171168
        %v5855 = vunpack.c.0.s8 %v5854
        %v5856 = vlaneseq
        %v5857 = vshrl.u32 %v5856, 7
        %v5858 = vsub.s32 %v5855, %v5857
        %v5859 = vrot.slane %v5851, %v5858
        %v5861 = vunpack.c.l.s4 1966171168
        %v5862 = vunpack.c.0.s8 %v5861
        %v5863 = vlaneseq
        %v5864 = vshrl.u32 %v5863, 7
        %v5865 = vsub.s32 %v5862, %v5864
        %v5866 = vrot.slane %v5852, %v5865
        %v5868 = vld [vmem:[#allocation3 + $0x20] sm:$0x1]
        %v5869 = vsel %vm5339, %v5866, %v5868
        %5870 = vst [vmem:[#allocation3 + $0x20] sm:$0x1] %v5869
        %v5871 = vcombine.high %v5859, %v5859
        %v5873 = vld [vmem:[#allocation3 + $0x21] sm:$0x1]
        %v5874 = vsel %vm5339, %v5871, %v5873
        %5875 = vst [vmem:[#allocation3 + $0x21] sm:$0x1] %v5874
        %v5876 = vcombine.high %v5866, %v5866
        %v5878 = vld [vmem:[#allocation3 + $0x22] sm:$0x1]
        %v5879 = vsel %vm5339, %v5876, %v5878
        %5880 = vst [vmem:[#allocation3 + $0x22] sm:$0x1] %v5879
        %v5882 = vrot.slane %v5809, 1
        %v5884 = vmax.f32 %v5809, %v5882
        %v5885 = vpack.c.bf16 %v5884, %v5884
        %v5886 = vld [vmem:[#allocation3 + $0x23] sm:$0x1]
        %v5887 = vsel %vm5339, %v5885, %v5886
        %5888 = vst [vmem:[#allocation3 + $0x23] sm:$0x1] %v5887
        %v5889 = vld [vmem:[#allocation3] sm:$0xff]
        %v5890 = vld [vmem:[#allocation3 + $0x8] sm:$0xff]
        %v5891 = vld [vmem:[#allocation3 + $0x10] sm:$0xff]
        %v5892 = vld [vmem:[#allocation3 + $0x18] sm:$0xff]
        %v5893 = vld [vmem:[#allocation3 + $0x20] sm:$0xf]
        %v5894 = vld [vmem:[%s5] sm:$0xf]
        %v5895 = vld [vmem:[%s5 + $0x4] sm:$0xf]
        %v5896 = vld [vmem:[%s5 + $0x8] sm:$0xf]
        %v5897 = vld [vmem:[%s5 + $0xc] sm:$0xf]
        %v5898 = vld [vmem:[%s5 + $0x10] sm:$0xf]
        %v5899 = vld [vmem:[%s5 + $0x14] sm:$0xf]
        %v5900 = vld [vmem:[%s5 + $0x18] sm:$0xf]
        %v5901 = vld [vmem:[%s5 + $0x1c] sm:$0xf]
        %v5902 = vld [vmem:[%s5 + $0x20] sm:$0xf]
        %v5903 = vld [vmem:[%s5 + $0x24] sm:$0xf]
        %v5904 = vld [vmem:[%s5 + $0x28] sm:$0xf]
        %v5905 = vld [vmem:[%s5 + $0x2c] sm:$0xf]
        %v5906 = vld [vmem:[%s5 + $0x30] sm:$0xf]
        %v5907 = vld [vmem:[%s5 + $0x34] sm:$0xf]
        %v5908 = vld [vmem:[%s5 + $0x38] sm:$0xf]
        %v5909 = vld [vmem:[%s5 + $0x3c] sm:$0xf]
        %v5910 = vld [vmem:[%s5 + $0x40] sm:$0xf]
        %v5911 = vld [vmem:[%s5 + $0x44] sm:$0xf]
        %v5912 = vld [vmem:[%s5 + $0x48] sm:$0xf]
        %v5913 = vld [vmem:[%s5 + $0x4c] sm:$0xf]
        %v5914 = vld [vmem:[%s5 + $0x50] sm:$0xf]
        %v5915 = vld [vmem:[%s5 + $0x54] sm:$0xf]
        %v5916 = vld [vmem:[%s5 + $0x58] sm:$0xf]
        %v5917 = vld [vmem:[%s5 + $0x5c] sm:$0xf]
        %v5918 = vld [vmem:[%s5 + $0x60] sm:$0xf]
        %v5919 = vld [vmem:[%s5 + $0x64] sm:$0xf]
        %v5920 = vld [vmem:[%s5 + $0x68] sm:$0xf]
        %v5921 = vld [vmem:[%s5 + $0x6c] sm:$0xf]
        %v5922 = vld [vmem:[%s5 + $0x70] sm:$0xf]
        %v5923 = vld [vmem:[%s5 + $0x74] sm:$0xf]
        %v5924 = vld [vmem:[%s5 + $0x78] sm:$0xf]
        %v5925 = vld [vmem:[%s5 + $0x7c] sm:$0xf]
        %v5926 = vld [vmem:[%s5 + $0x80] sm:$0xf]
        %v5927 = vld [vmem:[%s5 + $0x84] sm:$0xf]
        %v5928 = vld [vmem:[%s5 + $0x88] sm:$0xf]
        %v5929 = vld [vmem:[%s5 + $0x8c] sm:$0xf]
        %v5930 = vld [vmem:[%s5 + $0x90] sm:$0xf]
        %v5931 = vld [vmem:[%s5 + $0x94] sm:$0xf]
        %v5932 = vld [vmem:[%s5 + $0x98] sm:$0xf]
        %v5933 = vld [vmem:[%s5 + $0x9c] sm:$0xf]
        %v5934 = vld [vmem:[%s5 + $0xa0] sm:$0xf]
        %v5935 = vld [vmem:[%s5 + $0xa4] sm:$0xf]
        %v5936 = vld [vmem:[%s5 + $0xa8] sm:$0xf]
        %v5937 = vld [vmem:[%s5 + $0xac] sm:$0xf]
        %v5938 = vld [vmem:[%s5 + $0xb0] sm:$0xf]
        %v5939 = vld [vmem:[%s5 + $0xb4] sm:$0xf]
        %v5940 = vld [vmem:[%s5 + $0xb8] sm:$0xf]
        %v5941 = vld [vmem:[%s5 + $0xbc] sm:$0xf]
        %v5942 = vld [vmem:[%s5 + $0xc0] sm:$0xf]
        %v5943 = vld [vmem:[%s5 + $0xc4] sm:$0xf]
        %v5944 = vld [vmem:[%s5 + $0xc8] sm:$0xf]
        %v5945 = vld [vmem:[%s5 + $0xcc] sm:$0xf]
        %v5946 = vld [vmem:[%s5 + $0xd0] sm:$0xf]
        %v5947 = vld [vmem:[%s5 + $0xd4] sm:$0xf]
        %v5948 = vld [vmem:[%s5 + $0xd8] sm:$0xf]
        %v5949 = vld [vmem:[%s5 + $0xdc] sm:$0xf]
        %v5950 = vld [vmem:[%s5 + $0xe0] sm:$0xf]
        %v5951 = vld [vmem:[%s5 + $0xe4] sm:$0xf]
        %v5952 = vld [vmem:[%s5 + $0xe8] sm:$0xf]
        %v5953 = vld [vmem:[%s5 + $0xec] sm:$0xf]
        %v5954 = vld [vmem:[%s5 + $0xf0] sm:$0xf]
        %v5955 = vld [vmem:[%s5 + $0xf4] sm:$0xf]
        %v5956 = vld [vmem:[%s5 + $0xf8] sm:$0xf]
        %v5957 = vld [vmem:[%s5 + $0xfc] sm:$0xf]
        %v5958 = vld [vmem:[%s5 + $0x100] sm:$0xf]
        %v5959 = vld [vmem:[%s5 + $0x104] sm:$0xf]
        %v5960 = vld [vmem:[%s5 + $0x108] sm:$0xf]
        %v5961 = vld [vmem:[%s5 + $0x10c] sm:$0xf]
        %v5962 = vld [vmem:[%s5 + $0x110] sm:$0xf]
        %v5963 = vld [vmem:[%s5 + $0x114] sm:$0xf]
        %v5964 = vld [vmem:[%s5 + $0x118] sm:$0xf]
        %v5965 = vld [vmem:[%s5 + $0x11c] sm:$0xf]
        %v5966 = vld [vmem:[%s5 + $0x120] sm:$0xf]
        %v5967 = vld [vmem:[%s5 + $0x124] sm:$0xf]
        %v5968 = vld [vmem:[%s5 + $0x128] sm:$0xf]
        %v5969 = vld [vmem:[%s5 + $0x12c] sm:$0xf]
        %v5970 = vld [vmem:[%s5 + $0x130] sm:$0xf]
        %v5971 = vld [vmem:[%s5 + $0x134] sm:$0xf]
        %v5972 = vld [vmem:[%s5 + $0x138] sm:$0xf]
        %v5973 = vld [vmem:[%s5 + $0x13c] sm:$0xf]
        %v5974 = vld [vmem:[%s5 + $0x140] sm:$0xf]
        %v5975 = vld [vmem:[%s5 + $0x144] sm:$0xf]
        %v5976 = vld [vmem:[%s5 + $0x148] sm:$0xf]
        %v5977 = vld [vmem:[%s5 + $0x14c] sm:$0xf]
        %v5978 = vld [vmem:[%s5 + $0x150] sm:$0xf]
        %v5979 = vld [vmem:[%s5 + $0x154] sm:$0xf]
        %v5980 = vld [vmem:[%s5 + $0x158] sm:$0xf]
        %v5981 = vld [vmem:[%s5 + $0x15c] sm:$0xf]
        %v5982 = vld [vmem:[%s5 + $0x160] sm:$0xf]
        %v5983 = vld [vmem:[%s5 + $0x164] sm:$0xf]
        %v5984 = vld [vmem:[%s5 + $0x168] sm:$0xf]
        %v5985 = vld [vmem:[%s5 + $0x16c] sm:$0xf]
        %v5986 = vld [vmem:[%s5 + $0x170] sm:$0xf]
        %v5987 = vld [vmem:[%s5 + $0x174] sm:$0xf]
        %v5988 = vld [vmem:[%s5 + $0x178] sm:$0xf]
        %v5989 = vld [vmem:[%s5 + $0x17c] sm:$0xf]
        %v5990 = vld [vmem:[%s5 + $0x180] sm:$0xf]
        %v5991 = vld [vmem:[%s5 + $0x184] sm:$0xf]
        %v5992 = vld [vmem:[%s5 + $0x188] sm:$0xf]
        %v5993 = vld [vmem:[%s5 + $0x18c] sm:$0xf]
        %v5994 = vld [vmem:[%s5 + $0x190] sm:$0xf]
        %v5995 = vld [vmem:[%s5 + $0x194] sm:$0xf]
        %v5996 = vld [vmem:[%s5 + $0x198] sm:$0xf]
        %v5997 = vld [vmem:[%s5 + $0x19c] sm:$0xf]
        %v5998 = vld [vmem:[%s5 + $0x1a0] sm:$0xf]
        %v5999 = vld [vmem:[%s5 + $0x1a4] sm:$0xf]
        %v6000 = vld [vmem:[%s5 + $0x1a8] sm:$0xf]
        %v6001 = vld [vmem:[%s5 + $0x1ac] sm:$0xf]
        %v6002 = vld [vmem:[%s5 + $0x1b0] sm:$0xf]
        %v6003 = vld [vmem:[%s5 + $0x1b4] sm:$0xf]
        %v6004 = vld [vmem:[%s5 + $0x1b8] sm:$0xf]
        %v6005 = vld [vmem:[%s5 + $0x1bc] sm:$0xf]
        %v6006 = vld [vmem:[%s5 + $0x1c0] sm:$0xf]
        %v6007 = vld [vmem:[%s5 + $0x1c4] sm:$0xf]
        %v6008 = vld [vmem:[%s5 + $0x1c8] sm:$0xf]
        %v6009 = vld [vmem:[%s5 + $0x1cc] sm:$0xf]
        %v6010 = vld [vmem:[%s5 + $0x1d0] sm:$0xf]
        %v6011 = vld [vmem:[%s5 + $0x1d4] sm:$0xf]
        %v6012 = vld [vmem:[%s5 + $0x1d8] sm:$0xf]
        %v6013 = vld [vmem:[%s5 + $0x1dc] sm:$0xf]
        %v6014 = vld [vmem:[%s5 + $0x1e0] sm:$0xf]
        %v6015 = vld [vmem:[%s5 + $0x1e4] sm:$0xf]
        %v6016 = vld [vmem:[%s5 + $0x1e8] sm:$0xf]
        %v6017 = vld [vmem:[%s5 + $0x1ec] sm:$0xf]
        %v6018 = vld [vmem:[%s5 + $0x1f0] sm:$0xf]
        %v6019 = vld [vmem:[%s5 + $0x1f4] sm:$0xf]
        %v6020 = vld [vmem:[%s5 + $0x1f8] sm:$0xf]
        %v6021 = vld [vmem:[%s5 + $0x1fc] sm:$0xf]
        %v6022 = vld [vmem:[%s5 + $0x200] sm:$0xf]
        %v6023 = vld [vmem:[%s5 + $0x204] sm:$0xf]
        %v6024 = vld [vmem:[%s5 + $0x208] sm:$0xf]
        %v6025 = vld [vmem:[%s5 + $0x20c] sm:$0xf]
        %v6026 = vld [vmem:[%s5 + $0x210] sm:$0xf]
        %v6027 = vld [vmem:[%s5 + $0x214] sm:$0xf]
        %v6028 = vld [vmem:[%s5 + $0x218] sm:$0xf]
        %v6029 = vld [vmem:[%s5 + $0x21c] sm:$0xf]
        %v6030 = vld [vmem:[%s5 + $0x220] sm:$0xf]
        %v6031 = vld [vmem:[%s5 + $0x224] sm:$0xf]
        %v6032 = vld [vmem:[%s5 + $0x228] sm:$0xf]
        %v6033 = vld [vmem:[%s5 + $0x22c] sm:$0xf]
        %v6034 = vld [vmem:[%s5 + $0x230] sm:$0xf]
        %v6035 = vld [vmem:[%s5 + $0x234] sm:$0xf]
        %v6036 = vld [vmem:[%s5 + $0x238] sm:$0xf]
        %v6037 = vld [vmem:[%s5 + $0x23c] sm:$0xf]
        %v6038 = vld [vmem:[%s5 + $0x240] sm:$0xf]
        %v6039 = vld [vmem:[%s5 + $0x244] sm:$0xf]
        %v6040 = vld [vmem:[%s5 + $0x248] sm:$0xf]
        %v6041 = vld [vmem:[%s5 + $0x24c] sm:$0xf]
        %v6042 = vld [vmem:[%s5 + $0x250] sm:$0xf]
        %v6043 = vld [vmem:[%s5 + $0x254] sm:$0xf]
        %v6044 = vld [vmem:[%s5 + $0x258] sm:$0xf]
        %v6045 = vld [vmem:[%s5 + $0x25c] sm:$0xf]
        %v6046 = vld [vmem:[%s5 + $0x260] sm:$0xf]
        %v6047 = vld [vmem:[%s5 + $0x264] sm:$0xf]
        %v6048 = vld [vmem:[%s5 + $0x268] sm:$0xf]
        %v6049 = vld [vmem:[%s5 + $0x26c] sm:$0xf]
        %v6050 = vld [vmem:[%s5 + $0x270] sm:$0xf]
        %v6051 = vld [vmem:[%s5 + $0x274] sm:$0xf]
        %v6052 = vld [vmem:[%s5 + $0x278] sm:$0xf]
        %v6053 = vld [vmem:[%s5 + $0x27c] sm:$0xf]
        %v6054 = vld [vmem:[%s5 + $0x280] sm:$0xf]
        %v6055 = vld [vmem:[%s5 + $0x284] sm:$0xf]
        %v6056 = vld [vmem:[%s5 + $0x288] sm:$0xf]
        %v6057 = vld [vmem:[%s5 + $0x28c] sm:$0xf]
        %v6058 = vld [vmem:[%s5 + $0x290] sm:$0xf]
        %v6059 = vld [vmem:[%s5 + $0x294] sm:$0xf]
        %v6060 = vld [vmem:[%s5 + $0x298] sm:$0xf]
        %v6061 = vld [vmem:[%s5 + $0x29c] sm:$0xf]
        %v6062 = vld [vmem:[%s5 + $0x2a0] sm:$0xf]
        %v6063 = vld [vmem:[%s5 + $0x2a4] sm:$0xf]
        %v6064 = vld [vmem:[%s5 + $0x2a8] sm:$0xf]
        %v6065 = vld [vmem:[%s5 + $0x2ac] sm:$0xf]
        %v6066 = vld [vmem:[%s5 + $0x2b0] sm:$0xf]
        %v6067 = vld [vmem:[%s5 + $0x2b4] sm:$0xf]
        %v6068 = vld [vmem:[%s5 + $0x2b8] sm:$0xf]
        %v6069 = vld [vmem:[%s5 + $0x2bc] sm:$0xf]
        %v6070 = vld [vmem:[%s5 + $0x2c0] sm:$0xf]
        %v6071 = vld [vmem:[%s5 + $0x2c4] sm:$0xf]
        %v6072 = vld [vmem:[%s5 + $0x2c8] sm:$0xf]
        %v6073 = vld [vmem:[%s5 + $0x2cc] sm:$0xf]
        %v6074 = vld [vmem:[%s5 + $0x2d0] sm:$0xf]
        %v6075 = vld [vmem:[%s5 + $0x2d4] sm:$0xf]
        %v6076 = vld [vmem:[%s5 + $0x2d8] sm:$0xf]
        %v6077 = vld [vmem:[%s5 + $0x2dc] sm:$0xf]
        %v6078 = vld [vmem:[%s5 + $0x2e0] sm:$0xf]
        %v6079 = vld [vmem:[%s5 + $0x2e4] sm:$0xf]
        %v6080 = vld [vmem:[%s5 + $0x2e8] sm:$0xf]
        %v6081 = vld [vmem:[%s5 + $0x2ec] sm:$0xf]
        %v6082 = vld [vmem:[%s5 + $0x2f0] sm:$0xf]
        %v6083 = vld [vmem:[%s5 + $0x2f4] sm:$0xf]
        %v6084 = vld [vmem:[%s5 + $0x2f8] sm:$0xf]
        %v6085 = vld [vmem:[%s5 + $0x2fc] sm:$0xf]
        %v6086 = vld [vmem:[%s5 + $0x300] sm:$0xf]
        %v6087 = vld [vmem:[%s5 + $0x304] sm:$0xf]
        %v6088 = vld [vmem:[%s5 + $0x308] sm:$0xf]
        %v6089 = vld [vmem:[%s5 + $0x30c] sm:$0xf]
        %v6090 = vld [vmem:[%s5 + $0x310] sm:$0xf]
        %v6091 = vld [vmem:[%s5 + $0x314] sm:$0xf]
        %v6092 = vld [vmem:[%s5 + $0x318] sm:$0xf]
        %v6093 = vld [vmem:[%s5 + $0x31c] sm:$0xf]
        %v6094 = vld [vmem:[%s5 + $0x320] sm:$0xf]
        %v6095 = vld [vmem:[%s5 + $0x324] sm:$0xf]
        %v6096 = vld [vmem:[%s5 + $0x328] sm:$0xf]
        %v6097 = vld [vmem:[%s5 + $0x32c] sm:$0xf]
        %v6098 = vld [vmem:[%s5 + $0x330] sm:$0xf]
        %v6099 = vld [vmem:[%s5 + $0x334] sm:$0xf]
        %v6100 = vld [vmem:[%s5 + $0x338] sm:$0xf]
        %v6101 = vld [vmem:[%s5 + $0x33c] sm:$0xf]
        %v6102 = vld [vmem:[%s5 + $0x340] sm:$0xf]
        %v6103 = vld [vmem:[%s5 + $0x344] sm:$0xf]
        %v6104 = vld [vmem:[%s5 + $0x348] sm:$0xf]
        %v6105 = vld [vmem:[%s5 + $0x34c] sm:$0xf]
        %v6106 = vld [vmem:[%s5 + $0x350] sm:$0xf]
        %v6107 = vld [vmem:[%s5 + $0x354] sm:$0xf]
        %v6108 = vld [vmem:[%s5 + $0x358] sm:$0xf]
        %v6109 = vld [vmem:[%s5 + $0x35c] sm:$0xf]
        %v6110 = vld [vmem:[%s5 + $0x360] sm:$0xf]
        %v6111 = vld [vmem:[%s5 + $0x364] sm:$0xf]
        %v6112 = vld [vmem:[%s5 + $0x368] sm:$0xf]
        %v6113 = vld [vmem:[%s5 + $0x36c] sm:$0xf]
        %v6114 = vld [vmem:[%s5 + $0x370] sm:$0xf]
        %v6115 = vld [vmem:[%s5 + $0x374] sm:$0xf]
        %v6116 = vld [vmem:[%s5 + $0x378] sm:$0xf]
        %v6117 = vld [vmem:[%s5 + $0x37c] sm:$0xf]
        %v6118 = vld [vmem:[%s5 + $0x380] sm:$0xf]
        %v6119 = vld [vmem:[%s5 + $0x384] sm:$0xf]
        %v6120 = vld [vmem:[%s5 + $0x388] sm:$0xf]
        %v6121 = vld [vmem:[%s5 + $0x38c] sm:$0xf]
        %v6122 = vld [vmem:[%s5 + $0x390] sm:$0xf]
        %v6123 = vld [vmem:[%s5 + $0x394] sm:$0xf]
        %v6124 = vld [vmem:[%s5 + $0x398] sm:$0xf]
        %v6125 = vld [vmem:[%s5 + $0x39c] sm:$0xf]
        %v6126 = vld [vmem:[%s5 + $0x3a0] sm:$0xf]
        %v6127 = vld [vmem:[%s5 + $0x3a4] sm:$0xf]
        %v6128 = vld [vmem:[%s5 + $0x3a8] sm:$0xf]
        %v6129 = vld [vmem:[%s5 + $0x3ac] sm:$0xf]
        %v6130 = vld [vmem:[%s5 + $0x3b0] sm:$0xf]
        %v6131 = vld [vmem:[%s5 + $0x3b4] sm:$0xf]
        %v6132 = vld [vmem:[%s5 + $0x3b8] sm:$0xf]
        %v6133 = vld [vmem:[%s5 + $0x3bc] sm:$0xf]
        %v6134 = vld [vmem:[%s5 + $0x3c0] sm:$0xf]
        %v6135 = vld [vmem:[%s5 + $0x3c4] sm:$0xf]
        %v6136 = vld [vmem:[%s5 + $0x3c8] sm:$0xf]
        %v6137 = vld [vmem:[%s5 + $0x3cc] sm:$0xf]
        %v6138 = vld [vmem:[%s5 + $0x3d0] sm:$0xf]
        %v6139 = vld [vmem:[%s5 + $0x3d4] sm:$0xf]
        %v6140 = vld [vmem:[%s5 + $0x3d8] sm:$0xf]
        %v6141 = vld [vmem:[%s5 + $0x3dc] sm:$0xf]
        %v6142 = vld [vmem:[%s5 + $0x3e0] sm:$0xf]
        %v6143 = vld [vmem:[%s5 + $0x3e4] sm:$0xf]
        %v6144 = vld [vmem:[%s5 + $0x3e8] sm:$0xf]
        %v6145 = vld [vmem:[%s5 + $0x3ec] sm:$0xf]
        %v6146 = vld [vmem:[%s5 + $0x3f0] sm:$0xf]
        %v6147 = vld [vmem:[%s5 + $0x3f4] sm:$0xf]
        %v6148 = vld [vmem:[%s5 + $0x3f8] sm:$0xf]
        %v6149 = vld [vmem:[%s5 + $0x3fc] sm:$0xf]
        %v6150 = vld [vmem:[%s5 + $0x400] sm:$0xf]
        %v6151 = vld [vmem:[%s5 + $0x404] sm:$0xf]
        %v6152 = vld [vmem:[%s5 + $0x408] sm:$0xf]
        %v6153 = vld [vmem:[%s5 + $0x40c] sm:$0xf]
        %v6154 = vld [vmem:[%s5 + $0x410] sm:$0xf]
        %v6155 = vld [vmem:[%s5 + $0x414] sm:$0xf]
        %v6156 = vld [vmem:[%s5 + $0x418] sm:$0xf]
        %v6157 = vld [vmem:[%s5 + $0x41c] sm:$0xf]
        %v6158 = vld [vmem:[%s5 + $0x420] sm:$0xf]
        %v6159 = vld [vmem:[%s5 + $0x424] sm:$0xf]
        %v6160 = vld [vmem:[%s5 + $0x428] sm:$0xf]
        %v6161 = vld [vmem:[%s5 + $0x42c] sm:$0xf]
        %v6162 = vld [vmem:[%s5 + $0x430] sm:$0xf]
        %v6163 = vld [vmem:[%s5 + $0x434] sm:$0xf]
        %v6164 = vld [vmem:[%s5 + $0x438] sm:$0xf]
        %v6165 = vld [vmem:[%s5 + $0x43c] sm:$0xf]
        %v6166 = vld [vmem:[%s5 + $0x440] sm:$0xf]
        %v6167 = vld [vmem:[%s5 + $0x444] sm:$0xf]
        %v6168 = vld [vmem:[%s5 + $0x448] sm:$0xf]
        %v6169 = vld [vmem:[%s5 + $0x44c] sm:$0xf]
        %v6170 = vld [vmem:[%s5 + $0x450] sm:$0xf]
        %v6171 = vld [vmem:[%s5 + $0x454] sm:$0xf]
        %v6172 = vld [vmem:[%s5 + $0x458] sm:$0xf]
        %v6173 = vld [vmem:[%s5 + $0x45c] sm:$0xf]
        %v6174 = vld [vmem:[%s5 + $0x460] sm:$0xf]
        %v6175 = vld [vmem:[%s5 + $0x464] sm:$0xf]
        %v6176 = vld [vmem:[%s5 + $0x468] sm:$0xf]
        %v6177 = vld [vmem:[%s5 + $0x46c] sm:$0xf]
        %v6178 = vld [vmem:[%s5 + $0x470] sm:$0xf]
        %v6179 = vld [vmem:[%s5 + $0x474] sm:$0xf]
        %v6180 = vld [vmem:[%s5 + $0x478] sm:$0xf]
        %v6181 = vld [vmem:[%s5 + $0x47c] sm:$0xf]
        %v6182 = vld [vmem:[%s5 + $0x480] sm:$0xf]
        %v6183 = vld [vmem:[%s5 + $0x484] sm:$0xf]
        %v6184 = vld [vmem:[%s5 + $0x488] sm:$0xf]
        %v6185 = vld [vmem:[%s5 + $0x48c] sm:$0xf]
        %v6186 = vld [vmem:[%s5 + $0x490] sm:$0xf]
        %v6187 = vld [vmem:[%s5 + $0x494] sm:$0xf]
        %v6188 = vld [vmem:[%s5 + $0x498] sm:$0xf]
        %v6189 = vld [vmem:[%s5 + $0x49c] sm:$0xf]
        %v6190 = vld [vmem:[%s5 + $0x4a0] sm:$0xf]
        %v6191 = vld [vmem:[%s5 + $0x4a4] sm:$0xf]
        %v6192 = vld [vmem:[%s5 + $0x4a8] sm:$0xf]
        %v6193 = vld [vmem:[%s5 + $0x4ac] sm:$0xf]
        %v6194 = vld [vmem:[%s5 + $0x4b0] sm:$0xf]
        %v6195 = vld [vmem:[%s5 + $0x4b4] sm:$0xf]
        %v6196 = vld [vmem:[%s5 + $0x4b8] sm:$0xf]
        %v6197 = vld [vmem:[%s5 + $0x4bc] sm:$0xf]
        %v6198 = vld [vmem:[%s5 + $0x4c0] sm:$0xf]
        %v6199 = vld [vmem:[%s5 + $0x4c4] sm:$0xf]
        %v6200 = vld [vmem:[%s5 + $0x4c8] sm:$0xf]
        %v6201 = vld [vmem:[%s5 + $0x4cc] sm:$0xf]
        %v6202 = vld [vmem:[%s5 + $0x4d0] sm:$0xf]
        %v6203 = vld [vmem:[%s5 + $0x4d4] sm:$0xf]
        %v6204 = vld [vmem:[%s5 + $0x4d8] sm:$0xf]
        %v6205 = vld [vmem:[%s5 + $0x4dc] sm:$0xf]
        %v6206 = vld [vmem:[%s5 + $0x4e0] sm:$0xf]
        %v6207 = vld [vmem:[%s5 + $0x4e4] sm:$0xf]
        %v6208 = vld [vmem:[%s5 + $0x4e8] sm:$0xf]
        %v6209 = vld [vmem:[%s5 + $0x4ec] sm:$0xf]
        %v6210 = vld [vmem:[%s5 + $0x4f0] sm:$0xf]
        %v6211 = vld [vmem:[%s5 + $0x4f4] sm:$0xf]
        %v6212 = vld [vmem:[%s5 + $0x4f8] sm:$0xf]
        %v6213 = vld [vmem:[%s5 + $0x4fc] sm:$0xf]
        %v6214 = vld [vmem:[%s5 + $0x500] sm:$0xf]
        %v6215 = vld [vmem:[%s5 + $0x504] sm:$0xf]
        %v6216 = vld [vmem:[%s5 + $0x508] sm:$0xf]
        %v6217 = vld [vmem:[%s5 + $0x50c] sm:$0xf]
        %v6218 = vld [vmem:[%s5 + $0x510] sm:$0xf]
        %v6219 = vld [vmem:[%s5 + $0x514] sm:$0xf]
        %v6220 = vld [vmem:[%s5 + $0x518] sm:$0xf]
        %v6221 = vld [vmem:[%s5 + $0x51c] sm:$0xf]
        %v6222 = vld [vmem:[%s5 + $0x520] sm:$0xf]
        %v6223 = vld [vmem:[%s5 + $0x524] sm:$0xf]
        %v6224 = vld [vmem:[%s5 + $0x528] sm:$0xf]
        %v6225 = vld [vmem:[%s5 + $0x52c] sm:$0xf]
        %v6226 = vld [vmem:[%s5 + $0x530] sm:$0xf]
        %v6227 = vld [vmem:[%s5 + $0x534] sm:$0xf]
        %v6228 = vld [vmem:[%s5 + $0x538] sm:$0xf]
        %v6229 = vld [vmem:[%s5 + $0x53c] sm:$0xf]
        %v6230 = vld [vmem:[%s5 + $0x540] sm:$0xf]
        %v6231 = vld [vmem:[%s5 + $0x544] sm:$0xf]
        %v6232 = vld [vmem:[%s5 + $0x548] sm:$0xf]
        %v6233 = vld [vmem:[%s5 + $0x54c] sm:$0xf]
        %v6234 = vld [vmem:[%s5 + $0x550] sm:$0xf]
        %v6235 = vld [vmem:[%s5 + $0x554] sm:$0xf]
        %v6236 = vld [vmem:[%s5 + $0x558] sm:$0xf]
        %v6237 = vld [vmem:[%s5 + $0x55c] sm:$0xf]
        %v6238 = vld [vmem:[%s5 + $0x560] sm:$0xf]
        %v6239 = vld [vmem:[%s5 + $0x564] sm:$0xf]
        %v6240 = vld [vmem:[%s5 + $0x568] sm:$0xf]
        %v6241 = vld [vmem:[%s5 + $0x56c] sm:$0xf]
        %v6242 = vld [vmem:[%s5 + $0x570] sm:$0xf]
        %v6243 = vld [vmem:[%s5 + $0x574] sm:$0xf]
        %v6244 = vld [vmem:[%s5 + $0x578] sm:$0xf]
        %v6245 = vld [vmem:[%s5 + $0x57c] sm:$0xf]
        %v6246 = vld [vmem:[%s5 + $0x580] sm:$0xf]
        %v6247 = vld [vmem:[%s5 + $0x584] sm:$0xf]
        %v6248 = vld [vmem:[%s5 + $0x588] sm:$0xf]
        %v6249 = vld [vmem:[%s5 + $0x58c] sm:$0xf]
        %v6250 = vld [vmem:[%s5 + $0x590] sm:$0xf]
        %v6251 = vld [vmem:[%s5 + $0x594] sm:$0xf]
        %v6252 = vld [vmem:[%s5 + $0x598] sm:$0xf]
        %v6253 = vld [vmem:[%s5 + $0x59c] sm:$0xf]
        %v6254 = vld [vmem:[%s5 + $0x5a0] sm:$0xf]
        %v6255 = vld [vmem:[%s5 + $0x5a4] sm:$0xf]
        %v6256 = vld [vmem:[%s5 + $0x5a8] sm:$0xf]
        %v6257 = vld [vmem:[%s5 + $0x5ac] sm:$0xf]
        %v6258 = vld [vmem:[%s5 + $0x5b0] sm:$0xf]
        %v6259 = vld [vmem:[%s5 + $0x5b4] sm:$0xf]
        %v6260 = vld [vmem:[%s5 + $0x5b8] sm:$0xf]
        %v6261 = vld [vmem:[%s5 + $0x5bc] sm:$0xf]
        %v6262 = vld [vmem:[%s5 + $0x5c0] sm:$0xf]
        %v6263 = vld [vmem:[%s5 + $0x5c4] sm:$0xf]
        %v6264 = vld [vmem:[%s5 + $0x5c8] sm:$0xf]
        %v6265 = vld [vmem:[%s5 + $0x5cc] sm:$0xf]
        %v6266 = vld [vmem:[%s5 + $0x5d0] sm:$0xf]
        %v6267 = vld [vmem:[%s5 + $0x5d4] sm:$0xf]
        %v6268 = vld [vmem:[%s5 + $0x5d8] sm:$0xf]
        %v6269 = vld [vmem:[%s5 + $0x5dc] sm:$0xf]
        %v6270 = vld [vmem:[%s5 + $0x5e0] sm:$0xf]
        %v6271 = vld [vmem:[%s5 + $0x5e4] sm:$0xf]
        %v6272 = vld [vmem:[%s5 + $0x5e8] sm:$0xf]
        %v6273 = vld [vmem:[%s5 + $0x5ec] sm:$0xf]
        %v6274 = vld [vmem:[%s5 + $0x5f0] sm:$0xf]
        %v6275 = vld [vmem:[%s5 + $0x5f4] sm:$0xf]
        %v6276 = vld [vmem:[%s5 + $0x5f8] sm:$0xf]
        %v6277 = vld [vmem:[%s5 + $0x5fc] sm:$0xf]
        %v6278 = vld [vmem:[%s5 + $0x600] sm:$0xf]
        %v6279 = vld [vmem:[%s5 + $0x604] sm:$0xf]
        %v6280 = vld [vmem:[%s5 + $0x608] sm:$0xf]
        %v6281 = vld [vmem:[%s5 + $0x60c] sm:$0xf]
        %v6282 = vld [vmem:[%s5 + $0x610] sm:$0xf]
        %v6283 = vld [vmem:[%s5 + $0x614] sm:$0xf]
        %v6284 = vld [vmem:[%s5 + $0x618] sm:$0xf]
        %v6285 = vld [vmem:[%s5 + $0x61c] sm:$0xf]
        %v6286 = vld [vmem:[%s5 + $0x620] sm:$0xf]
        %v6287 = vld [vmem:[%s5 + $0x624] sm:$0xf]
        %v6288 = vld [vmem:[%s5 + $0x628] sm:$0xf]
        %v6289 = vld [vmem:[%s5 + $0x62c] sm:$0xf]
        %v6290 = vld [vmem:[%s5 + $0x630] sm:$0xf]
        %v6291 = vld [vmem:[%s5 + $0x634] sm:$0xf]
        %v6292 = vld [vmem:[%s5 + $0x638] sm:$0xf]
        %v6293 = vld [vmem:[%s5 + $0x63c] sm:$0xf]
        %v6294 = vld [vmem:[%s5 + $0x640] sm:$0xf]
        %v6295 = vld [vmem:[%s5 + $0x644] sm:$0xf]
        %v6296 = vld [vmem:[%s5 + $0x648] sm:$0xf]
        %v6297 = vld [vmem:[%s5 + $0x64c] sm:$0xf]
        %v6298 = vld [vmem:[%s5 + $0x650] sm:$0xf]
        %v6299 = vld [vmem:[%s5 + $0x654] sm:$0xf]
        %v6300 = vld [vmem:[%s5 + $0x658] sm:$0xf]
        %v6301 = vld [vmem:[%s5 + $0x65c] sm:$0xf]
        %v6302 = vld [vmem:[%s5 + $0x660] sm:$0xf]
        %v6303 = vld [vmem:[%s5 + $0x664] sm:$0xf]
        %v6304 = vld [vmem:[%s5 + $0x668] sm:$0xf]
        %v6305 = vld [vmem:[%s5 + $0x66c] sm:$0xf]
        %v6306 = vld [vmem:[%s5 + $0x670] sm:$0xf]
        %v6307 = vld [vmem:[%s5 + $0x674] sm:$0xf]
        %v6308 = vld [vmem:[%s5 + $0x678] sm:$0xf]
        %v6309 = vld [vmem:[%s5 + $0x67c] sm:$0xf]
        %v6310 = vld [vmem:[%s5 + $0x680] sm:$0xf]
        %v6311 = vld [vmem:[%s5 + $0x684] sm:$0xf]
        %v6312 = vld [vmem:[%s5 + $0x688] sm:$0xf]
        %v6313 = vld [vmem:[%s5 + $0x68c] sm:$0xf]
        %v6314 = vld [vmem:[%s5 + $0x690] sm:$0xf]
        %v6315 = vld [vmem:[%s5 + $0x694] sm:$0xf]
        %v6316 = vld [vmem:[%s5 + $0x698] sm:$0xf]
        %v6317 = vld [vmem:[%s5 + $0x69c] sm:$0xf]
        %v6318 = vld [vmem:[%s5 + $0x6a0] sm:$0xf]
        %v6319 = vld [vmem:[%s5 + $0x6a4] sm:$0xf]
        %v6320 = vld [vmem:[%s5 + $0x6a8] sm:$0xf]
        %v6321 = vld [vmem:[%s5 + $0x6ac] sm:$0xf]
        %v6322 = vld [vmem:[%s5 + $0x6b0] sm:$0xf]
        %v6323 = vld [vmem:[%s5 + $0x6b4] sm:$0xf]
        %v6324 = vld [vmem:[%s5 + $0x6b8] sm:$0xf]
        %v6325 = vld [vmem:[%s5 + $0x6bc] sm:$0xf]
        %v6326 = vld [vmem:[%s5 + $0x6c0] sm:$0xf]
        %v6327 = vld [vmem:[%s5 + $0x6c4] sm:$0xf]
        %v6328 = vld [vmem:[%s5 + $0x6c8] sm:$0xf]
        %v6329 = vld [vmem:[%s5 + $0x6cc] sm:$0xf]
        %v6330 = vld [vmem:[%s5 + $0x6d0] sm:$0xf]
        %v6331 = vld [vmem:[%s5 + $0x6d4] sm:$0xf]
        %v6332 = vld [vmem:[%s5 + $0x6d8] sm:$0xf]
        %v6333 = vld [vmem:[%s5 + $0x6dc] sm:$0xf]
        %v6334 = vld [vmem:[%s5 + $0x6e0] sm:$0xf]
        %v6335 = vld [vmem:[%s5 + $0x6e4] sm:$0xf]
        %v6336 = vld [vmem:[%s5 + $0x6e8] sm:$0xf]
        %v6337 = vld [vmem:[%s5 + $0x6ec] sm:$0xf]
        %v6338 = vld [vmem:[%s5 + $0x6f0] sm:$0xf]
        %v6339 = vld [vmem:[%s5 + $0x6f4] sm:$0xf]
        %v6340 = vld [vmem:[%s5 + $0x6f8] sm:$0xf]
        %v6341 = vld [vmem:[%s5 + $0x6fc] sm:$0xf]
        %v6342 = vld [vmem:[%s5 + $0x700] sm:$0xf]
        %v6343 = vld [vmem:[%s5 + $0x704] sm:$0xf]
        %v6344 = vld [vmem:[%s5 + $0x708] sm:$0xf]
        %v6345 = vld [vmem:[%s5 + $0x70c] sm:$0xf]
        %v6346 = vld [vmem:[%s5 + $0x710] sm:$0xf]
        %v6347 = vld [vmem:[%s5 + $0x714] sm:$0xf]
        %v6348 = vld [vmem:[%s5 + $0x718] sm:$0xf]
        %v6349 = vld [vmem:[%s5 + $0x71c] sm:$0xf]
        %v6350 = vld [vmem:[%s5 + $0x720] sm:$0xf]
        %v6351 = vld [vmem:[%s5 + $0x724] sm:$0xf]
        %v6352 = vld [vmem:[%s5 + $0x728] sm:$0xf]
        %v6353 = vld [vmem:[%s5 + $0x72c] sm:$0xf]
        %v6354 = vld [vmem:[%s5 + $0x730] sm:$0xf]
        %v6355 = vld [vmem:[%s5 + $0x734] sm:$0xf]
        %v6356 = vld [vmem:[%s5 + $0x738] sm:$0xf]
        %v6357 = vld [vmem:[%s5 + $0x73c] sm:$0xf]
        %v6358 = vld [vmem:[%s5 + $0x740] sm:$0xf]
        %v6359 = vld [vmem:[%s5 + $0x744] sm:$0xf]
        %v6360 = vld [vmem:[%s5 + $0x748] sm:$0xf]
        %v6361 = vld [vmem:[%s5 + $0x74c] sm:$0xf]
        %v6362 = vld [vmem:[%s5 + $0x750] sm:$0xf]
        %v6363 = vld [vmem:[%s5 + $0x754] sm:$0xf]
        %v6364 = vld [vmem:[%s5 + $0x758] sm:$0xf]
        %v6365 = vld [vmem:[%s5 + $0x75c] sm:$0xf]
        %v6366 = vld [vmem:[%s5 + $0x760] sm:$0xf]
        %v6367 = vld [vmem:[%s5 + $0x764] sm:$0xf]
        %v6368 = vld [vmem:[%s5 + $0x768] sm:$0xf]
        %v6369 = vld [vmem:[%s5 + $0x76c] sm:$0xf]
        %v6370 = vld [vmem:[%s5 + $0x770] sm:$0xf]
        %v6371 = vld [vmem:[%s5 + $0x774] sm:$0xf]
        %v6372 = vld [vmem:[%s5 + $0x778] sm:$0xf]
        %v6373 = vld [vmem:[%s5 + $0x77c] sm:$0xf]
        %v6374 = vld [vmem:[%s5 + $0x780] sm:$0xf]
        %v6375 = vld [vmem:[%s5 + $0x784] sm:$0xf]
        %v6376 = vld [vmem:[%s5 + $0x788] sm:$0xf]
        %v6377 = vld [vmem:[%s5 + $0x78c] sm:$0xf]
        %v6378 = vld [vmem:[%s5 + $0x790] sm:$0xf]
        %v6379 = vld [vmem:[%s5 + $0x794] sm:$0xf]
        %v6380 = vld [vmem:[%s5 + $0x798] sm:$0xf]
        %v6381 = vld [vmem:[%s5 + $0x79c] sm:$0xf]
        %v6382 = vld [vmem:[%s5 + $0x7a0] sm:$0xf]
        %v6383 = vld [vmem:[%s5 + $0x7a4] sm:$0xf]
        %v6384 = vld [vmem:[%s5 + $0x7a8] sm:$0xf]
        %v6385 = vld [vmem:[%s5 + $0x7ac] sm:$0xf]
        %v6386 = vld [vmem:[%s5 + $0x7b0] sm:$0xf]
        %v6387 = vld [vmem:[%s5 + $0x7b4] sm:$0xf]
        %v6388 = vld [vmem:[%s5 + $0x7b8] sm:$0xf]
        %v6389 = vld [vmem:[%s5 + $0x7bc] sm:$0xf]
        %v6390 = vld [vmem:[%s5 + $0x7c0] sm:$0xf]
        %v6391 = vld [vmem:[%s5 + $0x7c4] sm:$0xf]
        %v6392 = vld [vmem:[%s5 + $0x7c8] sm:$0xf]
        %v6393 = vld [vmem:[%s5 + $0x7cc] sm:$0xf]
        %v6394 = vld [vmem:[%s5 + $0x7d0] sm:$0xf]
        %v6395 = vld [vmem:[%s5 + $0x7d4] sm:$0xf]
        %v6396 = vld [vmem:[%s5 + $0x7d8] sm:$0xf]
        %v6397 = vld [vmem:[%s5 + $0x7dc] sm:$0xf]
        %v6398 = vld [vmem:[%s5 + $0x7e0] sm:$0xf]
        %v6399 = vld [vmem:[%s5 + $0x7e4] sm:$0xf]
        %v6400 = vld [vmem:[%s5 + $0x7e8] sm:$0xf]
        %v6401 = vld [vmem:[%s5 + $0x7ec] sm:$0xf]
        %v6402 = vld [vmem:[%s5 + $0x7f0] sm:$0xf]
        %v6403 = vld [vmem:[%s5 + $0x7f4] sm:$0xf]
        %v6404 = vld [vmem:[%s5 + $0x7f8] sm:$0xf]
        %v6405 = vld [vmem:[%s5 + $0x7fc] sm:$0xf]
        %v6406 = vld [vmem:[%s5 + $0x800] sm:$0xf]
        %v6407 = vld [vmem:[%s5 + $0x804] sm:$0xf]
        %v6408 = vld [vmem:[%s5 + $0x808] sm:$0xf]
        %v6409 = vld [vmem:[%s5 + $0x80c] sm:$0xf]
        %v6410 = vld [vmem:[%s5 + $0x810] sm:$0xf]
        %v6411 = vld [vmem:[%s5 + $0x814] sm:$0xf]
        %v6412 = vld [vmem:[%s5 + $0x818] sm:$0xf]
        %v6413 = vld [vmem:[%s5 + $0x81c] sm:$0xf]
        %v6414 = vld [vmem:[%s5 + $0x820] sm:$0xf]
        %v6415 = vld [vmem:[%s5 + $0x824] sm:$0xf]
        %v6416 = vld [vmem:[%s5 + $0x828] sm:$0xf]
        %v6417 = vld [vmem:[%s5 + $0x82c] sm:$0xf]
        %v6418 = vld [vmem:[%s5 + $0x830] sm:$0xf]
        %v6419 = vld [vmem:[%s5 + $0x834] sm:$0xf]
        %v6420 = vld [vmem:[%s5 + $0x838] sm:$0xf]
        %v6421 = vld [vmem:[%s5 + $0x83c] sm:$0xf]
        %v6422 = vld [vmem:[%s5 + $0x840] sm:$0xf]
        %v6423 = vld [vmem:[%s5 + $0x844] sm:$0xf]
        %v6424 = vld [vmem:[%s5 + $0x848] sm:$0xf]
        %v6425 = vld [vmem:[%s5 + $0x84c] sm:$0xf]
        %v6426 = vld [vmem:[%s5 + $0x850] sm:$0xf]
        %v6427 = vld [vmem:[%s5 + $0x854] sm:$0xf]
        %v6428 = vld [vmem:[%s5 + $0x858] sm:$0xf]
        %v6429 = vld [vmem:[%s5 + $0x85c] sm:$0xf]
        %v6430 = vld [vmem:[%s5 + $0x860] sm:$0xf]
        %v6431 = vld [vmem:[%s5 + $0x864] sm:$0xf]
        %v6432 = vld [vmem:[%s5 + $0x868] sm:$0xf]
        %v6433 = vld [vmem:[%s5 + $0x86c] sm:$0xf]
        %v6434 = vld [vmem:[%s5 + $0x870] sm:$0xf]
        %v6435 = vld [vmem:[%s5 + $0x874] sm:$0xf]
        %v6436 = vld [vmem:[%s5 + $0x878] sm:$0xf]
        %v6437 = vld [vmem:[%s5 + $0x87c] sm:$0xf]
        %v6438 = vld [vmem:[%s5 + $0x880] sm:$0xf]
        %v6439 = vld [vmem:[%s5 + $0x884] sm:$0xf]
        %v6440 = vld [vmem:[%s5 + $0x888] sm:$0xf]
        %v6441 = vld [vmem:[%s5 + $0x88c] sm:$0xf]
        %v6442 = vld [vmem:[%s5 + $0x890] sm:$0xf]
        %v6443 = vld [vmem:[%s5 + $0x894] sm:$0xf]
        %v6444 = vld [vmem:[%s5 + $0x898] sm:$0xf]
        %v6445 = vld [vmem:[%s5 + $0x89c] sm:$0xf]
        %v6446 = vld [vmem:[%s5 + $0x8a0] sm:$0xf]
        %v6447 = vld [vmem:[%s5 + $0x8a4] sm:$0xf]
        %v6448 = vld [vmem:[%s5 + $0x8a8] sm:$0xf]
        %v6449 = vld [vmem:[%s5 + $0x8ac] sm:$0xf]
        %v6450 = vld [vmem:[%s5 + $0x8b0] sm:$0xf]
        %v6451 = vld [vmem:[%s5 + $0x8b4] sm:$0xf]
        %v6452 = vld [vmem:[%s5 + $0x8b8] sm:$0xf]
        %v6453 = vld [vmem:[%s5 + $0x8bc] sm:$0xf]
        %v6454 = vld [vmem:[%s5 + $0x8c0] sm:$0xf]
        %v6455 = vld [vmem:[%s5 + $0x8c4] sm:$0xf]
        %v6456 = vld [vmem:[%s5 + $0x8c8] sm:$0xf]
        %v6457 = vld [vmem:[%s5 + $0x8cc] sm:$0xf]
        %v6458 = vld [vmem:[%s5 + $0x8d0] sm:$0xf]
        %v6459 = vld [vmem:[%s5 + $0x8d4] sm:$0xf]
        %v6460 = vld [vmem:[%s5 + $0x8d8] sm:$0xf]
        %v6461 = vld [vmem:[%s5 + $0x8dc] sm:$0xf]
        %v6462 = vld [vmem:[%s5 + $0x8e0] sm:$0xf]
        %v6463 = vld [vmem:[%s5 + $0x8e4] sm:$0xf]
        %v6464 = vld [vmem:[%s5 + $0x8e8] sm:$0xf]
        %v6465 = vld [vmem:[%s5 + $0x8ec] sm:$0xf]
        %v6466 = vld [vmem:[%s5 + $0x8f0] sm:$0xf]
        %v6467 = vld [vmem:[%s5 + $0x8f4] sm:$0xf]
        %v6468 = vld [vmem:[%s5 + $0x8f8] sm:$0xf]
        %v6469 = vld [vmem:[%s5 + $0x8fc] sm:$0xf]
        %v6470 = vld [vmem:[%s6] sm:$0x1]
        %v6476 = vcombine.high %v5889, %v5889
        %v6478 = vunpack.c.l.s4 1966171168
        %v6479 = vunpack.c.0.s8 %v6478
        %v6480 = vlaneseq
        %v6481 = vshrl.u32 %v6480, 7
        %v6482 = vsub.s32 %v6479, %v6481
        %v6483 = vrot.slane %v5889, %v6482
        %v6485 = vunpack.c.l.s4 1966171168
        %v6486 = vunpack.c.0.s8 %v6485
        %v6487 = vlaneseq
        %v6488 = vshrl.u32 %v6487, 7
        %v6489 = vsub.s32 %v6486, %v6488
        %v6490 = vrot.slane %v6476, %v6489
        %v6491 = vcombine.high %v6483, %v6483
        %v6492 = vcombine.high %v6490, %v6490
        %v6494 = vunpack.c.l.s4 1966171168
        %v6495 = vunpack.c.0.s8 %v6494
        %v6496 = vlaneseq
        %v6497 = vshrl.u32 %v6496, 7
        %v6498 = vsub.s32 %v6495, %v6497
        %v6499 = vrot.slane %v6483, %v6498
        %v6501 = vunpack.c.l.s4 1966171168
        %v6502 = vunpack.c.0.s8 %v6501
        %v6503 = vlaneseq
        %v6504 = vshrl.u32 %v6503, 7
        %v6505 = vsub.s32 %v6502, %v6504
        %v6506 = vrot.slane %v6490, %v6505
        %v6508 = vunpack.c.l.s4 1966171168
        %v6509 = vunpack.c.0.s8 %v6508
        %v6510 = vlaneseq
        %v6511 = vshrl.u32 %v6510, 7
        %v6512 = vsub.s32 %v6509, %v6511
        %v6513 = vrot.slane %v6491, %v6512
        %v6515 = vunpack.c.l.s4 1966171168
        %v6516 = vunpack.c.0.s8 %v6515
        %v6517 = vlaneseq
        %v6518 = vshrl.u32 %v6517, 7
        %v6519 = vsub.s32 %v6516, %v6518
        %v6520 = vrot.slane %v6492, %v6519
        %v6521 = vcombine.high %v6499, %v6499
        %v6522 = vcombine.high %v6506, %v6506
        %v6523 = vcombine.high %v6513, %v6513
        %v6524 = vcombine.high %v6520, %v6520
        %v6525 = vcombine.high %v5890, %v5890
        %v6527 = vunpack.c.l.s4 1966171168
        %v6528 = vunpack.c.0.s8 %v6527
        %v6529 = vlaneseq
        %v6530 = vshrl.u32 %v6529, 7
        %v6531 = vsub.s32 %v6528, %v6530
        %v6532 = vrot.slane %v5890, %v6531
        %v6534 = vunpack.c.l.s4 1966171168
        %v6535 = vunpack.c.0.s8 %v6534
        %v6536 = vlaneseq
        %v6537 = vshrl.u32 %v6536, 7
        %v6538 = vsub.s32 %v6535, %v6537
        %v6539 = vrot.slane %v6525, %v6538
        %v6540 = vcombine.high %v6532, %v6532
        %v6541 = vcombine.high %v6539, %v6539
        %v6543 = vunpack.c.l.s4 1966171168
        %v6544 = vunpack.c.0.s8 %v6543
        %v6545 = vlaneseq
        %v6546 = vshrl.u32 %v6545, 7
        %v6547 = vsub.s32 %v6544, %v6546
        %v6548 = vrot.slane %v6532, %v6547
        %v6550 = vunpack.c.l.s4 1966171168
        %v6551 = vunpack.c.0.s8 %v6550
        %v6552 = vlaneseq
        %v6553 = vshrl.u32 %v6552, 7
        %v6554 = vsub.s32 %v6551, %v6553
        %v6555 = vrot.slane %v6539, %v6554
        %v6557 = vunpack.c.l.s4 1966171168
        %v6558 = vunpack.c.0.s8 %v6557
        %v6559 = vlaneseq
        %v6560 = vshrl.u32 %v6559, 7
        %v6561 = vsub.s32 %v6558, %v6560
        %v6562 = vrot.slane %v6540, %v6561
        %v6564 = vunpack.c.l.s4 1966171168
        %v6565 = vunpack.c.0.s8 %v6564
        %v6566 = vlaneseq
        %v6567 = vshrl.u32 %v6566, 7
        %v6568 = vsub.s32 %v6565, %v6567
        %v6569 = vrot.slane %v6541, %v6568
        %v6570 = vcombine.high %v6548, %v6548
        %v6571 = vcombine.high %v6555, %v6555
        %v6572 = vcombine.high %v6562, %v6562
        %v6573 = vcombine.high %v6569, %v6569
        %v6574 = vcombine.high %v5891, %v5891
        %v6576 = vunpack.c.l.s4 1966171168
        %v6577 = vunpack.c.0.s8 %v6576
        %v6578 = vlaneseq
        %v6579 = vshrl.u32 %v6578, 7
        %v6580 = vsub.s32 %v6577, %v6579
        %v6581 = vrot.slane %v5891, %v6580
        %v6583 = vunpack.c.l.s4 1966171168
        %v6584 = vunpack.c.0.s8 %v6583
        %v6585 = vlaneseq
        %v6586 = vshrl.u32 %v6585, 7
        %v6587 = vsub.s32 %v6584, %v6586
        %v6588 = vrot.slane %v6574, %v6587
        %v6589 = vcombine.high %v6581, %v6581
        %v6590 = vcombine.high %v6588, %v6588
        %v6592 = vunpack.c.l.s4 1966171168
        %v6593 = vunpack.c.0.s8 %v6592
        %v6594 = vlaneseq
        %v6595 = vshrl.u32 %v6594, 7
        %v6596 = vsub.s32 %v6593, %v6595
        %v6597 = vrot.slane %v6581, %v6596
        %v6599 = vunpack.c.l.s4 1966171168
        %v6600 = vunpack.c.0.s8 %v6599
        %v6601 = vlaneseq
        %v6602 = vshrl.u32 %v6601, 7
        %v6603 = vsub.s32 %v6600, %v6602
        %v6604 = vrot.slane %v6588, %v6603
        %v6606 = vunpack.c.l.s4 1966171168
        %v6607 = vunpack.c.0.s8 %v6606
        %v6608 = vlaneseq
        %v6609 = vshrl.u32 %v6608, 7
        %v6610 = vsub.s32 %v6607, %v6609
        %v6611 = vrot.slane %v6589, %v6610
        %v6613 = vunpack.c.l.s4 1966171168
        %v6614 = vunpack.c.0.s8 %v6613
        %v6615 = vlaneseq
        %v6616 = vshrl.u32 %v6615, 7
        %v6617 = vsub.s32 %v6614, %v6616
        %v6618 = vrot.slane %v6590, %v6617
        %v6619 = vcombine.high %v6597, %v6597
        %v6620 = vcombine.high %v6604, %v6604
        %v6621 = vcombine.high %v6611, %v6611
        %v6622 = vcombine.high %v6618, %v6618
        %v6623 = vcombine.high %v5892, %v5892
        %v6625 = vunpack.c.l.s4 1966171168
        %v6626 = vunpack.c.0.s8 %v6625
        %v6627 = vlaneseq
        %v6628 = vshrl.u32 %v6627, 7
        %v6629 = vsub.s32 %v6626, %v6628
        %v6630 = vrot.slane %v5892, %v6629
        %v6632 = vunpack.c.l.s4 1966171168
        %v6633 = vunpack.c.0.s8 %v6632
        %v6634 = vlaneseq
        %v6635 = vshrl.u32 %v6634, 7
        %v6636 = vsub.s32 %v6633, %v6635
        %v6637 = vrot.slane %v6623, %v6636
        %v6638 = vcombine.high %v6630, %v6630
        %v6639 = vcombine.high %v6637, %v6637
        %v6641 = vunpack.c.l.s4 1966171168
        %v6642 = vunpack.c.0.s8 %v6641
        %v6643 = vlaneseq
        %v6644 = vshrl.u32 %v6643, 7
        %v6645 = vsub.s32 %v6642, %v6644
        %v6646 = vrot.slane %v6630, %v6645
        %v6648 = vunpack.c.l.s4 1966171168
        %v6649 = vunpack.c.0.s8 %v6648
        %v6650 = vlaneseq
        %v6651 = vshrl.u32 %v6650, 7
        %v6652 = vsub.s32 %v6649, %v6651
        %v6653 = vrot.slane %v6637, %v6652
        %v6655 = vunpack.c.l.s4 1966171168
        %v6656 = vunpack.c.0.s8 %v6655
        %v6657 = vlaneseq
        %v6658 = vshrl.u32 %v6657, 7
        %v6659 = vsub.s32 %v6656, %v6658
        %v6660 = vrot.slane %v6638, %v6659
        %v6662 = vunpack.c.l.s4 1966171168
        %v6663 = vunpack.c.0.s8 %v6662
        %v6664 = vlaneseq
        %v6665 = vshrl.u32 %v6664, 7
        %v6666 = vsub.s32 %v6663, %v6665
        %v6667 = vrot.slane %v6639, %v6666
        %v6668 = vcombine.high %v6646, %v6646
        %v6669 = vcombine.high %v6653, %v6653
        %v6670 = vcombine.high %v6660, %v6660
        %v6671 = vcombine.high %v6667, %v6667
        %v6673 = vunpack.c.l.s4 1966171168
        %v6674 = vunpack.c.0.s8 %v6673
        %v6675 = vlaneseq
        %v6676 = vshrl.u32 %v6675, 7
        %v6677 = vsub.s32 %v6674, %v6676
        %v6678 = vrot.slane %v5893, %v6677
        %v6679 = vcombine.high %v6678, %v6678
        %v6681 = vunpack.c.l.s4 1966171168
        %v6682 = vunpack.c.0.s8 %v6681
        %v6683 = vlaneseq
        %v6684 = vshrl.u32 %v6683, 7
        %v6685 = vsub.s32 %v6682, %v6684
        %v6686 = vrot.slane %v6678, %v6685
        %v6688 = vunpack.c.l.s4 1966171168
        %v6689 = vunpack.c.0.s8 %v6688
        %v6690 = vlaneseq
        %v6691 = vshrl.u32 %v6690, 7
        %v6692 = vsub.s32 %v6689, %v6691
        %v6693 = vrot.slane %v6679, %v6692
        %v6694 = vcombine.high %v6686, %v6686
        %v6695 = vcombine.high %v6693, %v6693
        %v7308 = vunpack.c.l.b16 %v5894
        %v7309 = vunpack.c.l.b16 %v5895
        %v7310 = vunpack.c.l.b16 %v5896
        %v7311 = vunpack.c.l.b16 %v5897
        %v7312 = vunpack.c.l.b16 %v5898
        %v7313 = vunpack.c.l.b16 %v5899
        %v7314 = vunpack.c.l.b16 %v5900
        %v7315 = vunpack.c.l.b16 %v5901
        %v7316 = vunpack.c.l.b16 %v5902
        %v7317 = vunpack.c.l.b16 %v5903
        %v7318 = vunpack.c.l.b16 %v5904
        %v7319 = vunpack.c.l.b16 %v5905
        %v7320 = vunpack.c.l.b16 %v5906
        %v7321 = vunpack.c.l.b16 %v5907
        %v7322 = vunpack.c.l.b16 %v5908
        %v7323 = vunpack.c.l.b16 %v5909
        %v7324 = vunpack.c.l.b16 %v5910
        %v7325 = vunpack.c.l.b16 %v5911
        %v7326 = vunpack.c.l.b16 %v5912
        %v7327 = vunpack.c.l.b16 %v5913
        %v7328 = vunpack.c.l.b16 %v5914
        %v7329 = vunpack.c.l.b16 %v5915
        %v7330 = vunpack.c.l.b16 %v5916
        %v7331 = vunpack.c.l.b16 %v5917
        %v7332 = vunpack.c.l.b16 %v5918
        %v7333 = vunpack.c.l.b16 %v5919
        %v7334 = vunpack.c.l.b16 %v5920
        %v7335 = vunpack.c.l.b16 %v5921
        %v7336 = vunpack.c.l.b16 %v5922
        %v7337 = vunpack.c.l.b16 %v5923
        %v7338 = vunpack.c.l.b16 %v5924
        %v7339 = vunpack.c.l.b16 %v5925
        %v7340 = vunpack.c.l.b16 %v5926
        %v7341 = vunpack.c.l.b16 %v5927
        %v7342 = vunpack.c.l.b16 %v5928
        %v7343 = vunpack.c.l.b16 %v5929
        %v7344 = vunpack.c.l.b16 %v5930
        %v7345 = vunpack.c.l.b16 %v5931
        %v7346 = vunpack.c.l.b16 %v5932
        %v7347 = vunpack.c.l.b16 %v5933
        %v7348 = vunpack.c.l.b16 %v5934
        %v7349 = vunpack.c.l.b16 %v5935
        %v7350 = vunpack.c.l.b16 %v5936
        %v7351 = vunpack.c.l.b16 %v5937
        %v7352 = vunpack.c.l.b16 %v5938
        %v7353 = vunpack.c.l.b16 %v5939
        %v7354 = vunpack.c.l.b16 %v5940
        %v7355 = vunpack.c.l.b16 %v5941
        %v7356 = vunpack.c.l.b16 %v5942
        %v7357 = vunpack.c.l.b16 %v5943
        %v7358 = vunpack.c.l.b16 %v5944
        %v7359 = vunpack.c.l.b16 %v5945
        %v7360 = vunpack.c.l.b16 %v5946
        %v7361 = vunpack.c.l.b16 %v5947
        %v7362 = vunpack.c.l.b16 %v5948
        %v7363 = vunpack.c.l.b16 %v5949
        %v7364 = vunpack.c.l.b16 %v5950
        %v7365 = vunpack.c.l.b16 %v5951
        %v7366 = vunpack.c.l.b16 %v5952
        %v7367 = vunpack.c.l.b16 %v5953
        %v7368 = vunpack.c.l.b16 %v5954
        %v7369 = vunpack.c.l.b16 %v5955
        %v7370 = vunpack.c.l.b16 %v5956
        %v7371 = vunpack.c.l.b16 %v5957
        %v7372 = vunpack.c.l.b16 %v5958
        %v7373 = vunpack.c.l.b16 %v5959
        %v7374 = vunpack.c.l.b16 %v5960
        %v7375 = vunpack.c.l.b16 %v5961
        %v7376 = vunpack.c.l.b16 %v5962
        %v7377 = vunpack.c.l.b16 %v5963
        %v7378 = vunpack.c.l.b16 %v5964
        %v7379 = vunpack.c.l.b16 %v5965
        %v7380 = vunpack.c.l.b16 %v5966
        %v7381 = vunpack.c.l.b16 %v5967
        %v7382 = vunpack.c.l.b16 %v5968
        %v7383 = vunpack.c.l.b16 %v5969
        %v7384 = vunpack.c.l.b16 %v5970
        %v7385 = vunpack.c.l.b16 %v5971
        %v7386 = vunpack.c.l.b16 %v5972
        %v7387 = vunpack.c.l.b16 %v5973
        %v7388 = vunpack.c.l.b16 %v5974
        %v7389 = vunpack.c.l.b16 %v5975
        %v7390 = vunpack.c.l.b16 %v5976
        %v7391 = vunpack.c.l.b16 %v5977
        %v7392 = vunpack.c.l.b16 %v5978
        %v7393 = vunpack.c.l.b16 %v5979
        %v7394 = vunpack.c.l.b16 %v5980
        %v7395 = vunpack.c.l.b16 %v5981
        %v7396 = vunpack.c.l.b16 %v5982
        %v7397 = vunpack.c.l.b16 %v5983
        %v7398 = vunpack.c.l.b16 %v5984
        %v7399 = vunpack.c.l.b16 %v5985
        %v7400 = vunpack.c.l.b16 %v5986
        %v7401 = vunpack.c.l.b16 %v5987
        %v7402 = vunpack.c.l.b16 %v5988
        %v7403 = vunpack.c.l.b16 %v5989
        %v7404 = vunpack.c.l.b16 %v5990
        %v7405 = vunpack.c.l.b16 %v5991
        %v7406 = vunpack.c.l.b16 %v5992
        %v7407 = vunpack.c.l.b16 %v5993
        %v7408 = vunpack.c.l.b16 %v5994
        %v7409 = vunpack.c.l.b16 %v5995
        %v7410 = vunpack.c.l.b16 %v5996
        %v7411 = vunpack.c.l.b16 %v5997
        %v7412 = vunpack.c.l.b16 %v5998
        %v7413 = vunpack.c.l.b16 %v5999
        %v7414 = vunpack.c.l.b16 %v6000
        %v7415 = vunpack.c.l.b16 %v6001
        %v7416 = vunpack.c.l.b16 %v6002
        %v7417 = vunpack.c.l.b16 %v6003
        %v7418 = vunpack.c.l.b16 %v6004
        %v7419 = vunpack.c.l.b16 %v6005
        %v7420 = vunpack.c.l.b16 %v6006
        %v7421 = vunpack.c.l.b16 %v6007
        %v7422 = vunpack.c.l.b16 %v6008
        %v7423 = vunpack.c.l.b16 %v6009
        %v7424 = vunpack.c.l.b16 %v6010
        %v7425 = vunpack.c.l.b16 %v6011
        %v7426 = vunpack.c.l.b16 %v6012
        %v7427 = vunpack.c.l.b16 %v6013
        %v7428 = vunpack.c.l.b16 %v6014
        %v7429 = vunpack.c.l.b16 %v6015
        %v7430 = vunpack.c.l.b16 %v6016
        %v7431 = vunpack.c.l.b16 %v6017
        %v7432 = vunpack.c.l.b16 %v6018
        %v7433 = vunpack.c.l.b16 %v6019
        %v7434 = vunpack.c.l.b16 %v6020
        %v7435 = vunpack.c.l.b16 %v6021
        %v7436 = vunpack.c.l.b16 %v6022
        %v7437 = vunpack.c.l.b16 %v6023
        %v7438 = vunpack.c.l.b16 %v6024
        %v7439 = vunpack.c.l.b16 %v6025
        %v7440 = vunpack.c.l.b16 %v6026
        %v7441 = vunpack.c.l.b16 %v6027
        %v7442 = vunpack.c.l.b16 %v6028
        %v7443 = vunpack.c.l.b16 %v6029
        %v7444 = vunpack.c.l.b16 %v6030
        %v7445 = vunpack.c.l.b16 %v6031
        %v7446 = vunpack.c.l.b16 %v6032
        %v7447 = vunpack.c.l.b16 %v6033
        %v7448 = vunpack.c.l.b16 %v6034
        %v7449 = vunpack.c.l.b16 %v6035
        %v7450 = vunpack.c.l.b16 %v6036
        %v7451 = vunpack.c.l.b16 %v6037
        %v7452 = vunpack.c.l.b16 %v6038
        %v7453 = vunpack.c.l.b16 %v6039
        %v7454 = vunpack.c.l.b16 %v6040
        %v7455 = vunpack.c.l.b16 %v6041
        %v7456 = vunpack.c.l.b16 %v6042
        %v7457 = vunpack.c.l.b16 %v6043
        %v7458 = vunpack.c.l.b16 %v6044
        %v7459 = vunpack.c.l.b16 %v6045
        %v7460 = vunpack.c.l.b16 %v6046
        %v7461 = vunpack.c.l.b16 %v6047
        %v7462 = vunpack.c.l.b16 %v6048
        %v7463 = vunpack.c.l.b16 %v6049
        %v7464 = vunpack.c.l.b16 %v6050
        %v7465 = vunpack.c.l.b16 %v6051
        %v7466 = vunpack.c.l.b16 %v6052
        %v7467 = vunpack.c.l.b16 %v6053
        %v7468 = vunpack.c.l.b16 %v6054
        %v7469 = vunpack.c.l.b16 %v6055
        %v7470 = vunpack.c.l.b16 %v6056
        %v7471 = vunpack.c.l.b16 %v6057
        %v7472 = vunpack.c.l.b16 %v6058
        %v7473 = vunpack.c.l.b16 %v6059
        %v7474 = vunpack.c.l.b16 %v6060
        %v7475 = vunpack.c.l.b16 %v6061
        %v7476 = vunpack.c.l.b16 %v6062
        %v7477 = vunpack.c.l.b16 %v6063
        %v7478 = vunpack.c.l.b16 %v6064
        %v7479 = vunpack.c.l.b16 %v6065
        %v7480 = vunpack.c.l.b16 %v6066
        %v7481 = vunpack.c.l.b16 %v6067
        %v7482 = vunpack.c.l.b16 %v6068
        %v7483 = vunpack.c.l.b16 %v6069
        %v7484 = vunpack.c.l.b16 %v6070
        %v7485 = vunpack.c.l.b16 %v6071
        %v7486 = vunpack.c.l.b16 %v6072
        %v7487 = vunpack.c.l.b16 %v6073
        %v7488 = vunpack.c.l.b16 %v6074
        %v7489 = vunpack.c.l.b16 %v6075
        %v7490 = vunpack.c.l.b16 %v6076
        %v7491 = vunpack.c.l.b16 %v6077
        %v7492 = vunpack.c.l.b16 %v6078
        %v7493 = vunpack.c.l.b16 %v6079
        %v7494 = vunpack.c.l.b16 %v6080
        %v7495 = vunpack.c.l.b16 %v6081
        %v7496 = vunpack.c.l.b16 %v6082
        %v7497 = vunpack.c.l.b16 %v6083
        %v7498 = vunpack.c.l.b16 %v6084
        %v7499 = vunpack.c.l.b16 %v6085
        %v7500 = vunpack.c.l.b16 %v6086
        %v7501 = vunpack.c.l.b16 %v6087
        %v7502 = vunpack.c.l.b16 %v6088
        %v7503 = vunpack.c.l.b16 %v6089
        %v7504 = vunpack.c.l.b16 %v6090
        %v7505 = vunpack.c.l.b16 %v6091
        %v7506 = vunpack.c.l.b16 %v6092
        %v7507 = vunpack.c.l.b16 %v6093
        %v7508 = vunpack.c.l.b16 %v6094
        %v7509 = vunpack.c.l.b16 %v6095
        %v7510 = vunpack.c.l.b16 %v6096
        %v7511 = vunpack.c.l.b16 %v6097
        %v7512 = vunpack.c.l.b16 %v6098
        %v7513 = vunpack.c.l.b16 %v6099
        %v7514 = vunpack.c.l.b16 %v6100
        %v7515 = vunpack.c.l.b16 %v6101
        %v7516 = vunpack.c.l.b16 %v6102
        %v7517 = vunpack.c.l.b16 %v6103
        %v7518 = vunpack.c.l.b16 %v6104
        %v7519 = vunpack.c.l.b16 %v6105
        %v7520 = vunpack.c.l.b16 %v6106
        %v7521 = vunpack.c.l.b16 %v6107
        %v7522 = vunpack.c.l.b16 %v6108
        %v7523 = vunpack.c.l.b16 %v6109
        %v7524 = vunpack.c.l.b16 %v6110
        %v7525 = vunpack.c.l.b16 %v6111
        %v7526 = vunpack.c.l.b16 %v6112
        %v7527 = vunpack.c.l.b16 %v6113
        %v7528 = vunpack.c.l.b16 %v6114
        %v7529 = vunpack.c.l.b16 %v6115
        %v7530 = vunpack.c.l.b16 %v6116
        %v7531 = vunpack.c.l.b16 %v6117
        %v7532 = vunpack.c.l.b16 %v6118
        %v7533 = vunpack.c.l.b16 %v6119
        %v7534 = vunpack.c.l.b16 %v6120
        %v7535 = vunpack.c.l.b16 %v6121
        %v7536 = vunpack.c.l.b16 %v6122
        %v7537 = vunpack.c.l.b16 %v6123
        %v7538 = vunpack.c.l.b16 %v6124
        %v7539 = vunpack.c.l.b16 %v6125
        %v7540 = vunpack.c.l.b16 %v6126
        %v7541 = vunpack.c.l.b16 %v6127
        %v7542 = vunpack.c.l.b16 %v6128
        %v7543 = vunpack.c.l.b16 %v6129
        %v7544 = vunpack.c.l.b16 %v6130
        %v7545 = vunpack.c.l.b16 %v6131
        %v7546 = vunpack.c.l.b16 %v6132
        %v7547 = vunpack.c.l.b16 %v6133
        %v7548 = vunpack.c.l.b16 %v6134
        %v7549 = vunpack.c.l.b16 %v6135
        %v7550 = vunpack.c.l.b16 %v6136
        %v7551 = vunpack.c.l.b16 %v6137
        %v7552 = vunpack.c.l.b16 %v6138
        %v7553 = vunpack.c.l.b16 %v6139
        %v7554 = vunpack.c.l.b16 %v6140
        %v7555 = vunpack.c.l.b16 %v6141
        %v7556 = vunpack.c.l.b16 %v6142
        %v7557 = vunpack.c.l.b16 %v6143
        %v7558 = vunpack.c.l.b16 %v6144
        %v7559 = vunpack.c.l.b16 %v6145
        %v7560 = vunpack.c.l.b16 %v6146
        %v7561 = vunpack.c.l.b16 %v6147
        %v7562 = vunpack.c.l.b16 %v6148
        %v7563 = vunpack.c.l.b16 %v6149
        %v7564 = vunpack.c.l.b16 %v6150
        %v7565 = vunpack.c.l.b16 %v6151
        %v7566 = vunpack.c.l.b16 %v6152
        %v7567 = vunpack.c.l.b16 %v6153
        %v7568 = vunpack.c.l.b16 %v6154
        %v7569 = vunpack.c.l.b16 %v6155
        %v7570 = vunpack.c.l.b16 %v6156
        %v7571 = vunpack.c.l.b16 %v6157
        %v7572 = vunpack.c.l.b16 %v6158
        %v7573 = vunpack.c.l.b16 %v6159
        %v7574 = vunpack.c.l.b16 %v6160
        %v7575 = vunpack.c.l.b16 %v6161
        %v7576 = vunpack.c.l.b16 %v6162
        %v7577 = vunpack.c.l.b16 %v6163
        %v7578 = vunpack.c.l.b16 %v6164
        %v7579 = vunpack.c.l.b16 %v6165
        %v7580 = vunpack.c.l.b16 %v6166
        %v7581 = vunpack.c.l.b16 %v6167
        %v7582 = vunpack.c.l.b16 %v6168
        %v7583 = vunpack.c.l.b16 %v6169
        %v7584 = vunpack.c.l.b16 %v6170
        %v7585 = vunpack.c.l.b16 %v6171
        %v7586 = vunpack.c.l.b16 %v6172
        %v7587 = vunpack.c.l.b16 %v6173
        %v7588 = vunpack.c.l.b16 %v6174
        %v7589 = vunpack.c.l.b16 %v6175
        %v7590 = vunpack.c.l.b16 %v6176
        %v7591 = vunpack.c.l.b16 %v6177
        %v7592 = vunpack.c.l.b16 %v6178
        %v7593 = vunpack.c.l.b16 %v6179
        %v7594 = vunpack.c.l.b16 %v6180
        %v7595 = vunpack.c.l.b16 %v6181
        %v7596 = vunpack.c.l.b16 %v6182
        %v7597 = vunpack.c.l.b16 %v6183
        %v7598 = vunpack.c.l.b16 %v6184
        %v7599 = vunpack.c.l.b16 %v6185
        %v7600 = vunpack.c.l.b16 %v6186
        %v7601 = vunpack.c.l.b16 %v6187
        %v7602 = vunpack.c.l.b16 %v6188
        %v7603 = vunpack.c.l.b16 %v6189
        %v7604 = vunpack.c.l.b16 %v6190
        %v7605 = vunpack.c.l.b16 %v6191
        %v7606 = vunpack.c.l.b16 %v6192
        %v7607 = vunpack.c.l.b16 %v6193
        %v7608 = vunpack.c.l.b16 %v6194
        %v7609 = vunpack.c.l.b16 %v6195
        %v7610 = vunpack.c.l.b16 %v6196
        %v7611 = vunpack.c.l.b16 %v6197
        %v7612 = vunpack.c.l.b16 %v6198
        %v7613 = vunpack.c.l.b16 %v6199
        %v7614 = vunpack.c.l.b16 %v6200
        %v7615 = vunpack.c.l.b16 %v6201
        %v7616 = vunpack.c.l.b16 %v6202
        %v7617 = vunpack.c.l.b16 %v6203
        %v7618 = vunpack.c.l.b16 %v6204
        %v7619 = vunpack.c.l.b16 %v6205
        %v7620 = vunpack.c.l.b16 %v6206
        %v7621 = vunpack.c.l.b16 %v6207
        %v7622 = vunpack.c.l.b16 %v6208
        %v7623 = vunpack.c.l.b16 %v6209
        %v7624 = vunpack.c.l.b16 %v6210
        %v7625 = vunpack.c.l.b16 %v6211
        %v7626 = vunpack.c.l.b16 %v6212
        %v7627 = vunpack.c.l.b16 %v6213
        %v7628 = vunpack.c.l.b16 %v6214
        %v7629 = vunpack.c.l.b16 %v6215
        %v7630 = vunpack.c.l.b16 %v6216
        %v7631 = vunpack.c.l.b16 %v6217
        %v7632 = vunpack.c.l.b16 %v6218
        %v7633 = vunpack.c.l.b16 %v6219
        %v7634 = vunpack.c.l.b16 %v6220
        %v7635 = vunpack.c.l.b16 %v6221
        %v7636 = vunpack.c.l.b16 %v6222
        %v7637 = vunpack.c.l.b16 %v6223
        %v7638 = vunpack.c.l.b16 %v6224
        %v7639 = vunpack.c.l.b16 %v6225
        %v7640 = vunpack.c.l.b16 %v6226
        %v7641 = vunpack.c.l.b16 %v6227
        %v7642 = vunpack.c.l.b16 %v6228
        %v7643 = vunpack.c.l.b16 %v6229
        %v7644 = vunpack.c.l.b16 %v6230
        %v7645 = vunpack.c.l.b16 %v6231
        %v7646 = vunpack.c.l.b16 %v6232
        %v7647 = vunpack.c.l.b16 %v6233
        %v7648 = vunpack.c.l.b16 %v6234
        %v7649 = vunpack.c.l.b16 %v6235
        %v7650 = vunpack.c.l.b16 %v6236
        %v7651 = vunpack.c.l.b16 %v6237
        %v7652 = vunpack.c.l.b16 %v6238
        %v7653 = vunpack.c.l.b16 %v6239
        %v7654 = vunpack.c.l.b16 %v6240
        %v7655 = vunpack.c.l.b16 %v6241
        %v7656 = vunpack.c.l.b16 %v6242
        %v7657 = vunpack.c.l.b16 %v6243
        %v7658 = vunpack.c.l.b16 %v6244
        %v7659 = vunpack.c.l.b16 %v6245
        %v7660 = vunpack.c.l.b16 %v6246
        %v7661 = vunpack.c.l.b16 %v6247
        %v7662 = vunpack.c.l.b16 %v6248
        %v7663 = vunpack.c.l.b16 %v6249
        %v7664 = vunpack.c.l.b16 %v6250
        %v7665 = vunpack.c.l.b16 %v6251
        %v7666 = vunpack.c.l.b16 %v6252
        %v7667 = vunpack.c.l.b16 %v6253
        %v7668 = vunpack.c.l.b16 %v6254
        %v7669 = vunpack.c.l.b16 %v6255
        %v7670 = vunpack.c.l.b16 %v6256
        %v7671 = vunpack.c.l.b16 %v6257
        %v7672 = vunpack.c.l.b16 %v6258
        %v7673 = vunpack.c.l.b16 %v6259
        %v7674 = vunpack.c.l.b16 %v6260
        %v7675 = vunpack.c.l.b16 %v6261
        %v7676 = vunpack.c.l.b16 %v6262
        %v7677 = vunpack.c.l.b16 %v6263
        %v7678 = vunpack.c.l.b16 %v6264
        %v7679 = vunpack.c.l.b16 %v6265
        %v7680 = vunpack.c.l.b16 %v6266
        %v7681 = vunpack.c.l.b16 %v6267
        %v7682 = vunpack.c.l.b16 %v6268
        %v7683 = vunpack.c.l.b16 %v6269
        %v7684 = vunpack.c.l.b16 %v6270
        %v7685 = vunpack.c.l.b16 %v6271
        %v7686 = vunpack.c.l.b16 %v6272
        %v7687 = vunpack.c.l.b16 %v6273
        %v7688 = vunpack.c.l.b16 %v6274
        %v7689 = vunpack.c.l.b16 %v6275
        %v7690 = vunpack.c.l.b16 %v6276
        %v7691 = vunpack.c.l.b16 %v6277
        %v7692 = vunpack.c.l.b16 %v6278
        %v7693 = vunpack.c.l.b16 %v6279
        %v7694 = vunpack.c.l.b16 %v6280
        %v7695 = vunpack.c.l.b16 %v6281
        %v7696 = vunpack.c.l.b16 %v6282
        %v7697 = vunpack.c.l.b16 %v6283
        %v7698 = vunpack.c.l.b16 %v6284
        %v7699 = vunpack.c.l.b16 %v6285
        %v7700 = vunpack.c.l.b16 %v6286
        %v7701 = vunpack.c.l.b16 %v6287
        %v7702 = vunpack.c.l.b16 %v6288
        %v7703 = vunpack.c.l.b16 %v6289
        %v7704 = vunpack.c.l.b16 %v6290
        %v7705 = vunpack.c.l.b16 %v6291
        %v7706 = vunpack.c.l.b16 %v6292
        %v7707 = vunpack.c.l.b16 %v6293
        %v7708 = vunpack.c.l.b16 %v6294
        %v7709 = vunpack.c.l.b16 %v6295
        %v7710 = vunpack.c.l.b16 %v6296
        %v7711 = vunpack.c.l.b16 %v6297
        %v7712 = vunpack.c.l.b16 %v6298
        %v7713 = vunpack.c.l.b16 %v6299
        %v7714 = vunpack.c.l.b16 %v6300
        %v7715 = vunpack.c.l.b16 %v6301
        %v7716 = vunpack.c.l.b16 %v6302
        %v7717 = vunpack.c.l.b16 %v6303
        %v7718 = vunpack.c.l.b16 %v6304
        %v7719 = vunpack.c.l.b16 %v6305
        %v7720 = vunpack.c.l.b16 %v6306
        %v7721 = vunpack.c.l.b16 %v6307
        %v7722 = vunpack.c.l.b16 %v6308
        %v7723 = vunpack.c.l.b16 %v6309
        %v7724 = vunpack.c.l.b16 %v6310
        %v7725 = vunpack.c.l.b16 %v6311
        %v7726 = vunpack.c.l.b16 %v6312
        %v7727 = vunpack.c.l.b16 %v6313
        %v7728 = vunpack.c.l.b16 %v6314
        %v7729 = vunpack.c.l.b16 %v6315
        %v7730 = vunpack.c.l.b16 %v6316
        %v7731 = vunpack.c.l.b16 %v6317
        %v7732 = vunpack.c.l.b16 %v6318
        %v7733 = vunpack.c.l.b16 %v6319
        %v7734 = vunpack.c.l.b16 %v6320
        %v7735 = vunpack.c.l.b16 %v6321
        %v7736 = vunpack.c.l.b16 %v6322
        %v7737 = vunpack.c.l.b16 %v6323
        %v7738 = vunpack.c.l.b16 %v6324
        %v7739 = vunpack.c.l.b16 %v6325
        %v7740 = vunpack.c.l.b16 %v6326
        %v7741 = vunpack.c.l.b16 %v6327
        %v7742 = vunpack.c.l.b16 %v6328
        %v7743 = vunpack.c.l.b16 %v6329
        %v7744 = vunpack.c.l.b16 %v6330
        %v7745 = vunpack.c.l.b16 %v6331
        %v7746 = vunpack.c.l.b16 %v6332
        %v7747 = vunpack.c.l.b16 %v6333
        %v7748 = vunpack.c.l.b16 %v6334
        %v7749 = vunpack.c.l.b16 %v6335
        %v7750 = vunpack.c.l.b16 %v6336
        %v7751 = vunpack.c.l.b16 %v6337
        %v7752 = vunpack.c.l.b16 %v6338
        %v7753 = vunpack.c.l.b16 %v6339
        %v7754 = vunpack.c.l.b16 %v6340
        %v7755 = vunpack.c.l.b16 %v6341
        %v7756 = vunpack.c.l.b16 %v6342
        %v7757 = vunpack.c.l.b16 %v6343
        %v7758 = vunpack.c.l.b16 %v6344
        %v7759 = vunpack.c.l.b16 %v6345
        %v7760 = vunpack.c.l.b16 %v6346
        %v7761 = vunpack.c.l.b16 %v6347
        %v7762 = vunpack.c.l.b16 %v6348
        %v7763 = vunpack.c.l.b16 %v6349
        %v7764 = vunpack.c.l.b16 %v6350
        %v7765 = vunpack.c.l.b16 %v6351
        %v7766 = vunpack.c.l.b16 %v6352
        %v7767 = vunpack.c.l.b16 %v6353
        %v7768 = vunpack.c.l.b16 %v6354
        %v7769 = vunpack.c.l.b16 %v6355
        %v7770 = vunpack.c.l.b16 %v6356
        %v7771 = vunpack.c.l.b16 %v6357
        %v7772 = vunpack.c.l.b16 %v6358
        %v7773 = vunpack.c.l.b16 %v6359
        %v7774 = vunpack.c.l.b16 %v6360
        %v7775 = vunpack.c.l.b16 %v6361
        %v7776 = vunpack.c.l.b16 %v6362
        %v7777 = vunpack.c.l.b16 %v6363
        %v7778 = vunpack.c.l.b16 %v6364
        %v7779 = vunpack.c.l.b16 %v6365
        %v7780 = vunpack.c.l.b16 %v6366
        %v7781 = vunpack.c.l.b16 %v6367
        %v7782 = vunpack.c.l.b16 %v6368
        %v7783 = vunpack.c.l.b16 %v6369
        %v7784 = vunpack.c.l.b16 %v6370
        %v7785 = vunpack.c.l.b16 %v6371
        %v7786 = vunpack.c.l.b16 %v6372
        %v7787 = vunpack.c.l.b16 %v6373
        %v7788 = vunpack.c.l.b16 %v6374
        %v7789 = vunpack.c.l.b16 %v6375
        %v7790 = vunpack.c.l.b16 %v6376
        %v7791 = vunpack.c.l.b16 %v6377
        %v7792 = vunpack.c.l.b16 %v6378
        %v7793 = vunpack.c.l.b16 %v6379
        %v7794 = vunpack.c.l.b16 %v6380
        %v7795 = vunpack.c.l.b16 %v6381
        %v7796 = vunpack.c.l.b16 %v6382
        %v7797 = vunpack.c.l.b16 %v6383
        %v7798 = vunpack.c.l.b16 %v6384
        %v7799 = vunpack.c.l.b16 %v6385
        %v7800 = vunpack.c.l.b16 %v6386
        %v7801 = vunpack.c.l.b16 %v6387
        %v7802 = vunpack.c.l.b16 %v6388
        %v7803 = vunpack.c.l.b16 %v6389
        %v7804 = vunpack.c.l.b16 %v6390
        %v7805 = vunpack.c.l.b16 %v6391
        %v7806 = vunpack.c.l.b16 %v6392
        %v7807 = vunpack.c.l.b16 %v6393
        %v7808 = vunpack.c.l.b16 %v6394
        %v7809 = vunpack.c.l.b16 %v6395
        %v7810 = vunpack.c.l.b16 %v6396
        %v7811 = vunpack.c.l.b16 %v6397
        %v7812 = vunpack.c.l.b16 %v6398
        %v7813 = vunpack.c.l.b16 %v6399
        %v7814 = vunpack.c.l.b16 %v6400
        %v7815 = vunpack.c.l.b16 %v6401
        %v7816 = vunpack.c.l.b16 %v6402
        %v7817 = vunpack.c.l.b16 %v6403
        %v7818 = vunpack.c.l.b16 %v6404
        %v7819 = vunpack.c.l.b16 %v6405
        %v7820 = vunpack.c.l.b16 %v6406
        %v7821 = vunpack.c.l.b16 %v6407
        %v7822 = vunpack.c.l.b16 %v6408
        %v7823 = vunpack.c.l.b16 %v6409
        %v7824 = vunpack.c.l.b16 %v6410
        %v7825 = vunpack.c.l.b16 %v6411
        %v7826 = vunpack.c.l.b16 %v6412
        %v7827 = vunpack.c.l.b16 %v6413
        %v7828 = vunpack.c.l.b16 %v6414
        %v7829 = vunpack.c.l.b16 %v6415
        %v7830 = vunpack.c.l.b16 %v6416
        %v7831 = vunpack.c.l.b16 %v6417
        %v7832 = vunpack.c.l.b16 %v6418
        %v7833 = vunpack.c.l.b16 %v6419
        %v7834 = vunpack.c.l.b16 %v6420
        %v7835 = vunpack.c.l.b16 %v6421
        %v7836 = vunpack.c.l.b16 %v6422
        %v7837 = vunpack.c.l.b16 %v6423
        %v7838 = vunpack.c.l.b16 %v6424
        %v7839 = vunpack.c.l.b16 %v6425
        %v7840 = vunpack.c.l.b16 %v6426
        %v7841 = vunpack.c.l.b16 %v6427
        %v7842 = vunpack.c.l.b16 %v6428
        %v7843 = vunpack.c.l.b16 %v6429
        %v7844 = vunpack.c.l.b16 %v6430
        %v7845 = vunpack.c.l.b16 %v6431
        %v7846 = vunpack.c.l.b16 %v6432
        %v7847 = vunpack.c.l.b16 %v6433
        %v7848 = vunpack.c.l.b16 %v6434
        %v7849 = vunpack.c.l.b16 %v6435
        %v7850 = vunpack.c.l.b16 %v6436
        %v7851 = vunpack.c.l.b16 %v6437
        %v7852 = vunpack.c.l.b16 %v6438
        %v7853 = vunpack.c.l.b16 %v6439
        %v7854 = vunpack.c.l.b16 %v6440
        %v7855 = vunpack.c.l.b16 %v6441
        %v7856 = vunpack.c.l.b16 %v6442
        %v7857 = vunpack.c.l.b16 %v6443
        %v7858 = vunpack.c.l.b16 %v6444
        %v7859 = vunpack.c.l.b16 %v6445
        %v7860 = vunpack.c.l.b16 %v6446
        %v7861 = vunpack.c.l.b16 %v6447
        %v7862 = vunpack.c.l.b16 %v6448
        %v7863 = vunpack.c.l.b16 %v6449
        %v7864 = vunpack.c.l.b16 %v6450
        %v7865 = vunpack.c.l.b16 %v6451
        %v7866 = vunpack.c.l.b16 %v6452
        %v7867 = vunpack.c.l.b16 %v6453
        %v7868 = vunpack.c.l.b16 %v6454
        %v7869 = vunpack.c.l.b16 %v6455
        %v7870 = vunpack.c.l.b16 %v6456
        %v7871 = vunpack.c.l.b16 %v6457
        %v7872 = vunpack.c.l.b16 %v6458
        %v7873 = vunpack.c.l.b16 %v6459
        %v7874 = vunpack.c.l.b16 %v6460
        %v7875 = vunpack.c.l.b16 %v6461
        %v7876 = vunpack.c.l.b16 %v6462
        %v7877 = vunpack.c.l.b16 %v6463
        %v7878 = vunpack.c.l.b16 %v6464
        %v7879 = vunpack.c.l.b16 %v6465
        %v7880 = vunpack.c.l.b16 %v6466
        %v7881 = vunpack.c.l.b16 %v6467
        %v7882 = vunpack.c.l.b16 %v6468
        %v7883 = vunpack.c.l.b16 %v6469
        %v7884 = vpack.c.b16 %v7309, %v7308
        %v7885 = vpack.c.b16 %v7311, %v7310
        %v7886 = vpack.c.b16 %v7313, %v7312
        %v7887 = vpack.c.b16 %v7315, %v7314
        %v7888 = vpack.c.b16 %v7317, %v7316
        %v7889 = vpack.c.b16 %v7319, %v7318
        %v7890 = vpack.c.b16 %v7321, %v7320
        %v7891 = vpack.c.b16 %v7323, %v7322
        %v7892 = vpack.c.b16 %v7325, %v7324
        %v7893 = vpack.c.b16 %v7327, %v7326
        %v7894 = vpack.c.b16 %v7329, %v7328
        %v7895 = vpack.c.b16 %v7331, %v7330
        %v7896 = vpack.c.b16 %v7333, %v7332
        %v7897 = vpack.c.b16 %v7335, %v7334
        %v7898 = vpack.c.b16 %v7337, %v7336
        %v7899 = vpack.c.b16 %v7339, %v7338
        %v7900 = vpack.c.b16 %v7341, %v7340
        %v7901 = vpack.c.b16 %v7343, %v7342
        %v7902 = vpack.c.b16 %v7345, %v7344
        %v7903 = vpack.c.b16 %v7347, %v7346
        %v7904 = vpack.c.b16 %v7349, %v7348
        %v7905 = vpack.c.b16 %v7351, %v7350
        %v7906 = vpack.c.b16 %v7353, %v7352
        %v7907 = vpack.c.b16 %v7355, %v7354
        %v7908 = vpack.c.b16 %v7357, %v7356
        %v7909 = vpack.c.b16 %v7359, %v7358
        %v7910 = vpack.c.b16 %v7361, %v7360
        %v7911 = vpack.c.b16 %v7363, %v7362
        %v7912 = vpack.c.b16 %v7365, %v7364
        %v7913 = vpack.c.b16 %v7367, %v7366
        %v7914 = vpack.c.b16 %v7369, %v7368
        %v7915 = vpack.c.b16 %v7371, %v7370
        %v7916 = vpack.c.b16 %v7373, %v7372
        %v7917 = vpack.c.b16 %v7375, %v7374
        %v7918 = vpack.c.b16 %v7377, %v7376
        %v7919 = vpack.c.b16 %v7379, %v7378
        %v7920 = vpack.c.b16 %v7381, %v7380
        %v7921 = vpack.c.b16 %v7383, %v7382
        %v7922 = vpack.c.b16 %v7385, %v7384
        %v7923 = vpack.c.b16 %v7387, %v7386
        %v7924 = vpack.c.b16 %v7389, %v7388
        %v7925 = vpack.c.b16 %v7391, %v7390
        %v7926 = vpack.c.b16 %v7393, %v7392
        %v7927 = vpack.c.b16 %v7395, %v7394
        %v7928 = vpack.c.b16 %v7397, %v7396
        %v7929 = vpack.c.b16 %v7399, %v7398
        %v7930 = vpack.c.b16 %v7401, %v7400
        %v7931 = vpack.c.b16 %v7403, %v7402
        %v7932 = vpack.c.b16 %v7405, %v7404
        %v7933 = vpack.c.b16 %v7407, %v7406
        %v7934 = vpack.c.b16 %v7409, %v7408
        %v7935 = vpack.c.b16 %v7411, %v7410
        %v7936 = vpack.c.b16 %v7413, %v7412
        %v7937 = vpack.c.b16 %v7415, %v7414
        %v7938 = vpack.c.b16 %v7417, %v7416
        %v7939 = vpack.c.b16 %v7419, %v7418
        %v7940 = vpack.c.b16 %v7421, %v7420
        %v7941 = vpack.c.b16 %v7423, %v7422
        %v7942 = vpack.c.b16 %v7425, %v7424
        %v7943 = vpack.c.b16 %v7427, %v7426
        %v7944 = vpack.c.b16 %v7429, %v7428
        %v7945 = vpack.c.b16 %v7431, %v7430
        %v7946 = vpack.c.b16 %v7433, %v7432
        %v7947 = vpack.c.b16 %v7435, %v7434
        %v7948 = vpack.c.b16 %v7437, %v7436
        %v7949 = vpack.c.b16 %v7439, %v7438
        %v7950 = vpack.c.b16 %v7441, %v7440
        %v7951 = vpack.c.b16 %v7443, %v7442
        %v7952 = vpack.c.b16 %v7445, %v7444
        %v7953 = vpack.c.b16 %v7447, %v7446
        %v7954 = vpack.c.b16 %v7449, %v7448
        %v7955 = vpack.c.b16 %v7451, %v7450
        %v7956 = vpack.c.b16 %v7453, %v7452
        %v7957 = vpack.c.b16 %v7455, %v7454
        %v7958 = vpack.c.b16 %v7457, %v7456
        %v7959 = vpack.c.b16 %v7459, %v7458
        %v7960 = vpack.c.b16 %v7461, %v7460
        %v7961 = vpack.c.b16 %v7463, %v7462
        %v7962 = vpack.c.b16 %v7465, %v7464
        %v7963 = vpack.c.b16 %v7467, %v7466
        %v7964 = vpack.c.b16 %v7469, %v7468
        %v7965 = vpack.c.b16 %v7471, %v7470
        %v7966 = vpack.c.b16 %v7473, %v7472
        %v7967 = vpack.c.b16 %v7475, %v7474
        %v7968 = vpack.c.b16 %v7477, %v7476
        %v7969 = vpack.c.b16 %v7479, %v7478
        %v7970 = vpack.c.b16 %v7481, %v7480
        %v7971 = vpack.c.b16 %v7483, %v7482
        %v7972 = vpack.c.b16 %v7485, %v7484
        %v7973 = vpack.c.b16 %v7487, %v7486
        %v7974 = vpack.c.b16 %v7489, %v7488
        %v7975 = vpack.c.b16 %v7491, %v7490
        %v7976 = vpack.c.b16 %v7493, %v7492
        %v7977 = vpack.c.b16 %v7495, %v7494
        %v7978 = vpack.c.b16 %v7497, %v7496
        %v7979 = vpack.c.b16 %v7499, %v7498
        %v7980 = vpack.c.b16 %v7501, %v7500
        %v7981 = vpack.c.b16 %v7503, %v7502
        %v7982 = vpack.c.b16 %v7505, %v7504
        %v7983 = vpack.c.b16 %v7507, %v7506
        %v7984 = vpack.c.b16 %v7509, %v7508
        %v7985 = vpack.c.b16 %v7511, %v7510
        %v7986 = vpack.c.b16 %v7513, %v7512
        %v7987 = vpack.c.b16 %v7515, %v7514
        %v7988 = vpack.c.b16 %v7517, %v7516
        %v7989 = vpack.c.b16 %v7519, %v7518
        %v7990 = vpack.c.b16 %v7521, %v7520
        %v7991 = vpack.c.b16 %v7523, %v7522
        %v7992 = vpack.c.b16 %v7525, %v7524
        %v7993 = vpack.c.b16 %v7527, %v7526
        %v7994 = vpack.c.b16 %v7529, %v7528
        %v7995 = vpack.c.b16 %v7531, %v7530
        %v7996 = vpack.c.b16 %v7533, %v7532
        %v7997 = vpack.c.b16 %v7535, %v7534
        %v7998 = vpack.c.b16 %v7537, %v7536
        %v7999 = vpack.c.b16 %v7539, %v7538
        %v8000 = vpack.c.b16 %v7541, %v7540
        %v8001 = vpack.c.b16 %v7543, %v7542
        %v8002 = vpack.c.b16 %v7545, %v7544
        %v8003 = vpack.c.b16 %v7547, %v7546
        %v8004 = vpack.c.b16 %v7549, %v7548
        %v8005 = vpack.c.b16 %v7551, %v7550
        %v8006 = vpack.c.b16 %v7553, %v7552
        %v8007 = vpack.c.b16 %v7555, %v7554
        %v8008 = vpack.c.b16 %v7557, %v7556
        %v8009 = vpack.c.b16 %v7559, %v7558
        %v8010 = vpack.c.b16 %v7561, %v7560
        %v8011 = vpack.c.b16 %v7563, %v7562
        %v8012 = vpack.c.b16 %v7565, %v7564
        %v8013 = vpack.c.b16 %v7567, %v7566
        %v8014 = vpack.c.b16 %v7569, %v7568
        %v8015 = vpack.c.b16 %v7571, %v7570
        %v8016 = vpack.c.b16 %v7573, %v7572
        %v8017 = vpack.c.b16 %v7575, %v7574
        %v8018 = vpack.c.b16 %v7577, %v7576
        %v8019 = vpack.c.b16 %v7579, %v7578
        %v8020 = vpack.c.b16 %v7581, %v7580
        %v8021 = vpack.c.b16 %v7583, %v7582
        %v8022 = vpack.c.b16 %v7585, %v7584
        %v8023 = vpack.c.b16 %v7587, %v7586
        %v8024 = vpack.c.b16 %v7589, %v7588
        %v8025 = vpack.c.b16 %v7591, %v7590
        %v8026 = vpack.c.b16 %v7593, %v7592
        %v8027 = vpack.c.b16 %v7595, %v7594
        %v8028 = vpack.c.b16 %v7597, %v7596
        %v8029 = vpack.c.b16 %v7599, %v7598
        %v8030 = vpack.c.b16 %v7601, %v7600
        %v8031 = vpack.c.b16 %v7603, %v7602
        %v8032 = vpack.c.b16 %v7605, %v7604
        %v8033 = vpack.c.b16 %v7607, %v7606
        %v8034 = vpack.c.b16 %v7609, %v7608
        %v8035 = vpack.c.b16 %v7611, %v7610
        %v8036 = vpack.c.b16 %v7613, %v7612
        %v8037 = vpack.c.b16 %v7615, %v7614
        %v8038 = vpack.c.b16 %v7617, %v7616
        %v8039 = vpack.c.b16 %v7619, %v7618
        %v8040 = vpack.c.b16 %v7621, %v7620
        %v8041 = vpack.c.b16 %v7623, %v7622
        %v8042 = vpack.c.b16 %v7625, %v7624
        %v8043 = vpack.c.b16 %v7627, %v7626
        %v8044 = vpack.c.b16 %v7629, %v7628
        %v8045 = vpack.c.b16 %v7631, %v7630
        %v8046 = vpack.c.b16 %v7633, %v7632
        %v8047 = vpack.c.b16 %v7635, %v7634
        %v8048 = vpack.c.b16 %v7637, %v7636
        %v8049 = vpack.c.b16 %v7639, %v7638
        %v8050 = vpack.c.b16 %v7641, %v7640
        %v8051 = vpack.c.b16 %v7643, %v7642
        %v8052 = vpack.c.b16 %v7645, %v7644
        %v8053 = vpack.c.b16 %v7647, %v7646
        %v8054 = vpack.c.b16 %v7649, %v7648
        %v8055 = vpack.c.b16 %v7651, %v7650
        %v8056 = vpack.c.b16 %v7653, %v7652
        %v8057 = vpack.c.b16 %v7655, %v7654
        %v8058 = vpack.c.b16 %v7657, %v7656
        %v8059 = vpack.c.b16 %v7659, %v7658
        %v8060 = vpack.c.b16 %v7661, %v7660
        %v8061 = vpack.c.b16 %v7663, %v7662
        %v8062 = vpack.c.b16 %v7665, %v7664
        %v8063 = vpack.c.b16 %v7667, %v7666
        %v8064 = vpack.c.b16 %v7669, %v7668
        %v8065 = vpack.c.b16 %v7671, %v7670
        %v8066 = vpack.c.b16 %v7673, %v7672
        %v8067 = vpack.c.b16 %v7675, %v7674
        %v8068 = vpack.c.b16 %v7677, %v7676
        %v8069 = vpack.c.b16 %v7679, %v7678
        %v8070 = vpack.c.b16 %v7681, %v7680
        %v8071 = vpack.c.b16 %v7683, %v7682
        %v8072 = vpack.c.b16 %v7685, %v7684
        %v8073 = vpack.c.b16 %v7687, %v7686
        %v8074 = vpack.c.b16 %v7689, %v7688
        %v8075 = vpack.c.b16 %v7691, %v7690
        %v8076 = vpack.c.b16 %v7693, %v7692
        %v8077 = vpack.c.b16 %v7695, %v7694
        %v8078 = vpack.c.b16 %v7697, %v7696
        %v8079 = vpack.c.b16 %v7699, %v7698
        %v8080 = vpack.c.b16 %v7701, %v7700
        %v8081 = vpack.c.b16 %v7703, %v7702
        %v8082 = vpack.c.b16 %v7705, %v7704
        %v8083 = vpack.c.b16 %v7707, %v7706
        %v8084 = vpack.c.b16 %v7709, %v7708
        %v8085 = vpack.c.b16 %v7711, %v7710
        %v8086 = vpack.c.b16 %v7713, %v7712
        %v8087 = vpack.c.b16 %v7715, %v7714
        %v8088 = vpack.c.b16 %v7717, %v7716
        %v8089 = vpack.c.b16 %v7719, %v7718
        %v8090 = vpack.c.b16 %v7721, %v7720
        %v8091 = vpack.c.b16 %v7723, %v7722
        %v8092 = vpack.c.b16 %v7725, %v7724
        %v8093 = vpack.c.b16 %v7727, %v7726
        %v8094 = vpack.c.b16 %v7729, %v7728
        %v8095 = vpack.c.b16 %v7731, %v7730
        %v8096 = vpack.c.b16 %v7733, %v7732
        %v8097 = vpack.c.b16 %v7735, %v7734
        %v8098 = vpack.c.b16 %v7737, %v7736
        %v8099 = vpack.c.b16 %v7739, %v7738
        %v8100 = vpack.c.b16 %v7741, %v7740
        %v8101 = vpack.c.b16 %v7743, %v7742
        %v8102 = vpack.c.b16 %v7745, %v7744
        %v8103 = vpack.c.b16 %v7747, %v7746
        %v8104 = vpack.c.b16 %v7749, %v7748
        %v8105 = vpack.c.b16 %v7751, %v7750
        %v8106 = vpack.c.b16 %v7753, %v7752
        %v8107 = vpack.c.b16 %v7755, %v7754
        %v8108 = vpack.c.b16 %v7757, %v7756
        %v8109 = vpack.c.b16 %v7759, %v7758
        %v8110 = vpack.c.b16 %v7761, %v7760
        %v8111 = vpack.c.b16 %v7763, %v7762
        %v8112 = vpack.c.b16 %v7765, %v7764
        %v8113 = vpack.c.b16 %v7767, %v7766
        %v8114 = vpack.c.b16 %v7769, %v7768
        %v8115 = vpack.c.b16 %v7771, %v7770
        %v8116 = vpack.c.b16 %v7773, %v7772
        %v8117 = vpack.c.b16 %v7775, %v7774
        %v8118 = vpack.c.b16 %v7777, %v7776
        %v8119 = vpack.c.b16 %v7779, %v7778
        %v8120 = vpack.c.b16 %v7781, %v7780
        %v8121 = vpack.c.b16 %v7783, %v7782
        %v8122 = vpack.c.b16 %v7785, %v7784
        %v8123 = vpack.c.b16 %v7787, %v7786
        %v8124 = vpack.c.b16 %v7789, %v7788
        %v8125 = vpack.c.b16 %v7791, %v7790
        %v8126 = vpack.c.b16 %v7793, %v7792
        %v8127 = vpack.c.b16 %v7795, %v7794
        %v8128 = vpack.c.b16 %v7797, %v7796
        %v8129 = vpack.c.b16 %v7799, %v7798
        %v8130 = vpack.c.b16 %v7801, %v7800
        %v8131 = vpack.c.b16 %v7803, %v7802
        %v8132 = vpack.c.b16 %v7805, %v7804
        %v8133 = vpack.c.b16 %v7807, %v7806
        %v8134 = vpack.c.b16 %v7809, %v7808
        %v8135 = vpack.c.b16 %v7811, %v7810
        %v8136 = vpack.c.b16 %v7813, %v7812
        %v8137 = vpack.c.b16 %v7815, %v7814
        %v8138 = vpack.c.b16 %v7817, %v7816
        %v8139 = vpack.c.b16 %v7819, %v7818
        %v8140 = vpack.c.b16 %v7821, %v7820
        %v8141 = vpack.c.b16 %v7823, %v7822
        %v8142 = vpack.c.b16 %v7825, %v7824
        %v8143 = vpack.c.b16 %v7827, %v7826
        %v8144 = vpack.c.b16 %v7829, %v7828
        %v8145 = vpack.c.b16 %v7831, %v7830
        %v8146 = vpack.c.b16 %v7833, %v7832
        %v8147 = vpack.c.b16 %v7835, %v7834
        %v8148 = vpack.c.b16 %v7837, %v7836
        %v8149 = vpack.c.b16 %v7839, %v7838
        %v8150 = vpack.c.b16 %v7841, %v7840
        %v8151 = vpack.c.b16 %v7843, %v7842
        %v8152 = vpack.c.b16 %v7845, %v7844
        %v8153 = vpack.c.b16 %v7847, %v7846
        %v8154 = vpack.c.b16 %v7849, %v7848
        %v8155 = vpack.c.b16 %v7851, %v7850
        %v8156 = vpack.c.b16 %v7853, %v7852
        %v8157 = vpack.c.b16 %v7855, %v7854
        %v8158 = vpack.c.b16 %v7857, %v7856
        %v8159 = vpack.c.b16 %v7859, %v7858
        %v8160 = vpack.c.b16 %v7861, %v7860
        %v8161 = vpack.c.b16 %v7863, %v7862
        %v8162 = vpack.c.b16 %v7865, %v7864
        %v8163 = vpack.c.b16 %v7867, %v7866
        %v8164 = vpack.c.b16 %v7869, %v7868
        %v8165 = vpack.c.b16 %v7871, %v7870
        %v8166 = vpack.c.b16 %v7873, %v7872
        %v8167 = vpack.c.b16 %v7875, %v7874
        %v8168 = vpack.c.b16 %v7877, %v7876
        %v8169 = vpack.c.b16 %v7879, %v7878
        %v8170 = vpack.c.b16 %v7881, %v7880
        %v8171 = vpack.c.b16 %v7883, %v7882
        %8460 = vmatprep.subr.bf16.mxu0 0
        %8461 = vmatpush1.bf16.msra.mxu0 %v7891
        %8462 = vmatprep.subr.bf16.mxu0 0
        %8463 = vmatpush1.bf16.msra.mxu0 %v7890
        %8464 = vmatprep.subr.bf16.mxu0 0
        %8465 = vmatpush1.bf16.msra.mxu0 %v7889
        %8466 = vmatprep.subr.bf16.mxu0 0
        %8467 = vmatpush1.bf16.msra.mxu0 %v7888
        %8468 = vmatprep.subr.bf16.mxu0 0
        %8469 = vmatpush1.bf16.msra.mxu0 %v7887
        %8470 = vmatprep.subr.bf16.mxu0 0
        %8471 = vmatpush1.bf16.msra.mxu0 %v7886
        %8472 = vmatprep.subr.bf16.mxu0 0
        %8473 = vmatpush1.bf16.msra.mxu0 %v7885
        %8474 = vmatprep.subr.bf16.mxu0 0
        %8475 = vmatpush1.bf16.msra.mxu0 %v7884
        %8476 = vmatprep.subr.bf16.mxu0 0
        %8477 = vmatpush2.bf16.msra.mxu0 %v7899
        %8478 = vmatprep.subr.bf16.mxu0 0
        %8479 = vmatpush2.bf16.msra.mxu0 %v7898
        %8480 = vmatprep.subr.bf16.mxu0 0
        %8481 = vmatpush2.bf16.msra.mxu0 %v7897
        %8482 = vmatprep.subr.bf16.mxu0 0
        %8483 = vmatpush2.bf16.msra.mxu0 %v7896
        %8484 = vmatprep.subr.bf16.mxu0 0
        %8485 = vmatpush2.bf16.msra.mxu0 %v7895
        %8486 = vmatprep.subr.bf16.mxu0 0
        %8487 = vmatpush2.bf16.msra.mxu0 %v7894
        %8488 = vmatprep.subr.bf16.mxu0 0
        %8489 = vmatpush2.bf16.msra.mxu0 %v7893
        %8490 = vmatprep.subr.bf16.mxu0 0
        %8491 = vmatpush2.bf16.msra.mxu0 %v7892
        %8492 = vmatprep.mubr.bf16.mxu0 %v6513
        %8493 = vmatmul.mubr.bf16.gmra.mxu0 %v6499
        %v8494 = vpop.f32.mrf.mxu0
        %v8495 = vadd.f32 %v6470, %v8494
        %v8496 = vpop.f32.mrf.mxu0
        %v8497 = vpop.f32.mrf.mxu0
        %v8498 = vpop.f32.mrf.mxu0
        %8499 = vdwg.mxu0
        %8500 = vmatprep.subr.bf16.mxu0 0
        %8501 = vmatpush1.bf16.msra.mxu0 %v7907
        %8502 = vmatprep.subr.bf16.mxu0 0
        %8503 = vmatpush1.bf16.msra.mxu0 %v7906
        %8504 = vmatprep.subr.bf16.mxu0 0
        %8505 = vmatpush1.bf16.msra.mxu0 %v7905
        %8506 = vmatprep.subr.bf16.mxu0 0
        %8507 = vmatpush1.bf16.msra.mxu0 %v7904
        %8508 = vmatprep.subr.bf16.mxu0 0
        %8509 = vmatpush1.bf16.msra.mxu0 %v7903
        %8510 = vmatprep.subr.bf16.mxu0 0
        %8511 = vmatpush1.bf16.msra.mxu0 %v7902
        %8512 = vmatprep.subr.bf16.mxu0 0
        %8513 = vmatpush1.bf16.msra.mxu0 %v7901
        %8514 = vmatprep.subr.bf16.mxu0 0
        %8515 = vmatpush1.bf16.msra.mxu0 %v7900
        %8516 = vmatprep.subr.bf16.mxu0 0
        %8517 = vmatpush2.bf16.msra.mxu0 %v7915
        %8518 = vmatprep.subr.bf16.mxu0 0
        %8519 = vmatpush2.bf16.msra.mxu0 %v7914
        %8520 = vmatprep.subr.bf16.mxu0 0
        %8521 = vmatpush2.bf16.msra.mxu0 %v7913
        %8522 = vmatprep.subr.bf16.mxu0 0
        %8523 = vmatpush2.bf16.msra.mxu0 %v7912
        %8524 = vmatprep.subr.bf16.mxu0 0
        %8525 = vmatpush2.bf16.msra.mxu0 %v7911
        %8526 = vmatprep.subr.bf16.mxu0 0
        %8527 = vmatpush2.bf16.msra.mxu0 %v7910
        %8528 = vmatprep.subr.bf16.mxu0 0
        %8529 = vmatpush2.bf16.msra.mxu0 %v7909
        %8530 = vmatprep.subr.bf16.mxu0 0
        %8531 = vmatpush2.bf16.msra.mxu0 %v7908
        %8532 = vmatprep.mubr.bf16.mxu0 %v6523
        %8533 = vmatmul.mubr.bf16.gmra.mxu0 %v6521
        %v8534 = vpop.f32.mrf.mxu0
        %v8535 = vadd.f32 %v8495, %v8534
        %v8536 = vpop.f32.mrf.mxu0
        %v8537 = vpop.f32.mrf.mxu0
        %v8538 = vpop.f32.mrf.mxu0
        %8539 = vdwg.mxu0
        %8540 = vmatprep.subr.bf16.mxu0 0
        %8541 = vmatpush1.bf16.msra.mxu0 %v7923
        %8542 = vmatprep.subr.bf16.mxu0 0
        %8543 = vmatpush1.bf16.msra.mxu0 %v7922
        %8544 = vmatprep.subr.bf16.mxu0 0
        %8545 = vmatpush1.bf16.msra.mxu0 %v7921
        %8546 = vmatprep.subr.bf16.mxu0 0
        %8547 = vmatpush1.bf16.msra.mxu0 %v7920
        %8548 = vmatprep.subr.bf16.mxu0 0
        %8549 = vmatpush1.bf16.msra.mxu0 %v7919
        %8550 = vmatprep.subr.bf16.mxu0 0
        %8551 = vmatpush1.bf16.msra.mxu0 %v7918
        %8552 = vmatprep.subr.bf16.mxu0 0
        %8553 = vmatpush1.bf16.msra.mxu0 %v7917
        %8554 = vmatprep.subr.bf16.mxu0 0
        %8555 = vmatpush1.bf16.msra.mxu0 %v7916
        %8556 = vmatprep.subr.bf16.mxu0 0
        %8557 = vmatpush2.bf16.msra.mxu0 %v7931
        %8558 = vmatprep.subr.bf16.mxu0 0
        %8559 = vmatpush2.bf16.msra.mxu0 %v7930
        %8560 = vmatprep.subr.bf16.mxu0 0
        %8561 = vmatpush2.bf16.msra.mxu0 %v7929
        %8562 = vmatprep.subr.bf16.mxu0 0
        %8563 = vmatpush2.bf16.msra.mxu0 %v7928
        %8564 = vmatprep.subr.bf16.mxu0 0
        %8565 = vmatpush2.bf16.msra.mxu0 %v7927
        %8566 = vmatprep.subr.bf16.mxu0 0
        %8567 = vmatpush2.bf16.msra.mxu0 %v7926
        %8568 = vmatprep.subr.bf16.mxu0 0
        %8569 = vmatpush2.bf16.msra.mxu0 %v7925
        %8570 = vmatprep.subr.bf16.mxu0 0
        %8571 = vmatpush2.bf16.msra.mxu0 %v7924
        %8572 = vmatprep.mubr.bf16.mxu0 %v6520
        %8573 = vmatmul.mubr.bf16.gmra.mxu0 %v6506
        %v8574 = vpop.f32.mrf.mxu0
        %v8575 = vadd.f32 %v8535, %v8574
        %v8576 = vpop.f32.mrf.mxu0
        %v8577 = vpop.f32.mrf.mxu0
        %v8578 = vpop.f32.mrf.mxu0
        %8579 = vdwg.mxu0
        %8580 = vmatprep.subr.bf16.mxu0 0
        %8581 = vmatpush1.bf16.msra.mxu0 %v7939
        %8582 = vmatprep.subr.bf16.mxu0 0
        %8583 = vmatpush1.bf16.msra.mxu0 %v7938
        %8584 = vmatprep.subr.bf16.mxu0 0
        %8585 = vmatpush1.bf16.msra.mxu0 %v7937
        %8586 = vmatprep.subr.bf16.mxu0 0
        %8587 = vmatpush1.bf16.msra.mxu0 %v7936
        %8588 = vmatprep.subr.bf16.mxu0 0
        %8589 = vmatpush1.bf16.msra.mxu0 %v7935
        %8590 = vmatprep.subr.bf16.mxu0 0
        %8591 = vmatpush1.bf16.msra.mxu0 %v7934
        %8592 = vmatprep.subr.bf16.mxu0 0
        %8593 = vmatpush1.bf16.msra.mxu0 %v7933
        %8594 = vmatprep.subr.bf16.mxu0 0
        %8595 = vmatpush1.bf16.msra.mxu0 %v7932
        %8596 = vmatprep.subr.bf16.mxu0 0
        %8597 = vmatpush2.bf16.msra.mxu0 %v7947
        %8598 = vmatprep.subr.bf16.mxu0 0
        %8599 = vmatpush2.bf16.msra.mxu0 %v7946
        %8600 = vmatprep.subr.bf16.mxu0 0
        %8601 = vmatpush2.bf16.msra.mxu0 %v7945
        %8602 = vmatprep.subr.bf16.mxu0 0
        %8603 = vmatpush2.bf16.msra.mxu0 %v7944
        %8604 = vmatprep.subr.bf16.mxu0 0
        %8605 = vmatpush2.bf16.msra.mxu0 %v7943
        %8606 = vmatprep.subr.bf16.mxu0 0
        %8607 = vmatpush2.bf16.msra.mxu0 %v7942
        %8608 = vmatprep.subr.bf16.mxu0 0
        %8609 = vmatpush2.bf16.msra.mxu0 %v7941
        %8610 = vmatprep.subr.bf16.mxu0 0
        %8611 = vmatpush2.bf16.msra.mxu0 %v7940
        %8612 = vmatprep.mubr.bf16.mxu0 %v6524
        %8613 = vmatmul.mubr.bf16.gmra.mxu0 %v6522
        %v8614 = vpop.f32.mrf.mxu0
        %v8615 = vadd.f32 %v8575, %v8614
        %v8616 = vpop.f32.mrf.mxu0
        %v8617 = vpop.f32.mrf.mxu0
        %v8618 = vpop.f32.mrf.mxu0
        %8619 = vdwg.mxu0
        %8620 = vmatprep.subr.bf16.mxu0 0
        %8621 = vmatpush1.bf16.msra.mxu0 %v7955
        %8622 = vmatprep.subr.bf16.mxu0 0
        %8623 = vmatpush1.bf16.msra.mxu0 %v7954
        %8624 = vmatprep.subr.bf16.mxu0 0
        %8625 = vmatpush1.bf16.msra.mxu0 %v7953
        %8626 = vmatprep.subr.bf16.mxu0 0
        %8627 = vmatpush1.bf16.msra.mxu0 %v7952
        %8628 = vmatprep.subr.bf16.mxu0 0
        %8629 = vmatpush1.bf16.msra.mxu0 %v7951
        %8630 = vmatprep.subr.bf16.mxu0 0
        %8631 = vmatpush1.bf16.msra.mxu0 %v7950
        %8632 = vmatprep.subr.bf16.mxu0 0
        %8633 = vmatpush1.bf16.msra.mxu0 %v7949
        %8634 = vmatprep.subr.bf16.mxu0 0
        %8635 = vmatpush1.bf16.msra.mxu0 %v7948
        %8636 = vmatprep.subr.bf16.mxu0 0
        %8637 = vmatpush2.bf16.msra.mxu0 %v7963
        %8638 = vmatprep.subr.bf16.mxu0 0
        %8639 = vmatpush2.bf16.msra.mxu0 %v7962
        %8640 = vmatprep.subr.bf16.mxu0 0
        %8641 = vmatpush2.bf16.msra.mxu0 %v7961
        %8642 = vmatprep.subr.bf16.mxu0 0
        %8643 = vmatpush2.bf16.msra.mxu0 %v7960
        %8644 = vmatprep.subr.bf16.mxu0 0
        %8645 = vmatpush2.bf16.msra.mxu0 %v7959
        %8646 = vmatprep.subr.bf16.mxu0 0
        %8647 = vmatpush2.bf16.msra.mxu0 %v7958
        %8648 = vmatprep.subr.bf16.mxu0 0
        %8649 = vmatpush2.bf16.msra.mxu0 %v7957
        %8650 = vmatprep.subr.bf16.mxu0 0
        %8651 = vmatpush2.bf16.msra.mxu0 %v7956
        %8652 = vmatprep.mubr.bf16.mxu0 %v6562
        %8653 = vmatmul.mubr.bf16.gmra.mxu0 %v6548
        %v8654 = vpop.f32.mrf.mxu0
        %v8655 = vadd.f32 %v8615, %v8654
        %v8656 = vpop.f32.mrf.mxu0
        %v8657 = vpop.f32.mrf.mxu0
        %v8658 = vpop.f32.mrf.mxu0
        %8659 = vdwg.mxu0
        %8660 = vmatprep.subr.bf16.mxu0 0
        %8661 = vmatpush1.bf16.msra.mxu0 %v7971
        %8662 = vmatprep.subr.bf16.mxu0 0
        %8663 = vmatpush1.bf16.msra.mxu0 %v7970
        %8664 = vmatprep.subr.bf16.mxu0 0
        %8665 = vmatpush1.bf16.msra.mxu0 %v7969
        %8666 = vmatprep.subr.bf16.mxu0 0
        %8667 = vmatpush1.bf16.msra.mxu0 %v7968
        %8668 = vmatprep.subr.bf16.mxu0 0
        %8669 = vmatpush1.bf16.msra.mxu0 %v7967
        %8670 = vmatprep.subr.bf16.mxu0 0
        %8671 = vmatpush1.bf16.msra.mxu0 %v7966
        %8672 = vmatprep.subr.bf16.mxu0 0
        %8673 = vmatpush1.bf16.msra.mxu0 %v7965
        %8674 = vmatprep.subr.bf16.mxu0 0
        %8675 = vmatpush1.bf16.msra.mxu0 %v7964
        %8676 = vmatprep.subr.bf16.mxu0 0
        %8677 = vmatpush2.bf16.msra.mxu0 %v7979
        %8678 = vmatprep.subr.bf16.mxu0 0
        %8679 = vmatpush2.bf16.msra.mxu0 %v7978
        %8680 = vmatprep.subr.bf16.mxu0 0
        %8681 = vmatpush2.bf16.msra.mxu0 %v7977
        %8682 = vmatprep.subr.bf16.mxu0 0
        %8683 = vmatpush2.bf16.msra.mxu0 %v7976
        %8684 = vmatprep.subr.bf16.mxu0 0
        %8685 = vmatpush2.bf16.msra.mxu0 %v7975
        %8686 = vmatprep.subr.bf16.mxu0 0
        %8687 = vmatpush2.bf16.msra.mxu0 %v7974
        %8688 = vmatprep.subr.bf16.mxu0 0
        %8689 = vmatpush2.bf16.msra.mxu0 %v7973
        %8690 = vmatprep.subr.bf16.mxu0 0
        %8691 = vmatpush2.bf16.msra.mxu0 %v7972
        %8692 = vmatprep.mubr.bf16.mxu0 %v6572
        %8693 = vmatmul.mubr.bf16.gmra.mxu0 %v6570
        %v8694 = vpop.f32.mrf.mxu0
        %v8695 = vadd.f32 %v8655, %v8694
        %v8696 = vpop.f32.mrf.mxu0
        %v8697 = vpop.f32.mrf.mxu0
        %v8698 = vpop.f32.mrf.mxu0
        %8699 = vdwg.mxu0
        %8700 = vmatprep.subr.bf16.mxu0 0
        %8701 = vmatpush1.bf16.msra.mxu0 %v7987
        %8702 = vmatprep.subr.bf16.mxu0 0
        %8703 = vmatpush1.bf16.msra.mxu0 %v7986
        %8704 = vmatprep.subr.bf16.mxu0 0
        %8705 = vmatpush1.bf16.msra.mxu0 %v7985
        %8706 = vmatprep.subr.bf16.mxu0 0
        %8707 = vmatpush1.bf16.msra.mxu0 %v7984
        %8708 = vmatprep.subr.bf16.mxu0 0
        %8709 = vmatpush1.bf16.msra.mxu0 %v7983
        %8710 = vmatprep.subr.bf16.mxu0 0
        %8711 = vmatpush1.bf16.msra.mxu0 %v7982
        %8712 = vmatprep.subr.bf16.mxu0 0
        %8713 = vmatpush1.bf16.msra.mxu0 %v7981
        %8714 = vmatprep.subr.bf16.mxu0 0
        %8715 = vmatpush1.bf16.msra.mxu0 %v7980
        %8716 = vmatprep.subr.bf16.mxu0 0
        %8717 = vmatpush2.bf16.msra.mxu0 %v7995
        %8718 = vmatprep.subr.bf16.mxu0 0
        %8719 = vmatpush2.bf16.msra.mxu0 %v7994
        %8720 = vmatprep.subr.bf16.mxu0 0
        %8721 = vmatpush2.bf16.msra.mxu0 %v7993
        %8722 = vmatprep.subr.bf16.mxu0 0
        %8723 = vmatpush2.bf16.msra.mxu0 %v7992
        %8724 = vmatprep.subr.bf16.mxu0 0
        %8725 = vmatpush2.bf16.msra.mxu0 %v7991
        %8726 = vmatprep.subr.bf16.mxu0 0
        %8727 = vmatpush2.bf16.msra.mxu0 %v7990
        %8728 = vmatprep.subr.bf16.mxu0 0
        %8729 = vmatpush2.bf16.msra.mxu0 %v7989
        %8730 = vmatprep.subr.bf16.mxu0 0
        %8731 = vmatpush2.bf16.msra.mxu0 %v7988
        %8732 = vmatprep.mubr.bf16.mxu0 %v6569
        %8733 = vmatmul.mubr.bf16.gmra.mxu0 %v6555
        %v8734 = vpop.f32.mrf.mxu0
        %v8735 = vadd.f32 %v8695, %v8734
        %v8736 = vpop.f32.mrf.mxu0
        %v8737 = vpop.f32.mrf.mxu0
        %v8738 = vpop.f32.mrf.mxu0
        %8739 = vdwg.mxu0
        %8740 = vmatprep.subr.bf16.mxu0 0
        %8741 = vmatpush1.bf16.msra.mxu0 %v8003
        %8742 = vmatprep.subr.bf16.mxu0 0
        %8743 = vmatpush1.bf16.msra.mxu0 %v8002
        %8744 = vmatprep.subr.bf16.mxu0 0
        %8745 = vmatpush1.bf16.msra.mxu0 %v8001
        %8746 = vmatprep.subr.bf16.mxu0 0
        %8747 = vmatpush1.bf16.msra.mxu0 %v8000
        %8748 = vmatprep.subr.bf16.mxu0 0
        %8749 = vmatpush1.bf16.msra.mxu0 %v7999
        %8750 = vmatprep.subr.bf16.mxu0 0
        %8751 = vmatpush1.bf16.msra.mxu0 %v7998
        %8752 = vmatprep.subr.bf16.mxu0 0
        %8753 = vmatpush1.bf16.msra.mxu0 %v7997
        %8754 = vmatprep.subr.bf16.mxu0 0
        %8755 = vmatpush1.bf16.msra.mxu0 %v7996
        %8756 = vmatprep.subr.bf16.mxu0 0
        %8757 = vmatpush2.bf16.msra.mxu0 %v8011
        %8758 = vmatprep.subr.bf16.mxu0 0
        %8759 = vmatpush2.bf16.msra.mxu0 %v8010
        %8760 = vmatprep.subr.bf16.mxu0 0
        %8761 = vmatpush2.bf16.msra.mxu0 %v8009
        %8762 = vmatprep.subr.bf16.mxu0 0
        %8763 = vmatpush2.bf16.msra.mxu0 %v8008
        %8764 = vmatprep.subr.bf16.mxu0 0
        %8765 = vmatpush2.bf16.msra.mxu0 %v8007
        %8766 = vmatprep.subr.bf16.mxu0 0
        %8767 = vmatpush2.bf16.msra.mxu0 %v8006
        %8768 = vmatprep.subr.bf16.mxu0 0
        %8769 = vmatpush2.bf16.msra.mxu0 %v8005
        %8770 = vmatprep.subr.bf16.mxu0 0
        %8771 = vmatpush2.bf16.msra.mxu0 %v8004
        %8772 = vmatprep.mubr.bf16.mxu0 %v6573
        %8773 = vmatmul.mubr.bf16.gmra.mxu0 %v6571
        %v8774 = vpop.f32.mrf.mxu0
        %v8775 = vadd.f32 %v8735, %v8774
        %v8776 = vpop.f32.mrf.mxu0
        %v8777 = vpop.f32.mrf.mxu0
        %v8778 = vpop.f32.mrf.mxu0
        %8779 = vdwg.mxu0
        %8780 = vmatprep.subr.bf16.mxu0 0
        %8781 = vmatpush1.bf16.msra.mxu0 %v8019
        %8782 = vmatprep.subr.bf16.mxu0 0
        %8783 = vmatpush1.bf16.msra.mxu0 %v8018
        %8784 = vmatprep.subr.bf16.mxu0 0
        %8785 = vmatpush1.bf16.msra.mxu0 %v8017
        %8786 = vmatprep.subr.bf16.mxu0 0
        %8787 = vmatpush1.bf16.msra.mxu0 %v8016
        %8788 = vmatprep.subr.bf16.mxu0 0
        %8789 = vmatpush1.bf16.msra.mxu0 %v8015
        %8790 = vmatprep.subr.bf16.mxu0 0
        %8791 = vmatpush1.bf16.msra.mxu0 %v8014
        %8792 = vmatprep.subr.bf16.mxu0 0
        %8793 = vmatpush1.bf16.msra.mxu0 %v8013
        %8794 = vmatprep.subr.bf16.mxu0 0
        %8795 = vmatpush1.bf16.msra.mxu0 %v8012
        %8796 = vmatprep.subr.bf16.mxu0 0
        %8797 = vmatpush2.bf16.msra.mxu0 %v8027
        %8798 = vmatprep.subr.bf16.mxu0 0
        %8799 = vmatpush2.bf16.msra.mxu0 %v8026
        %8800 = vmatprep.subr.bf16.mxu0 0
        %8801 = vmatpush2.bf16.msra.mxu0 %v8025
        %8802 = vmatprep.subr.bf16.mxu0 0
        %8803 = vmatpush2.bf16.msra.mxu0 %v8024
        %8804 = vmatprep.subr.bf16.mxu0 0
        %8805 = vmatpush2.bf16.msra.mxu0 %v8023
        %8806 = vmatprep.subr.bf16.mxu0 0
        %8807 = vmatpush2.bf16.msra.mxu0 %v8022
        %8808 = vmatprep.subr.bf16.mxu0 0
        %8809 = vmatpush2.bf16.msra.mxu0 %v8021
        %8810 = vmatprep.subr.bf16.mxu0 0
        %8811 = vmatpush2.bf16.msra.mxu0 %v8020
        %8812 = vmatprep.mubr.bf16.mxu0 %v6611
        %8813 = vmatmul.mubr.bf16.gmra.mxu0 %v6597
        %v8814 = vpop.f32.mrf.mxu0
        %v8815 = vadd.f32 %v8775, %v8814
        %v8816 = vpop.f32.mrf.mxu0
        %v8817 = vpop.f32.mrf.mxu0
        %v8818 = vpop.f32.mrf.mxu0
        %8819 = vdwg.mxu0
        %8820 = vmatprep.subr.bf16.mxu0 0
        %8821 = vmatpush1.bf16.msra.mxu0 %v8035
        %8822 = vmatprep.subr.bf16.mxu0 0
        %8823 = vmatpush1.bf16.msra.mxu0 %v8034
        %8824 = vmatprep.subr.bf16.mxu0 0
        %8825 = vmatpush1.bf16.msra.mxu0 %v8033
        %8826 = vmatprep.subr.bf16.mxu0 0
        %8827 = vmatpush1.bf16.msra.mxu0 %v8032
        %8828 = vmatprep.subr.bf16.mxu0 0
        %8829 = vmatpush1.bf16.msra.mxu0 %v8031
        %8830 = vmatprep.subr.bf16.mxu0 0
        %8831 = vmatpush1.bf16.msra.mxu0 %v8030
        %8832 = vmatprep.subr.bf16.mxu0 0
        %8833 = vmatpush1.bf16.msra.mxu0 %v8029
        %8834 = vmatprep.subr.bf16.mxu0 0
        %8835 = vmatpush1.bf16.msra.mxu0 %v8028
        %8836 = vmatprep.subr.bf16.mxu0 0
        %8837 = vmatpush2.bf16.msra.mxu0 %v8043
        %8838 = vmatprep.subr.bf16.mxu0 0
        %8839 = vmatpush2.bf16.msra.mxu0 %v8042
        %8840 = vmatprep.subr.bf16.mxu0 0
        %8841 = vmatpush2.bf16.msra.mxu0 %v8041
        %8842 = vmatprep.subr.bf16.mxu0 0
        %8843 = vmatpush2.bf16.msra.mxu0 %v8040
        %8844 = vmatprep.subr.bf16.mxu0 0
        %8845 = vmatpush2.bf16.msra.mxu0 %v8039
        %8846 = vmatprep.subr.bf16.mxu0 0
        %8847 = vmatpush2.bf16.msra.mxu0 %v8038
        %8848 = vmatprep.subr.bf16.mxu0 0
        %8849 = vmatpush2.bf16.msra.mxu0 %v8037
        %8850 = vmatprep.subr.bf16.mxu0 0
        %8851 = vmatpush2.bf16.msra.mxu0 %v8036
        %8852 = vmatprep.mubr.bf16.mxu0 %v6621
        %8853 = vmatmul.mubr.bf16.gmra.mxu0 %v6619
        %v8854 = vpop.f32.mrf.mxu0
        %v8855 = vadd.f32 %v8815, %v8854
        %v8856 = vpop.f32.mrf.mxu0
        %v8857 = vpop.f32.mrf.mxu0
        %v8858 = vpop.f32.mrf.mxu0
        %8859 = vdwg.mxu0
        %8860 = vmatprep.subr.bf16.mxu0 0
        %8861 = vmatpush1.bf16.msra.mxu0 %v8051
        %8862 = vmatprep.subr.bf16.mxu0 0
        %8863 = vmatpush1.bf16.msra.mxu0 %v8050
        %8864 = vmatprep.subr.bf16.mxu0 0
        %8865 = vmatpush1.bf16.msra.mxu0 %v8049
        %8866 = vmatprep.subr.bf16.mxu0 0
        %8867 = vmatpush1.bf16.msra.mxu0 %v8048
        %8868 = vmatprep.subr.bf16.mxu0 0
        %8869 = vmatpush1.bf16.msra.mxu0 %v8047
        %8870 = vmatprep.subr.bf16.mxu0 0
        %8871 = vmatpush1.bf16.msra.mxu0 %v8046
        %8872 = vmatprep.subr.bf16.mxu0 0
        %8873 = vmatpush1.bf16.msra.mxu0 %v8045
        %8874 = vmatprep.subr.bf16.mxu0 0
        %8875 = vmatpush1.bf16.msra.mxu0 %v8044
        %8876 = vmatprep.subr.bf16.mxu0 0
        %8877 = vmatpush2.bf16.msra.mxu0 %v8059
        %8878 = vmatprep.subr.bf16.mxu0 0
        %8879 = vmatpush2.bf16.msra.mxu0 %v8058
        %8880 = vmatprep.subr.bf16.mxu0 0
        %8881 = vmatpush2.bf16.msra.mxu0 %v8057
        %8882 = vmatprep.subr.bf16.mxu0 0
        %8883 = vmatpush2.bf16.msra.mxu0 %v8056
        %8884 = vmatprep.subr.bf16.mxu0 0
        %8885 = vmatpush2.bf16.msra.mxu0 %v8055
        %8886 = vmatprep.subr.bf16.mxu0 0
        %8887 = vmatpush2.bf16.msra.mxu0 %v8054
        %8888 = vmatprep.subr.bf16.mxu0 0
        %8889 = vmatpush2.bf16.msra.mxu0 %v8053
        %8890 = vmatprep.subr.bf16.mxu0 0
        %8891 = vmatpush2.bf16.msra.mxu0 %v8052
        %8892 = vmatprep.mubr.bf16.mxu0 %v6618
        %8893 = vmatmul.mubr.bf16.gmra.mxu0 %v6604
        %v8894 = vpop.f32.mrf.mxu0
        %v8895 = vadd.f32 %v8855, %v8894
        %v8896 = vpop.f32.mrf.mxu0
        %v8897 = vpop.f32.mrf.mxu0
        %v8898 = vpop.f32.mrf.mxu0
        %8899 = vdwg.mxu0
        %8900 = vmatprep.subr.bf16.mxu0 0
        %8901 = vmatpush1.bf16.msra.mxu0 %v8067
        %8902 = vmatprep.subr.bf16.mxu0 0
        %8903 = vmatpush1.bf16.msra.mxu0 %v8066
        %8904 = vmatprep.subr.bf16.mxu0 0
        %8905 = vmatpush1.bf16.msra.mxu0 %v8065
        %8906 = vmatprep.subr.bf16.mxu0 0
        %8907 = vmatpush1.bf16.msra.mxu0 %v8064
        %8908 = vmatprep.subr.bf16.mxu0 0
        %8909 = vmatpush1.bf16.msra.mxu0 %v8063
        %8910 = vmatprep.subr.bf16.mxu0 0
        %8911 = vmatpush1.bf16.msra.mxu0 %v8062
        %8912 = vmatprep.subr.bf16.mxu0 0
        %8913 = vmatpush1.bf16.msra.mxu0 %v8061
        %8914 = vmatprep.subr.bf16.mxu0 0
        %8915 = vmatpush1.bf16.msra.mxu0 %v8060
        %8916 = vmatprep.subr.bf16.mxu0 0
        %8917 = vmatpush2.bf16.msra.mxu0 %v8075
        %8918 = vmatprep.subr.bf16.mxu0 0
        %8919 = vmatpush2.bf16.msra.mxu0 %v8074
        %8920 = vmatprep.subr.bf16.mxu0 0
        %8921 = vmatpush2.bf16.msra.mxu0 %v8073
        %8922 = vmatprep.subr.bf16.mxu0 0
        %8923 = vmatpush2.bf16.msra.mxu0 %v8072
        %8924 = vmatprep.subr.bf16.mxu0 0
        %8925 = vmatpush2.bf16.msra.mxu0 %v8071
        %8926 = vmatprep.subr.bf16.mxu0 0
        %8927 = vmatpush2.bf16.msra.mxu0 %v8070
        %8928 = vmatprep.subr.bf16.mxu0 0
        %8929 = vmatpush2.bf16.msra.mxu0 %v8069
        %8930 = vmatprep.subr.bf16.mxu0 0
        %8931 = vmatpush2.bf16.msra.mxu0 %v8068
        %8932 = vmatprep.mubr.bf16.mxu0 %v6622
        %8933 = vmatmul.mubr.bf16.gmra.mxu0 %v6620
        %v8934 = vpop.f32.mrf.mxu0
        %v8935 = vadd.f32 %v8895, %v8934
        %v8936 = vpop.f32.mrf.mxu0
        %v8937 = vpop.f32.mrf.mxu0
        %v8938 = vpop.f32.mrf.mxu0
        %8939 = vdwg.mxu0
        %8940 = vmatprep.subr.bf16.mxu0 0
        %8941 = vmatpush1.bf16.msra.mxu0 %v8083
        %8942 = vmatprep.subr.bf16.mxu0 0
        %8943 = vmatpush1.bf16.msra.mxu0 %v8082
        %8944 = vmatprep.subr.bf16.mxu0 0
        %8945 = vmatpush1.bf16.msra.mxu0 %v8081
        %8946 = vmatprep.subr.bf16.mxu0 0
        %8947 = vmatpush1.bf16.msra.mxu0 %v8080
        %8948 = vmatprep.subr.bf16.mxu0 0
        %8949 = vmatpush1.bf16.msra.mxu0 %v8079
        %8950 = vmatprep.subr.bf16.mxu0 0
        %8951 = vmatpush1.bf16.msra.mxu0 %v8078
        %8952 = vmatprep.subr.bf16.mxu0 0
        %8953 = vmatpush1.bf16.msra.mxu0 %v8077
        %8954 = vmatprep.subr.bf16.mxu0 0
        %8955 = vmatpush1.bf16.msra.mxu0 %v8076
        %8956 = vmatprep.subr.bf16.mxu0 0
        %8957 = vmatpush2.bf16.msra.mxu0 %v8091
        %8958 = vmatprep.subr.bf16.mxu0 0
        %8959 = vmatpush2.bf16.msra.mxu0 %v8090
        %8960 = vmatprep.subr.bf16.mxu0 0
        %8961 = vmatpush2.bf16.msra.mxu0 %v8089
        %8962 = vmatprep.subr.bf16.mxu0 0
        %8963 = vmatpush2.bf16.msra.mxu0 %v8088
        %8964 = vmatprep.subr.bf16.mxu0 0
        %8965 = vmatpush2.bf16.msra.mxu0 %v8087
        %8966 = vmatprep.subr.bf16.mxu0 0
        %8967 = vmatpush2.bf16.msra.mxu0 %v8086
        %8968 = vmatprep.subr.bf16.mxu0 0
        %8969 = vmatpush2.bf16.msra.mxu0 %v8085
        %8970 = vmatprep.subr.bf16.mxu0 0
        %8971 = vmatpush2.bf16.msra.mxu0 %v8084
        %8972 = vmatprep.mubr.bf16.mxu0 %v6660
        %8973 = vmatmul.mubr.bf16.gmra.mxu0 %v6646
        %v8974 = vpop.f32.mrf.mxu0
        %v8975 = vadd.f32 %v8935, %v8974
        %v8976 = vpop.f32.mrf.mxu0
        %v8977 = vpop.f32.mrf.mxu0
        %v8978 = vpop.f32.mrf.mxu0
        %8979 = vdwg.mxu0
        %8980 = vmatprep.subr.bf16.mxu0 0
        %8981 = vmatpush1.bf16.msra.mxu0 %v8099
        %8982 = vmatprep.subr.bf16.mxu0 0
        %8983 = vmatpush1.bf16.msra.mxu0 %v8098
        %8984 = vmatprep.subr.bf16.mxu0 0
        %8985 = vmatpush1.bf16.msra.mxu0 %v8097
        %8986 = vmatprep.subr.bf16.mxu0 0
        %8987 = vmatpush1.bf16.msra.mxu0 %v8096
        %8988 = vmatprep.subr.bf16.mxu0 0
        %8989 = vmatpush1.bf16.msra.mxu0 %v8095
        %8990 = vmatprep.subr.bf16.mxu0 0
        %8991 = vmatpush1.bf16.msra.mxu0 %v8094
        %8992 = vmatprep.subr.bf16.mxu0 0
        %8993 = vmatpush1.bf16.msra.mxu0 %v8093
        %8994 = vmatprep.subr.bf16.mxu0 0
        %8995 = vmatpush1.bf16.msra.mxu0 %v8092
        %8996 = vmatprep.subr.bf16.mxu0 0
        %8997 = vmatpush2.bf16.msra.mxu0 %v8107
        %8998 = vmatprep.subr.bf16.mxu0 0
        %8999 = vmatpush2.bf16.msra.mxu0 %v8106
        %9000 = vmatprep.subr.bf16.mxu0 0
        %9001 = vmatpush2.bf16.msra.mxu0 %v8105
        %9002 = vmatprep.subr.bf16.mxu0 0
        %9003 = vmatpush2.bf16.msra.mxu0 %v8104
        %9004 = vmatprep.subr.bf16.mxu0 0
        %9005 = vmatpush2.bf16.msra.mxu0 %v8103
        %9006 = vmatprep.subr.bf16.mxu0 0
        %9007 = vmatpush2.bf16.msra.mxu0 %v8102
        %9008 = vmatprep.subr.bf16.mxu0 0
        %9009 = vmatpush2.bf16.msra.mxu0 %v8101
        %9010 = vmatprep.subr.bf16.mxu0 0
        %9011 = vmatpush2.bf16.msra.mxu0 %v8100
        %9012 = vmatprep.mubr.bf16.mxu0 %v6670
        %9013 = vmatmul.mubr.bf16.gmra.mxu0 %v6668
        %v9014 = vpop.f32.mrf.mxu0
        %v9015 = vadd.f32 %v8975, %v9014
        %v9016 = vpop.f32.mrf.mxu0
        %v9017 = vpop.f32.mrf.mxu0
        %v9018 = vpop.f32.mrf.mxu0
        %9019 = vdwg.mxu0
        %9020 = vmatprep.subr.bf16.mxu0 0
        %9021 = vmatpush1.bf16.msra.mxu0 %v8115
        %9022 = vmatprep.subr.bf16.mxu0 0
        %9023 = vmatpush1.bf16.msra.mxu0 %v8114
        %9024 = vmatprep.subr.bf16.mxu0 0
        %9025 = vmatpush1.bf16.msra.mxu0 %v8113
        %9026 = vmatprep.subr.bf16.mxu0 0
        %9027 = vmatpush1.bf16.msra.mxu0 %v8112
        %9028 = vmatprep.subr.bf16.mxu0 0
        %9029 = vmatpush1.bf16.msra.mxu0 %v8111
        %9030 = vmatprep.subr.bf16.mxu0 0
        %9031 = vmatpush1.bf16.msra.mxu0 %v8110
        %9032 = vmatprep.subr.bf16.mxu0 0
        %9033 = vmatpush1.bf16.msra.mxu0 %v8109
        %9034 = vmatprep.subr.bf16.mxu0 0
        %9035 = vmatpush1.bf16.msra.mxu0 %v8108
        %9036 = vmatprep.subr.bf16.mxu0 0
        %9037 = vmatpush2.bf16.msra.mxu0 %v8123
        %9038 = vmatprep.subr.bf16.mxu0 0
        %9039 = vmatpush2.bf16.msra.mxu0 %v8122
        %9040 = vmatprep.subr.bf16.mxu0 0
        %9041 = vmatpush2.bf16.msra.mxu0 %v8121
        %9042 = vmatprep.subr.bf16.mxu0 0
        %9043 = vmatpush2.bf16.msra.mxu0 %v8120
        %9044 = vmatprep.subr.bf16.mxu0 0
        %9045 = vmatpush2.bf16.msra.mxu0 %v8119
        %9046 = vmatprep.subr.bf16.mxu0 0
        %9047 = vmatpush2.bf16.msra.mxu0 %v8118
        %9048 = vmatprep.subr.bf16.mxu0 0
        %9049 = vmatpush2.bf16.msra.mxu0 %v8117
        %9050 = vmatprep.subr.bf16.mxu0 0
        %9051 = vmatpush2.bf16.msra.mxu0 %v8116
        %9052 = vmatprep.mubr.bf16.mxu0 %v6667
        %9053 = vmatmul.mubr.bf16.gmra.mxu0 %v6653
        %v9054 = vpop.f32.mrf.mxu0
        %v9055 = vadd.f32 %v9015, %v9054
        %v9056 = vpop.f32.mrf.mxu0
        %v9057 = vpop.f32.mrf.mxu0
        %v9058 = vpop.f32.mrf.mxu0
        %9059 = vdwg.mxu0
        %9060 = vmatprep.subr.bf16.mxu0 0
        %9061 = vmatpush1.bf16.msra.mxu0 %v8131
        %9062 = vmatprep.subr.bf16.mxu0 0
        %9063 = vmatpush1.bf16.msra.mxu0 %v8130
        %9064 = vmatprep.subr.bf16.mxu0 0
        %9065 = vmatpush1.bf16.msra.mxu0 %v8129
        %9066 = vmatprep.subr.bf16.mxu0 0
        %9067 = vmatpush1.bf16.msra.mxu0 %v8128
        %9068 = vmatprep.subr.bf16.mxu0 0
        %9069 = vmatpush1.bf16.msra.mxu0 %v8127
        %9070 = vmatprep.subr.bf16.mxu0 0
        %9071 = vmatpush1.bf16.msra.mxu0 %v8126
        %9072 = vmatprep.subr.bf16.mxu0 0
        %9073 = vmatpush1.bf16.msra.mxu0 %v8125
        %9074 = vmatprep.subr.bf16.mxu0 0
        %9075 = vmatpush1.bf16.msra.mxu0 %v8124
        %9076 = vmatprep.subr.bf16.mxu0 0
        %9077 = vmatpush2.bf16.msra.mxu0 %v8139
        %9078 = vmatprep.subr.bf16.mxu0 0
        %9079 = vmatpush2.bf16.msra.mxu0 %v8138
        %9080 = vmatprep.subr.bf16.mxu0 0
        %9081 = vmatpush2.bf16.msra.mxu0 %v8137
        %9082 = vmatprep.subr.bf16.mxu0 0
        %9083 = vmatpush2.bf16.msra.mxu0 %v8136
        %9084 = vmatprep.subr.bf16.mxu0 0
        %9085 = vmatpush2.bf16.msra.mxu0 %v8135
        %9086 = vmatprep.subr.bf16.mxu0 0
        %9087 = vmatpush2.bf16.msra.mxu0 %v8134
        %9088 = vmatprep.subr.bf16.mxu0 0
        %9089 = vmatpush2.bf16.msra.mxu0 %v8133
        %9090 = vmatprep.subr.bf16.mxu0 0
        %9091 = vmatpush2.bf16.msra.mxu0 %v8132
        %9092 = vmatprep.mubr.bf16.mxu0 %v6671
        %9093 = vmatmul.mubr.bf16.gmra.mxu0 %v6669
        %v9094 = vpop.f32.mrf.mxu0
        %v9095 = vadd.f32 %v9055, %v9094
        %v9096 = vpop.f32.mrf.mxu0
        %v9097 = vpop.f32.mrf.mxu0
        %v9098 = vpop.f32.mrf.mxu0
        %9099 = vdwg.mxu0
        %9100 = vmatprep.subr.bf16.mxu0 0
        %9101 = vmatpush1.bf16.msra.mxu0 %v8147
        %9102 = vmatprep.subr.bf16.mxu0 0
        %9103 = vmatpush1.bf16.msra.mxu0 %v8146
        %9104 = vmatprep.subr.bf16.mxu0 0
        %9105 = vmatpush1.bf16.msra.mxu0 %v8145
        %9106 = vmatprep.subr.bf16.mxu0 0
        %9107 = vmatpush1.bf16.msra.mxu0 %v8144
        %9108 = vmatprep.subr.bf16.mxu0 0
        %9109 = vmatpush1.bf16.msra.mxu0 %v8143
        %9110 = vmatprep.subr.bf16.mxu0 0
        %9111 = vmatpush1.bf16.msra.mxu0 %v8142
        %9112 = vmatprep.subr.bf16.mxu0 0
        %9113 = vmatpush1.bf16.msra.mxu0 %v8141
        %9114 = vmatprep.subr.bf16.mxu0 0
        %9115 = vmatpush1.bf16.msra.mxu0 %v8140
        %9116 = vmatprep.subr.bf16.mxu0 0
        %9117 = vmatpush2.bf16.msra.mxu0 %v8155
        %9118 = vmatprep.subr.bf16.mxu0 0
        %9119 = vmatpush2.bf16.msra.mxu0 %v8154
        %9120 = vmatprep.subr.bf16.mxu0 0
        %9121 = vmatpush2.bf16.msra.mxu0 %v8153
        %9122 = vmatprep.subr.bf16.mxu0 0
        %9123 = vmatpush2.bf16.msra.mxu0 %v8152
        %9124 = vmatprep.subr.bf16.mxu0 0
        %9125 = vmatpush2.bf16.msra.mxu0 %v8151
        %9126 = vmatprep.subr.bf16.mxu0 0
        %9127 = vmatpush2.bf16.msra.mxu0 %v8150
        %9128 = vmatprep.subr.bf16.mxu0 0
        %9129 = vmatpush2.bf16.msra.mxu0 %v8149
        %9130 = vmatprep.subr.bf16.mxu0 0
        %9131 = vmatpush2.bf16.msra.mxu0 %v8148
        %9132 = vmatprep.mubr.bf16.mxu0 %v6693
        %9133 = vmatmul.mubr.bf16.gmra.mxu0 %v6686
        %v9134 = vpop.f32.mrf.mxu0
        %v9135 = vadd.f32 %v9095, %v9134
        %v9136 = vpop.f32.mrf.mxu0
        %v9137 = vpop.f32.mrf.mxu0
        %v9138 = vpop.f32.mrf.mxu0
        %9139 = vdwg.mxu0
        %9140 = vmatprep.subr.bf16.mxu0 0
        %9141 = vmatpush1.bf16.msra.mxu0 %v8163
        %9142 = vmatprep.subr.bf16.mxu0 0
        %9143 = vmatpush1.bf16.msra.mxu0 %v8162
        %9144 = vmatprep.subr.bf16.mxu0 0
        %9145 = vmatpush1.bf16.msra.mxu0 %v8161
        %9146 = vmatprep.subr.bf16.mxu0 0
        %9147 = vmatpush1.bf16.msra.mxu0 %v8160
        %9148 = vmatprep.subr.bf16.mxu0 0
        %9149 = vmatpush1.bf16.msra.mxu0 %v8159
        %9150 = vmatprep.subr.bf16.mxu0 0
        %9151 = vmatpush1.bf16.msra.mxu0 %v8158
        %9152 = vmatprep.subr.bf16.mxu0 0
        %9153 = vmatpush1.bf16.msra.mxu0 %v8157
        %9154 = vmatprep.subr.bf16.mxu0 0
        %9155 = vmatpush1.bf16.msra.mxu0 %v8156
        %9156 = vmatprep.subr.bf16.mxu0 0
        %9157 = vmatpush2.bf16.msra.mxu0 %v8171
        %9158 = vmatprep.subr.bf16.mxu0 0
        %9159 = vmatpush2.bf16.msra.mxu0 %v8170
        %9160 = vmatprep.subr.bf16.mxu0 0
        %9161 = vmatpush2.bf16.msra.mxu0 %v8169
        %9162 = vmatprep.subr.bf16.mxu0 0
        %9163 = vmatpush2.bf16.msra.mxu0 %v8168
        %9164 = vmatprep.subr.bf16.mxu0 0
        %9165 = vmatpush2.bf16.msra.mxu0 %v8167
        %9166 = vmatprep.subr.bf16.mxu0 0
        %9167 = vmatpush2.bf16.msra.mxu0 %v8166
        %9168 = vmatprep.subr.bf16.mxu0 0
        %9169 = vmatpush2.bf16.msra.mxu0 %v8165
        %9170 = vmatprep.subr.bf16.mxu0 0
        %9171 = vmatpush2.bf16.msra.mxu0 %v8164
        %9172 = vmatprep.mubr.bf16.mxu0 %v6695
        %9173 = vmatmul.mubr.bf16.gmra.mxu0 %v6694
        %v9174 = vpop.f32.mrf.mxu0
        %v9175 = vadd.f32 %v9135, %v9174
        %v9176 = vpop.f32.mrf.mxu0
        %v9177 = vpop.f32.mrf.mxu0
        %v9178 = vpop.f32.mrf.mxu0
        %9179 = vdwg.mxu0
        %v9180 = vmax.f32 %v9175, 0.0
        %v9181 = vpack.c.bf16 %v9180, %v9180
        %v9182 = vld [vmem:[%s7] sm:$0xf]
        %v9183 = vld [vmem:[%s7 + $0x4] sm:$0xf]
        %v9184 = vld [vmem:[%s7 + $0x8] sm:$0xf]
        %v9185 = vld [vmem:[%s7 + $0xc] sm:$0xf]
        %v9186 = vld [vmem:[%s7 + $0x10] sm:$0xf]
        %v9187 = vld [vmem:[%s7 + $0x14] sm:$0xf]
        %v9188 = vld [vmem:[%s7 + $0x18] sm:$0xf]
        %v9189 = vld [vmem:[%s7 + $0x1c] sm:$0xf]
        %v9190 = vld [vmem:[%s7 + $0x20] sm:$0xf]
        %v9191 = vld [vmem:[%s7 + $0x24] sm:$0xf]
        %v9192 = vld [vmem:[%s7 + $0x28] sm:$0xf]
        %v9193 = vld [vmem:[%s7 + $0x2c] sm:$0xf]
        %v9194 = vld [vmem:[%s7 + $0x30] sm:$0xf]
        %v9195 = vld [vmem:[%s7 + $0x34] sm:$0xf]
        %v9196 = vld [vmem:[%s7 + $0x38] sm:$0xf]
        %v9197 = vld [vmem:[%s7 + $0x3c] sm:$0xf]
        %v9198 = vld [vmem:[%s8] sm:$0x1]
        %v9215 = vunpack.c.l.b16 %v9182
        %v9216 = vunpack.c.l.b16 %v9183
        %v9217 = vunpack.c.l.b16 %v9184
        %v9218 = vunpack.c.l.b16 %v9185
        %v9219 = vunpack.c.l.b16 %v9186
        %v9220 = vunpack.c.l.b16 %v9187
        %v9221 = vunpack.c.l.b16 %v9188
        %v9222 = vunpack.c.l.b16 %v9189
        %v9223 = vunpack.c.l.b16 %v9190
        %v9224 = vunpack.c.l.b16 %v9191
        %v9225 = vunpack.c.l.b16 %v9192
        %v9226 = vunpack.c.l.b16 %v9193
        %v9227 = vunpack.c.l.b16 %v9194
        %v9228 = vunpack.c.l.b16 %v9195
        %v9229 = vunpack.c.l.b16 %v9196
        %v9230 = vunpack.c.l.b16 %v9197
        %v9231 = vpack.c.b16 %v9216, %v9215
        %v9232 = vpack.c.b16 %v9218, %v9217
        %v9233 = vpack.c.b16 %v9220, %v9219
        %v9234 = vpack.c.b16 %v9222, %v9221
        %v9235 = vpack.c.b16 %v9224, %v9223
        %v9236 = vpack.c.b16 %v9226, %v9225
        %v9237 = vpack.c.b16 %v9228, %v9227
        %v9238 = vpack.c.b16 %v9230, %v9229
        %9247 = vmatprep.subr.bf16.mxu0 0
        %9248 = vmatpush1.bf16.msra.mxu0 %v9238
        %9249 = vmatprep.subr.bf16.mxu0 0
        %9250 = vmatpush1.bf16.msra.mxu0 %v9237
        %9251 = vmatprep.subr.bf16.mxu0 0
        %9252 = vmatpush1.bf16.msra.mxu0 %v9236
        %9253 = vmatprep.subr.bf16.mxu0 0
        %9254 = vmatpush1.bf16.msra.mxu0 %v9235
        %9255 = vmatprep.subr.bf16.mxu0 0
        %9256 = vmatpush1.bf16.msra.mxu0 %v9234
        %9257 = vmatprep.subr.bf16.mxu0 0
        %9258 = vmatpush1.bf16.msra.mxu0 %v9233
        %9259 = vmatprep.subr.bf16.mxu0 0
        %9260 = vmatpush1.bf16.msra.mxu0 %v9232
        %9261 = vmatprep.subr.bf16.mxu0 0
        %9262 = vmatpush1.bf16.msra.mxu0 %v9231
        %9263 = vmatprep.subr.bf16.mxu0 0
        %9264 = vmatpush2.bf16.msra.mxu0 0
        %9265 = vmatprep.subr.bf16.mxu0 0
        %9266 = vmatpush2.bf16.msra.mxu0 0
        %9267 = vmatprep.subr.bf16.mxu0 0
        %9268 = vmatpush2.bf16.msra.mxu0 0
        %9269 = vmatprep.subr.bf16.mxu0 0
        %9270 = vmatpush2.bf16.msra.mxu0 0
        %9271 = vmatprep.subr.bf16.mxu0 0
        %9272 = vmatpush2.bf16.msra.mxu0 0
        %9273 = vmatprep.subr.bf16.mxu0 0
        %9274 = vmatpush2.bf16.msra.mxu0 0
        %9275 = vmatprep.subr.bf16.mxu0 0
        %9276 = vmatpush2.bf16.msra.mxu0 0
        %9277 = vmatprep.subr.bf16.mxu0 0
        %9278 = vmatpush2.bf16.msra.mxu0 0
        %9279 = vmatprep.mubr.bf16.mxu0 0
        %9280 = vmatmul.mubr.bf16.gmra.mxu0 %v9181
        %v9281 = vpop.f32.mrf.mxu0
        %v9282 = vadd.f32 %v9198, %v9281
        %v9283 = vpop.f32.mrf.mxu0
        %v9284 = vpop.f32.mrf.mxu0
        %v9285 = vpop.f32.mrf.mxu0
        %9286 = vdwg.mxu0
        %9287 = vst [vmem:[%s324] sm:$0x1] %v9282
        %s9288 = sand.u32 %s225, 1
        %s9289 = scalar_lea.sflag [#allocation5], %s9288
        %s9290 = sand.u32 %s225, 1
        %s9291 = scalar_lea.vmem [#allocation4], %s9290
        // Predicated region
        $region57: #{model_forward.1} parent=55 // pred_check
          %p9292 = pneg %p235
        $region58: #{model_forward.1} parent=55 // pred_check_branch
          %9294 = sbr.rel (%p9292) target = $region60
        $region59: #{model_forward.1} parent=55 // pred_region
          %s9296 = ssub.s32 16, 16
          %9297 = vsyncadd %s9289, %s9296
          %s9298 = smul.addr %s23, 16
          %s9299 = scalar_lea.hbm %s9, %s9298
          %s9301 = sshll.u32 %s9291, 4
          %s9302 = int_to_ptr.vmem [resolvable:$true] %s9301
          %9304 = dma.vmem_to_hbm [thread:$0]  %s9302, 16, %s9299, %s9289
        $region60: #{model_forward.1} parent=55 // pred_fallthru
          _
      $region56: #{model_forward.1} parent=5 // pred_fallthru
        _
      %p9305 = scmp.le.s32.totalorder 2, %s18
      // Predicated region
      $region61: #{model_forward.1} parent=5 // pred_check
        %p9306 = pneg %p9305
      $region62: #{model_forward.1} parent=5 // pred_check_branch
        %9308 = sbr.rel (%p9306) target = $region64
      $region63: #{model_forward.1} parent=5 // pred_region
        %s9309 = ssub.s32 %s18, 2
        // Predicated region
        $region65: #{model_forward.1} parent=63 // pred_check
          %p9310 = pneg %p241
        $region66: #{model_forward.1} parent=63 // pred_check_branch
          %9312 = sbr.rel (%p9310) target = $region68
        $region67: #{model_forward.1} parent=63 // pred_region
          %s9313 = sand.u32 %s226, 1
          %s9314 = scalar_lea.sflag [#allocation5], %s9313
          %s9315 = sand.u32 %s226, 1
          %s9316 = scalar_lea.vmem [#allocation4], %s9315
          %9317 = dma.done %s9314, 16
        $region68: #{model_forward.1} parent=63 // pred_fallthru
          _
      $region64: #{model_forward.1} parent=5 // pred_fallthru
        _
    $region6: #{model_forward.1} parent=1 // loop_footer
      %s22 = sadd.s32 1, %s18
    $region7: #{model_forward.1} parent=1 // loop_footer_branch
      %17 = sbr.rel target = $region3
    $region8: #{model_forward.1} parent=1 // loop_exit
      _
    %9318 = vsyncpa [#allocation5], 1
    %s9319 = scalar_lea.sflag [#allocation5], 1
    %9320 = vsyncpa %s9319, 1

</llo_original>
